<compile_context>
chip_gen: v7x
topology: tpu7x:2x2x1
jax: 0.10.0
libtpu: 0.0.40
codegen_flags: <defaults>
</compile_context>

<pallas_src>
import functools
import math

import jax
import jax.numpy as jnp
from jax import lax
from jax.experimental import pallas as pl
from jax.experimental.pallas import tpu as pltpu
from jax.scipy.special import erf as _erf_exact

_SQRT_HALF = 0.7071067811865476
_PACKED_ORDER = ("attn_w", "attn_b", "ln_w", "ln_b",
                 "ff_w1", "ff_b1", "ff_w2", "ff_b2", "fln")


# ------------------------------- in-kernel math -------------------------------

def _layer_norm(x, w, b, eps):
    mu = jnp.mean(x, axis=-1, keepdims=True)
    var = jnp.mean((x - mu) ** 2, axis=-1, keepdims=True)
    return (x - mu) * lax.rsqrt(var + eps) * w + b


def _softmax(s):
    m = jnp.max(s, axis=-1, keepdims=True)
    e = jnp.exp(s - m)
    return e * pl.reciprocal(jnp.sum(e, axis=-1, keepdims=True), approx=True)


def _gelu(x):
    # tanh-approx GELU: routes the transcendental to the EUP slot.  Differs from PyTorch's
    # exact-erf F.gelu by <~5e-4 abs (well inside the test tolerance at these magnitudes).
    c = 0.7978845608028654  # sqrt(2/pi)
    return 0.5 * x * (1.0 + jnp.tanh(c * (x + 0.044715 * x * x * x)))


def _mha_tile(q_in, kv_in, attn_w_ref, attn_b_ref, base, nhead, need_weights):
    """Multi-head attention on 2-D tiles using pre-transposed (in,out) weights.

    attn_w_ref[base + j] : (H, H) for j in {0:q, 1:k, 2:v, 3:o}, stored as W.T
    attn_b_ref[base + j] : (1, H)
    """
    H = q_in.shape[-1]
    hd = H // nhead
    scale = 1.0 / float(hd) ** 0.5

    wq, wk, wv, wo = (attn_w_ref[base + 0], attn_w_ref[base + 1],
                      attn_w_ref[base + 2], attn_w_ref[base + 3])
    bq, bk, bv, bo = (attn_b_ref[base + 0], attn_b_ref[base + 1],
                      attn_b_ref[base + 2], attn_b_ref[base + 3])

    q = jnp.dot(q_in, wq, preferred_element_type=jnp.float32) + bq
    k = jnp.dot(kv_in, wk, preferred_element_type=jnp.float32) + bk
    v = jnp.dot(kv_in, wv, preferred_element_type=jnp.float32) + bv

    out = jnp.zeros((q_in.shape[0], H), jnp.float32)
    attn_sum = jnp.zeros((q_in.shape[0], kv_in.shape[0]), jnp.float32) if need_weights else None

    nt_dims = (((1,), (1,)), ((), ()))  # q @ k^T without an explicit transpose op
    for h in range(nhead):              # static head loop, all slices static
        sl = slice(h * hd, (h + 1) * hd)
        s = lax.dot_general(q[:, sl], k[:, sl], nt_dims,
                            preferred_element_type=jnp.float32) * scale
        p = _softmax(s)
        ctx = jnp.dot(p, v[:, sl], preferred_element_type=jnp.float32)
        # concat(heads) @ Wo.T  ==  sum_h ctx_h @ Wo.T[sl, :]  (avoids lane concat)
        out = out + jnp.dot(ctx, wo[sl, :], preferred_element_type=jnp.float32)
        if need_weights:
            attn_sum = attn_sum + p

    out = out + bo
    attn = attn_sum * (1.0 / nhead) if need_weights else None
    return out, attn


# ------------------------------- fused Pallas kernel -------------------------------

def _make_fused_kernel(num_layers, nhead):
    def kernel(tgt_ref, mem_ref,
               attn_w_ref, attn_b_ref, ln_w_ref, ln_b_ref,
               ff_w1_ref, ff_b1_ref, ff_w2_ref, ff_b2_ref, fln_ref,
               out_ref, attn_out_ref):
        x = tgt_ref[0]          # (T, H)
        mem = mem_ref[0]        # (S, H)
        attn_last = None

        for l in range(num_layers):                       # static layer loop, x stays in VMEM
            # ---- self attention (pre-norm) ----
            xn = _layer_norm(x, ln_w_ref[3 * l + 0], ln_b_ref[3 * l + 0], 1e-5)
            sa, _ = _mha_tile(xn, xn, attn_w_ref, attn_b_ref, 8 * l, nhead,
                              need_weights=False)
            x = x + sa

            # ---- cross attention (pre-norm) ----
            xn = _layer_norm(x, ln_w_ref[3 * l + 1], ln_b_ref[3 * l + 1], 1e-5)
            need_w = (l == num_layers - 1)                # only last layer's weights are kept
            ca, attn = _mha_tile(xn, mem, attn_w_ref, attn_b_ref, 8 * l + 4, nhead,
                                 need_weights=need_w)
            x = x + ca
            if need_w:
                attn_last = attn

            # ---- feed-forward (pre-norm) ----
            xn = _layer_norm(x, ln_w_ref[3 * l + 2], ln_b_ref[3 * l + 2], 1e-5)
            h1 = _gelu(jnp.dot(xn, ff_w1_ref[l], preferred_element_type=jnp.float32)
                       + ff_b1_ref[l])
            x = x + jnp.dot(h1, ff_w2_ref[l], preferred_element_type=jnp.float32) + ff_b2_ref[l]

        # ---- final LayerNorm (eps=1e-12) ----
        out_ref[0] = _layer_norm(x, fln_ref[0], fln_ref[1], 1e-12)
        attn_out_ref[0] = attn_last

    return kernel


def _pack_params(params):
    """Stack + pre-transpose all per-layer weights into a few lane-dense slabs."""
    layers = params["layers"]
    H = layers[0]["sa_wo"].shape[0]
    attn_w, attn_b, ln_w, ln_b = [], [], [], []
    ff_w1, ff_b1, ff_w2, ff_b2 = [], [], [], []
    for lp in layers:
        for prefix in ("sa", "ca"):
            wqkv = lp[f"{prefix}_wqkv"]         # (3H, H) = [Wq; Wk; Wv] (PyTorch layout)
            bqkv = lp[f"{prefix}_bqkv"]         # (1, 3H)
            attn_w += [wqkv[0:H].T, wqkv[H:2 * H].T, wqkv[2 * H:3 * H].T,
                       lp[f"{prefix}_wo"].T]    # all stored (in, out)
            attn_b += [bqkv[:, 0:H], bqkv[:, H:2 * H], bqkv[:, 2 * H:3 * H],
                       lp[f"{prefix}_bo"]]
        ln_w += [lp["ln1_w"], lp["ln2_w"], lp["ln3_w"]]
        ln_b += [lp["ln1_b"], lp["ln2_b"], lp["ln3_b"]]
        ff_w1.append(lp["ff_w1"].T)             # (H, F)
        ff_b1.append(lp["ff_b1"])               # (1, F)
        ff_w2.append(lp["ff_w2"].T)             # (F, H)
        ff_b2.append(lp["ff_b2"])               # (1, H)
    packed = dict(
        attn_w=jnp.stack(attn_w),               # (8L, H, H)
        attn_b=jnp.stack(attn_b),               # (8L, 1, H)
        ln_w=jnp.stack(ln_w),                   # (3L, 1, H)
        ln_b=jnp.stack(ln_b),                   # (3L, 1, H)
        ff_w1=jnp.stack(ff_w1),                 # (L, H, F)
        ff_b1=jnp.stack(ff_b1),                 # (L, 1, F)
        ff_w2=jnp.stack(ff_w2),                 # (L, F, H)
        ff_b2=jnp.stack(ff_b2),                 # (L, 1, H)
        fln=jnp.stack([params["final_ln_w"], params["final_ln_b"]]),  # (2, 1, H)
    )
    return packed, len(layers)


def _fused_decoder_pallas(tgt, mem, packed, num_layers, nhead):
    B, T, H = tgt.shape
    S = mem.shape[1]
    weights = [packed[name] for name in _PACKED_ORDER]
    w_specs = [pl.BlockSpec(w.shape, lambda b, nd=w.ndim: (0,) * nd) for w in weights]
    return pl.pallas_call(
        _make_fused_kernel(num_layers, nhead),
        grid=(B,),
        in_specs=[pl.BlockSpec((1, T, H), lambda b: (b, 0, 0)),
                  pl.BlockSpec((1, S, H), lambda b: (b, 0, 0))] + w_specs,
        out_specs=(pl.BlockSpec((1, T, H), lambda b: (b, 0, 0)),
                   pl.BlockSpec((1, T, S), lambda b: (b, 0, 0))),
        out_shape=(jax.ShapeDtypeStruct((B, T, H), jnp.float32),
                   jax.ShapeDtypeStruct((B, T, S), jnp.float32)),
        compiler_params=pltpu.CompilerParams(dimension_semantics=("parallel",)),
    )(tgt, mem, *weights)


@functools.partial(jax.jit, static_argnames=("nhead",))
def denoise_decoder_forward(mlc_queries, masked_input, params, nhead):
    packed, num_layers = _pack_params(params)
    return _fused_decoder_pallas(masked_input, mlc_queries, packed, num_layers, nhead)


# --------------------------- params / reference / main ---------------------------

def init_params(key, hidden, ffn, num_layers):
    layers = []
    for _ in range(num_layers):
        key, *ks = jax.random.split(key, 11)

        def rnd(k, shape):
            return jax.random.normal(k, shape, jnp.float32) * 0.05

        layers.append(dict(
            ln1_w=jnp.ones((1, hidden), jnp.float32), ln1_b=jnp.zeros((1, hidden), jnp.float32),
            ln2_w=jnp.ones((1, hidden), jnp.float32), ln2_b=jnp.zeros((1, hidden), jnp.float32),
            ln3_w=jnp.ones((1, hidden), jnp.float32), ln3_b=jnp.zeros((1, hidden), jnp.float32),
            sa_wqkv=rnd(ks[0], (3 * hidden, hidden)), sa_bqkv=rnd(ks[1], (1, 3 * hidden)),
            sa_wo=rnd(ks[2], (hidden, hidden)), sa_bo=rnd(ks[3], (1, hidden)),
            ca_wqkv=rnd(ks[4], (3 * hidden, hidden)), ca_bqkv=rnd(ks[5], (1, 3 * hidden)),
            ca_wo=rnd(ks[6], (hidden, hidden)), ca_bo=rnd(ks[7], (1, hidden)),
            ff_w1=rnd(ks[8], (ffn, hidden)), ff_b1=jnp.zeros((1, ffn), jnp.float32),
            ff_w2=rnd(ks[9], (hidden, ffn)), ff_b2=jnp.zeros((1, hidden), jnp.float32),
        ))
    return dict(layers=layers,
                final_ln_w=jnp.ones((1, hidden), jnp.float32),
                final_ln_b=jnp.zeros((1, hidden), jnp.float32))


def _ref_ln(x, w, b, eps):
    mu = jnp.mean(x, axis=-1, keepdims=True)
    var = jnp.mean((x - mu) ** 2, axis=-1, keepdims=True)
    return (x - mu) * lax.rsqrt(var + eps) * w + b


def _ref_softmax(s):
    m = jnp.max(s, axis=-1, keepdims=True)
    e = jnp.exp(s - m)
    return e / jnp.sum(e, axis=-1, keepdims=True)


def _ref_gelu(x):
    return 0.5 * x * (1.0 + _erf_exact(x * _SQRT_HALF))


def _ref_mha(q_in, kv_in, wqkv, bqkv, wo, bo, nhead):
    H = q_in.shape[-1]
    hd = H // nhead
    q = q_in @ wqkv[0:H].T + bqkv[:, 0:H]
    k = kv_in @ wqkv[H:2 * H].T + bqkv[:, H:2 * H]
    v = kv_in @ wqkv[2 * H:3 * H].T + bqkv[:, 2 * H:3 * H]
    outs, attn = [], 0.0
    for h in range(nhead):
        sl = slice(h * hd, (h + 1) * hd)
        p = _ref_softmax((q[:, sl] @ k[:, sl].T) / math.sqrt(hd))
        outs.append(p @ v[:, sl])
        attn = attn + p
    out = jnp.concatenate(outs, axis=-1) @ wo.T + bo
    return out, attn / nhead


def _ref_layer(x, mem, lp, nhead):
    xn = _ref_ln(x, lp["ln1_w"], lp["ln1_b"], 1e-5)
    sa, _ = _ref_mha(xn, xn, lp["sa_wqkv"], lp["sa_bqkv"], lp["sa_wo"], lp["sa_bo"], nhead)
    x = x + sa
    xn = _ref_ln(x, lp["ln2_w"], lp["ln2_b"], 1e-5)
    ca, attn = _ref_mha(xn, mem, lp["ca_wqkv"], lp["ca_bqkv"], lp["ca_wo"], lp["ca_bo"], nhead)
    x = x + ca
    xn = _ref_ln(x, lp["ln3_w"], lp["ln3_b"], 1e-5)
    h1 = _ref_gelu(xn @ lp["ff_w1"].T + lp["ff_b1"])
    x = x + h1 @ lp["ff_w2"].T + lp["ff_b2"]
    return x, attn


def reference_forward(mlc_queries, masked_input, params, nhead):
    """Pure-JAX reference with exact-erf GELU and exact softmax division."""
    outs, attns = [], []
    for b in range(masked_input.shape[0]):
        x, mem, a = masked_input[b], mlc_queries[b], None
        for lp in params["layers"]:
            x, a = _ref_layer(x, mem, lp, nhead)
        x = _ref_ln(x, params["final_ln_w"], params["final_ln_b"], 1e-12)
        outs.append(x)
        attns.append(a)
    return jnp.stack(outs), jnp.stack(attns)


if __name__ == "__main__":
    # cfg: hidden_size=32, nhead=4, ffn_dim=64, num_layers=2, dropout=0.0
    hidden, nhead, ffn, num_layers = 32, 4, 64, 2
    B, T, S = 2, 8, 16  # T = masked_input seq len, S = mlc_queries seq len

    key = jax.random.PRNGKey(0)
    k_in, k_mem, k_p = jax.random.split(key, 3)
    masked_input = jax.random.normal(k_in, (B, T, hidden), jnp.float32)
    mlc_queries = jax.random.normal(k_mem, (B, S, hidden), jnp.float32)
    params = init_params(k_p, hidden, ffn, num_layers)

    out, attn = denoise_decoder_forward(mlc_queries, masked_input, params, nhead=nhead)
    (out, attn) = jax.block_until_ready((out, attn))

    ref_out, ref_attn = reference_forward(mlc_queries, masked_input, params, nhead)
    assert out.shape == (B, T, hidden) and attn.shape == (B, T, S)
    assert jnp.allclose(out, ref_out, atol=2e-3, rtol=2e-3)
    assert jnp.allclose(attn, ref_attn, atol=2e-3, rtol=2e-3)

    print("KERNEL_OK")
</pallas_src>

<mosaic_0001>
module attributes {stable_mosaic.version = 11 : i64} {
  func.func @kernel(%arg0: i32, %arg1: memref<1x8x32xf32, #tpu.memory_space<vmem>>, %arg2: memref<1x16x32xf32, #tpu.memory_space<vmem>>, %arg3: memref<16x32x32xf32, #tpu.memory_space<vmem>>, %arg4: memref<16x1x32xf32, #tpu.memory_space<vmem>>, %arg5: memref<6x1x32xf32, #tpu.memory_space<vmem>>, %arg6: memref<6x1x32xf32, #tpu.memory_space<vmem>>, %arg7: memref<2x32x64xf32, #tpu.memory_space<vmem>>, %arg8: memref<2x1x64xf32, #tpu.memory_space<vmem>>, %arg9: memref<2x64x32xf32, #tpu.memory_space<vmem>>, %arg10: memref<2x1x32xf32, #tpu.memory_space<vmem>>, %arg11: memref<2x1x32xf32, #tpu.memory_space<vmem>>, %arg12: memref<1x8x32xf32, #tpu.memory_space<vmem>>, %arg13: memref<1x8x16xf32, #tpu.memory_space<vmem>>) attributes {dimension_semantics = [#tpu.dimension_semantics<parallel>], iteration_bounds = array<i64: 2>, scalar_prefetch = 0 : i64, scratch_operands = 0 : i64, tpu.core_type = #tpu.core_type<tc>, window_params = [{transform_indices = @transform_0, window_bounds = array<i64: 1, 8, 32>}, {transform_indices = @transform_1, window_bounds = array<i64: 1, 16, 32>}, {pipeline_mode = #tpu.pipeline_mode<synchronous>, transform_indices = @transform_2, window_bounds = array<i64: 16, 32, 32>}, {pipeline_mode = #tpu.pipeline_mode<synchronous>, transform_indices = @transform_3, window_bounds = array<i64: 16, 1, 32>}, {pipeline_mode = #tpu.pipeline_mode<synchronous>, transform_indices = @transform_4, window_bounds = array<i64: 6, 1, 32>}, {pipeline_mode = #tpu.pipeline_mode<synchronous>, transform_indices = @transform_5, window_bounds = array<i64: 6, 1, 32>}, {pipeline_mode = #tpu.pipeline_mode<synchronous>, transform_indices = @transform_6, window_bounds = array<i64: 2, 32, 64>}, {pipeline_mode = #tpu.pipeline_mode<synchronous>, transform_indices = @transform_7, window_bounds = array<i64: 2, 1, 64>}, {pipeline_mode = #tpu.pipeline_mode<synchronous>, transform_indices = @transform_8, window_bounds = array<i64: 2, 64, 32>}, {pipeline_mode = #tpu.pipeline_mode<synchronous>, transform_indices = @transform_9, window_bounds = array<i64: 2, 1, 32>}, {pipeline_mode = #tpu.pipeline_mode<synchronous>, transform_indices = @transform_10, window_bounds = array<i64: 2, 1, 32>}, {transform_indices = @transform_11, window_bounds = array<i64: 1, 8, 32>}, {transform_indices = @transform_12, window_bounds = array<i64: 1, 8, 16>}]} {
    %c0 = arith.constant 0 : index
    %c0_0 = arith.constant 0 : index
    %c0_1 = arith.constant 0 : index
    %0 = vector.load %arg1[%c0, %c0_0, %c0_1] : memref<1x8x32xf32, #tpu.memory_space<vmem>>, vector<1x8x32xf32>
    %1 = vector.shape_cast %0 : vector<1x8x32xf32> to vector<8x32xf32>
    %c0_2 = arith.constant 0 : index
    %c0_3 = arith.constant 0 : index
    %c0_4 = arith.constant 0 : index
    %2 = vector.load %arg2[%c0_2, %c0_3, %c0_4] : memref<1x16x32xf32, #tpu.memory_space<vmem>>, vector<1x16x32xf32>
    %3 = vector.shape_cast %2 : vector<1x16x32xf32> to vector<16x32xf32>
    %c0_5 = arith.constant 0 : index
    %c0_6 = arith.constant 0 : index
    %c0_7 = arith.constant 0 : index
    %4 = vector.load %arg5[%c0_5, %c0_6, %c0_7] : memref<6x1x32xf32, #tpu.memory_space<vmem>>, vector<1x1x32xf32>
    %5 = vector.shape_cast %4 : vector<1x1x32xf32> to vector<1x32xf32>
    %c0_8 = arith.constant 0 : index
    %c0_9 = arith.constant 0 : index
    %c0_10 = arith.constant 0 : index
    %6 = vector.load %arg6[%c0_8, %c0_9, %c0_10] : memref<6x1x32xf32, #tpu.memory_space<vmem>>, vector<1x1x32xf32>
    %7 = vector.shape_cast %6 : vector<1x1x32xf32> to vector<1x32xf32>
    %cst = arith.constant dense<0.000000e+00> : vector<8xf32>
    %8 = vector.multi_reduction <add>, %1, %cst [1] : vector<8x32xf32> to vector<8xf32>
    %9 = vector.shape_cast %8 : vector<8xf32> to vector<8x1xf32>
    %cst_11 = arith.constant 3.200000e+01 : f32
    %10 = vector.broadcast %cst_11 : f32 to vector<8x1xf32>
    %11 = arith.divf %9, %10 : vector<8x1xf32>
    %12 = vector.broadcast %11 : vector<8x1xf32> to vector<8x32xf32>
    %13 = arith.subf %1, %12 : vector<8x32xf32>
    %14 = arith.mulf %13, %13 : vector<8x32xf32>
    %cst_12 = arith.constant dense<0.000000e+00> : vector<8xf32>
    %15 = vector.multi_reduction <add>, %14, %cst_12 [1] : vector<8x32xf32> to vector<8xf32>
    %16 = vector.shape_cast %15 : vector<8xf32> to vector<8x1xf32>
    %cst_13 = arith.constant 3.200000e+01 : f32
    %17 = vector.broadcast %cst_13 : f32 to vector<8x1xf32>
    %18 = arith.divf %16, %17 : vector<8x1xf32>
    %19 = vector.broadcast %11 : vector<8x1xf32> to vector<8x32xf32>
    %20 = arith.subf %1, %19 : vector<8x32xf32>
    %cst_14 = arith.constant 9.99999974E-6 : f32
    %21 = vector.broadcast %cst_14 : f32 to vector<8x1xf32>
    %22 = arith.addf %18, %21 : vector<8x1xf32>
    %23 = math.rsqrt %22 : vector<8x1xf32>
    %24 = vector.broadcast %23 : vector<8x1xf32> to vector<8x32xf32>
    %25 = arith.mulf %20, %24 : vector<8x32xf32>
    %26 = vector.broadcast %5 : vector<1x32xf32> to vector<8x32xf32>
    %27 = arith.mulf %25, %26 : vector<8x32xf32>
    %28 = vector.broadcast %7 : vector<1x32xf32> to vector<8x32xf32>
    %29 = arith.addf %27, %28 : vector<8x32xf32>
    %c0_15 = arith.constant 0 : index
    %c0_16 = arith.constant 0 : index
    %c0_17 = arith.constant 0 : index
    %30 = vector.load %arg3[%c0_15, %c0_16, %c0_17] : memref<16x32x32xf32, #tpu.memory_space<vmem>>, vector<1x32x32xf32>
    %31 = vector.shape_cast %30 : vector<1x32x32xf32> to vector<32x32xf32>
    %c1 = arith.constant 1 : index
    %c0_18 = arith.constant 0 : index
    %c0_19 = arith.constant 0 : index
    %32 = vector.load %arg3[%c1, %c0_18, %c0_19] : memref<16x32x32xf32, #tpu.memory_space<vmem>>, vector<1x32x32xf32>
    %33 = vector.shape_cast %32 : vector<1x32x32xf32> to vector<32x32xf32>
    %c2 = arith.constant 2 : index
    %c0_20 = arith.constant 0 : index
    %c0_21 = arith.constant 0 : index
    %34 = vector.load %arg3[%c2, %c0_20, %c0_21] : memref<16x32x32xf32, #tpu.memory_space<vmem>>, vector<1x32x32xf32>
    %35 = vector.shape_cast %34 : vector<1x32x32xf32> to vector<32x32xf32>
    %c3 = arith.constant 3 : index
    %c0_22 = arith.constant 0 : index
    %c0_23 = arith.constant 0 : index
    %36 = vector.load %arg3[%c3, %c0_22, %c0_23] : memref<16x32x32xf32, #tpu.memory_space<vmem>>, vector<1x32x32xf32>
    %37 = vector.shape_cast %36 : vector<1x32x32xf32> to vector<32x32xf32>
    %c0_24 = arith.constant 0 : index
    %c0_25 = arith.constant 0 : index
    %c0_26 = arith.constant 0 : index
    %38 = vector.load %arg4[%c0_24, %c0_25, %c0_26] : memref<16x1x32xf32, #tpu.memory_space<vmem>>, vector<1x1x32xf32>
    %39 = vector.shape_cast %38 : vector<1x1x32xf32> to vector<1x32xf32>
    %c1_27 = arith.constant 1 : index
    %c0_28 = arith.constant 0 : index
    %c0_29 = arith.constant 0 : index
    %40 = vector.load %arg4[%c1_27, %c0_28, %c0_29] : memref<16x1x32xf32, #tpu.memory_space<vmem>>, vector<1x1x32xf32>
    %41 = vector.shape_cast %40 : vector<1x1x32xf32> to vector<1x32xf32>
    %c2_30 = arith.constant 2 : index
    %c0_31 = arith.constant 0 : index
    %c0_32 = arith.constant 0 : index
    %42 = vector.load %arg4[%c2_30, %c0_31, %c0_32] : memref<16x1x32xf32, #tpu.memory_space<vmem>>, vector<1x1x32xf32>
    %43 = vector.shape_cast %42 : vector<1x1x32xf32> to vector<1x32xf32>
    %c3_33 = arith.constant 3 : index
    %c0_34 = arith.constant 0 : index
    %c0_35 = arith.constant 0 : index
    %44 = vector.load %arg4[%c3_33, %c0_34, %c0_35] : memref<16x1x32xf32, #tpu.memory_space<vmem>>, vector<1x1x32xf32>
    %45 = vector.shape_cast %44 : vector<1x1x32xf32> to vector<1x32xf32>
    %cst_36 = arith.constant dense<0.000000e+00> : vector<8x32xf32>
    %46 = tpu.matmul %29, %31, %cst_36 {dimension_numbers = #tpu.dot_dimension_numbers<[1], [0], [0], [1], [0, 0, 1, 1], [], []>} : vector<8x32xf32>, vector<32x32xf32>, vector<8x32xf32> -> vector<8x32xf32>
    %47 = vector.broadcast %39 : vector<1x32xf32> to vector<8x32xf32>
    %48 = arith.addf %46, %47 : vector<8x32xf32>
    %cst_37 = arith.constant dense<0.000000e+00> : vector<8x32xf32>
    %49 = tpu.matmul %29, %33, %cst_37 {dimension_numbers = #tpu.dot_dimension_numbers<[1], [0], [0], [1], [0, 0, 1, 1], [], []>} : vector<8x32xf32>, vector<32x32xf32>, vector<8x32xf32> -> vector<8x32xf32>
    %50 = vector.broadcast %41 : vector<1x32xf32> to vector<8x32xf32>
    %51 = arith.addf %49, %50 : vector<8x32xf32>
    %cst_38 = arith.constant dense<0.000000e+00> : vector<8x32xf32>
    %52 = tpu.matmul %29, %35, %cst_38 {dimension_numbers = #tpu.dot_dimension_numbers<[1], [0], [0], [1], [0, 0, 1, 1], [], []>} : vector<8x32xf32>, vector<32x32xf32>, vector<8x32xf32> -> vector<8x32xf32>
    %53 = vector.broadcast %43 : vector<1x32xf32> to vector<8x32xf32>
    %54 = arith.addf %52, %53 : vector<8x32xf32>
    %cst_39 = arith.constant 0.000000e+00 : f32
    %55 = vector.broadcast %cst_39 : f32 to vector<8x32xf32>
    %56 = vector.extract_strided_slice %48 {offsets = [0, 0], sizes = [8, 8], strides = [1, 1]} : vector<8x32xf32> to vector<8x8xf32>
    %57 = vector.extract_strided_slice %51 {offsets = [0, 0], sizes = [8, 8], strides = [1, 1]} : vector<8x32xf32> to vector<8x8xf32>
    %cst_40 = arith.constant dense<0.000000e+00> : vector<8x8xf32>
    %58 = tpu.matmul %56, %57, %cst_40 {dimension_numbers = #tpu.dot_dimension_numbers<[1], [1], [0], [0], [0, 0, 1, 0], [], []>} : vector<8x8xf32>, vector<8x8xf32>, vector<8x8xf32> -> vector<8x8xf32>
    %cst_41 = arith.constant 0.353553385 : f32
    %59 = vector.broadcast %cst_41 : f32 to vector<8x8xf32>
    %60 = arith.mulf %58, %59 : vector<8x8xf32>
    %cst_42 = arith.constant dense<0xFF800000> : vector<8xf32>
    %61 = vector.multi_reduction <maximumf>, %60, %cst_42 [1] : vector<8x8xf32> to vector<8xf32>
    %62 = vector.shape_cast %61 : vector<8xf32> to vector<8x1xf32>
    %63 = vector.broadcast %62 : vector<8x1xf32> to vector<8x8xf32>
    %64 = arith.subf %60, %63 : vector<8x8xf32>
    %65 = math.exp %64 : vector<8x8xf32>
    %cst_43 = arith.constant dense<0.000000e+00> : vector<8xf32>
    %66 = vector.multi_reduction <add>, %65, %cst_43 [1] : vector<8x8xf32> to vector<8xf32>
    %67 = vector.shape_cast %66 : vector<8xf32> to vector<8x1xf32>
    %68 = tpu.reciprocal %67 {approx = true} : vector<8x1xf32> -> vector<8x1xf32>
    %69 = vector.broadcast %68 : vector<8x1xf32> to vector<8x8xf32>
    %70 = arith.mulf %65, %69 : vector<8x8xf32>
    %71 = vector.extract_strided_slice %54 {offsets = [0, 0], sizes = [8, 8], strides = [1, 1]} : vector<8x32xf32> to vector<8x8xf32>
    %cst_44 = arith.constant dense<0.000000e+00> : vector<8x8xf32>
    %72 = tpu.matmul %70, %71, %cst_44 {dimension_numbers = #tpu.dot_dimension_numbers<[1], [0], [0], [1], [0, 0, 1, 1], [], []>} : vector<8x8xf32>, vector<8x8xf32>, vector<8x8xf32> -> vector<8x8xf32>
    %73 = vector.extract_strided_slice %37 {offsets = [0, 0], sizes = [8, 32], strides = [1, 1]} : vector<32x32xf32> to vector<8x32xf32>
    %cst_45 = arith.constant dense<0.000000e+00> : vector<8x32xf32>
    %74 = tpu.matmul %72, %73, %cst_45 {dimension_numbers = #tpu.dot_dimension_numbers<[1], [0], [0], [1], [0, 0, 1, 1], [], []>} : vector<8x8xf32>, vector<8x32xf32>, vector<8x32xf32> -> vector<8x32xf32>
    %75 = arith.addf %55, %74 : vector<8x32xf32>
    %76 = vector.extract_strided_slice %48 {offsets = [0, 8], sizes = [8, 8], strides = [1, 1]} : vector<8x32xf32> to vector<8x8xf32>
    %77 = vector.extract_strided_slice %51 {offsets = [0, 8], sizes = [8, 8], strides = [1, 1]} : vector<8x32xf32> to vector<8x8xf32>
    %cst_46 = arith.constant dense<0.000000e+00> : vector<8x8xf32>
    %78 = tpu.matmul %76, %77, %cst_46 {dimension_numbers = #tpu.dot_dimension_numbers<[1], [1], [0], [0], [0, 0, 1, 0], [], []>} : vector<8x8xf32>, vector<8x8xf32>, vector<8x8xf32> -> vector<8x8xf32>
    %cst_47 = arith.constant 0.353553385 : f32
    %79 = vector.broadcast %cst_47 : f32 to vector<8x8xf32>
    %80 = arith.mulf %78, %79 : vector<8x8xf32>
    %cst_48 = arith.constant dense<0xFF800000> : vector<8xf32>
    %81 = vector.multi_reduction <maximumf>, %80, %cst_48 [1] : vector<8x8xf32> to vector<8xf32>
    %82 = vector.shape_cast %81 : vector<8xf32> to vector<8x1xf32>
    %83 = vector.broadcast %82 : vector<8x1xf32> to vector<8x8xf32>
    %84 = arith.subf %80, %83 : vector<8x8xf32>
    %85 = math.exp %84 : vector<8x8xf32>
    %cst_49 = arith.constant dense<0.000000e+00> : vector<8xf32>
    %86 = vector.multi_reduction <add>, %85, %cst_49 [1] : vector<8x8xf32> to vector<8xf32>
    %87 = vector.shape_cast %86 : vector<8xf32> to vector<8x1xf32>
    %88 = tpu.reciprocal %87 {approx = true} : vector<8x1xf32> -> vector<8x1xf32>
    %89 = vector.broadcast %88 : vector<8x1xf32> to vector<8x8xf32>
    %90 = arith.mulf %85, %89 : vector<8x8xf32>
    %91 = vector.extract_strided_slice %54 {offsets = [0, 8], sizes = [8, 8], strides = [1, 1]} : vector<8x32xf32> to vector<8x8xf32>
    %cst_50 = arith.constant dense<0.000000e+00> : vector<8x8xf32>
    %92 = tpu.matmul %90, %91, %cst_50 {dimension_numbers = #tpu.dot_dimension_numbers<[1], [0], [0], [1], [0, 0, 1, 1], [], []>} : vector<8x8xf32>, vector<8x8xf32>, vector<8x8xf32> -> vector<8x8xf32>
    %93 = vector.extract_strided_slice %37 {offsets = [8, 0], sizes = [8, 32], strides = [1, 1]} : vector<32x32xf32> to vector<8x32xf32>
    %cst_51 = arith.constant dense<0.000000e+00> : vector<8x32xf32>
    %94 = tpu.matmul %92, %93, %cst_51 {dimension_numbers = #tpu.dot_dimension_numbers<[1], [0], [0], [1], [0, 0, 1, 1], [], []>} : vector<8x8xf32>, vector<8x32xf32>, vector<8x32xf32> -> vector<8x32xf32>
    %95 = arith.addf %75, %94 : vector<8x32xf32>
    %96 = vector.extract_strided_slice %48 {offsets = [0, 16], sizes = [8, 8], strides = [1, 1]} : vector<8x32xf32> to vector<8x8xf32>
    %97 = vector.extract_strided_slice %51 {offsets = [0, 16], sizes = [8, 8], strides = [1, 1]} : vector<8x32xf32> to vector<8x8xf32>
    %cst_52 = arith.constant dense<0.000000e+00> : vector<8x8xf32>
    %98 = tpu.matmul %96, %97, %cst_52 {dimension_numbers = #tpu.dot_dimension_numbers<[1], [1], [0], [0], [0, 0, 1, 0], [], []>} : vector<8x8xf32>, vector<8x8xf32>, vector<8x8xf32> -> vector<8x8xf32>
    %cst_53 = arith.constant 0.353553385 : f32
    %99 = vector.broadcast %cst_53 : f32 to vector<8x8xf32>
    %100 = arith.mulf %98, %99 : vector<8x8xf32>
    %cst_54 = arith.constant dense<0xFF800000> : vector<8xf32>
    %101 = vector.multi_reduction <maximumf>, %100, %cst_54 [1] : vector<8x8xf32> to vector<8xf32>
    %102 = vector.shape_cast %101 : vector<8xf32> to vector<8x1xf32>
    %103 = vector.broadcast %102 : vector<8x1xf32> to vector<8x8xf32>
    %104 = arith.subf %100, %103 : vector<8x8xf32>
    %105 = math.exp %104 : vector<8x8xf32>
    %cst_55 = arith.constant dense<0.000000e+00> : vector<8xf32>
    %106 = vector.multi_reduction <add>, %105, %cst_55 [1] : vector<8x8xf32> to vector<8xf32>
    %107 = vector.shape_cast %106 : vector<8xf32> to vector<8x1xf32>
    %108 = tpu.reciprocal %107 {approx = true} : vector<8x1xf32> -> vector<8x1xf32>
    %109 = vector.broadcast %108 : vector<8x1xf32> to vector<8x8xf32>
    %110 = arith.mulf %105, %109 : vector<8x8xf32>
    %111 = vector.extract_strided_slice %54 {offsets = [0, 16], sizes = [8, 8], strides = [1, 1]} : vector<8x32xf32> to vector<8x8xf32>
    %cst_56 = arith.constant dense<0.000000e+00> : vector<8x8xf32>
    %112 = tpu.matmul %110, %111, %cst_56 {dimension_numbers = #tpu.dot_dimension_numbers<[1], [0], [0], [1], [0, 0, 1, 1], [], []>} : vector<8x8xf32>, vector<8x8xf32>, vector<8x8xf32> -> vector<8x8xf32>
    %113 = vector.extract_strided_slice %37 {offsets = [16, 0], sizes = [8, 32], strides = [1, 1]} : vector<32x32xf32> to vector<8x32xf32>
    %cst_57 = arith.constant dense<0.000000e+00> : vector<8x32xf32>
    %114 = tpu.matmul %112, %113, %cst_57 {dimension_numbers = #tpu.dot_dimension_numbers<[1], [0], [0], [1], [0, 0, 1, 1], [], []>} : vector<8x8xf32>, vector<8x32xf32>, vector<8x32xf32> -> vector<8x32xf32>
    %115 = arith.addf %95, %114 : vector<8x32xf32>
    %116 = vector.extract_strided_slice %48 {offsets = [0, 24], sizes = [8, 8], strides = [1, 1]} : vector<8x32xf32> to vector<8x8xf32>
    %117 = vector.extract_strided_slice %51 {offsets = [0, 24], sizes = [8, 8], strides = [1, 1]} : vector<8x32xf32> to vector<8x8xf32>
    %cst_58 = arith.constant dense<0.000000e+00> : vector<8x8xf32>
    %118 = tpu.matmul %116, %117, %cst_58 {dimension_numbers = #tpu.dot_dimension_numbers<[1], [1], [0], [0], [0, 0, 1, 0], [], []>} : vector<8x8xf32>, vector<8x8xf32>, vector<8x8xf32> -> vector<8x8xf32>
    %cst_59 = arith.constant 0.353553385 : f32
    %119 = vector.broadcast %cst_59 : f32 to vector<8x8xf32>
    %120 = arith.mulf %118, %119 : vector<8x8xf32>
    %cst_60 = arith.constant dense<0xFF800000> : vector<8xf32>
    %121 = vector.multi_reduction <maximumf>, %120, %cst_60 [1] : vector<8x8xf32> to vector<8xf32>
    %122 = vector.shape_cast %121 : vector<8xf32> to vector<8x1xf32>
    %123 = vector.broadcast %122 : vector<8x1xf32> to vector<8x8xf32>
    %124 = arith.subf %120, %123 : vector<8x8xf32>
    %125 = math.exp %124 : vector<8x8xf32>
    %cst_61 = arith.constant dense<0.000000e+00> : vector<8xf32>
    %126 = vector.multi_reduction <add>, %125, %cst_61 [1] : vector<8x8xf32> to vector<8xf32>
    %127 = vector.shape_cast %126 : vector<8xf32> to vector<8x1xf32>
    %128 = tpu.reciprocal %127 {approx = true} : vector<8x1xf32> -> vector<8x1xf32>
    %129 = vector.broadcast %128 : vector<8x1xf32> to vector<8x8xf32>
    %130 = arith.mulf %125, %129 : vector<8x8xf32>
    %131 = vector.extract_strided_slice %54 {offsets = [0, 24], sizes = [8, 8], strides = [1, 1]} : vector<8x32xf32> to vector<8x8xf32>
    %cst_62 = arith.constant dense<0.000000e+00> : vector<8x8xf32>
    %132 = tpu.matmul %130, %131, %cst_62 {dimension_numbers = #tpu.dot_dimension_numbers<[1], [0], [0], [1], [0, 0, 1, 1], [], []>} : vector<8x8xf32>, vector<8x8xf32>, vector<8x8xf32> -> vector<8x8xf32>
    %133 = vector.extract_strided_slice %37 {offsets = [24, 0], sizes = [8, 32], strides = [1, 1]} : vector<32x32xf32> to vector<8x32xf32>
    %cst_63 = arith.constant dense<0.000000e+00> : vector<8x32xf32>
    %134 = tpu.matmul %132, %133, %cst_63 {dimension_numbers = #tpu.dot_dimension_numbers<[1], [0], [0], [1], [0, 0, 1, 1], [], []>} : vector<8x8xf32>, vector<8x32xf32>, vector<8x32xf32> -> vector<8x32xf32>
    %135 = arith.addf %115, %134 : vector<8x32xf32>
    %136 = vector.broadcast %45 : vector<1x32xf32> to vector<8x32xf32>
    %137 = arith.addf %135, %136 : vector<8x32xf32>
    %138 = arith.addf %1, %137 : vector<8x32xf32>
    %c1_64 = arith.constant 1 : index
    %c0_65 = arith.constant 0 : index
    %c0_66 = arith.constant 0 : index
    %139 = vector.load %arg5[%c1_64, %c0_65, %c0_66] : memref<6x1x32xf32, #tpu.memory_space<vmem>>, vector<1x1x32xf32>
    %140 = vector.shape_cast %139 : vector<1x1x32xf32> to vector<1x32xf32>
    %c1_67 = arith.constant 1 : index
    %c0_68 = arith.constant 0 : index
    %c0_69 = arith.constant 0 : index
    %141 = vector.load %arg6[%c1_67, %c0_68, %c0_69] : memref<6x1x32xf32, #tpu.memory_space<vmem>>, vector<1x1x32xf32>
    %142 = vector.shape_cast %141 : vector<1x1x32xf32> to vector<1x32xf32>
    %cst_70 = arith.constant dense<0.000000e+00> : vector<8xf32>
    %143 = vector.multi_reduction <add>, %138, %cst_70 [1] : vector<8x32xf32> to vector<8xf32>
    %144 = vector.shape_cast %143 : vector<8xf32> to vector<8x1xf32>
    %cst_71 = arith.constant 3.200000e+01 : f32
    %145 = vector.broadcast %cst_71 : f32 to vector<8x1xf32>
    %146 = arith.divf %144, %145 : vector<8x1xf32>
    %147 = vector.broadcast %146 : vector<8x1xf32> to vector<8x32xf32>
    %148 = arith.subf %138, %147 : vector<8x32xf32>
    %149 = arith.mulf %148, %148 : vector<8x32xf32>
    %cst_72 = arith.constant dense<0.000000e+00> : vector<8xf32>
    %150 = vector.multi_reduction <add>, %149, %cst_72 [1] : vector<8x32xf32> to vector<8xf32>
    %151 = vector.shape_cast %150 : vector<8xf32> to vector<8x1xf32>
    %cst_73 = arith.constant 3.200000e+01 : f32
    %152 = vector.broadcast %cst_73 : f32 to vector<8x1xf32>
    %153 = arith.divf %151, %152 : vector<8x1xf32>
    %154 = vector.broadcast %146 : vector<8x1xf32> to vector<8x32xf32>
    %155 = arith.subf %138, %154 : vector<8x32xf32>
    %cst_74 = arith.constant 9.99999974E-6 : f32
    %156 = vector.broadcast %cst_74 : f32 to vector<8x1xf32>
    %157 = arith.addf %153, %156 : vector<8x1xf32>
    %158 = math.rsqrt %157 : vector<8x1xf32>
    %159 = vector.broadcast %158 : vector<8x1xf32> to vector<8x32xf32>
    %160 = arith.mulf %155, %159 : vector<8x32xf32>
    %161 = vector.broadcast %140 : vector<1x32xf32> to vector<8x32xf32>
    %162 = arith.mulf %160, %161 : vector<8x32xf32>
    %163 = vector.broadcast %142 : vector<1x32xf32> to vector<8x32xf32>
    %164 = arith.addf %162, %163 : vector<8x32xf32>
    %c4 = arith.constant 4 : index
    %c0_75 = arith.constant 0 : index
    %c0_76 = arith.constant 0 : index
    %165 = vector.load %arg3[%c4, %c0_75, %c0_76] : memref<16x32x32xf32, #tpu.memory_space<vmem>>, vector<1x32x32xf32>
    %166 = vector.shape_cast %165 : vector<1x32x32xf32> to vector<32x32xf32>
    %c5 = arith.constant 5 : index
    %c0_77 = arith.constant 0 : index
    %c0_78 = arith.constant 0 : index
    %167 = vector.load %arg3[%c5, %c0_77, %c0_78] : memref<16x32x32xf32, #tpu.memory_space<vmem>>, vector<1x32x32xf32>
    %168 = vector.shape_cast %167 : vector<1x32x32xf32> to vector<32x32xf32>
    %c6 = arith.constant 6 : index
    %c0_79 = arith.constant 0 : index
    %c0_80 = arith.constant 0 : index
    %169 = vector.load %arg3[%c6, %c0_79, %c0_80] : memref<16x32x32xf32, #tpu.memory_space<vmem>>, vector<1x32x32xf32>
    %170 = vector.shape_cast %169 : vector<1x32x32xf32> to vector<32x32xf32>
    %c7 = arith.constant 7 : index
    %c0_81 = arith.constant 0 : index
    %c0_82 = arith.constant 0 : index
    %171 = vector.load %arg3[%c7, %c0_81, %c0_82] : memref<16x32x32xf32, #tpu.memory_space<vmem>>, vector<1x32x32xf32>
    %172 = vector.shape_cast %171 : vector<1x32x32xf32> to vector<32x32xf32>
    %c4_83 = arith.constant 4 : index
    %c0_84 = arith.constant 0 : index
    %c0_85 = arith.constant 0 : index
    %173 = vector.load %arg4[%c4_83, %c0_84, %c0_85] : memref<16x1x32xf32, #tpu.memory_space<vmem>>, vector<1x1x32xf32>
    %174 = vector.shape_cast %173 : vector<1x1x32xf32> to vector<1x32xf32>
    %c5_86 = arith.constant 5 : index
    %c0_87 = arith.constant 0 : index
    %c0_88 = arith.constant 0 : index
    %175 = vector.load %arg4[%c5_86, %c0_87, %c0_88] : memref<16x1x32xf32, #tpu.memory_space<vmem>>, vector<1x1x32xf32>
    %176 = vector.shape_cast %175 : vector<1x1x32xf32> to vector<1x32xf32>
    %c6_89 = arith.constant 6 : index
    %c0_90 = arith.constant 0 : index
    %c0_91 = arith.constant 0 : index
    %177 = vector.load %arg4[%c6_89, %c0_90, %c0_91] : memref<16x1x32xf32, #tpu.memory_space<vmem>>, vector<1x1x32xf32>
    %178 = vector.shape_cast %177 : vector<1x1x32xf32> to vector<1x32xf32>
    %c7_92 = arith.constant 7 : index
    %c0_93 = arith.constant 0 : index
    %c0_94 = arith.constant 0 : index
    %179 = vector.load %arg4[%c7_92, %c0_93, %c0_94] : memref<16x1x32xf32, #tpu.memory_space<vmem>>, vector<1x1x32xf32>
    %180 = vector.shape_cast %179 : vector<1x1x32xf32> to vector<1x32xf32>
    %cst_95 = arith.constant dense<0.000000e+00> : vector<8x32xf32>
    %181 = tpu.matmul %164, %166, %cst_95 {dimension_numbers = #tpu.dot_dimension_numbers<[1], [0], [0], [1], [0, 0, 1, 1], [], []>} : vector<8x32xf32>, vector<32x32xf32>, vector<8x32xf32> -> vector<8x32xf32>
    %182 = vector.broadcast %174 : vector<1x32xf32> to vector<8x32xf32>
    %183 = arith.addf %181, %182 : vector<8x32xf32>
    %cst_96 = arith.constant dense<0.000000e+00> : vector<16x32xf32>
    %184 = tpu.matmul %3, %168, %cst_96 {dimension_numbers = #tpu.dot_dimension_numbers<[1], [0], [0], [1], [0, 0, 1, 1], [], []>} : vector<16x32xf32>, vector<32x32xf32>, vector<16x32xf32> -> vector<16x32xf32>
    %185 = vector.broadcast %176 : vector<1x32xf32> to vector<16x32xf32>
    %186 = arith.addf %184, %185 : vector<16x32xf32>
    %cst_97 = arith.constant dense<0.000000e+00> : vector<16x32xf32>
    %187 = tpu.matmul %3, %170, %cst_97 {dimension_numbers = #tpu.dot_dimension_numbers<[1], [0], [0], [1], [0, 0, 1, 1], [], []>} : vector<16x32xf32>, vector<32x32xf32>, vector<16x32xf32> -> vector<16x32xf32>
    %188 = vector.broadcast %178 : vector<1x32xf32> to vector<16x32xf32>
    %189 = arith.addf %187, %188 : vector<16x32xf32>
    %cst_98 = arith.constant 0.000000e+00 : f32
    %190 = vector.broadcast %cst_98 : f32 to vector<8x32xf32>
    %191 = vector.extract_strided_slice %183 {offsets = [0, 0], sizes = [8, 8], strides = [1, 1]} : vector<8x32xf32> to vector<8x8xf32>
    %192 = vector.extract_strided_slice %186 {offsets = [0, 0], sizes = [16, 8], strides = [1, 1]} : vector<16x32xf32> to vector<16x8xf32>
    %cst_99 = arith.constant dense<0.000000e+00> : vector<8x16xf32>
    %193 = tpu.matmul %191, %192, %cst_99 {dimension_numbers = #tpu.dot_dimension_numbers<[1], [1], [0], [0], [0, 0, 1, 0], [], []>} : vector<8x8xf32>, vector<16x8xf32>, vector<8x16xf32> -> vector<8x16xf32>
    %cst_100 = arith.constant 0.353553385 : f32
    %194 = vector.broadcast %cst_100 : f32 to vector<8x16xf32>
    %195 = arith.mulf %193, %194 : vector<8x16xf32>
    %cst_101 = arith.constant dense<0xFF800000> : vector<8xf32>
    %196 = vector.multi_reduction <maximumf>, %195, %cst_101 [1] : vector<8x16xf32> to vector<8xf32>
    %197 = vector.shape_cast %196 : vector<8xf32> to vector<8x1xf32>
    %198 = vector.broadcast %197 : vector<8x1xf32> to vector<8x16xf32>
    %199 = arith.subf %195, %198 : vector<8x16xf32>
    %200 = math.exp %199 : vector<8x16xf32>
    %cst_102 = arith.constant dense<0.000000e+00> : vector<8xf32>
    %201 = vector.multi_reduction <add>, %200, %cst_102 [1] : vector<8x16xf32> to vector<8xf32>
    %202 = vector.shape_cast %201 : vector<8xf32> to vector<8x1xf32>
    %203 = tpu.reciprocal %202 {approx = true} : vector<8x1xf32> -> vector<8x1xf32>
    %204 = vector.broadcast %203 : vector<8x1xf32> to vector<8x16xf32>
    %205 = arith.mulf %200, %204 : vector<8x16xf32>
    %206 = vector.extract_strided_slice %189 {offsets = [0, 0], sizes = [16, 8], strides = [1, 1]} : vector<16x32xf32> to vector<16x8xf32>
    %cst_103 = arith.constant dense<0.000000e+00> : vector<8x8xf32>
    %207 = tpu.matmul %205, %206, %cst_103 {dimension_numbers = #tpu.dot_dimension_numbers<[1], [0], [0], [1], [0, 0, 1, 1], [], []>} : vector<8x16xf32>, vector<16x8xf32>, vector<8x8xf32> -> vector<8x8xf32>
    %208 = vector.extract_strided_slice %172 {offsets = [0, 0], sizes = [8, 32], strides = [1, 1]} : vector<32x32xf32> to vector<8x32xf32>
    %cst_104 = arith.constant dense<0.000000e+00> : vector<8x32xf32>
    %209 = tpu.matmul %207, %208, %cst_104 {dimension_numbers = #tpu.dot_dimension_numbers<[1], [0], [0], [1], [0, 0, 1, 1], [], []>} : vector<8x8xf32>, vector<8x32xf32>, vector<8x32xf32> -> vector<8x32xf32>
    %210 = arith.addf %190, %209 : vector<8x32xf32>
    %211 = vector.extract_strided_slice %183 {offsets = [0, 8], sizes = [8, 8], strides = [1, 1]} : vector<8x32xf32> to vector<8x8xf32>
    %212 = vector.extract_strided_slice %186 {offsets = [0, 8], sizes = [16, 8], strides = [1, 1]} : vector<16x32xf32> to vector<16x8xf32>
    %cst_105 = arith.constant dense<0.000000e+00> : vector<8x16xf32>
    %213 = tpu.matmul %211, %212, %cst_105 {dimension_numbers = #tpu.dot_dimension_numbers<[1], [1], [0], [0], [0, 0, 1, 0], [], []>} : vector<8x8xf32>, vector<16x8xf32>, vector<8x16xf32> -> vector<8x16xf32>
    %cst_106 = arith.constant 0.353553385 : f32
    %214 = vector.broadcast %cst_106 : f32 to vector<8x16xf32>
    %215 = arith.mulf %213, %214 : vector<8x16xf32>
    %cst_107 = arith.constant dense<0xFF800000> : vector<8xf32>
    %216 = vector.multi_reduction <maximumf>, %215, %cst_107 [1] : vector<8x16xf32> to vector<8xf32>
    %217 = vector.shape_cast %216 : vector<8xf32> to vector<8x1xf32>
    %218 = vector.broadcast %217 : vector<8x1xf32> to vector<8x16xf32>
    %219 = arith.subf %215, %218 : vector<8x16xf32>
    %220 = math.exp %219 : vector<8x16xf32>
    %cst_108 = arith.constant dense<0.000000e+00> : vector<8xf32>
    %221 = vector.multi_reduction <add>, %220, %cst_108 [1] : vector<8x16xf32> to vector<8xf32>
    %222 = vector.shape_cast %221 : vector<8xf32> to vector<8x1xf32>
    %223 = tpu.reciprocal %222 {approx = true} : vector<8x1xf32> -> vector<8x1xf32>
    %224 = vector.broadcast %223 : vector<8x1xf32> to vector<8x16xf32>
    %225 = arith.mulf %220, %224 : vector<8x16xf32>
    %226 = vector.extract_strided_slice %189 {offsets = [0, 8], sizes = [16, 8], strides = [1, 1]} : vector<16x32xf32> to vector<16x8xf32>
    %cst_109 = arith.constant dense<0.000000e+00> : vector<8x8xf32>
    %227 = tpu.matmul %225, %226, %cst_109 {dimension_numbers = #tpu.dot_dimension_numbers<[1], [0], [0], [1], [0, 0, 1, 1], [], []>} : vector<8x16xf32>, vector<16x8xf32>, vector<8x8xf32> -> vector<8x8xf32>
    %228 = vector.extract_strided_slice %172 {offsets = [8, 0], sizes = [8, 32], strides = [1, 1]} : vector<32x32xf32> to vector<8x32xf32>
    %cst_110 = arith.constant dense<0.000000e+00> : vector<8x32xf32>
    %229 = tpu.matmul %227, %228, %cst_110 {dimension_numbers = #tpu.dot_dimension_numbers<[1], [0], [0], [1], [0, 0, 1, 1], [], []>} : vector<8x8xf32>, vector<8x32xf32>, vector<8x32xf32> -> vector<8x32xf32>
    %230 = arith.addf %210, %229 : vector<8x32xf32>
    %231 = vector.extract_strided_slice %183 {offsets = [0, 16], sizes = [8, 8], strides = [1, 1]} : vector<8x32xf32> to vector<8x8xf32>
    %232 = vector.extract_strided_slice %186 {offsets = [0, 16], sizes = [16, 8], strides = [1, 1]} : vector<16x32xf32> to vector<16x8xf32>
    %cst_111 = arith.constant dense<0.000000e+00> : vector<8x16xf32>
    %233 = tpu.matmul %231, %232, %cst_111 {dimension_numbers = #tpu.dot_dimension_numbers<[1], [1], [0], [0], [0, 0, 1, 0], [], []>} : vector<8x8xf32>, vector<16x8xf32>, vector<8x16xf32> -> vector<8x16xf32>
    %cst_112 = arith.constant 0.353553385 : f32
    %234 = vector.broadcast %cst_112 : f32 to vector<8x16xf32>
    %235 = arith.mulf %233, %234 : vector<8x16xf32>
    %cst_113 = arith.constant dense<0xFF800000> : vector<8xf32>
    %236 = vector.multi_reduction <maximumf>, %235, %cst_113 [1] : vector<8x16xf32> to vector<8xf32>
    %237 = vector.shape_cast %236 : vector<8xf32> to vector<8x1xf32>
    %238 = vector.broadcast %237 : vector<8x1xf32> to vector<8x16xf32>
    %239 = arith.subf %235, %238 : vector<8x16xf32>
    %240 = math.exp %239 : vector<8x16xf32>
    %cst_114 = arith.constant dense<0.000000e+00> : vector<8xf32>
    %241 = vector.multi_reduction <add>, %240, %cst_114 [1] : vector<8x16xf32> to vector<8xf32>
    %242 = vector.shape_cast %241 : vector<8xf32> to vector<8x1xf32>
    %243 = tpu.reciprocal %242 {approx = true} : vector<8x1xf32> -> vector<8x1xf32>
    %244 = vector.broadcast %243 : vector<8x1xf32> to vector<8x16xf32>
    %245 = arith.mulf %240, %244 : vector<8x16xf32>
    %246 = vector.extract_strided_slice %189 {offsets = [0, 16], sizes = [16, 8], strides = [1, 1]} : vector<16x32xf32> to vector<16x8xf32>
    %cst_115 = arith.constant dense<0.000000e+00> : vector<8x8xf32>
    %247 = tpu.matmul %245, %246, %cst_115 {dimension_numbers = #tpu.dot_dimension_numbers<[1], [0], [0], [1], [0, 0, 1, 1], [], []>} : vector<8x16xf32>, vector<16x8xf32>, vector<8x8xf32> -> vector<8x8xf32>
    %248 = vector.extract_strided_slice %172 {offsets = [16, 0], sizes = [8, 32], strides = [1, 1]} : vector<32x32xf32> to vector<8x32xf32>
    %cst_116 = arith.constant dense<0.000000e+00> : vector<8x32xf32>
    %249 = tpu.matmul %247, %248, %cst_116 {dimension_numbers = #tpu.dot_dimension_numbers<[1], [0], [0], [1], [0, 0, 1, 1], [], []>} : vector<8x8xf32>, vector<8x32xf32>, vector<8x32xf32> -> vector<8x32xf32>
    %250 = arith.addf %230, %249 : vector<8x32xf32>
    %251 = vector.extract_strided_slice %183 {offsets = [0, 24], sizes = [8, 8], strides = [1, 1]} : vector<8x32xf32> to vector<8x8xf32>
    %252 = vector.extract_strided_slice %186 {offsets = [0, 24], sizes = [16, 8], strides = [1, 1]} : vector<16x32xf32> to vector<16x8xf32>
    %cst_117 = arith.constant dense<0.000000e+00> : vector<8x16xf32>
    %253 = tpu.matmul %251, %252, %cst_117 {dimension_numbers = #tpu.dot_dimension_numbers<[1], [1], [0], [0], [0, 0, 1, 0], [], []>} : vector<8x8xf32>, vector<16x8xf32>, vector<8x16xf32> -> vector<8x16xf32>
    %cst_118 = arith.constant 0.353553385 : f32
    %254 = vector.broadcast %cst_118 : f32 to vector<8x16xf32>
    %255 = arith.mulf %253, %254 : vector<8x16xf32>
    %cst_119 = arith.constant dense<0xFF800000> : vector<8xf32>
    %256 = vector.multi_reduction <maximumf>, %255, %cst_119 [1] : vector<8x16xf32> to vector<8xf32>
    %257 = vector.shape_cast %256 : vector<8xf32> to vector<8x1xf32>
    %258 = vector.broadcast %257 : vector<8x1xf32> to vector<8x16xf32>
    %259 = arith.subf %255, %258 : vector<8x16xf32>
    %260 = math.exp %259 : vector<8x16xf32>
    %cst_120 = arith.constant dense<0.000000e+00> : vector<8xf32>
    %261 = vector.multi_reduction <add>, %260, %cst_120 [1] : vector<8x16xf32> to vector<8xf32>
    %262 = vector.shape_cast %261 : vector<8xf32> to vector<8x1xf32>
    %263 = tpu.reciprocal %262 {approx = true} : vector<8x1xf32> -> vector<8x1xf32>
    %264 = vector.broadcast %263 : vector<8x1xf32> to vector<8x16xf32>
    %265 = arith.mulf %260, %264 : vector<8x16xf32>
    %266 = vector.extract_strided_slice %189 {offsets = [0, 24], sizes = [16, 8], strides = [1, 1]} : vector<16x32xf32> to vector<16x8xf32>
    %cst_121 = arith.constant dense<0.000000e+00> : vector<8x8xf32>
    %267 = tpu.matmul %265, %266, %cst_121 {dimension_numbers = #tpu.dot_dimension_numbers<[1], [0], [0], [1], [0, 0, 1, 1], [], []>} : vector<8x16xf32>, vector<16x8xf32>, vector<8x8xf32> -> vector<8x8xf32>
    %268 = vector.extract_strided_slice %172 {offsets = [24, 0], sizes = [8, 32], strides = [1, 1]} : vector<32x32xf32> to vector<8x32xf32>
    %cst_122 = arith.constant dense<0.000000e+00> : vector<8x32xf32>
    %269 = tpu.matmul %267, %268, %cst_122 {dimension_numbers = #tpu.dot_dimension_numbers<[1], [0], [0], [1], [0, 0, 1, 1], [], []>} : vector<8x8xf32>, vector<8x32xf32>, vector<8x32xf32> -> vector<8x32xf32>
    %270 = arith.addf %250, %269 : vector<8x32xf32>
    %271 = vector.broadcast %180 : vector<1x32xf32> to vector<8x32xf32>
    %272 = arith.addf %270, %271 : vector<8x32xf32>
    %273 = arith.addf %138, %272 : vector<8x32xf32>
    %c2_123 = arith.constant 2 : index
    %c0_124 = arith.constant 0 : index
    %c0_125 = arith.constant 0 : index
    %274 = vector.load %arg5[%c2_123, %c0_124, %c0_125] : memref<6x1x32xf32, #tpu.memory_space<vmem>>, vector<1x1x32xf32>
    %275 = vector.shape_cast %274 : vector<1x1x32xf32> to vector<1x32xf32>
    %c2_126 = arith.constant 2 : index
    %c0_127 = arith.constant 0 : index
    %c0_128 = arith.constant 0 : index
    %276 = vector.load %arg6[%c2_126, %c0_127, %c0_128] : memref<6x1x32xf32, #tpu.memory_space<vmem>>, vector<1x1x32xf32>
    %277 = vector.shape_cast %276 : vector<1x1x32xf32> to vector<1x32xf32>
    %cst_129 = arith.constant dense<0.000000e+00> : vector<8xf32>
    %278 = vector.multi_reduction <add>, %273, %cst_129 [1] : vector<8x32xf32> to vector<8xf32>
    %279 = vector.shape_cast %278 : vector<8xf32> to vector<8x1xf32>
    %cst_130 = arith.constant 3.200000e+01 : f32
    %280 = vector.broadcast %cst_130 : f32 to vector<8x1xf32>
    %281 = arith.divf %279, %280 : vector<8x1xf32>
    %282 = vector.broadcast %281 : vector<8x1xf32> to vector<8x32xf32>
    %283 = arith.subf %273, %282 : vector<8x32xf32>
    %284 = arith.mulf %283, %283 : vector<8x32xf32>
    %cst_131 = arith.constant dense<0.000000e+00> : vector<8xf32>
    %285 = vector.multi_reduction <add>, %284, %cst_131 [1] : vector<8x32xf32> to vector<8xf32>
    %286 = vector.shape_cast %285 : vector<8xf32> to vector<8x1xf32>
    %cst_132 = arith.constant 3.200000e+01 : f32
    %287 = vector.broadcast %cst_132 : f32 to vector<8x1xf32>
    %288 = arith.divf %286, %287 : vector<8x1xf32>
    %289 = vector.broadcast %281 : vector<8x1xf32> to vector<8x32xf32>
    %290 = arith.subf %273, %289 : vector<8x32xf32>
    %cst_133 = arith.constant 9.99999974E-6 : f32
    %291 = vector.broadcast %cst_133 : f32 to vector<8x1xf32>
    %292 = arith.addf %288, %291 : vector<8x1xf32>
    %293 = math.rsqrt %292 : vector<8x1xf32>
    %294 = vector.broadcast %293 : vector<8x1xf32> to vector<8x32xf32>
    %295 = arith.mulf %290, %294 : vector<8x32xf32>
    %296 = vector.broadcast %275 : vector<1x32xf32> to vector<8x32xf32>
    %297 = arith.mulf %295, %296 : vector<8x32xf32>
    %298 = vector.broadcast %277 : vector<1x32xf32> to vector<8x32xf32>
    %299 = arith.addf %297, %298 : vector<8x32xf32>
    %c0_134 = arith.constant 0 : index
    %c0_135 = arith.constant 0 : index
    %c0_136 = arith.constant 0 : index
    %300 = vector.load %arg7[%c0_134, %c0_135, %c0_136] : memref<2x32x64xf32, #tpu.memory_space<vmem>>, vector<1x32x64xf32>
    %301 = vector.shape_cast %300 : vector<1x32x64xf32> to vector<32x64xf32>
    %cst_137 = arith.constant dense<0.000000e+00> : vector<8x64xf32>
    %302 = tpu.matmul %299, %301, %cst_137 {dimension_numbers = #tpu.dot_dimension_numbers<[1], [0], [0], [1], [0, 0, 1, 1], [], []>} : vector<8x32xf32>, vector<32x64xf32>, vector<8x64xf32> -> vector<8x64xf32>
    %c0_138 = arith.constant 0 : index
    %c0_139 = arith.constant 0 : index
    %c0_140 = arith.constant 0 : index
    %303 = vector.load %arg8[%c0_138, %c0_139, %c0_140] : memref<2x1x64xf32, #tpu.memory_space<vmem>>, vector<1x1x64xf32>
    %304 = vector.shape_cast %303 : vector<1x1x64xf32> to vector<1x64xf32>
    %305 = vector.broadcast %304 : vector<1x64xf32> to vector<8x64xf32>
    %306 = arith.addf %302, %305 : vector<8x64xf32>
    %cst_141 = arith.constant 5.000000e-01 : f32
    %307 = vector.broadcast %cst_141 : f32 to vector<8x64xf32>
    %308 = arith.mulf %307, %306 : vector<8x64xf32>
    %cst_142 = arith.constant 4.471500e-02 : f32
    %309 = vector.broadcast %cst_142 : f32 to vector<8x64xf32>
    %310 = arith.mulf %309, %306 : vector<8x64xf32>
    %311 = arith.mulf %310, %306 : vector<8x64xf32>
    %312 = arith.mulf %311, %306 : vector<8x64xf32>
    %313 = arith.addf %306, %312 : vector<8x64xf32>
    %cst_143 = arith.constant 0.797884583 : f32
    %314 = vector.broadcast %cst_143 : f32 to vector<8x64xf32>
    %315 = arith.mulf %314, %313 : vector<8x64xf32>
    %316 = math.tanh %315 : vector<8x64xf32>
    %cst_144 = arith.constant 1.000000e+00 : f32
    %317 = vector.broadcast %cst_144 : f32 to vector<8x64xf32>
    %318 = arith.addf %317, %316 : vector<8x64xf32>
    %319 = arith.mulf %308, %318 : vector<8x64xf32>
    %c0_145 = arith.constant 0 : index
    %c0_146 = arith.constant 0 : index
    %c0_147 = arith.constant 0 : index
    %320 = vector.load %arg9[%c0_145, %c0_146, %c0_147] : memref<2x64x32xf32, #tpu.memory_space<vmem>>, vector<1x64x32xf32>
    %321 = vector.shape_cast %320 : vector<1x64x32xf32> to vector<64x32xf32>
    %cst_148 = arith.constant dense<0.000000e+00> : vector<8x32xf32>
    %322 = tpu.matmul %319, %321, %cst_148 {dimension_numbers = #tpu.dot_dimension_numbers<[1], [0], [0], [1], [0, 0, 1, 1], [], []>} : vector<8x64xf32>, vector<64x32xf32>, vector<8x32xf32> -> vector<8x32xf32>
    %323 = arith.addf %273, %322 : vector<8x32xf32>
    %c0_149 = arith.constant 0 : index
    %c0_150 = arith.constant 0 : index
    %c0_151 = arith.constant 0 : index
    %324 = vector.load %arg10[%c0_149, %c0_150, %c0_151] : memref<2x1x32xf32, #tpu.memory_space<vmem>>, vector<1x1x32xf32>
    %325 = vector.shape_cast %324 : vector<1x1x32xf32> to vector<1x32xf32>
    %326 = vector.broadcast %325 : vector<1x32xf32> to vector<8x32xf32>
    %327 = arith.addf %323, %326 : vector<8x32xf32>
    %c3_152 = arith.constant 3 : index
    %c0_153 = arith.constant 0 : index
    %c0_154 = arith.constant 0 : index
    %328 = vector.load %arg5[%c3_152, %c0_153, %c0_154] : memref<6x1x32xf32, #tpu.memory_space<vmem>>, vector<1x1x32xf32>
    %329 = vector.shape_cast %328 : vector<1x1x32xf32> to vector<1x32xf32>
    %c3_155 = arith.constant 3 : index
    %c0_156 = arith.constant 0 : index
    %c0_157 = arith.constant 0 : index
    %330 = vector.load %arg6[%c3_155, %c0_156, %c0_157] : memref<6x1x32xf32, #tpu.memory_space<vmem>>, vector<1x1x32xf32>
    %331 = vector.shape_cast %330 : vector<1x1x32xf32> to vector<1x32xf32>
    %cst_158 = arith.constant dense<0.000000e+00> : vector<8xf32>
    %332 = vector.multi_reduction <add>, %327, %cst_158 [1] : vector<8x32xf32> to vector<8xf32>
    %333 = vector.shape_cast %332 : vector<8xf32> to vector<8x1xf32>
    %cst_159 = arith.constant 3.200000e+01 : f32
    %334 = vector.broadcast %cst_159 : f32 to vector<8x1xf32>
    %335 = arith.divf %333, %334 : vector<8x1xf32>
    %336 = vector.broadcast %335 : vector<8x1xf32> to vector<8x32xf32>
    %337 = arith.subf %327, %336 : vector<8x32xf32>
    %338 = arith.mulf %337, %337 : vector<8x32xf32>
    %cst_160 = arith.constant dense<0.000000e+00> : vector<8xf32>
    %339 = vector.multi_reduction <add>, %338, %cst_160 [1] : vector<8x32xf32> to vector<8xf32>
    %340 = vector.shape_cast %339 : vector<8xf32> to vector<8x1xf32>
    %cst_161 = arith.constant 3.200000e+01 : f32
    %341 = vector.broadcast %cst_161 : f32 to vector<8x1xf32>
    %342 = arith.divf %340, %341 : vector<8x1xf32>
    %343 = vector.broadcast %335 : vector<8x1xf32> to vector<8x32xf32>
    %344 = arith.subf %327, %343 : vector<8x32xf32>
    %cst_162 = arith.constant 9.99999974E-6 : f32
    %345 = vector.broadcast %cst_162 : f32 to vector<8x1xf32>
    %346 = arith.addf %342, %345 : vector<8x1xf32>
    %347 = math.rsqrt %346 : vector<8x1xf32>
    %348 = vector.broadcast %347 : vector<8x1xf32> to vector<8x32xf32>
    %349 = arith.mulf %344, %348 : vector<8x32xf32>
    %350 = vector.broadcast %329 : vector<1x32xf32> to vector<8x32xf32>
    %351 = arith.mulf %349, %350 : vector<8x32xf32>
    %352 = vector.broadcast %331 : vector<1x32xf32> to vector<8x32xf32>
    %353 = arith.addf %351, %352 : vector<8x32xf32>
    %c8 = arith.constant 8 : index
    %c0_163 = arith.constant 0 : index
    %c0_164 = arith.constant 0 : index
    %354 = vector.load %arg3[%c8, %c0_163, %c0_164] : memref<16x32x32xf32, #tpu.memory_space<vmem>>, vector<1x32x32xf32>
    %355 = vector.shape_cast %354 : vector<1x32x32xf32> to vector<32x32xf32>
    %c9 = arith.constant 9 : index
    %c0_165 = arith.constant 0 : index
    %c0_166 = arith.constant 0 : index
    %356 = vector.load %arg3[%c9, %c0_165, %c0_166] : memref<16x32x32xf32, #tpu.memory_space<vmem>>, vector<1x32x32xf32>
    %357 = vector.shape_cast %356 : vector<1x32x32xf32> to vector<32x32xf32>
    %c10 = arith.constant 10 : index
    %c0_167 = arith.constant 0 : index
    %c0_168 = arith.constant 0 : index
    %358 = vector.load %arg3[%c10, %c0_167, %c0_168] : memref<16x32x32xf32, #tpu.memory_space<vmem>>, vector<1x32x32xf32>
    %359 = vector.shape_cast %358 : vector<1x32x32xf32> to vector<32x32xf32>
    %c11 = arith.constant 11 : index
    %c0_169 = arith.constant 0 : index
    %c0_170 = arith.constant 0 : index
    %360 = vector.load %arg3[%c11, %c0_169, %c0_170] : memref<16x32x32xf32, #tpu.memory_space<vmem>>, vector<1x32x32xf32>
    %361 = vector.shape_cast %360 : vector<1x32x32xf32> to vector<32x32xf32>
    %c8_171 = arith.constant 8 : index
    %c0_172 = arith.constant 0 : index
    %c0_173 = arith.constant 0 : index
    %362 = vector.load %arg4[%c8_171, %c0_172, %c0_173] : memref<16x1x32xf32, #tpu.memory_space<vmem>>, vector<1x1x32xf32>
    %363 = vector.shape_cast %362 : vector<1x1x32xf32> to vector<1x32xf32>
    %c9_174 = arith.constant 9 : index
    %c0_175 = arith.constant 0 : index
    %c0_176 = arith.constant 0 : index
    %364 = vector.load %arg4[%c9_174, %c0_175, %c0_176] : memref<16x1x32xf32, #tpu.memory_space<vmem>>, vector<1x1x32xf32>
    %365 = vector.shape_cast %364 : vector<1x1x32xf32> to vector<1x32xf32>
    %c10_177 = arith.constant 10 : index
    %c0_178 = arith.constant 0 : index
    %c0_179 = arith.constant 0 : index
    %366 = vector.load %arg4[%c10_177, %c0_178, %c0_179] : memref<16x1x32xf32, #tpu.memory_space<vmem>>, vector<1x1x32xf32>
    %367 = vector.shape_cast %366 : vector<1x1x32xf32> to vector<1x32xf32>
    %c11_180 = arith.constant 11 : index
    %c0_181 = arith.constant 0 : index
    %c0_182 = arith.constant 0 : index
    %368 = vector.load %arg4[%c11_180, %c0_181, %c0_182] : memref<16x1x32xf32, #tpu.memory_space<vmem>>, vector<1x1x32xf32>
    %369 = vector.shape_cast %368 : vector<1x1x32xf32> to vector<1x32xf32>
    %cst_183 = arith.constant dense<0.000000e+00> : vector<8x32xf32>
    %370 = tpu.matmul %353, %355, %cst_183 {dimension_numbers = #tpu.dot_dimension_numbers<[1], [0], [0], [1], [0, 0, 1, 1], [], []>} : vector<8x32xf32>, vector<32x32xf32>, vector<8x32xf32> -> vector<8x32xf32>
    %371 = vector.broadcast %363 : vector<1x32xf32> to vector<8x32xf32>
    %372 = arith.addf %370, %371 : vector<8x32xf32>
    %cst_184 = arith.constant dense<0.000000e+00> : vector<8x32xf32>
    %373 = tpu.matmul %353, %357, %cst_184 {dimension_numbers = #tpu.dot_dimension_numbers<[1], [0], [0], [1], [0, 0, 1, 1], [], []>} : vector<8x32xf32>, vector<32x32xf32>, vector<8x32xf32> -> vector<8x32xf32>
    %374 = vector.broadcast %365 : vector<1x32xf32> to vector<8x32xf32>
    %375 = arith.addf %373, %374 : vector<8x32xf32>
    %cst_185 = arith.constant dense<0.000000e+00> : vector<8x32xf32>
    %376 = tpu.matmul %353, %359, %cst_185 {dimension_numbers = #tpu.dot_dimension_numbers<[1], [0], [0], [1], [0, 0, 1, 1], [], []>} : vector<8x32xf32>, vector<32x32xf32>, vector<8x32xf32> -> vector<8x32xf32>
    %377 = vector.broadcast %367 : vector<1x32xf32> to vector<8x32xf32>
    %378 = arith.addf %376, %377 : vector<8x32xf32>
    %cst_186 = arith.constant 0.000000e+00 : f32
    %379 = vector.broadcast %cst_186 : f32 to vector<8x32xf32>
    %380 = vector.extract_strided_slice %372 {offsets = [0, 0], sizes = [8, 8], strides = [1, 1]} : vector<8x32xf32> to vector<8x8xf32>
    %381 = vector.extract_strided_slice %375 {offsets = [0, 0], sizes = [8, 8], strides = [1, 1]} : vector<8x32xf32> to vector<8x8xf32>
    %cst_187 = arith.constant dense<0.000000e+00> : vector<8x8xf32>
    %382 = tpu.matmul %380, %381, %cst_187 {dimension_numbers = #tpu.dot_dimension_numbers<[1], [1], [0], [0], [0, 0, 1, 0], [], []>} : vector<8x8xf32>, vector<8x8xf32>, vector<8x8xf32> -> vector<8x8xf32>
    %cst_188 = arith.constant 0.353553385 : f32
    %383 = vector.broadcast %cst_188 : f32 to vector<8x8xf32>
    %384 = arith.mulf %382, %383 : vector<8x8xf32>
    %cst_189 = arith.constant dense<0xFF800000> : vector<8xf32>
    %385 = vector.multi_reduction <maximumf>, %384, %cst_189 [1] : vector<8x8xf32> to vector<8xf32>
    %386 = vector.shape_cast %385 : vector<8xf32> to vector<8x1xf32>
    %387 = vector.broadcast %386 : vector<8x1xf32> to vector<8x8xf32>
    %388 = arith.subf %384, %387 : vector<8x8xf32>
    %389 = math.exp %388 : vector<8x8xf32>
    %cst_190 = arith.constant dense<0.000000e+00> : vector<8xf32>
    %390 = vector.multi_reduction <add>, %389, %cst_190 [1] : vector<8x8xf32> to vector<8xf32>
    %391 = vector.shape_cast %390 : vector<8xf32> to vector<8x1xf32>
    %392 = tpu.reciprocal %391 {approx = true} : vector<8x1xf32> -> vector<8x1xf32>
    %393 = vector.broadcast %392 : vector<8x1xf32> to vector<8x8xf32>
    %394 = arith.mulf %389, %393 : vector<8x8xf32>
    %395 = vector.extract_strided_slice %378 {offsets = [0, 0], sizes = [8, 8], strides = [1, 1]} : vector<8x32xf32> to vector<8x8xf32>
    %cst_191 = arith.constant dense<0.000000e+00> : vector<8x8xf32>
    %396 = tpu.matmul %394, %395, %cst_191 {dimension_numbers = #tpu.dot_dimension_numbers<[1], [0], [0], [1], [0, 0, 1, 1], [], []>} : vector<8x8xf32>, vector<8x8xf32>, vector<8x8xf32> -> vector<8x8xf32>
    %397 = vector.extract_strided_slice %361 {offsets = [0, 0], sizes = [8, 32], strides = [1, 1]} : vector<32x32xf32> to vector<8x32xf32>
    %cst_192 = arith.constant dense<0.000000e+00> : vector<8x32xf32>
    %398 = tpu.matmul %396, %397, %cst_192 {dimension_numbers = #tpu.dot_dimension_numbers<[1], [0], [0], [1], [0, 0, 1, 1], [], []>} : vector<8x8xf32>, vector<8x32xf32>, vector<8x32xf32> -> vector<8x32xf32>
    %399 = arith.addf %379, %398 : vector<8x32xf32>
    %400 = vector.extract_strided_slice %372 {offsets = [0, 8], sizes = [8, 8], strides = [1, 1]} : vector<8x32xf32> to vector<8x8xf32>
    %401 = vector.extract_strided_slice %375 {offsets = [0, 8], sizes = [8, 8], strides = [1, 1]} : vector<8x32xf32> to vector<8x8xf32>
    %cst_193 = arith.constant dense<0.000000e+00> : vector<8x8xf32>
    %402 = tpu.matmul %400, %401, %cst_193 {dimension_numbers = #tpu.dot_dimension_numbers<[1], [1], [0], [0], [0, 0, 1, 0], [], []>} : vector<8x8xf32>, vector<8x8xf32>, vector<8x8xf32> -> vector<8x8xf32>
    %cst_194 = arith.constant 0.353553385 : f32
    %403 = vector.broadcast %cst_194 : f32 to vector<8x8xf32>
    %404 = arith.mulf %402, %403 : vector<8x8xf32>
    %cst_195 = arith.constant dense<0xFF800000> : vector<8xf32>
    %405 = vector.multi_reduction <maximumf>, %404, %cst_195 [1] : vector<8x8xf32> to vector<8xf32>
    %406 = vector.shape_cast %405 : vector<8xf32> to vector<8x1xf32>
    %407 = vector.broadcast %406 : vector<8x1xf32> to vector<8x8xf32>
    %408 = arith.subf %404, %407 : vector<8x8xf32>
    %409 = math.exp %408 : vector<8x8xf32>
    %cst_196 = arith.constant dense<0.000000e+00> : vector<8xf32>
    %410 = vector.multi_reduction <add>, %409, %cst_196 [1] : vector<8x8xf32> to vector<8xf32>
    %411 = vector.shape_cast %410 : vector<8xf32> to vector<8x1xf32>
    %412 = tpu.reciprocal %411 {approx = true} : vector<8x1xf32> -> vector<8x1xf32>
    %413 = vector.broadcast %412 : vector<8x1xf32> to vector<8x8xf32>
    %414 = arith.mulf %409, %413 : vector<8x8xf32>
    %415 = vector.extract_strided_slice %378 {offsets = [0, 8], sizes = [8, 8], strides = [1, 1]} : vector<8x32xf32> to vector<8x8xf32>
    %cst_197 = arith.constant dense<0.000000e+00> : vector<8x8xf32>
    %416 = tpu.matmul %414, %415, %cst_197 {dimension_numbers = #tpu.dot_dimension_numbers<[1], [0], [0], [1], [0, 0, 1, 1], [], []>} : vector<8x8xf32>, vector<8x8xf32>, vector<8x8xf32> -> vector<8x8xf32>
    %417 = vector.extract_strided_slice %361 {offsets = [8, 0], sizes = [8, 32], strides = [1, 1]} : vector<32x32xf32> to vector<8x32xf32>
    %cst_198 = arith.constant dense<0.000000e+00> : vector<8x32xf32>
    %418 = tpu.matmul %416, %417, %cst_198 {dimension_numbers = #tpu.dot_dimension_numbers<[1], [0], [0], [1], [0, 0, 1, 1], [], []>} : vector<8x8xf32>, vector<8x32xf32>, vector<8x32xf32> -> vector<8x32xf32>
    %419 = arith.addf %399, %418 : vector<8x32xf32>
    %420 = vector.extract_strided_slice %372 {offsets = [0, 16], sizes = [8, 8], strides = [1, 1]} : vector<8x32xf32> to vector<8x8xf32>
    %421 = vector.extract_strided_slice %375 {offsets = [0, 16], sizes = [8, 8], strides = [1, 1]} : vector<8x32xf32> to vector<8x8xf32>
    %cst_199 = arith.constant dense<0.000000e+00> : vector<8x8xf32>
    %422 = tpu.matmul %420, %421, %cst_199 {dimension_numbers = #tpu.dot_dimension_numbers<[1], [1], [0], [0], [0, 0, 1, 0], [], []>} : vector<8x8xf32>, vector<8x8xf32>, vector<8x8xf32> -> vector<8x8xf32>
    %cst_200 = arith.constant 0.353553385 : f32
    %423 = vector.broadcast %cst_200 : f32 to vector<8x8xf32>
    %424 = arith.mulf %422, %423 : vector<8x8xf32>
    %cst_201 = arith.constant dense<0xFF800000> : vector<8xf32>
    %425 = vector.multi_reduction <maximumf>, %424, %cst_201 [1] : vector<8x8xf32> to vector<8xf32>
    %426 = vector.shape_cast %425 : vector<8xf32> to vector<8x1xf32>
    %427 = vector.broadcast %426 : vector<8x1xf32> to vector<8x8xf32>
    %428 = arith.subf %424, %427 : vector<8x8xf32>
    %429 = math.exp %428 : vector<8x8xf32>
    %cst_202 = arith.constant dense<0.000000e+00> : vector<8xf32>
    %430 = vector.multi_reduction <add>, %429, %cst_202 [1] : vector<8x8xf32> to vector<8xf32>
    %431 = vector.shape_cast %430 : vector<8xf32> to vector<8x1xf32>
    %432 = tpu.reciprocal %431 {approx = true} : vector<8x1xf32> -> vector<8x1xf32>
    %433 = vector.broadcast %432 : vector<8x1xf32> to vector<8x8xf32>
    %434 = arith.mulf %429, %433 : vector<8x8xf32>
    %435 = vector.extract_strided_slice %378 {offsets = [0, 16], sizes = [8, 8], strides = [1, 1]} : vector<8x32xf32> to vector<8x8xf32>
    %cst_203 = arith.constant dense<0.000000e+00> : vector<8x8xf32>
    %436 = tpu.matmul %434, %435, %cst_203 {dimension_numbers = #tpu.dot_dimension_numbers<[1], [0], [0], [1], [0, 0, 1, 1], [], []>} : vector<8x8xf32>, vector<8x8xf32>, vector<8x8xf32> -> vector<8x8xf32>
    %437 = vector.extract_strided_slice %361 {offsets = [16, 0], sizes = [8, 32], strides = [1, 1]} : vector<32x32xf32> to vector<8x32xf32>
    %cst_204 = arith.constant dense<0.000000e+00> : vector<8x32xf32>
    %438 = tpu.matmul %436, %437, %cst_204 {dimension_numbers = #tpu.dot_dimension_numbers<[1], [0], [0], [1], [0, 0, 1, 1], [], []>} : vector<8x8xf32>, vector<8x32xf32>, vector<8x32xf32> -> vector<8x32xf32>
    %439 = arith.addf %419, %438 : vector<8x32xf32>
    %440 = vector.extract_strided_slice %372 {offsets = [0, 24], sizes = [8, 8], strides = [1, 1]} : vector<8x32xf32> to vector<8x8xf32>
    %441 = vector.extract_strided_slice %375 {offsets = [0, 24], sizes = [8, 8], strides = [1, 1]} : vector<8x32xf32> to vector<8x8xf32>
    %cst_205 = arith.constant dense<0.000000e+00> : vector<8x8xf32>
    %442 = tpu.matmul %440, %441, %cst_205 {dimension_numbers = #tpu.dot_dimension_numbers<[1], [1], [0], [0], [0, 0, 1, 0], [], []>} : vector<8x8xf32>, vector<8x8xf32>, vector<8x8xf32> -> vector<8x8xf32>
    %cst_206 = arith.constant 0.353553385 : f32
    %443 = vector.broadcast %cst_206 : f32 to vector<8x8xf32>
    %444 = arith.mulf %442, %443 : vector<8x8xf32>
    %cst_207 = arith.constant dense<0xFF800000> : vector<8xf32>
    %445 = vector.multi_reduction <maximumf>, %444, %cst_207 [1] : vector<8x8xf32> to vector<8xf32>
    %446 = vector.shape_cast %445 : vector<8xf32> to vector<8x1xf32>
    %447 = vector.broadcast %446 : vector<8x1xf32> to vector<8x8xf32>
    %448 = arith.subf %444, %447 : vector<8x8xf32>
    %449 = math.exp %448 : vector<8x8xf32>
    %cst_208 = arith.constant dense<0.000000e+00> : vector<8xf32>
    %450 = vector.multi_reduction <add>, %449, %cst_208 [1] : vector<8x8xf32> to vector<8xf32>
    %451 = vector.shape_cast %450 : vector<8xf32> to vector<8x1xf32>
    %452 = tpu.reciprocal %451 {approx = true} : vector<8x1xf32> -> vector<8x1xf32>
    %453 = vector.broadcast %452 : vector<8x1xf32> to vector<8x8xf32>
    %454 = arith.mulf %449, %453 : vector<8x8xf32>
    %455 = vector.extract_strided_slice %378 {offsets = [0, 24], sizes = [8, 8], strides = [1, 1]} : vector<8x32xf32> to vector<8x8xf32>
    %cst_209 = arith.constant dense<0.000000e+00> : vector<8x8xf32>
    %456 = tpu.matmul %454, %455, %cst_209 {dimension_numbers = #tpu.dot_dimension_numbers<[1], [0], [0], [1], [0, 0, 1, 1], [], []>} : vector<8x8xf32>, vector<8x8xf32>, vector<8x8xf32> -> vector<8x8xf32>
    %457 = vector.extract_strided_slice %361 {offsets = [24, 0], sizes = [8, 32], strides = [1, 1]} : vector<32x32xf32> to vector<8x32xf32>
    %cst_210 = arith.constant dense<0.000000e+00> : vector<8x32xf32>
    %458 = tpu.matmul %456, %457, %cst_210 {dimension_numbers = #tpu.dot_dimension_numbers<[1], [0], [0], [1], [0, 0, 1, 1], [], []>} : vector<8x8xf32>, vector<8x32xf32>, vector<8x32xf32> -> vector<8x32xf32>
    %459 = arith.addf %439, %458 : vector<8x32xf32>
    %460 = vector.broadcast %369 : vector<1x32xf32> to vector<8x32xf32>
    %461 = arith.addf %459, %460 : vector<8x32xf32>
    %462 = arith.addf %327, %461 : vector<8x32xf32>
    %c4_211 = arith.constant 4 : index
    %c0_212 = arith.constant 0 : index
    %c0_213 = arith.constant 0 : index
    %463 = vector.load %arg5[%c4_211, %c0_212, %c0_213] : memref<6x1x32xf32, #tpu.memory_space<vmem>>, vector<1x1x32xf32>
    %464 = vector.shape_cast %463 : vector<1x1x32xf32> to vector<1x32xf32>
    %c4_214 = arith.constant 4 : index
    %c0_215 = arith.constant 0 : index
    %c0_216 = arith.constant 0 : index
    %465 = vector.load %arg6[%c4_214, %c0_215, %c0_216] : memref<6x1x32xf32, #tpu.memory_space<vmem>>, vector<1x1x32xf32>
    %466 = vector.shape_cast %465 : vector<1x1x32xf32> to vector<1x32xf32>
    %cst_217 = arith.constant dense<0.000000e+00> : vector<8xf32>
    %467 = vector.multi_reduction <add>, %462, %cst_217 [1] : vector<8x32xf32> to vector<8xf32>
    %468 = vector.shape_cast %467 : vector<8xf32> to vector<8x1xf32>
    %cst_218 = arith.constant 3.200000e+01 : f32
    %469 = vector.broadcast %cst_218 : f32 to vector<8x1xf32>
    %470 = arith.divf %468, %469 : vector<8x1xf32>
    %471 = vector.broadcast %470 : vector<8x1xf32> to vector<8x32xf32>
    %472 = arith.subf %462, %471 : vector<8x32xf32>
    %473 = arith.mulf %472, %472 : vector<8x32xf32>
    %cst_219 = arith.constant dense<0.000000e+00> : vector<8xf32>
    %474 = vector.multi_reduction <add>, %473, %cst_219 [1] : vector<8x32xf32> to vector<8xf32>
    %475 = vector.shape_cast %474 : vector<8xf32> to vector<8x1xf32>
    %cst_220 = arith.constant 3.200000e+01 : f32
    %476 = vector.broadcast %cst_220 : f32 to vector<8x1xf32>
    %477 = arith.divf %475, %476 : vector<8x1xf32>
    %478 = vector.broadcast %470 : vector<8x1xf32> to vector<8x32xf32>
    %479 = arith.subf %462, %478 : vector<8x32xf32>
    %cst_221 = arith.constant 9.99999974E-6 : f32
    %480 = vector.broadcast %cst_221 : f32 to vector<8x1xf32>
    %481 = arith.addf %477, %480 : vector<8x1xf32>
    %482 = math.rsqrt %481 : vector<8x1xf32>
    %483 = vector.broadcast %482 : vector<8x1xf32> to vector<8x32xf32>
    %484 = arith.mulf %479, %483 : vector<8x32xf32>
    %485 = vector.broadcast %464 : vector<1x32xf32> to vector<8x32xf32>
    %486 = arith.mulf %484, %485 : vector<8x32xf32>
    %487 = vector.broadcast %466 : vector<1x32xf32> to vector<8x32xf32>
    %488 = arith.addf %486, %487 : vector<8x32xf32>
    %c12 = arith.constant 12 : index
    %c0_222 = arith.constant 0 : index
    %c0_223 = arith.constant 0 : index
    %489 = vector.load %arg3[%c12, %c0_222, %c0_223] : memref<16x32x32xf32, #tpu.memory_space<vmem>>, vector<1x32x32xf32>
    %490 = vector.shape_cast %489 : vector<1x32x32xf32> to vector<32x32xf32>
    %c13 = arith.constant 13 : index
    %c0_224 = arith.constant 0 : index
    %c0_225 = arith.constant 0 : index
    %491 = vector.load %arg3[%c13, %c0_224, %c0_225] : memref<16x32x32xf32, #tpu.memory_space<vmem>>, vector<1x32x32xf32>
    %492 = vector.shape_cast %491 : vector<1x32x32xf32> to vector<32x32xf32>
    %c14 = arith.constant 14 : index
    %c0_226 = arith.constant 0 : index
    %c0_227 = arith.constant 0 : index
    %493 = vector.load %arg3[%c14, %c0_226, %c0_227] : memref<16x32x32xf32, #tpu.memory_space<vmem>>, vector<1x32x32xf32>
    %494 = vector.shape_cast %493 : vector<1x32x32xf32> to vector<32x32xf32>
    %c15 = arith.constant 15 : index
    %c0_228 = arith.constant 0 : index
    %c0_229 = arith.constant 0 : index
    %495 = vector.load %arg3[%c15, %c0_228, %c0_229] : memref<16x32x32xf32, #tpu.memory_space<vmem>>, vector<1x32x32xf32>
    %496 = vector.shape_cast %495 : vector<1x32x32xf32> to vector<32x32xf32>
    %c12_230 = arith.constant 12 : index
    %c0_231 = arith.constant 0 : index
    %c0_232 = arith.constant 0 : index
    %497 = vector.load %arg4[%c12_230, %c0_231, %c0_232] : memref<16x1x32xf32, #tpu.memory_space<vmem>>, vector<1x1x32xf32>
    %498 = vector.shape_cast %497 : vector<1x1x32xf32> to vector<1x32xf32>
    %c13_233 = arith.constant 13 : index
    %c0_234 = arith.constant 0 : index
    %c0_235 = arith.constant 0 : index
    %499 = vector.load %arg4[%c13_233, %c0_234, %c0_235] : memref<16x1x32xf32, #tpu.memory_space<vmem>>, vector<1x1x32xf32>
    %500 = vector.shape_cast %499 : vector<1x1x32xf32> to vector<1x32xf32>
    %c14_236 = arith.constant 14 : index
    %c0_237 = arith.constant 0 : index
    %c0_238 = arith.constant 0 : index
    %501 = vector.load %arg4[%c14_236, %c0_237, %c0_238] : memref<16x1x32xf32, #tpu.memory_space<vmem>>, vector<1x1x32xf32>
    %502 = vector.shape_cast %501 : vector<1x1x32xf32> to vector<1x32xf32>
    %c15_239 = arith.constant 15 : index
    %c0_240 = arith.constant 0 : index
    %c0_241 = arith.constant 0 : index
    %503 = vector.load %arg4[%c15_239, %c0_240, %c0_241] : memref<16x1x32xf32, #tpu.memory_space<vmem>>, vector<1x1x32xf32>
    %504 = vector.shape_cast %503 : vector<1x1x32xf32> to vector<1x32xf32>
    %cst_242 = arith.constant dense<0.000000e+00> : vector<8x32xf32>
    %505 = tpu.matmul %488, %490, %cst_242 {dimension_numbers = #tpu.dot_dimension_numbers<[1], [0], [0], [1], [0, 0, 1, 1], [], []>} : vector<8x32xf32>, vector<32x32xf32>, vector<8x32xf32> -> vector<8x32xf32>
    %506 = vector.broadcast %498 : vector<1x32xf32> to vector<8x32xf32>
    %507 = arith.addf %505, %506 : vector<8x32xf32>
    %cst_243 = arith.constant dense<0.000000e+00> : vector<16x32xf32>
    %508 = tpu.matmul %3, %492, %cst_243 {dimension_numbers = #tpu.dot_dimension_numbers<[1], [0], [0], [1], [0, 0, 1, 1], [], []>} : vector<16x32xf32>, vector<32x32xf32>, vector<16x32xf32> -> vector<16x32xf32>
    %509 = vector.broadcast %500 : vector<1x32xf32> to vector<16x32xf32>
    %510 = arith.addf %508, %509 : vector<16x32xf32>
    %cst_244 = arith.constant dense<0.000000e+00> : vector<16x32xf32>
    %511 = tpu.matmul %3, %494, %cst_244 {dimension_numbers = #tpu.dot_dimension_numbers<[1], [0], [0], [1], [0, 0, 1, 1], [], []>} : vector<16x32xf32>, vector<32x32xf32>, vector<16x32xf32> -> vector<16x32xf32>
    %512 = vector.broadcast %502 : vector<1x32xf32> to vector<16x32xf32>
    %513 = arith.addf %511, %512 : vector<16x32xf32>
    %cst_245 = arith.constant 0.000000e+00 : f32
    %514 = vector.broadcast %cst_245 : f32 to vector<8x32xf32>
    %cst_246 = arith.constant 0.000000e+00 : f32
    %515 = vector.broadcast %cst_246 : f32 to vector<8x16xf32>
    %516 = vector.extract_strided_slice %507 {offsets = [0, 0], sizes = [8, 8], strides = [1, 1]} : vector<8x32xf32> to vector<8x8xf32>
    %517 = vector.extract_strided_slice %510 {offsets = [0, 0], sizes = [16, 8], strides = [1, 1]} : vector<16x32xf32> to vector<16x8xf32>
    %cst_247 = arith.constant dense<0.000000e+00> : vector<8x16xf32>
    %518 = tpu.matmul %516, %517, %cst_247 {dimension_numbers = #tpu.dot_dimension_numbers<[1], [1], [0], [0], [0, 0, 1, 0], [], []>} : vector<8x8xf32>, vector<16x8xf32>, vector<8x16xf32> -> vector<8x16xf32>
    %cst_248 = arith.constant 0.353553385 : f32
    %519 = vector.broadcast %cst_248 : f32 to vector<8x16xf32>
    %520 = arith.mulf %518, %519 : vector<8x16xf32>
    %cst_249 = arith.constant dense<0xFF800000> : vector<8xf32>
    %521 = vector.multi_reduction <maximumf>, %520, %cst_249 [1] : vector<8x16xf32> to vector<8xf32>
    %522 = vector.shape_cast %521 : vector<8xf32> to vector<8x1xf32>
    %523 = vector.broadcast %522 : vector<8x1xf32> to vector<8x16xf32>
    %524 = arith.subf %520, %523 : vector<8x16xf32>
    %525 = math.exp %524 : vector<8x16xf32>
    %cst_250 = arith.constant dense<0.000000e+00> : vector<8xf32>
    %526 = vector.multi_reduction <add>, %525, %cst_250 [1] : vector<8x16xf32> to vector<8xf32>
    %527 = vector.shape_cast %526 : vector<8xf32> to vector<8x1xf32>
    %528 = tpu.reciprocal %527 {approx = true} : vector<8x1xf32> -> vector<8x1xf32>
    %529 = vector.broadcast %528 : vector<8x1xf32> to vector<8x16xf32>
    %530 = arith.mulf %525, %529 : vector<8x16xf32>
    %531 = vector.extract_strided_slice %513 {offsets = [0, 0], sizes = [16, 8], strides = [1, 1]} : vector<16x32xf32> to vector<16x8xf32>
    %cst_251 = arith.constant dense<0.000000e+00> : vector<8x8xf32>
    %532 = tpu.matmul %530, %531, %cst_251 {dimension_numbers = #tpu.dot_dimension_numbers<[1], [0], [0], [1], [0, 0, 1, 1], [], []>} : vector<8x16xf32>, vector<16x8xf32>, vector<8x8xf32> -> vector<8x8xf32>
    %533 = vector.extract_strided_slice %496 {offsets = [0, 0], sizes = [8, 32], strides = [1, 1]} : vector<32x32xf32> to vector<8x32xf32>
    %cst_252 = arith.constant dense<0.000000e+00> : vector<8x32xf32>
    %534 = tpu.matmul %532, %533, %cst_252 {dimension_numbers = #tpu.dot_dimension_numbers<[1], [0], [0], [1], [0, 0, 1, 1], [], []>} : vector<8x8xf32>, vector<8x32xf32>, vector<8x32xf32> -> vector<8x32xf32>
    %535 = arith.addf %514, %534 : vector<8x32xf32>
    %536 = arith.addf %515, %530 : vector<8x16xf32>
    %537 = vector.extract_strided_slice %507 {offsets = [0, 8], sizes = [8, 8], strides = [1, 1]} : vector<8x32xf32> to vector<8x8xf32>
    %538 = vector.extract_strided_slice %510 {offsets = [0, 8], sizes = [16, 8], strides = [1, 1]} : vector<16x32xf32> to vector<16x8xf32>
    %cst_253 = arith.constant dense<0.000000e+00> : vector<8x16xf32>
    %539 = tpu.matmul %537, %538, %cst_253 {dimension_numbers = #tpu.dot_dimension_numbers<[1], [1], [0], [0], [0, 0, 1, 0], [], []>} : vector<8x8xf32>, vector<16x8xf32>, vector<8x16xf32> -> vector<8x16xf32>
    %cst_254 = arith.constant 0.353553385 : f32
    %540 = vector.broadcast %cst_254 : f32 to vector<8x16xf32>
    %541 = arith.mulf %539, %540 : vector<8x16xf32>
    %cst_255 = arith.constant dense<0xFF800000> : vector<8xf32>
    %542 = vector.multi_reduction <maximumf>, %541, %cst_255 [1] : vector<8x16xf32> to vector<8xf32>
    %543 = vector.shape_cast %542 : vector<8xf32> to vector<8x1xf32>
    %544 = vector.broadcast %543 : vector<8x1xf32> to vector<8x16xf32>
    %545 = arith.subf %541, %544 : vector<8x16xf32>
    %546 = math.exp %545 : vector<8x16xf32>
    %cst_256 = arith.constant dense<0.000000e+00> : vector<8xf32>
    %547 = vector.multi_reduction <add>, %546, %cst_256 [1] : vector<8x16xf32> to vector<8xf32>
    %548 = vector.shape_cast %547 : vector<8xf32> to vector<8x1xf32>
    %549 = tpu.reciprocal %548 {approx = true} : vector<8x1xf32> -> vector<8x1xf32>
    %550 = vector.broadcast %549 : vector<8x1xf32> to vector<8x16xf32>
    %551 = arith.mulf %546, %550 : vector<8x16xf32>
    %552 = vector.extract_strided_slice %513 {offsets = [0, 8], sizes = [16, 8], strides = [1, 1]} : vector<16x32xf32> to vector<16x8xf32>
    %cst_257 = arith.constant dense<0.000000e+00> : vector<8x8xf32>
    %553 = tpu.matmul %551, %552, %cst_257 {dimension_numbers = #tpu.dot_dimension_numbers<[1], [0], [0], [1], [0, 0, 1, 1], [], []>} : vector<8x16xf32>, vector<16x8xf32>, vector<8x8xf32> -> vector<8x8xf32>
    %554 = vector.extract_strided_slice %496 {offsets = [8, 0], sizes = [8, 32], strides = [1, 1]} : vector<32x32xf32> to vector<8x32xf32>
    %cst_258 = arith.constant dense<0.000000e+00> : vector<8x32xf32>
    %555 = tpu.matmul %553, %554, %cst_258 {dimension_numbers = #tpu.dot_dimension_numbers<[1], [0], [0], [1], [0, 0, 1, 1], [], []>} : vector<8x8xf32>, vector<8x32xf32>, vector<8x32xf32> -> vector<8x32xf32>
    %556 = arith.addf %535, %555 : vector<8x32xf32>
    %557 = arith.addf %536, %551 : vector<8x16xf32>
    %558 = vector.extract_strided_slice %507 {offsets = [0, 16], sizes = [8, 8], strides = [1, 1]} : vector<8x32xf32> to vector<8x8xf32>
    %559 = vector.extract_strided_slice %510 {offsets = [0, 16], sizes = [16, 8], strides = [1, 1]} : vector<16x32xf32> to vector<16x8xf32>
    %cst_259 = arith.constant dense<0.000000e+00> : vector<8x16xf32>
    %560 = tpu.matmul %558, %559, %cst_259 {dimension_numbers = #tpu.dot_dimension_numbers<[1], [1], [0], [0], [0, 0, 1, 0], [], []>} : vector<8x8xf32>, vector<16x8xf32>, vector<8x16xf32> -> vector<8x16xf32>
    %cst_260 = arith.constant 0.353553385 : f32
    %561 = vector.broadcast %cst_260 : f32 to vector<8x16xf32>
    %562 = arith.mulf %560, %561 : vector<8x16xf32>
    %cst_261 = arith.constant dense<0xFF800000> : vector<8xf32>
    %563 = vector.multi_reduction <maximumf>, %562, %cst_261 [1] : vector<8x16xf32> to vector<8xf32>
    %564 = vector.shape_cast %563 : vector<8xf32> to vector<8x1xf32>
    %565 = vector.broadcast %564 : vector<8x1xf32> to vector<8x16xf32>
    %566 = arith.subf %562, %565 : vector<8x16xf32>
    %567 = math.exp %566 : vector<8x16xf32>
    %cst_262 = arith.constant dense<0.000000e+00> : vector<8xf32>
    %568 = vector.multi_reduction <add>, %567, %cst_262 [1] : vector<8x16xf32> to vector<8xf32>
    %569 = vector.shape_cast %568 : vector<8xf32> to vector<8x1xf32>
    %570 = tpu.reciprocal %569 {approx = true} : vector<8x1xf32> -> vector<8x1xf32>
    %571 = vector.broadcast %570 : vector<8x1xf32> to vector<8x16xf32>
    %572 = arith.mulf %567, %571 : vector<8x16xf32>
    %573 = vector.extract_strided_slice %513 {offsets = [0, 16], sizes = [16, 8], strides = [1, 1]} : vector<16x32xf32> to vector<16x8xf32>
    %cst_263 = arith.constant dense<0.000000e+00> : vector<8x8xf32>
    %574 = tpu.matmul %572, %573, %cst_263 {dimension_numbers = #tpu.dot_dimension_numbers<[1], [0], [0], [1], [0, 0, 1, 1], [], []>} : vector<8x16xf32>, vector<16x8xf32>, vector<8x8xf32> -> vector<8x8xf32>
    %575 = vector.extract_strided_slice %496 {offsets = [16, 0], sizes = [8, 32], strides = [1, 1]} : vector<32x32xf32> to vector<8x32xf32>
    %cst_264 = arith.constant dense<0.000000e+00> : vector<8x32xf32>
    %576 = tpu.matmul %574, %575, %cst_264 {dimension_numbers = #tpu.dot_dimension_numbers<[1], [0], [0], [1], [0, 0, 1, 1], [], []>} : vector<8x8xf32>, vector<8x32xf32>, vector<8x32xf32> -> vector<8x32xf32>
    %577 = arith.addf %556, %576 : vector<8x32xf32>
    %578 = arith.addf %557, %572 : vector<8x16xf32>
    %579 = vector.extract_strided_slice %507 {offsets = [0, 24], sizes = [8, 8], strides = [1, 1]} : vector<8x32xf32> to vector<8x8xf32>
    %580 = vector.extract_strided_slice %510 {offsets = [0, 24], sizes = [16, 8], strides = [1, 1]} : vector<16x32xf32> to vector<16x8xf32>
    %cst_265 = arith.constant dense<0.000000e+00> : vector<8x16xf32>
    %581 = tpu.matmul %579, %580, %cst_265 {dimension_numbers = #tpu.dot_dimension_numbers<[1], [1], [0], [0], [0, 0, 1, 0], [], []>} : vector<8x8xf32>, vector<16x8xf32>, vector<8x16xf32> -> vector<8x16xf32>
    %cst_266 = arith.constant 0.353553385 : f32
    %582 = vector.broadcast %cst_266 : f32 to vector<8x16xf32>
    %583 = arith.mulf %581, %582 : vector<8x16xf32>
    %cst_267 = arith.constant dense<0xFF800000> : vector<8xf32>
    %584 = vector.multi_reduction <maximumf>, %583, %cst_267 [1] : vector<8x16xf32> to vector<8xf32>
    %585 = vector.shape_cast %584 : vector<8xf32> to vector<8x1xf32>
    %586 = vector.broadcast %585 : vector<8x1xf32> to vector<8x16xf32>
    %587 = arith.subf %583, %586 : vector<8x16xf32>
    %588 = math.exp %587 : vector<8x16xf32>
    %cst_268 = arith.constant dense<0.000000e+00> : vector<8xf32>
    %589 = vector.multi_reduction <add>, %588, %cst_268 [1] : vector<8x16xf32> to vector<8xf32>
    %590 = vector.shape_cast %589 : vector<8xf32> to vector<8x1xf32>
    %591 = tpu.reciprocal %590 {approx = true} : vector<8x1xf32> -> vector<8x1xf32>
    %592 = vector.broadcast %591 : vector<8x1xf32> to vector<8x16xf32>
    %593 = arith.mulf %588, %592 : vector<8x16xf32>
    %594 = vector.extract_strided_slice %513 {offsets = [0, 24], sizes = [16, 8], strides = [1, 1]} : vector<16x32xf32> to vector<16x8xf32>
    %cst_269 = arith.constant dense<0.000000e+00> : vector<8x8xf32>
    %595 = tpu.matmul %593, %594, %cst_269 {dimension_numbers = #tpu.dot_dimension_numbers<[1], [0], [0], [1], [0, 0, 1, 1], [], []>} : vector<8x16xf32>, vector<16x8xf32>, vector<8x8xf32> -> vector<8x8xf32>
    %596 = vector.extract_strided_slice %496 {offsets = [24, 0], sizes = [8, 32], strides = [1, 1]} : vector<32x32xf32> to vector<8x32xf32>
    %cst_270 = arith.constant dense<0.000000e+00> : vector<8x32xf32>
    %597 = tpu.matmul %595, %596, %cst_270 {dimension_numbers = #tpu.dot_dimension_numbers<[1], [0], [0], [1], [0, 0, 1, 1], [], []>} : vector<8x8xf32>, vector<8x32xf32>, vector<8x32xf32> -> vector<8x32xf32>
    %598 = arith.addf %577, %597 : vector<8x32xf32>
    %599 = arith.addf %578, %593 : vector<8x16xf32>
    %600 = vector.broadcast %504 : vector<1x32xf32> to vector<8x32xf32>
    %601 = arith.addf %598, %600 : vector<8x32xf32>
    %cst_271 = arith.constant 2.500000e-01 : f32
    %602 = vector.broadcast %cst_271 : f32 to vector<8x16xf32>
    %603 = arith.mulf %599, %602 : vector<8x16xf32>
    %604 = arith.addf %462, %601 : vector<8x32xf32>
    %c5_272 = arith.constant 5 : index
    %c0_273 = arith.constant 0 : index
    %c0_274 = arith.constant 0 : index
    %605 = vector.load %arg5[%c5_272, %c0_273, %c0_274] : memref<6x1x32xf32, #tpu.memory_space<vmem>>, vector<1x1x32xf32>
    %606 = vector.shape_cast %605 : vector<1x1x32xf32> to vector<1x32xf32>
    %c5_275 = arith.constant 5 : index
    %c0_276 = arith.constant 0 : index
    %c0_277 = arith.constant 0 : index
    %607 = vector.load %arg6[%c5_275, %c0_276, %c0_277] : memref<6x1x32xf32, #tpu.memory_space<vmem>>, vector<1x1x32xf32>
    %608 = vector.shape_cast %607 : vector<1x1x32xf32> to vector<1x32xf32>
    %cst_278 = arith.constant dense<0.000000e+00> : vector<8xf32>
    %609 = vector.multi_reduction <add>, %604, %cst_278 [1] : vector<8x32xf32> to vector<8xf32>
    %610 = vector.shape_cast %609 : vector<8xf32> to vector<8x1xf32>
    %cst_279 = arith.constant 3.200000e+01 : f32
    %611 = vector.broadcast %cst_279 : f32 to vector<8x1xf32>
    %612 = arith.divf %610, %611 : vector<8x1xf32>
    %613 = vector.broadcast %612 : vector<8x1xf32> to vector<8x32xf32>
    %614 = arith.subf %604, %613 : vector<8x32xf32>
    %615 = arith.mulf %614, %614 : vector<8x32xf32>
    %cst_280 = arith.constant dense<0.000000e+00> : vector<8xf32>
    %616 = vector.multi_reduction <add>, %615, %cst_280 [1] : vector<8x32xf32> to vector<8xf32>
    %617 = vector.shape_cast %616 : vector<8xf32> to vector<8x1xf32>
    %cst_281 = arith.constant 3.200000e+01 : f32
    %618 = vector.broadcast %cst_281 : f32 to vector<8x1xf32>
    %619 = arith.divf %617, %618 : vector<8x1xf32>
    %620 = vector.broadcast %612 : vector<8x1xf32> to vector<8x32xf32>
    %621 = arith.subf %604, %620 : vector<8x32xf32>
    %cst_282 = arith.constant 9.99999974E-6 : f32
    %622 = vector.broadcast %cst_282 : f32 to vector<8x1xf32>
    %623 = arith.addf %619, %622 : vector<8x1xf32>
    %624 = math.rsqrt %623 : vector<8x1xf32>
    %625 = vector.broadcast %624 : vector<8x1xf32> to vector<8x32xf32>
    %626 = arith.mulf %621, %625 : vector<8x32xf32>
    %627 = vector.broadcast %606 : vector<1x32xf32> to vector<8x32xf32>
    %628 = arith.mulf %626, %627 : vector<8x32xf32>
    %629 = vector.broadcast %608 : vector<1x32xf32> to vector<8x32xf32>
    %630 = arith.addf %628, %629 : vector<8x32xf32>
    %c1_283 = arith.constant 1 : index
    %c0_284 = arith.constant 0 : index
    %c0_285 = arith.constant 0 : index
    %631 = vector.load %arg7[%c1_283, %c0_284, %c0_285] : memref<2x32x64xf32, #tpu.memory_space<vmem>>, vector<1x32x64xf32>
    %632 = vector.shape_cast %631 : vector<1x32x64xf32> to vector<32x64xf32>
    %cst_286 = arith.constant dense<0.000000e+00> : vector<8x64xf32>
    %633 = tpu.matmul %630, %632, %cst_286 {dimension_numbers = #tpu.dot_dimension_numbers<[1], [0], [0], [1], [0, 0, 1, 1], [], []>} : vector<8x32xf32>, vector<32x64xf32>, vector<8x64xf32> -> vector<8x64xf32>
    %c1_287 = arith.constant 1 : index
    %c0_288 = arith.constant 0 : index
    %c0_289 = arith.constant 0 : index
    %634 = vector.load %arg8[%c1_287, %c0_288, %c0_289] : memref<2x1x64xf32, #tpu.memory_space<vmem>>, vector<1x1x64xf32>
    %635 = vector.shape_cast %634 : vector<1x1x64xf32> to vector<1x64xf32>
    %636 = vector.broadcast %635 : vector<1x64xf32> to vector<8x64xf32>
    %637 = arith.addf %633, %636 : vector<8x64xf32>
    %cst_290 = arith.constant 5.000000e-01 : f32
    %638 = vector.broadcast %cst_290 : f32 to vector<8x64xf32>
    %639 = arith.mulf %638, %637 : vector<8x64xf32>
    %cst_291 = arith.constant 4.471500e-02 : f32
    %640 = vector.broadcast %cst_291 : f32 to vector<8x64xf32>
    %641 = arith.mulf %640, %637 : vector<8x64xf32>
    %642 = arith.mulf %641, %637 : vector<8x64xf32>
    %643 = arith.mulf %642, %637 : vector<8x64xf32>
    %644 = arith.addf %637, %643 : vector<8x64xf32>
    %cst_292 = arith.constant 0.797884583 : f32
    %645 = vector.broadcast %cst_292 : f32 to vector<8x64xf32>
    %646 = arith.mulf %645, %644 : vector<8x64xf32>
    %647 = math.tanh %646 : vector<8x64xf32>
    %cst_293 = arith.constant 1.000000e+00 : f32
    %648 = vector.broadcast %cst_293 : f32 to vector<8x64xf32>
    %649 = arith.addf %648, %647 : vector<8x64xf32>
    %650 = arith.mulf %639, %649 : vector<8x64xf32>
    %c1_294 = arith.constant 1 : index
    %c0_295 = arith.constant 0 : index
    %c0_296 = arith.constant 0 : index
    %651 = vector.load %arg9[%c1_294, %c0_295, %c0_296] : memref<2x64x32xf32, #tpu.memory_space<vmem>>, vector<1x64x32xf32>
    %652 = vector.shape_cast %651 : vector<1x64x32xf32> to vector<64x32xf32>
    %cst_297 = arith.constant dense<0.000000e+00> : vector<8x32xf32>
    %653 = tpu.matmul %650, %652, %cst_297 {dimension_numbers = #tpu.dot_dimension_numbers<[1], [0], [0], [1], [0, 0, 1, 1], [], []>} : vector<8x64xf32>, vector<64x32xf32>, vector<8x32xf32> -> vector<8x32xf32>
    %654 = arith.addf %604, %653 : vector<8x32xf32>
    %c1_298 = arith.constant 1 : index
    %c0_299 = arith.constant 0 : index
    %c0_300 = arith.constant 0 : index
    %655 = vector.load %arg10[%c1_298, %c0_299, %c0_300] : memref<2x1x32xf32, #tpu.memory_space<vmem>>, vector<1x1x32xf32>
    %656 = vector.shape_cast %655 : vector<1x1x32xf32> to vector<1x32xf32>
    %657 = vector.broadcast %656 : vector<1x32xf32> to vector<8x32xf32>
    %658 = arith.addf %654, %657 : vector<8x32xf32>
    %c0_301 = arith.constant 0 : index
    %c0_302 = arith.constant 0 : index
    %c0_303 = arith.constant 0 : index
    %659 = vector.load %arg11[%c0_301, %c0_302, %c0_303] : memref<2x1x32xf32, #tpu.memory_space<vmem>>, vector<1x1x32xf32>
    %660 = vector.shape_cast %659 : vector<1x1x32xf32> to vector<1x32xf32>
    %c1_304 = arith.constant 1 : index
    %c0_305 = arith.constant 0 : index
    %c0_306 = arith.constant 0 : index
    %661 = vector.load %arg11[%c1_304, %c0_305, %c0_306] : memref<2x1x32xf32, #tpu.memory_space<vmem>>, vector<1x1x32xf32>
    %662 = vector.shape_cast %661 : vector<1x1x32xf32> to vector<1x32xf32>
    %cst_307 = arith.constant dense<0.000000e+00> : vector<8xf32>
    %663 = vector.multi_reduction <add>, %658, %cst_307 [1] : vector<8x32xf32> to vector<8xf32>
    %664 = vector.shape_cast %663 : vector<8xf32> to vector<8x1xf32>
    %cst_308 = arith.constant 3.200000e+01 : f32
    %665 = vector.broadcast %cst_308 : f32 to vector<8x1xf32>
    %666 = arith.divf %664, %665 : vector<8x1xf32>
    %667 = vector.broadcast %666 : vector<8x1xf32> to vector<8x32xf32>
    %668 = arith.subf %658, %667 : vector<8x32xf32>
    %669 = arith.mulf %668, %668 : vector<8x32xf32>
    %cst_309 = arith.constant dense<0.000000e+00> : vector<8xf32>
    %670 = vector.multi_reduction <add>, %669, %cst_309 [1] : vector<8x32xf32> to vector<8xf32>
    %671 = vector.shape_cast %670 : vector<8xf32> to vector<8x1xf32>
    %cst_310 = arith.constant 3.200000e+01 : f32
    %672 = vector.broadcast %cst_310 : f32 to vector<8x1xf32>
    %673 = arith.divf %671, %672 : vector<8x1xf32>
    %674 = vector.broadcast %666 : vector<8x1xf32> to vector<8x32xf32>
    %675 = arith.subf %658, %674 : vector<8x32xf32>
    %cst_311 = arith.constant 9.99999996E-13 : f32
    %676 = vector.broadcast %cst_311 : f32 to vector<8x1xf32>
    %677 = arith.addf %673, %676 : vector<8x1xf32>
    %678 = math.rsqrt %677 : vector<8x1xf32>
    %679 = vector.broadcast %678 : vector<8x1xf32> to vector<8x32xf32>
    %680 = arith.mulf %675, %679 : vector<8x32xf32>
    %681 = vector.broadcast %660 : vector<1x32xf32> to vector<8x32xf32>
    %682 = arith.mulf %680, %681 : vector<8x32xf32>
    %683 = vector.broadcast %662 : vector<1x32xf32> to vector<8x32xf32>
    %684 = arith.addf %682, %683 : vector<8x32xf32>
    %c0_312 = arith.constant 0 : index
    %c0_313 = arith.constant 0 : index
    %c0_314 = arith.constant 0 : index
    %685 = vector.load %arg12[%c0_312, %c0_313, %c0_314] : memref<1x8x32xf32, #tpu.memory_space<vmem>>, vector<1x8x32xf32>
    %686 = vector.shape_cast %685 : vector<1x8x32xf32> to vector<8x32xf32>
    %687 = vector.shape_cast %684 : vector<8x32xf32> to vector<1x8x32xf32>
    tpu.vector_store %arg12[%c0_312, %c0_313, %c0_314], %687 {strides = array<i32>} : memref<1x8x32xf32, #tpu.memory_space<vmem>>, vector<1x8x32xf32>,
    %c0_315 = arith.constant 0 : index
    %c0_316 = arith.constant 0 : index
    %c0_317 = arith.constant 0 : index
    %688 = vector.load %arg13[%c0_315, %c0_316, %c0_317] : memref<1x8x16xf32, #tpu.memory_space<vmem>>, vector<1x8x16xf32>
    %689 = vector.shape_cast %688 : vector<1x8x16xf32> to vector<8x16xf32>
    %690 = vector.shape_cast %603 : vector<8x16xf32> to vector<1x8x16xf32>
    tpu.vector_store %arg13[%c0_315, %c0_316, %c0_317], %690 {strides = array<i32>} : memref<1x8x16xf32, #tpu.memory_space<vmem>>, vector<1x8x16xf32>,
    return
  }
  func.func @transform_0(%arg0: i32) -> (i32, i32, i32) {
    %c0_i32 = arith.constant 0 : i32
    %c0_i32_0 = arith.constant 0 : i32
    %c0_i32_1 = arith.constant 0 : i32
    return %arg0, %c0_i32, %c0_i32_0 : i32, i32, i32
  }
  func.func @transform_1(%arg0: i32) -> (i32, i32, i32) {
    %c0_i32 = arith.constant 0 : i32
    %c0_i32_0 = arith.constant 0 : i32
    %c0_i32_1 = arith.constant 0 : i32
    return %arg0, %c0_i32, %c0_i32_0 : i32, i32, i32
  }
  func.func @transform_2(%arg0: i32) -> (i32, i32, i32) {
    %c0_i32 = arith.constant 0 : i32
    %c0_i32_0 = arith.constant 0 : i32
    %c0_i32_1 = arith.constant 0 : i32
    %c0_i32_2 = arith.constant 0 : i32
    return %c0_i32, %c0_i32_0, %c0_i32_1 : i32, i32, i32
  }
  func.func @transform_3(%arg0: i32) -> (i32, i32, i32) {
    %c0_i32 = arith.constant 0 : i32
    %c0_i32_0 = arith.constant 0 : i32
    %c0_i32_1 = arith.constant 0 : i32
    %c0_i32_2 = arith.constant 0 : i32
    return %c0_i32, %c0_i32_0, %c0_i32_1 : i32, i32, i32
  }
  func.func @transform_4(%arg0: i32) -> (i32, i32, i32) {
    %c0_i32 = arith.constant 0 : i32
    %c0_i32_0 = arith.constant 0 : i32
    %c0_i32_1 = arith.constant 0 : i32
    %c0_i32_2 = arith.constant 0 : i32
    return %c0_i32, %c0_i32_0, %c0_i32_1 : i32, i32, i32
  }
  func.func @transform_5(%arg0: i32) -> (i32, i32, i32) {
    %c0_i32 = arith.constant 0 : i32
    %c0_i32_0 = arith.constant 0 : i32
    %c0_i32_1 = arith.constant 0 : i32
    %c0_i32_2 = arith.constant 0 : i32
    return %c0_i32, %c0_i32_0, %c0_i32_1 : i32, i32, i32
  }
  func.func @transform_6(%arg0: i32) -> (i32, i32, i32) {
    %c0_i32 = arith.constant 0 : i32
    %c0_i32_0 = arith.constant 0 : i32
    %c0_i32_1 = arith.constant 0 : i32
    %c0_i32_2 = arith.constant 0 : i32
    return %c0_i32, %c0_i32_0, %c0_i32_1 : i32, i32, i32
  }
  func.func @transform_7(%arg0: i32) -> (i32, i32, i32) {
    %c0_i32 = arith.constant 0 : i32
    %c0_i32_0 = arith.constant 0 : i32
    %c0_i32_1 = arith.constant 0 : i32
    %c0_i32_2 = arith.constant 0 : i32
    return %c0_i32, %c0_i32_0, %c0_i32_1 : i32, i32, i32
  }
  func.func @transform_8(%arg0: i32) -> (i32, i32, i32) {
    %c0_i32 = arith.constant 0 : i32
    %c0_i32_0 = arith.constant 0 : i32
    %c0_i32_1 = arith.constant 0 : i32
    %c0_i32_2 = arith.constant 0 : i32
    return %c0_i32, %c0_i32_0, %c0_i32_1 : i32, i32, i32
  }
  func.func @transform_9(%arg0: i32) -> (i32, i32, i32) {
    %c0_i32 = arith.constant 0 : i32
    %c0_i32_0 = arith.constant 0 : i32
    %c0_i32_1 = arith.constant 0 : i32
    %c0_i32_2 = arith.constant 0 : i32
    return %c0_i32, %c0_i32_0, %c0_i32_1 : i32, i32, i32
  }
  func.func @transform_10(%arg0: i32) -> (i32, i32, i32) {
    %c0_i32 = arith.constant 0 : i32
    %c0_i32_0 = arith.constant 0 : i32
    %c0_i32_1 = arith.constant 0 : i32
    %c0_i32_2 = arith.constant 0 : i32
    return %c0_i32, %c0_i32_0, %c0_i32_1 : i32, i32, i32
  }
  func.func @transform_11(%arg0: i32) -> (i32, i32, i32) {
    %c0_i32 = arith.constant 0 : i32
    %c0_i32_0 = arith.constant 0 : i32
    %c0_i32_1 = arith.constant 0 : i32
    return %arg0, %c0_i32, %c0_i32_0 : i32, i32, i32
  }
  func.func @transform_12(%arg0: i32) -> (i32, i32, i32) {
    %c0_i32 = arith.constant 0 : i32
    %c0_i32_0 = arith.constant 0 : i32
    %c0_i32_1 = arith.constant 0 : i32
    return %arg0, %c0_i32, %c0_i32_0 : i32, i32, i32
  }
}

</mosaic_0001>

<llo_original>
// kernel: denoise_decoder_forward.1
$region0: #{denoise_decoder_forward.1}
  #allocation0 [shape = 'u32[]', space=smem, size = 0x4, offset = 0x4, fixed_abs, tag = 'smem constant byte address 0x4 - core index']
  #allocation1 [shape = 'u32[144,128]{1,0:T(1,128)}', space=vmem, size = 0x12000, scoped, tag = 'internal scratch']
  %s0 = inlined_call_operand.vmem [shape: f32[2,8,32], index: 0, kind: input, shape index: {}]
  %s1 = inlined_call_operand.vmem [shape: f32[2,16,32], index: 1, kind: input, shape index: {}]
  %s2 = inlined_call_operand.vmem [shape: f32[16,32,32], index: 2, kind: input, shape index: {}]
  %s3 = inlined_call_operand.vmem [shape: f32[16,1,32], index: 3, kind: input, shape index: {}]
  %s4 = inlined_call_operand.vmem [shape: f32[6,1,32], index: 4, kind: input, shape index: {}]
  %s5 = inlined_call_operand.vmem [shape: f32[6,1,32], index: 5, kind: input, shape index: {}]
  %s6 = inlined_call_operand.vmem [shape: f32[2,32,64], index: 6, kind: input, shape index: {}]
  %s7 = inlined_call_operand.vmem [shape: f32[2,1,64], index: 7, kind: input, shape index: {}]
  %s8 = inlined_call_operand.vmem [shape: f32[2,64,32], index: 8, kind: input, shape index: {}]
  %s9 = inlined_call_operand.vmem [shape: f32[2,1,32], index: 9, kind: input, shape index: {}]
  %s10 = inlined_call_operand.vmem [shape: f32[2,1,32], index: 10, kind: input, shape index: {}]
  %s11 = inlined_call_operand.hbm [shape: f32[2,8,32], index: 11, kind: output, shape index: {0}]
  %s12 = inlined_call_operand.hbm [shape: f32[2,8,16], index: 12, kind: output, shape index: {1}]
  %13 = xla_tuple %s11, %s12
  %s14 = sld [smem:[#allocation0]]
  $region85: #{denoise_decoder_forward.1} parent=0
    _
  %s16 = ssub.s32 1, %s14
  %s17 = scalar_select 0, %s16, %s14
  $region1: #{denoise_decoder_forward.1} parent=0
    #allocation2 [shape = 'u8[8192]{0}', space=vmem, size = 0x2000, scoped, tag = 'output window, operand 0']
    #allocation3 [shape = 's32[2]{0}', space=sflag, size = 0x8, scoped, tag = 'scoped memory for denoise_decoder_forward.1']
    #allocation4 [shape = 'u8[8192]{0}', space=vmem, size = 0x2000, scoped, tag = 'output window, operand 1']
    #allocation5 [shape = 's32[2]{0}', space=sflag, size = 0x8, scoped, tag = 'scoped memory for denoise_decoder_forward.1']
    %18 = vsyncpa [#allocation3], 0
    %s19 = scalar_lea.sflag [#allocation3], 1
    %20 = vsyncpa %s19, 0
    %21 = vsyncpa [#allocation5], 0
    %s22 = scalar_lea.sflag [#allocation5], 1
    %23 = vsyncpa %s22, 0
    loop: start=0, step=1, limit=4
    $region2: #{denoise_decoder_forward.1} parent=1 // loop_pre_header
      _
    $region3: #{denoise_decoder_forward.1} parent=1 // loop_header
      %s25 = sphi 0, %s29
      %p26 = scmp.ge.s32.totalorder %s25, 4
      %s35 = sphi 0, %s37
      %s38 = sphi 0, %s35
      %s39 = sphi 0, %s38
      %s55 = sphi 0, %s39
      %s61 = sphi 0, %s63
      %s64 = sphi 0, %s61
      %s65 = sphi 0, %s64
      %s81 = sphi 0, %s65
      %s85 = sphi 0, %s85
      %s87 = sphi 0, %s85
      %s88 = sphi 0, %s87
      %s102 = sphi 0, %s88
      %s106 = sphi 0, %s106
      %s108 = sphi 0, %s106
      %s109 = sphi 0, %s108
      %s123 = sphi 0, %s109
      %s127 = sphi 0, %s127
      %s129 = sphi 0, %s127
      %s130 = sphi 0, %s129
      %s144 = sphi 0, %s130
      %s148 = sphi 0, %s148
      %s150 = sphi 0, %s148
      %s151 = sphi 0, %s150
      %s165 = sphi 0, %s151
      %s169 = sphi 0, %s169
      %s171 = sphi 0, %s169
      %s172 = sphi 0, %s171
      %s186 = sphi 0, %s172
      %s190 = sphi 0, %s190
      %s192 = sphi 0, %s190
      %s193 = sphi 0, %s192
      %s207 = sphi 0, %s193
      %s211 = sphi 0, %s211
      %s213 = sphi 0, %s211
      %s214 = sphi 0, %s213
      %s228 = sphi 0, %s214
      %s232 = sphi 0, %s232
      %s234 = sphi 0, %s232
      %s235 = sphi 0, %s234
      %s249 = sphi 0, %s235
      %s253 = sphi 0, %s253
      %s255 = sphi 0, %s253
      %s256 = sphi 0, %s255
      %s270 = sphi 0, %s256
      %s276 = sphi 0, %s278
      %s279 = sphi 0, %s276
      %s280 = sphi 0, %s279
      %s296 = sphi 0, %s280
      %s302 = sphi 0, %s304
      %s305 = sphi 0, %s302
      %s306 = sphi 0, %s305
      %s322 = sphi 0, %s306
    $region4: #{denoise_decoder_forward.1} parent=1 // loop_header_branch
      %28 = sbr.rel (%p26) target = $region8
    $region5: #{denoise_decoder_forward.1} parent=1 // loop_body
      %s30 = ssub.s32 %s25, 1
      %s31 = ssub.s32 %s25, 2
      %s32 = sadd.s32 %s25, 1
      %s33 = ssub.s32 %s25, %s32
      %p34 = scmp.eq.s32.totalorder %s33, 0
      %s36 = sadd.s32 %s35, 1
      %s37 = scalar_select %p34, %s35, %s36
      %p40 = pneg %p34
      %p41 = scmp.eq.s32.totalorder %s25, 1
      %p42 = por %p40, %p41
      %p43 = scmp.ne.s32.totalorder %s35, %s38
      %p44 = scmp.eq.s32.totalorder %s25, 0
      %p45 = por %p43, %p44
      %p46 = scmp.ne.s32.totalorder %s35, %s38
      %p47 = scmp.eq.s32.totalorder %s30, 1
      %p48 = por %p46, %p47
      %p49 = scmp.ne.s32.totalorder %s38, %s39
      %p50 = scmp.eq.s32.totalorder %s30, 0
      %p51 = por %p49, %p50
      %p52 = scmp.ne.s32.totalorder %s38, %s39
      %p53 = scmp.eq.s32.totalorder %s31, 1
      %p54 = por %p52, %p53
      %p56 = scmp.ne.s32.totalorder %s39, %s55
      %p57 = scmp.eq.s32.totalorder %s31, 0
      %p58 = por %p56, %p57
      %s59 = ssub.s32 %s25, %s32
      %p60 = scmp.eq.s32.totalorder %s59, 0
      %s62 = sadd.s32 %s61, 1
      %s63 = scalar_select %p60, %s61, %s62
      %p66 = pneg %p60
      %p67 = scmp.eq.s32.totalorder %s25, 1
      %p68 = por %p66, %p67
      %p69 = scmp.ne.s32.totalorder %s61, %s64
      %p70 = scmp.eq.s32.totalorder %s25, 0
      %p71 = por %p69, %p70
      %p72 = scmp.ne.s32.totalorder %s61, %s64
      %p73 = scmp.eq.s32.totalorder %s30, 1
      %p74 = por %p72, %p73
      %p75 = scmp.ne.s32.totalorder %s64, %s65
      %p76 = scmp.eq.s32.totalorder %s30, 0
      %p77 = por %p75, %p76
      %p78 = scmp.ne.s32.totalorder %s64, %s65
      %p79 = scmp.eq.s32.totalorder %s31, 1
      %p80 = por %p78, %p79
      %p82 = scmp.ne.s32.totalorder %s65, %s81
      %p83 = scmp.eq.s32.totalorder %s31, 0
      %p84 = por %p82, %p83
      %s86 = sadd.s32 %s85, 1
      %p89 = scmp.eq.s32.totalorder %s25, 1
      %p90 = scmp.ne.s32.totalorder %s85, %s87
      %p91 = scmp.eq.s32.totalorder %s25, 0
      %p92 = por %p90, %p91
      %p93 = scmp.ne.s32.totalorder %s85, %s87
      %p94 = scmp.eq.s32.totalorder %s30, 1
      %p95 = por %p93, %p94
      %p96 = scmp.ne.s32.totalorder %s87, %s88
      %p97 = scmp.eq.s32.totalorder %s30, 0
      %p98 = por %p96, %p97
      %p99 = scmp.ne.s32.totalorder %s87, %s88
      %p100 = scmp.eq.s32.totalorder %s31, 1
      %p101 = por %p99, %p100
      %p103 = scmp.ne.s32.totalorder %s88, %s102
      %p104 = scmp.eq.s32.totalorder %s31, 0
      %p105 = por %p103, %p104
      %s107 = sadd.s32 %s106, 1
      %p110 = scmp.eq.s32.totalorder %s25, 1
      %p111 = scmp.ne.s32.totalorder %s106, %s108
      %p112 = scmp.eq.s32.totalorder %s25, 0
      %p113 = por %p111, %p112
      %p114 = scmp.ne.s32.totalorder %s106, %s108
      %p115 = scmp.eq.s32.totalorder %s30, 1
      %p116 = por %p114, %p115
      %p117 = scmp.ne.s32.totalorder %s108, %s109
      %p118 = scmp.eq.s32.totalorder %s30, 0
      %p119 = por %p117, %p118
      %p120 = scmp.ne.s32.totalorder %s108, %s109
      %p121 = scmp.eq.s32.totalorder %s31, 1
      %p122 = por %p120, %p121
      %p124 = scmp.ne.s32.totalorder %s109, %s123
      %p125 = scmp.eq.s32.totalorder %s31, 0
      %p126 = por %p124, %p125
      %s128 = sadd.s32 %s127, 1
      %p131 = scmp.eq.s32.totalorder %s25, 1
      %p132 = scmp.ne.s32.totalorder %s127, %s129
      %p133 = scmp.eq.s32.totalorder %s25, 0
      %p134 = por %p132, %p133
      %p135 = scmp.ne.s32.totalorder %s127, %s129
      %p136 = scmp.eq.s32.totalorder %s30, 1
      %p137 = por %p135, %p136
      %p138 = scmp.ne.s32.totalorder %s129, %s130
      %p139 = scmp.eq.s32.totalorder %s30, 0
      %p140 = por %p138, %p139
      %p141 = scmp.ne.s32.totalorder %s129, %s130
      %p142 = scmp.eq.s32.totalorder %s31, 1
      %p143 = por %p141, %p142
      %p145 = scmp.ne.s32.totalorder %s130, %s144
      %p146 = scmp.eq.s32.totalorder %s31, 0
      %p147 = por %p145, %p146
      %s149 = sadd.s32 %s148, 1
      %p152 = scmp.eq.s32.totalorder %s25, 1
      %p153 = scmp.ne.s32.totalorder %s148, %s150
      %p154 = scmp.eq.s32.totalorder %s25, 0
      %p155 = por %p153, %p154
      %p156 = scmp.ne.s32.totalorder %s148, %s150
      %p157 = scmp.eq.s32.totalorder %s30, 1
      %p158 = por %p156, %p157
      %p159 = scmp.ne.s32.totalorder %s150, %s151
      %p160 = scmp.eq.s32.totalorder %s30, 0
      %p161 = por %p159, %p160
      %p162 = scmp.ne.s32.totalorder %s150, %s151
      %p163 = scmp.eq.s32.totalorder %s31, 1
      %p164 = por %p162, %p163
      %p166 = scmp.ne.s32.totalorder %s151, %s165
      %p167 = scmp.eq.s32.totalorder %s31, 0
      %p168 = por %p166, %p167
      %s170 = sadd.s32 %s169, 1
      %p173 = scmp.eq.s32.totalorder %s25, 1
      %p174 = scmp.ne.s32.totalorder %s169, %s171
      %p175 = scmp.eq.s32.totalorder %s25, 0
      %p176 = por %p174, %p175
      %p177 = scmp.ne.s32.totalorder %s169, %s171
      %p178 = scmp.eq.s32.totalorder %s30, 1
      %p179 = por %p177, %p178
      %p180 = scmp.ne.s32.totalorder %s171, %s172
      %p181 = scmp.eq.s32.totalorder %s30, 0
      %p182 = por %p180, %p181
      %p183 = scmp.ne.s32.totalorder %s171, %s172
      %p184 = scmp.eq.s32.totalorder %s31, 1
      %p185 = por %p183, %p184
      %p187 = scmp.ne.s32.totalorder %s172, %s186
      %p188 = scmp.eq.s32.totalorder %s31, 0
      %p189 = por %p187, %p188
      %s191 = sadd.s32 %s190, 1
      %p194 = scmp.eq.s32.totalorder %s25, 1
      %p195 = scmp.ne.s32.totalorder %s190, %s192
      %p196 = scmp.eq.s32.totalorder %s25, 0
      %p197 = por %p195, %p196
      %p198 = scmp.ne.s32.totalorder %s190, %s192
      %p199 = scmp.eq.s32.totalorder %s30, 1
      %p200 = por %p198, %p199
      %p201 = scmp.ne.s32.totalorder %s192, %s193
      %p202 = scmp.eq.s32.totalorder %s30, 0
      %p203 = por %p201, %p202
      %p204 = scmp.ne.s32.totalorder %s192, %s193
      %p205 = scmp.eq.s32.totalorder %s31, 1
      %p206 = por %p204, %p205
      %p208 = scmp.ne.s32.totalorder %s193, %s207
      %p209 = scmp.eq.s32.totalorder %s31, 0
      %p210 = por %p208, %p209
      %s212 = sadd.s32 %s211, 1
      %p215 = scmp.eq.s32.totalorder %s25, 1
      %p216 = scmp.ne.s32.totalorder %s211, %s213
      %p217 = scmp.eq.s32.totalorder %s25, 0
      %p218 = por %p216, %p217
      %p219 = scmp.ne.s32.totalorder %s211, %s213
      %p220 = scmp.eq.s32.totalorder %s30, 1
      %p221 = por %p219, %p220
      %p222 = scmp.ne.s32.totalorder %s213, %s214
      %p223 = scmp.eq.s32.totalorder %s30, 0
      %p224 = por %p222, %p223
      %p225 = scmp.ne.s32.totalorder %s213, %s214
      %p226 = scmp.eq.s32.totalorder %s31, 1
      %p227 = por %p225, %p226
      %p229 = scmp.ne.s32.totalorder %s214, %s228
      %p230 = scmp.eq.s32.totalorder %s31, 0
      %p231 = por %p229, %p230
      %s233 = sadd.s32 %s232, 1
      %p236 = scmp.eq.s32.totalorder %s25, 1
      %p237 = scmp.ne.s32.totalorder %s232, %s234
      %p238 = scmp.eq.s32.totalorder %s25, 0
      %p239 = por %p237, %p238
      %p240 = scmp.ne.s32.totalorder %s232, %s234
      %p241 = scmp.eq.s32.totalorder %s30, 1
      %p242 = por %p240, %p241
      %p243 = scmp.ne.s32.totalorder %s234, %s235
      %p244 = scmp.eq.s32.totalorder %s30, 0
      %p245 = por %p243, %p244
      %p246 = scmp.ne.s32.totalorder %s234, %s235
      %p247 = scmp.eq.s32.totalorder %s31, 1
      %p248 = por %p246, %p247
      %p250 = scmp.ne.s32.totalorder %s235, %s249
      %p251 = scmp.eq.s32.totalorder %s31, 0
      %p252 = por %p250, %p251
      %s254 = sadd.s32 %s253, 1
      %p257 = scmp.eq.s32.totalorder %s25, 1
      %p258 = scmp.ne.s32.totalorder %s253, %s255
      %p259 = scmp.eq.s32.totalorder %s25, 0
      %p260 = por %p258, %p259
      %p261 = scmp.ne.s32.totalorder %s253, %s255
      %p262 = scmp.eq.s32.totalorder %s30, 1
      %p263 = por %p261, %p262
      %p264 = scmp.ne.s32.totalorder %s255, %s256
      %p265 = scmp.eq.s32.totalorder %s30, 0
      %p266 = por %p264, %p265
      %p267 = scmp.ne.s32.totalorder %s255, %s256
      %p268 = scmp.eq.s32.totalorder %s31, 1
      %p269 = por %p267, %p268
      %p271 = scmp.ne.s32.totalorder %s256, %s270
      %p272 = scmp.eq.s32.totalorder %s31, 0
      %p273 = por %p271, %p272
      %s274 = ssub.s32 %s25, %s32
      %p275 = scmp.eq.s32.totalorder %s274, 0
      %s277 = sadd.s32 %s276, 1
      %s278 = scalar_select %p275, %s276, %s277
      %p281 = pneg %p275
      %p282 = scmp.eq.s32.totalorder %s25, 1
      %p283 = por %p281, %p282
      %p284 = scmp.ne.s32.totalorder %s276, %s279
      %p285 = scmp.eq.s32.totalorder %s25, 0
      %p286 = por %p284, %p285
      %p287 = scmp.ne.s32.totalorder %s276, %s279
      %p288 = scmp.eq.s32.totalorder %s30, 1
      %p289 = por %p287, %p288
      %p290 = scmp.ne.s32.totalorder %s279, %s280
      %p291 = scmp.eq.s32.totalorder %s30, 0
      %p292 = por %p290, %p291
      %p293 = scmp.ne.s32.totalorder %s279, %s280
      %p294 = scmp.eq.s32.totalorder %s31, 1
      %p295 = por %p293, %p294
      %p297 = scmp.ne.s32.totalorder %s280, %s296
      %p298 = scmp.eq.s32.totalorder %s31, 0
      %p299 = por %p297, %p298
      %s300 = ssub.s32 %s25, %s32
      %p301 = scmp.eq.s32.totalorder %s300, 0
      %s303 = sadd.s32 %s302, 1
      %s304 = scalar_select %p301, %s302, %s303
      %p307 = pneg %p301
      %p308 = scmp.eq.s32.totalorder %s25, 1
      %p309 = por %p307, %p308
      %p310 = scmp.ne.s32.totalorder %s302, %s305
      %p311 = scmp.eq.s32.totalorder %s25, 0
      %p312 = por %p310, %p311
      %p313 = scmp.ne.s32.totalorder %s302, %s305
      %p314 = scmp.eq.s32.totalorder %s30, 1
      %p315 = por %p313, %p314
      %p316 = scmp.ne.s32.totalorder %s305, %s306
      %p317 = scmp.eq.s32.totalorder %s30, 0
      %p318 = por %p316, %p317
      %p319 = scmp.ne.s32.totalorder %s305, %s306
      %p320 = scmp.eq.s32.totalorder %s31, 1
      %p321 = por %p319, %p320
      %p323 = scmp.ne.s32.totalorder %s306, %s322
      %p324 = scmp.eq.s32.totalorder %s31, 0
      %p325 = por %p323, %p324
      %p326 = scmp.le.s32.totalorder 1, %s25
      %p327 = scmp.lt.s32.totalorder %s25, 3
      %p328 = pnand %p326, %p327
      %p329 = pneg %p328
      // Predicated region
      $region9: #{denoise_decoder_forward.1} parent=5 // pred_check
        _
      $region10: #{denoise_decoder_forward.1} parent=5 // pred_check_branch
        %331 = sbr.rel (%p328) target = $region12
      $region11: #{denoise_decoder_forward.1} parent=5 // pred_region
        %s332 = ssub.s32 %s25, 1
        // Predicated region
        $region13: #{denoise_decoder_forward.1} parent=11 // pred_check
          %p333 = pneg %p98
        $region14: #{denoise_decoder_forward.1} parent=11 // pred_check_branch
          %335 = sbr.rel (%p333) target = $region16
        $region15: #{denoise_decoder_forward.1} parent=11 // pred_region
          _
        $region16: #{denoise_decoder_forward.1} parent=11 // pred_fallthru
          _
        // Predicated region
        $region17: #{denoise_decoder_forward.1} parent=11 // pred_check
          %p336 = pneg %p119
        $region18: #{denoise_decoder_forward.1} parent=11 // pred_check_branch
          %338 = sbr.rel (%p336) target = $region20
        $region19: #{denoise_decoder_forward.1} parent=11 // pred_region
          _
        $region20: #{denoise_decoder_forward.1} parent=11 // pred_fallthru
          _
        // Predicated region
        $region21: #{denoise_decoder_forward.1} parent=11 // pred_check
          %p339 = pneg %p140
        $region22: #{denoise_decoder_forward.1} parent=11 // pred_check_branch
          %341 = sbr.rel (%p339) target = $region24
        $region23: #{denoise_decoder_forward.1} parent=11 // pred_region
          _
        $region24: #{denoise_decoder_forward.1} parent=11 // pred_fallthru
          _
        // Predicated region
        $region25: #{denoise_decoder_forward.1} parent=11 // pred_check
          %p342 = pneg %p161
        $region26: #{denoise_decoder_forward.1} parent=11 // pred_check_branch
          %344 = sbr.rel (%p342) target = $region28
        $region27: #{denoise_decoder_forward.1} parent=11 // pred_region
          _
        $region28: #{denoise_decoder_forward.1} parent=11 // pred_fallthru
          _
        // Predicated region
        $region29: #{denoise_decoder_forward.1} parent=11 // pred_check
          %p345 = pneg %p182
        $region30: #{denoise_decoder_forward.1} parent=11 // pred_check_branch
          %347 = sbr.rel (%p345) target = $region32
        $region31: #{denoise_decoder_forward.1} parent=11 // pred_region
          _
        $region32: #{denoise_decoder_forward.1} parent=11 // pred_fallthru
          _
        // Predicated region
        $region33: #{denoise_decoder_forward.1} parent=11 // pred_check
          %p348 = pneg %p203
        $region34: #{denoise_decoder_forward.1} parent=11 // pred_check_branch
          %350 = sbr.rel (%p348) target = $region36
        $region35: #{denoise_decoder_forward.1} parent=11 // pred_region
          _
        $region36: #{denoise_decoder_forward.1} parent=11 // pred_fallthru
          _
        // Predicated region
        $region37: #{denoise_decoder_forward.1} parent=11 // pred_check
          %p351 = pneg %p224
        $region38: #{denoise_decoder_forward.1} parent=11 // pred_check_branch
          %353 = sbr.rel (%p351) target = $region40
        $region39: #{denoise_decoder_forward.1} parent=11 // pred_region
          _
        $region40: #{denoise_decoder_forward.1} parent=11 // pred_fallthru
          _
        // Predicated region
        $region41: #{denoise_decoder_forward.1} parent=11 // pred_check
          %p354 = pneg %p245
        $region42: #{denoise_decoder_forward.1} parent=11 // pred_check_branch
          %356 = sbr.rel (%p354) target = $region44
        $region43: #{denoise_decoder_forward.1} parent=11 // pred_region
          _
        $region44: #{denoise_decoder_forward.1} parent=11 // pred_fallthru
          _
        // Predicated region
        $region45: #{denoise_decoder_forward.1} parent=11 // pred_check
          %p357 = pneg %p266
        $region46: #{denoise_decoder_forward.1} parent=11 // pred_check_branch
          %359 = sbr.rel (%p357) target = $region48
        $region47: #{denoise_decoder_forward.1} parent=11 // pred_region
          _
        $region48: #{denoise_decoder_forward.1} parent=11 // pred_fallthru
          _
      $region12: #{denoise_decoder_forward.1} parent=5 // pred_fallthru
        _
      %p360 = scmp.lt.s32.totalorder %s25, 2
      // Predicated region
      $region49: #{denoise_decoder_forward.1} parent=5 // pred_check
        %p361 = pneg %p360
      $region50: #{denoise_decoder_forward.1} parent=5 // pred_check_branch
        %363 = sbr.rel (%p361) target = $region52
      $region51: #{denoise_decoder_forward.1} parent=5 // pred_region
        // Predicated region
        $region53: #{denoise_decoder_forward.1} parent=51 // pred_check
          %p364 = pneg %p45
        $region54: #{denoise_decoder_forward.1} parent=51 // pred_check_branch
          %366 = sbr.rel (%p364) target = $region56
        $region55: #{denoise_decoder_forward.1} parent=51 // pred_region
          %p367 = scmp.lt.s32.totalorder %s25, 1
          %s368 = scalar_select %p367, %s25, 1
          %s369 = smul.addr %s368, 8
          %s370 = scalar_lea.vmem %s0, %s369
        $region56: #{denoise_decoder_forward.1} parent=51 // pred_fallthru
          _
        // Predicated region
        $region57: #{denoise_decoder_forward.1} parent=51 // pred_check
          %p371 = pneg %p71
        $region58: #{denoise_decoder_forward.1} parent=51 // pred_check_branch
          %373 = sbr.rel (%p371) target = $region60
        $region59: #{denoise_decoder_forward.1} parent=51 // pred_region
          %p374 = scmp.lt.s32.totalorder %s25, 1
          %s375 = scalar_select %p374, %s25, 1
          %s376 = smul.addr %s375, 2
          %s377 = smul.addr %s376, 8
          %s378 = scalar_lea.vmem %s1, %s377
        $region60: #{denoise_decoder_forward.1} parent=51 // pred_fallthru
          _
      $region52: #{denoise_decoder_forward.1} parent=5 // pred_fallthru
        _
      %p379 = scmp.le.s32.totalorder 1, %s25
      %p380 = scmp.lt.s32.totalorder %s25, 3
      %p381 = pnand %p379, %p380
      %p382 = pneg %p381
      // Predicated region
      $region61: #{denoise_decoder_forward.1} parent=5 // pred_check
        _
      $region62: #{denoise_decoder_forward.1} parent=5 // pred_check_branch
        %384 = sbr.rel (%p381) target = $region64
      $region63: #{denoise_decoder_forward.1} parent=5 // pred_region
        %s385 = ssub.s32 %s25, 1
        %p386 = scmp.lt.s32.totalorder %s30, 1
        %s387 = scalar_select %p386, %s30, 1
        %s388 = smul.addr %s387, 8
        %s389 = scalar_lea.vmem %s0, %s388
        %p390 = pneg %p51
        %p391 = pneg %p48
        %p392 = scmp.lt.s32.totalorder %s30, 1
        %s393 = scalar_select %p392, %s30, 1
        %s394 = smul.addr %s393, 2
        %s395 = smul.addr %s394, 8
        %s396 = scalar_lea.vmem %s1, %s395
        %p397 = pneg %p77
        %p398 = pneg %p74
        %p399 = pneg %p98
        %p400 = pneg %p95
        %p401 = pneg %p119
        %p402 = pneg %p116
        %p403 = pneg %p140
        %p404 = pneg %p137
        %p405 = pneg %p161
        %p406 = pneg %p158
        %p407 = pneg %p182
        %p408 = pneg %p179
        %p409 = pneg %p203
        %p410 = pneg %p200
        %p411 = pneg %p224
        %p412 = pneg %p221
        %p413 = pneg %p245
        %p414 = pneg %p242
        %p415 = pneg %p266
        %p416 = pneg %p263
        %p417 = pneg %p292
        %p418 = pneg %p289
        %s419 = sand.u32 %s279, 1
        %s420 = scalar_lea.sflag [#allocation3], %s419
        %s421 = sand.u32 %s279, 1
        %s422 = smul.addr %s421, 8
        %s423 = scalar_lea.vmem [#allocation2], %s422
        %p424 = pneg %p318
        %p425 = pneg %p315
        %s426 = sand.u32 %s305, 1
        %s427 = scalar_lea.sflag [#allocation5], %s426
        %s428 = sand.u32 %s305, 1
        %s429 = smul.addr %s428, 8
        %s430 = scalar_lea.vmem [#allocation4], %s429
        %p431 = scmp.lt.s32.totalorder %s30, 1
        %s432 = scalar_select %p431, %s30, 1
        %s433 = smul.addr %s432, 8
        %s434 = scalar_lea.vmem %s0, %s433
        %p435 = scmp.lt.s32.totalorder %s30, 1
        %s436 = scalar_select %p435, %s30, 1
        %s437 = smul.addr %s436, 2
        %s438 = smul.addr %s437, 8
        %s439 = scalar_lea.vmem %s1, %s438
        %v440 = vld [vmem:[%s434] sm:$0xff]
        %v441 = vld [vmem:[%s439] sm:$0xff]
        %v442 = vld [vmem:[%s439 + $0x8] sm:$0xff]
        %v443 = vld [vmem:[%s4] sm:$0x1]
        %v444 = vld [vmem:[%s5] sm:$0x1]
        %vm445 = vcmask 261120
        %v446 = vsel %vm445, %v440, 0.0
        %447 = vadd.xlane.f32.xlu0 %v446
        %v448 = vpop.xlane.xlu0 %447
        %v449 = vrcp.pop 32.0
        %v450 = vmul.f32 %v448, %v449
        %v451 = vsub.f32 %v440, %v450
        %v452 = vmul.f32 %v451, %v451
        %v453 = vsel %vm445, %v452, 0.0
        %454 = vadd.xlane.f32.xlu0 %v453
        %v455 = vpop.xlane.xlu0 %454
        %v456 = vmul.f32 %v455, %v449
        %v457 = vadd.f32 %v456, 1e-05
        %v458 = vrsqrt.pop %v457
        %v459 = vmul.f32 %v451, %v458
        %v461 = vlaneseq
        %v462 = vshrl.u32 %v461, 7
        %v463 = vsub.s32 0, %v462
        %v464 = vrot.slane %v443, %v463
        %v466 = vmul.f32 %v459, %v464
        %v468 = vlaneseq
        %v469 = vshrl.u32 %v468, 7
        %v470 = vsub.s32 0, %v469
        %v471 = vrot.slane %v444, %v470
        %v473 = vadd.f32 %v466, %v471
        %v474 = vld [vmem:[%s2] sm:$0xff]
        %v475 = vld [vmem:[%s2 + $0x8] sm:$0xff]
        %v476 = vld [vmem:[%s2 + $0x10] sm:$0xff]
        %v477 = vld [vmem:[%s2 + $0x18] sm:$0xff]
        %s478 = scalar_lea.vmem %s2, 32
        %v479 = vld [vmem:[%s478] sm:$0xff]
        %v480 = vld [vmem:[%s478 + $0x8] sm:$0xff]
        %v481 = vld [vmem:[%s478 + $0x10] sm:$0xff]
        %v482 = vld [vmem:[%s478 + $0x18] sm:$0xff]
        %s483 = scalar_lea.vmem %s2, 64
        %v484 = vld [vmem:[%s483] sm:$0xff]
        %v485 = vld [vmem:[%s483 + $0x8] sm:$0xff]
        %v486 = vld [vmem:[%s483 + $0x10] sm:$0xff]
        %v487 = vld [vmem:[%s483 + $0x18] sm:$0xff]
        %s488 = scalar_lea.vmem %s2, 96
        %v489 = vld [vmem:[%s488] sm:$0xff]
        %v490 = vld [vmem:[%s488 + $0x8] sm:$0xff]
        %v491 = vld [vmem:[%s488 + $0x10] sm:$0xff]
        %v492 = vld [vmem:[%s488 + $0x18] sm:$0xff]
        %v493 = vld [vmem:[%s3] sm:$0x1]
        %s494 = scalar_lea.vmem %s3, 1
        %v495 = vld [vmem:[%s494] sm:$0x1]
        %s496 = scalar_lea.vmem %s3, 2
        %v497 = vld [vmem:[%s496] sm:$0x1]
        %s498 = scalar_lea.vmem %s3, 3
        %v499 = vld [vmem:[%s498] sm:$0x1]
        %v501 = vlaneseq
        %v502 = vshrl.u32 %v501, 7
        %v503 = vsub.s32 0, %v502
        %v504 = vrot.slane %v493, %v503
        %v507 = vsel %vm445, %v473, 0
        %509 = vmatprep.subr.mxu0 0.0
        %510 = vmatpush1.msra.mxu0 %v474
        %511 = vmatprep.subr.mxu0 0.0
        %512 = vmatpush1.msra.mxu0 %v475
        %513 = vmatprep.subr.mxu0 0.0
        %514 = vmatpush1.msra.mxu0 %v476
        %515 = vmatprep.subr.mxu0 0.0
        %516 = vmatpush1.msra.mxu0 %v477
        %517 = vmatprep.subr.mxu0 0.0
        %518 = vmatpush1.msra.mxu0 0.0
        %519 = vmatprep.subr.mxu0 0.0
        %520 = vmatpush1.msra.mxu0 0.0
        %521 = vmatprep.subr.mxu0 0.0
        %522 = vmatpush1.msra.mxu0 0.0
        %523 = vmatprep.subr.mxu0 0.0
        %524 = vmatpush1.msra.mxu0 0.0
        %525 = vmatprep.subr.mxu0 0.0
        %526 = vmatpush1.msra.mxu0 0.0
        %527 = vmatprep.subr.mxu0 0.0
        %528 = vmatpush1.msra.mxu0 0.0
        %529 = vmatprep.subr.mxu0 0.0
        %530 = vmatpush1.msra.mxu0 0.0
        %531 = vmatprep.subr.mxu0 0.0
        %532 = vmatpush1.msra.mxu0 0.0
        %533 = vmatprep.subr.mxu0 0.0
        %534 = vmatpush1.msra.mxu0 0.0
        %535 = vmatprep.subr.mxu0 0.0
        %536 = vmatpush1.msra.mxu0 0.0
        %537 = vmatprep.subr.mxu0 0.0
        %538 = vmatpush1.msra.mxu0 0.0
        %539 = vmatprep.subr.mxu0 0.0
        %540 = vmatpush1.msra.mxu0 0.0
        %541 = vmatprep.subr.mxu0 0.0
        %542 = vmatpush1.msra.mxu0 0.0
        %543 = vmatprep.subr.mxu0 0.0
        %544 = vmatpush1.msra.mxu0 0.0
        %545 = vmatprep.subr.mxu0 0.0
        %546 = vmatpush1.msra.mxu0 0.0
        %547 = vmatprep.subr.mxu0 0.0
        %548 = vmatpush1.msra.mxu0 0.0
        %549 = vmatprep.subr.mxu0 0.0
        %550 = vmatpush1.msra.mxu0 0.0
        %551 = vmatprep.subr.mxu0 0.0
        %552 = vmatpush1.msra.mxu0 0.0
        %553 = vmatprep.subr.mxu0 0.0
        %554 = vmatpush1.msra.mxu0 0.0
        %555 = vmatprep.subr.mxu0 0.0
        %556 = vmatpush1.msra.mxu0 0.0
        %557 = vmatprep.subr.mxu0 0.0
        %558 = vmatpush1.msra.mxu0 0.0
        %559 = vmatprep.subr.mxu0 0.0
        %560 = vmatpush1.msra.mxu0 0.0
        %561 = vmatprep.subr.mxu0 0.0
        %562 = vmatpush1.msra.mxu0 0.0
        %563 = vmatprep.subr.mxu0 0.0
        %564 = vmatpush1.msra.mxu0 0.0
        %565 = vmatprep.subr.mxu0 0.0
        %566 = vmatpush1.msra.mxu0 0.0
        %567 = vmatprep.subr.mxu0 0.0
        %568 = vmatpush1.msra.mxu0 0.0
        %569 = vmatprep.subr.mxu0 0.0
        %570 = vmatpush1.msra.mxu0 0.0
        %571 = vmatprep.subr.mxu0 0.0
        %572 = vmatpush1.msra.mxu0 0.0
        %573 = vmatprep.mubr.f32.mxu0 0.0
        %574 = vmatmul.mubr.f32.gmra.mrb[0].mxu0 %v507
        %v575 = vpop.f32.mrb[0].mxu0
        %v576 = vadd.f32 %v504, %v575
        %v577 = vpop.f32.mrb[0].mxu0
        %578 = vdwg.mxu0
        %v580 = vlaneseq
        %v581 = vshrl.u32 %v580, 7
        %v582 = vsub.s32 0, %v581
        %v583 = vrot.slane %v495, %v582
        %585 = vmatprep.subr.mxu0 0.0
        %586 = vmatpush1.msra.mxu0 %v479
        %587 = vmatprep.subr.mxu0 0.0
        %588 = vmatpush1.msra.mxu0 %v480
        %589 = vmatprep.subr.mxu0 0.0
        %590 = vmatpush1.msra.mxu0 %v481
        %591 = vmatprep.subr.mxu0 0.0
        %592 = vmatpush1.msra.mxu0 %v482
        %593 = vmatprep.subr.mxu0 0.0
        %594 = vmatpush1.msra.mxu0 0.0
        %595 = vmatprep.subr.mxu0 0.0
        %596 = vmatpush1.msra.mxu0 0.0
        %597 = vmatprep.subr.mxu0 0.0
        %598 = vmatpush1.msra.mxu0 0.0
        %599 = vmatprep.subr.mxu0 0.0
        %600 = vmatpush1.msra.mxu0 0.0
        %601 = vmatprep.subr.mxu0 0.0
        %602 = vmatpush1.msra.mxu0 0.0
        %603 = vmatprep.subr.mxu0 0.0
        %604 = vmatpush1.msra.mxu0 0.0
        %605 = vmatprep.subr.mxu0 0.0
        %606 = vmatpush1.msra.mxu0 0.0
        %607 = vmatprep.subr.mxu0 0.0
        %608 = vmatpush1.msra.mxu0 0.0
        %609 = vmatprep.subr.mxu0 0.0
        %610 = vmatpush1.msra.mxu0 0.0
        %611 = vmatprep.subr.mxu0 0.0
        %612 = vmatpush1.msra.mxu0 0.0
        %613 = vmatprep.subr.mxu0 0.0
        %614 = vmatpush1.msra.mxu0 0.0
        %615 = vmatprep.subr.mxu0 0.0
        %616 = vmatpush1.msra.mxu0 0.0
        %617 = vmatprep.subr.mxu0 0.0
        %618 = vmatpush1.msra.mxu0 0.0
        %619 = vmatprep.subr.mxu0 0.0
        %620 = vmatpush1.msra.mxu0 0.0
        %621 = vmatprep.subr.mxu0 0.0
        %622 = vmatpush1.msra.mxu0 0.0
        %623 = vmatprep.subr.mxu0 0.0
        %624 = vmatpush1.msra.mxu0 0.0
        %625 = vmatprep.subr.mxu0 0.0
        %626 = vmatpush1.msra.mxu0 0.0
        %627 = vmatprep.subr.mxu0 0.0
        %628 = vmatpush1.msra.mxu0 0.0
        %629 = vmatprep.subr.mxu0 0.0
        %630 = vmatpush1.msra.mxu0 0.0
        %631 = vmatprep.subr.mxu0 0.0
        %632 = vmatpush1.msra.mxu0 0.0
        %633 = vmatprep.subr.mxu0 0.0
        %634 = vmatpush1.msra.mxu0 0.0
        %635 = vmatprep.subr.mxu0 0.0
        %636 = vmatpush1.msra.mxu0 0.0
        %637 = vmatprep.subr.mxu0 0.0
        %638 = vmatpush1.msra.mxu0 0.0
        %639 = vmatprep.subr.mxu0 0.0
        %640 = vmatpush1.msra.mxu0 0.0
        %641 = vmatprep.subr.mxu0 0.0
        %642 = vmatpush1.msra.mxu0 0.0
        %643 = vmatprep.subr.mxu0 0.0
        %644 = vmatpush1.msra.mxu0 0.0
        %645 = vmatprep.subr.mxu0 0.0
        %646 = vmatpush1.msra.mxu0 0.0
        %647 = vmatprep.subr.mxu0 0.0
        %648 = vmatpush1.msra.mxu0 0.0
        %649 = vmatprep.mubr.f32.mxu0 0.0
        %650 = vmatmul.mubr.f32.gmra.mrb[0].mxu0 %v507
        %v651 = vpop.f32.mrb[0].mxu0
        %v652 = vadd.f32 %v583, %v651
        %v653 = vpop.f32.mrb[0].mxu0
        %654 = vdwg.mxu0
        %v656 = vlaneseq
        %v657 = vshrl.u32 %v656, 7
        %v658 = vsub.s32 0, %v657
        %v659 = vrot.slane %v497, %v658
        %661 = vmatprep.subr.mxu0 0.0
        %662 = vmatpush1.msra.mxu0 %v484
        %663 = vmatprep.subr.mxu0 0.0
        %664 = vmatpush1.msra.mxu0 %v485
        %665 = vmatprep.subr.mxu0 0.0
        %666 = vmatpush1.msra.mxu0 %v486
        %667 = vmatprep.subr.mxu0 0.0
        %668 = vmatpush1.msra.mxu0 %v487
        %669 = vmatprep.subr.mxu0 0.0
        %670 = vmatpush1.msra.mxu0 0.0
        %671 = vmatprep.subr.mxu0 0.0
        %672 = vmatpush1.msra.mxu0 0.0
        %673 = vmatprep.subr.mxu0 0.0
        %674 = vmatpush1.msra.mxu0 0.0
        %675 = vmatprep.subr.mxu0 0.0
        %676 = vmatpush1.msra.mxu0 0.0
        %677 = vmatprep.subr.mxu0 0.0
        %678 = vmatpush1.msra.mxu0 0.0
        %679 = vmatprep.subr.mxu0 0.0
        %680 = vmatpush1.msra.mxu0 0.0
        %681 = vmatprep.subr.mxu0 0.0
        %682 = vmatpush1.msra.mxu0 0.0
        %683 = vmatprep.subr.mxu0 0.0
        %684 = vmatpush1.msra.mxu0 0.0
        %685 = vmatprep.subr.mxu0 0.0
        %686 = vmatpush1.msra.mxu0 0.0
        %687 = vmatprep.subr.mxu0 0.0
        %688 = vmatpush1.msra.mxu0 0.0
        %689 = vmatprep.subr.mxu0 0.0
        %690 = vmatpush1.msra.mxu0 0.0
        %691 = vmatprep.subr.mxu0 0.0
        %692 = vmatpush1.msra.mxu0 0.0
        %693 = vmatprep.subr.mxu0 0.0
        %694 = vmatpush1.msra.mxu0 0.0
        %695 = vmatprep.subr.mxu0 0.0
        %696 = vmatpush1.msra.mxu0 0.0
        %697 = vmatprep.subr.mxu0 0.0
        %698 = vmatpush1.msra.mxu0 0.0
        %699 = vmatprep.subr.mxu0 0.0
        %700 = vmatpush1.msra.mxu0 0.0
        %701 = vmatprep.subr.mxu0 0.0
        %702 = vmatpush1.msra.mxu0 0.0
        %703 = vmatprep.subr.mxu0 0.0
        %704 = vmatpush1.msra.mxu0 0.0
        %705 = vmatprep.subr.mxu0 0.0
        %706 = vmatpush1.msra.mxu0 0.0
        %707 = vmatprep.subr.mxu0 0.0
        %708 = vmatpush1.msra.mxu0 0.0
        %709 = vmatprep.subr.mxu0 0.0
        %710 = vmatpush1.msra.mxu0 0.0
        %711 = vmatprep.subr.mxu0 0.0
        %712 = vmatpush1.msra.mxu0 0.0
        %713 = vmatprep.subr.mxu0 0.0
        %714 = vmatpush1.msra.mxu0 0.0
        %715 = vmatprep.subr.mxu0 0.0
        %716 = vmatpush1.msra.mxu0 0.0
        %717 = vmatprep.subr.mxu0 0.0
        %718 = vmatpush1.msra.mxu0 0.0
        %719 = vmatprep.subr.mxu0 0.0
        %720 = vmatpush1.msra.mxu0 0.0
        %721 = vmatprep.subr.mxu0 0.0
        %722 = vmatpush1.msra.mxu0 0.0
        %723 = vmatprep.subr.mxu0 0.0
        %724 = vmatpush1.msra.mxu0 0.0
        %725 = vmatprep.mubr.f32.mxu0 0.0
        %726 = vmatmul.mubr.f32.gmra.mrb[0].mxu0 %v507
        %v727 = vpop.f32.mrb[0].mxu0
        %v728 = vadd.f32 %v659, %v727
        %v729 = vpop.f32.mrb[0].mxu0
        %730 = vdwg.mxu0
        %vm731 = vcmask 64512
        %v733 = vsel %vm731, %v576, 0
        %v736 = vsel %vm731, %v652, 0
        %738 = vmatprep.subr.mxu0 0.0
        %739 = vmatpush1.xpose.msra.mxu0 %v736
        %740 = vmatprep.subr.mxu0 0.0
        %741 = vmatpush1.xpose.msra.mxu0 0.0
        %742 = vmatprep.subr.mxu0 0.0
        %743 = vmatpush1.xpose.msra.mxu0 0.0
        %744 = vmatprep.subr.mxu0 0.0
        %745 = vmatpush1.xpose.msra.mxu0 0.0
        %746 = vmatprep.subr.mxu0 0.0
        %747 = vmatpush1.xpose.msra.mxu0 0.0
        %748 = vmatprep.subr.mxu0 0.0
        %749 = vmatpush1.xpose.msra.mxu0 0.0
        %750 = vmatprep.subr.mxu0 0.0
        %751 = vmatpush1.xpose.msra.mxu0 0.0
        %752 = vmatprep.subr.mxu0 0.0
        %753 = vmatpush1.xpose.msra.mxu0 0.0
        %754 = vmatprep.subr.mxu0 0.0
        %755 = vmatpush1.xpose.msra.mxu0 0.0
        %756 = vmatprep.subr.mxu0 0.0
        %757 = vmatpush1.xpose.msra.mxu0 0.0
        %758 = vmatprep.subr.mxu0 0.0
        %759 = vmatpush1.xpose.msra.mxu0 0.0
        %760 = vmatprep.subr.mxu0 0.0
        %761 = vmatpush1.xpose.msra.mxu0 0.0
        %762 = vmatprep.subr.mxu0 0.0
        %763 = vmatpush1.xpose.msra.mxu0 0.0
        %764 = vmatprep.subr.mxu0 0.0
        %765 = vmatpush1.xpose.msra.mxu0 0.0
        %766 = vmatprep.subr.mxu0 0.0
        %767 = vmatpush1.xpose.msra.mxu0 0.0
        %768 = vmatprep.subr.mxu0 0.0
        %769 = vmatpush1.xpose.msra.mxu0 0.0
        %770 = vmatprep.subr.mxu0 0.0
        %771 = vmatpush1.xpose.msra.mxu0 0.0
        %772 = vmatprep.subr.mxu0 0.0
        %773 = vmatpush1.xpose.msra.mxu0 0.0
        %774 = vmatprep.subr.mxu0 0.0
        %775 = vmatpush1.xpose.msra.mxu0 0.0
        %776 = vmatprep.subr.mxu0 0.0
        %777 = vmatpush1.xpose.msra.mxu0 0.0
        %778 = vmatprep.subr.mxu0 0.0
        %779 = vmatpush1.xpose.msra.mxu0 0.0
        %780 = vmatprep.subr.mxu0 0.0
        %781 = vmatpush1.xpose.msra.mxu0 0.0
        %782 = vmatprep.subr.mxu0 0.0
        %783 = vmatpush1.xpose.msra.mxu0 0.0
        %784 = vmatprep.subr.mxu0 0.0
        %785 = vmatpush1.xpose.msra.mxu0 0.0
        %786 = vmatprep.subr.mxu0 0.0
        %787 = vmatpush1.xpose.msra.mxu0 0.0
        %788 = vmatprep.subr.mxu0 0.0
        %789 = vmatpush1.xpose.msra.mxu0 0.0
        %790 = vmatprep.subr.mxu0 0.0
        %791 = vmatpush1.xpose.msra.mxu0 0.0
        %792 = vmatprep.subr.mxu0 0.0
        %793 = vmatpush1.xpose.msra.mxu0 0.0
        %794 = vmatprep.subr.mxu0 0.0
        %795 = vmatpush1.xpose.msra.mxu0 0.0
        %796 = vmatprep.subr.mxu0 0.0
        %797 = vmatpush1.xpose.msra.mxu0 0.0
        %798 = vmatprep.subr.mxu0 0.0
        %799 = vmatpush1.xpose.msra.mxu0 0.0
        %800 = vmatprep.subr.mxu0 0.0
        %801 = vmatpush1.xpose.msra.mxu0 0.0
        %802 = vmatprep.mubr.f32.mxu0 0.0
        %803 = vmatmul.mubr.f32.gmra.mrb[0].mxu0 %v733
        %v804 = vpop.f32.mrb[0].mxu0
        %v805 = vadd.f32 0.0, %v804
        %v806 = vpop.f32.mrb[0].mxu0
        %807 = vdwg.mxu0
        %v808 = vmul.f32 %v805, 0.35355338
        %v809 = vsel %vm731, %v808, -inf
        %810 = vmax.xlane.f32.xlu0 %v809
        %v811 = vpop.xlane.xlu0 %810
        %v812 = vsub.f32 %v808, %v811
        %v813 = vmul.f32 %v812, 1.442695
        %v814 = vpow.pop %v813
        %v815 = vsel %vm731, %v814, 0.0
        %816 = vadd.xlane.f32.xlu0 %v815
        %v817 = vpop.xlane.xlu0 %816
        %v818 = vrcp.pop %v817
        %v819 = vmul.f32 %v814, %v818
        %v821 = vsel %vm731, %v819, 0
        %823 = vmatprep.subr.mxu0 0.0
        %824 = vmatpush1.msra.mxu0 %v728
        %825 = vmatprep.subr.mxu0 0.0
        %826 = vmatpush1.msra.mxu0 0.0
        %827 = vmatprep.subr.mxu0 0.0
        %828 = vmatpush1.msra.mxu0 0.0
        %829 = vmatprep.subr.mxu0 0.0
        %830 = vmatpush1.msra.mxu0 0.0
        %831 = vmatprep.subr.mxu0 0.0
        %832 = vmatpush1.msra.mxu0 0.0
        %833 = vmatprep.subr.mxu0 0.0
        %834 = vmatpush1.msra.mxu0 0.0
        %835 = vmatprep.subr.mxu0 0.0
        %836 = vmatpush1.msra.mxu0 0.0
        %837 = vmatprep.subr.mxu0 0.0
        %838 = vmatpush1.msra.mxu0 0.0
        %839 = vmatprep.subr.mxu0 0.0
        %840 = vmatpush1.msra.mxu0 0.0
        %841 = vmatprep.subr.mxu0 0.0
        %842 = vmatpush1.msra.mxu0 0.0
        %843 = vmatprep.subr.mxu0 0.0
        %844 = vmatpush1.msra.mxu0 0.0
        %845 = vmatprep.subr.mxu0 0.0
        %846 = vmatpush1.msra.mxu0 0.0
        %847 = vmatprep.subr.mxu0 0.0
        %848 = vmatpush1.msra.mxu0 0.0
        %849 = vmatprep.subr.mxu0 0.0
        %850 = vmatpush1.msra.mxu0 0.0
        %851 = vmatprep.subr.mxu0 0.0
        %852 = vmatpush1.msra.mxu0 0.0
        %853 = vmatprep.subr.mxu0 0.0
        %854 = vmatpush1.msra.mxu0 0.0
        %855 = vmatprep.subr.mxu0 0.0
        %856 = vmatpush1.msra.mxu0 0.0
        %857 = vmatprep.subr.mxu0 0.0
        %858 = vmatpush1.msra.mxu0 0.0
        %859 = vmatprep.subr.mxu0 0.0
        %860 = vmatpush1.msra.mxu0 0.0
        %861 = vmatprep.subr.mxu0 0.0
        %862 = vmatpush1.msra.mxu0 0.0
        %863 = vmatprep.subr.mxu0 0.0
        %864 = vmatpush1.msra.mxu0 0.0
        %865 = vmatprep.subr.mxu0 0.0
        %866 = vmatpush1.msra.mxu0 0.0
        %867 = vmatprep.subr.mxu0 0.0
        %868 = vmatpush1.msra.mxu0 0.0
        %869 = vmatprep.subr.mxu0 0.0
        %870 = vmatpush1.msra.mxu0 0.0
        %871 = vmatprep.subr.mxu0 0.0
        %872 = vmatpush1.msra.mxu0 0.0
        %873 = vmatprep.subr.mxu0 0.0
        %874 = vmatpush1.msra.mxu0 0.0
        %875 = vmatprep.subr.mxu0 0.0
        %876 = vmatpush1.msra.mxu0 0.0
        %877 = vmatprep.subr.mxu0 0.0
        %878 = vmatpush1.msra.mxu0 0.0
        %879 = vmatprep.subr.mxu0 0.0
        %880 = vmatpush1.msra.mxu0 0.0
        %881 = vmatprep.subr.mxu0 0.0
        %882 = vmatpush1.msra.mxu0 0.0
        %883 = vmatprep.subr.mxu0 0.0
        %884 = vmatpush1.msra.mxu0 0.0
        %885 = vmatprep.subr.mxu0 0.0
        %886 = vmatpush1.msra.mxu0 0.0
        %887 = vmatprep.mubr.f32.mxu0 0.0
        %888 = vmatmul.mubr.f32.gmra.mrb[0].mxu0 %v821
        %v889 = vpop.f32.mrb[0].mxu0
        %v890 = vadd.f32 0.0, %v889
        %v891 = vpop.f32.mrb[0].mxu0
        %892 = vdwg.mxu0
        %893 = vrot.lane.b32.xlu0 %v576, 120
        %v894 = vpop.permute.xlu0 %893
        %895 = vrot.lane.b32.xlu0 %v652, 120
        %v896 = vpop.permute.xlu0 %895
        %v897 = vsel %vm731, %v894, 0
        %v899 = vsel %vm731, %v896, 0
        %901 = vmatprep.subr.mxu0 0.0
        %902 = vmatpush1.xpose.msra.mxu0 %v899
        %903 = vmatprep.subr.mxu0 0.0
        %904 = vmatpush1.xpose.msra.mxu0 0.0
        %905 = vmatprep.subr.mxu0 0.0
        %906 = vmatpush1.xpose.msra.mxu0 0.0
        %907 = vmatprep.subr.mxu0 0.0
        %908 = vmatpush1.xpose.msra.mxu0 0.0
        %909 = vmatprep.subr.mxu0 0.0
        %910 = vmatpush1.xpose.msra.mxu0 0.0
        %911 = vmatprep.subr.mxu0 0.0
        %912 = vmatpush1.xpose.msra.mxu0 0.0
        %913 = vmatprep.subr.mxu0 0.0
        %914 = vmatpush1.xpose.msra.mxu0 0.0
        %915 = vmatprep.subr.mxu0 0.0
        %916 = vmatpush1.xpose.msra.mxu0 0.0
        %917 = vmatprep.subr.mxu0 0.0
        %918 = vmatpush1.xpose.msra.mxu0 0.0
        %919 = vmatprep.subr.mxu0 0.0
        %920 = vmatpush1.xpose.msra.mxu0 0.0
        %921 = vmatprep.subr.mxu0 0.0
        %922 = vmatpush1.xpose.msra.mxu0 0.0
        %923 = vmatprep.subr.mxu0 0.0
        %924 = vmatpush1.xpose.msra.mxu0 0.0
        %925 = vmatprep.subr.mxu0 0.0
        %926 = vmatpush1.xpose.msra.mxu0 0.0
        %927 = vmatprep.subr.mxu0 0.0
        %928 = vmatpush1.xpose.msra.mxu0 0.0
        %929 = vmatprep.subr.mxu0 0.0
        %930 = vmatpush1.xpose.msra.mxu0 0.0
        %931 = vmatprep.subr.mxu0 0.0
        %932 = vmatpush1.xpose.msra.mxu0 0.0
        %933 = vmatprep.subr.mxu0 0.0
        %934 = vmatpush1.xpose.msra.mxu0 0.0
        %935 = vmatprep.subr.mxu0 0.0
        %936 = vmatpush1.xpose.msra.mxu0 0.0
        %937 = vmatprep.subr.mxu0 0.0
        %938 = vmatpush1.xpose.msra.mxu0 0.0
        %939 = vmatprep.subr.mxu0 0.0
        %940 = vmatpush1.xpose.msra.mxu0 0.0
        %941 = vmatprep.subr.mxu0 0.0
        %942 = vmatpush1.xpose.msra.mxu0 0.0
        %943 = vmatprep.subr.mxu0 0.0
        %944 = vmatpush1.xpose.msra.mxu0 0.0
        %945 = vmatprep.subr.mxu0 0.0
        %946 = vmatpush1.xpose.msra.mxu0 0.0
        %947 = vmatprep.subr.mxu0 0.0
        %948 = vmatpush1.xpose.msra.mxu0 0.0
        %949 = vmatprep.subr.mxu0 0.0
        %950 = vmatpush1.xpose.msra.mxu0 0.0
        %951 = vmatprep.subr.mxu0 0.0
        %952 = vmatpush1.xpose.msra.mxu0 0.0
        %953 = vmatprep.subr.mxu0 0.0
        %954 = vmatpush1.xpose.msra.mxu0 0.0
        %955 = vmatprep.subr.mxu0 0.0
        %956 = vmatpush1.xpose.msra.mxu0 0.0
        %957 = vmatprep.subr.mxu0 0.0
        %958 = vmatpush1.xpose.msra.mxu0 0.0
        %959 = vmatprep.subr.mxu0 0.0
        %960 = vmatpush1.xpose.msra.mxu0 0.0
        %961 = vmatprep.subr.mxu0 0.0
        %962 = vmatpush1.xpose.msra.mxu0 0.0
        %963 = vmatprep.subr.mxu0 0.0
        %964 = vmatpush1.xpose.msra.mxu0 0.0
        %965 = vmatprep.mubr.f32.mxu0 0.0
        %966 = vmatmul.mubr.f32.gmra.mrb[0].mxu0 %v897
        %v967 = vpop.f32.mrb[0].mxu0
        %v968 = vadd.f32 0.0, %v967
        %v969 = vpop.f32.mrb[0].mxu0
        %970 = vdwg.mxu0
        %v971 = vmul.f32 %v968, 0.35355338
        %v972 = vsel %vm731, %v971, -inf
        %973 = vmax.xlane.f32.xlu0 %v972
        %v974 = vpop.xlane.xlu0 %973
        %v975 = vsub.f32 %v971, %v974
        %v976 = vmul.f32 %v975, 1.442695
        %v977 = vpow.pop %v976
        %v978 = vsel %vm731, %v977, 0.0
        %979 = vadd.xlane.f32.xlu0 %v978
        %v980 = vpop.xlane.xlu0 %979
        %v981 = vrcp.pop %v980
        %v982 = vmul.f32 %v977, %v981
        %984 = vrot.lane.b32.xlu0 %v728, 120
        %v985 = vpop.permute.xlu0 %984
        %v988 = vsel %vm731, %v982, 0
        %990 = vmatprep.subr.mxu0 0.0
        %991 = vmatpush1.msra.mxu0 %v985
        %992 = vmatprep.subr.mxu0 0.0
        %993 = vmatpush1.msra.mxu0 0.0
        %994 = vmatprep.subr.mxu0 0.0
        %995 = vmatpush1.msra.mxu0 0.0
        %996 = vmatprep.subr.mxu0 0.0
        %997 = vmatpush1.msra.mxu0 0.0
        %998 = vmatprep.subr.mxu0 0.0
        %999 = vmatpush1.msra.mxu0 0.0
        %1000 = vmatprep.subr.mxu0 0.0
        %1001 = vmatpush1.msra.mxu0 0.0
        %1002 = vmatprep.subr.mxu0 0.0
        %1003 = vmatpush1.msra.mxu0 0.0
        %1004 = vmatprep.subr.mxu0 0.0
        %1005 = vmatpush1.msra.mxu0 0.0
        %1006 = vmatprep.subr.mxu0 0.0
        %1007 = vmatpush1.msra.mxu0 0.0
        %1008 = vmatprep.subr.mxu0 0.0
        %1009 = vmatpush1.msra.mxu0 0.0
        %1010 = vmatprep.subr.mxu0 0.0
        %1011 = vmatpush1.msra.mxu0 0.0
        %1012 = vmatprep.subr.mxu0 0.0
        %1013 = vmatpush1.msra.mxu0 0.0
        %1014 = vmatprep.subr.mxu0 0.0
        %1015 = vmatpush1.msra.mxu0 0.0
        %1016 = vmatprep.subr.mxu0 0.0
        %1017 = vmatpush1.msra.mxu0 0.0
        %1018 = vmatprep.subr.mxu0 0.0
        %1019 = vmatpush1.msra.mxu0 0.0
        %1020 = vmatprep.subr.mxu0 0.0
        %1021 = vmatpush1.msra.mxu0 0.0
        %1022 = vmatprep.subr.mxu0 0.0
        %1023 = vmatpush1.msra.mxu0 0.0
        %1024 = vmatprep.subr.mxu0 0.0
        %1025 = vmatpush1.msra.mxu0 0.0
        %1026 = vmatprep.subr.mxu0 0.0
        %1027 = vmatpush1.msra.mxu0 0.0
        %1028 = vmatprep.subr.mxu0 0.0
        %1029 = vmatpush1.msra.mxu0 0.0
        %1030 = vmatprep.subr.mxu0 0.0
        %1031 = vmatpush1.msra.mxu0 0.0
        %1032 = vmatprep.subr.mxu0 0.0
        %1033 = vmatpush1.msra.mxu0 0.0
        %1034 = vmatprep.subr.mxu0 0.0
        %1035 = vmatpush1.msra.mxu0 0.0
        %1036 = vmatprep.subr.mxu0 0.0
        %1037 = vmatpush1.msra.mxu0 0.0
        %1038 = vmatprep.subr.mxu0 0.0
        %1039 = vmatpush1.msra.mxu0 0.0
        %1040 = vmatprep.subr.mxu0 0.0
        %1041 = vmatpush1.msra.mxu0 0.0
        %1042 = vmatprep.subr.mxu0 0.0
        %1043 = vmatpush1.msra.mxu0 0.0
        %1044 = vmatprep.subr.mxu0 0.0
        %1045 = vmatpush1.msra.mxu0 0.0
        %1046 = vmatprep.subr.mxu0 0.0
        %1047 = vmatpush1.msra.mxu0 0.0
        %1048 = vmatprep.subr.mxu0 0.0
        %1049 = vmatpush1.msra.mxu0 0.0
        %1050 = vmatprep.subr.mxu0 0.0
        %1051 = vmatpush1.msra.mxu0 0.0
        %1052 = vmatprep.subr.mxu0 0.0
        %1053 = vmatpush1.msra.mxu0 0.0
        %1054 = vmatprep.mubr.f32.mxu0 0.0
        %1055 = vmatmul.mubr.f32.gmra.mrb[0].mxu0 %v988
        %v1056 = vpop.f32.mrb[0].mxu0
        %v1057 = vadd.f32 0.0, %v1056
        %v1058 = vpop.f32.mrb[0].mxu0
        %1059 = vdwg.mxu0
        %v1061 = vsel %vm731, %v1057, 0
        %1063 = vmatprep.subr.mxu0 0.0
        %1064 = vmatpush1.msra.mxu0 %v490
        %1065 = vmatprep.subr.mxu0 0.0
        %1066 = vmatpush1.msra.mxu0 0.0
        %1067 = vmatprep.subr.mxu0 0.0
        %1068 = vmatpush1.msra.mxu0 0.0
        %1069 = vmatprep.subr.mxu0 0.0
        %1070 = vmatpush1.msra.mxu0 0.0
        %1071 = vmatprep.subr.mxu0 0.0
        %1072 = vmatpush1.msra.mxu0 0.0
        %1073 = vmatprep.subr.mxu0 0.0
        %1074 = vmatpush1.msra.mxu0 0.0
        %1075 = vmatprep.subr.mxu0 0.0
        %1076 = vmatpush1.msra.mxu0 0.0
        %1077 = vmatprep.subr.mxu0 0.0
        %1078 = vmatpush1.msra.mxu0 0.0
        %1079 = vmatprep.subr.mxu0 0.0
        %1080 = vmatpush1.msra.mxu0 0.0
        %1081 = vmatprep.subr.mxu0 0.0
        %1082 = vmatpush1.msra.mxu0 0.0
        %1083 = vmatprep.subr.mxu0 0.0
        %1084 = vmatpush1.msra.mxu0 0.0
        %1085 = vmatprep.subr.mxu0 0.0
        %1086 = vmatpush1.msra.mxu0 0.0
        %1087 = vmatprep.subr.mxu0 0.0
        %1088 = vmatpush1.msra.mxu0 0.0
        %1089 = vmatprep.subr.mxu0 0.0
        %1090 = vmatpush1.msra.mxu0 0.0
        %1091 = vmatprep.subr.mxu0 0.0
        %1092 = vmatpush1.msra.mxu0 0.0
        %1093 = vmatprep.subr.mxu0 0.0
        %1094 = vmatpush1.msra.mxu0 0.0
        %1095 = vmatprep.subr.mxu0 0.0
        %1096 = vmatpush1.msra.mxu0 0.0
        %1097 = vmatprep.subr.mxu0 0.0
        %1098 = vmatpush1.msra.mxu0 0.0
        %1099 = vmatprep.subr.mxu0 0.0
        %1100 = vmatpush1.msra.mxu0 0.0
        %1101 = vmatprep.subr.mxu0 0.0
        %1102 = vmatpush1.msra.mxu0 0.0
        %1103 = vmatprep.subr.mxu0 0.0
        %1104 = vmatpush1.msra.mxu0 0.0
        %1105 = vmatprep.subr.mxu0 0.0
        %1106 = vmatpush1.msra.mxu0 0.0
        %1107 = vmatprep.subr.mxu0 0.0
        %1108 = vmatpush1.msra.mxu0 0.0
        %1109 = vmatprep.subr.mxu0 0.0
        %1110 = vmatpush1.msra.mxu0 0.0
        %1111 = vmatprep.subr.mxu0 0.0
        %1112 = vmatpush1.msra.mxu0 0.0
        %1113 = vmatprep.subr.mxu0 0.0
        %1114 = vmatpush1.msra.mxu0 0.0
        %1115 = vmatprep.subr.mxu0 0.0
        %1116 = vmatpush1.msra.mxu0 0.0
        %1117 = vmatprep.subr.mxu0 0.0
        %1118 = vmatpush1.msra.mxu0 0.0
        %1119 = vmatprep.subr.mxu0 0.0
        %1120 = vmatpush1.msra.mxu0 0.0
        %1121 = vmatprep.subr.mxu0 0.0
        %1122 = vmatpush1.msra.mxu0 0.0
        %1123 = vmatprep.subr.mxu0 0.0
        %1124 = vmatpush1.msra.mxu0 0.0
        %1125 = vmatprep.subr.mxu0 0.0
        %1126 = vmatpush1.msra.mxu0 0.0
        %1127 = vmatprep.mubr.f32.mxu0 0.0
        %1128 = vmatmul.mubr.f32.gmra.mrb[0].mxu0 %v1061
        %v1129 = vpop.f32.mrb[0].mxu0
        %v1130 = vadd.f32 0.0, %v1129
        %v1131 = vpop.f32.mrb[0].mxu0
        %1132 = vdwg.mxu0
        %v1134 = vsel %vm731, %v890, 0
        %1136 = vmatprep.subr.mxu0 0.0
        %1137 = vmatpush1.msra.mxu0 %v489
        %1138 = vmatprep.subr.mxu0 0.0
        %1139 = vmatpush1.msra.mxu0 0.0
        %1140 = vmatprep.subr.mxu0 0.0
        %1141 = vmatpush1.msra.mxu0 0.0
        %1142 = vmatprep.subr.mxu0 0.0
        %1143 = vmatpush1.msra.mxu0 0.0
        %1144 = vmatprep.subr.mxu0 0.0
        %1145 = vmatpush1.msra.mxu0 0.0
        %1146 = vmatprep.subr.mxu0 0.0
        %1147 = vmatpush1.msra.mxu0 0.0
        %1148 = vmatprep.subr.mxu0 0.0
        %1149 = vmatpush1.msra.mxu0 0.0
        %1150 = vmatprep.subr.mxu0 0.0
        %1151 = vmatpush1.msra.mxu0 0.0
        %1152 = vmatprep.subr.mxu0 0.0
        %1153 = vmatpush1.msra.mxu0 0.0
        %1154 = vmatprep.subr.mxu0 0.0
        %1155 = vmatpush1.msra.mxu0 0.0
        %1156 = vmatprep.subr.mxu0 0.0
        %1157 = vmatpush1.msra.mxu0 0.0
        %1158 = vmatprep.subr.mxu0 0.0
        %1159 = vmatpush1.msra.mxu0 0.0
        %1160 = vmatprep.subr.mxu0 0.0
        %1161 = vmatpush1.msra.mxu0 0.0
        %1162 = vmatprep.subr.mxu0 0.0
        %1163 = vmatpush1.msra.mxu0 0.0
        %1164 = vmatprep.subr.mxu0 0.0
        %1165 = vmatpush1.msra.mxu0 0.0
        %1166 = vmatprep.subr.mxu0 0.0
        %1167 = vmatpush1.msra.mxu0 0.0
        %1168 = vmatprep.subr.mxu0 0.0
        %1169 = vmatpush1.msra.mxu0 0.0
        %1170 = vmatprep.subr.mxu0 0.0
        %1171 = vmatpush1.msra.mxu0 0.0
        %1172 = vmatprep.subr.mxu0 0.0
        %1173 = vmatpush1.msra.mxu0 0.0
        %1174 = vmatprep.subr.mxu0 0.0
        %1175 = vmatpush1.msra.mxu0 0.0
        %1176 = vmatprep.subr.mxu0 0.0
        %1177 = vmatpush1.msra.mxu0 0.0
        %1178 = vmatprep.subr.mxu0 0.0
        %1179 = vmatpush1.msra.mxu0 0.0
        %1180 = vmatprep.subr.mxu0 0.0
        %1181 = vmatpush1.msra.mxu0 0.0
        %1182 = vmatprep.subr.mxu0 0.0
        %1183 = vmatpush1.msra.mxu0 0.0
        %1184 = vmatprep.subr.mxu0 0.0
        %1185 = vmatpush1.msra.mxu0 0.0
        %1186 = vmatprep.subr.mxu0 0.0
        %1187 = vmatpush1.msra.mxu0 0.0
        %1188 = vmatprep.subr.mxu0 0.0
        %1189 = vmatpush1.msra.mxu0 0.0
        %1190 = vmatprep.subr.mxu0 0.0
        %1191 = vmatpush1.msra.mxu0 0.0
        %1192 = vmatprep.subr.mxu0 0.0
        %1193 = vmatpush1.msra.mxu0 0.0
        %1194 = vmatprep.subr.mxu0 0.0
        %1195 = vmatpush1.msra.mxu0 0.0
        %1196 = vmatprep.subr.mxu0 0.0
        %1197 = vmatpush1.msra.mxu0 0.0
        %1198 = vmatprep.subr.mxu0 0.0
        %1199 = vmatpush1.msra.mxu0 0.0
        %1200 = vmatprep.mubr.f32.mxu0 0.0
        %1201 = vmatmul.mubr.f32.gmra.mrb[0].mxu0 %v1134
        %v1202 = vpop.f32.mrb[0].mxu0
        %v1203 = vadd.f32 %v1130, %v1202
        %v1204 = vpop.f32.mrb[0].mxu0
        %1205 = vdwg.mxu0
        %1206 = vrot.lane.b32.xlu0 %v576, 112
        %v1207 = vpop.permute.xlu0 %1206
        %1208 = vrot.lane.b32.xlu0 %v652, 112
        %v1209 = vpop.permute.xlu0 %1208
        %v1210 = vsel %vm731, %v1207, 0
        %v1212 = vsel %vm731, %v1209, 0
        %1214 = vmatprep.subr.mxu0 0.0
        %1215 = vmatpush1.xpose.msra.mxu0 %v1212
        %1216 = vmatprep.subr.mxu0 0.0
        %1217 = vmatpush1.xpose.msra.mxu0 0.0
        %1218 = vmatprep.subr.mxu0 0.0
        %1219 = vmatpush1.xpose.msra.mxu0 0.0
        %1220 = vmatprep.subr.mxu0 0.0
        %1221 = vmatpush1.xpose.msra.mxu0 0.0
        %1222 = vmatprep.subr.mxu0 0.0
        %1223 = vmatpush1.xpose.msra.mxu0 0.0
        %1224 = vmatprep.subr.mxu0 0.0
        %1225 = vmatpush1.xpose.msra.mxu0 0.0
        %1226 = vmatprep.subr.mxu0 0.0
        %1227 = vmatpush1.xpose.msra.mxu0 0.0
        %1228 = vmatprep.subr.mxu0 0.0
        %1229 = vmatpush1.xpose.msra.mxu0 0.0
        %1230 = vmatprep.subr.mxu0 0.0
        %1231 = vmatpush1.xpose.msra.mxu0 0.0
        %1232 = vmatprep.subr.mxu0 0.0
        %1233 = vmatpush1.xpose.msra.mxu0 0.0
        %1234 = vmatprep.subr.mxu0 0.0
        %1235 = vmatpush1.xpose.msra.mxu0 0.0
        %1236 = vmatprep.subr.mxu0 0.0
        %1237 = vmatpush1.xpose.msra.mxu0 0.0
        %1238 = vmatprep.subr.mxu0 0.0
        %1239 = vmatpush1.xpose.msra.mxu0 0.0
        %1240 = vmatprep.subr.mxu0 0.0
        %1241 = vmatpush1.xpose.msra.mxu0 0.0
        %1242 = vmatprep.subr.mxu0 0.0
        %1243 = vmatpush1.xpose.msra.mxu0 0.0
        %1244 = vmatprep.subr.mxu0 0.0
        %1245 = vmatpush1.xpose.msra.mxu0 0.0
        %1246 = vmatprep.subr.mxu0 0.0
        %1247 = vmatpush1.xpose.msra.mxu0 0.0
        %1248 = vmatprep.subr.mxu0 0.0
        %1249 = vmatpush1.xpose.msra.mxu0 0.0
        %1250 = vmatprep.subr.mxu0 0.0
        %1251 = vmatpush1.xpose.msra.mxu0 0.0
        %1252 = vmatprep.subr.mxu0 0.0
        %1253 = vmatpush1.xpose.msra.mxu0 0.0
        %1254 = vmatprep.subr.mxu0 0.0
        %1255 = vmatpush1.xpose.msra.mxu0 0.0
        %1256 = vmatprep.subr.mxu0 0.0
        %1257 = vmatpush1.xpose.msra.mxu0 0.0
        %1258 = vmatprep.subr.mxu0 0.0
        %1259 = vmatpush1.xpose.msra.mxu0 0.0
        %1260 = vmatprep.subr.mxu0 0.0
        %1261 = vmatpush1.xpose.msra.mxu0 0.0
        %1262 = vmatprep.subr.mxu0 0.0
        %1263 = vmatpush1.xpose.msra.mxu0 0.0
        %1264 = vmatprep.subr.mxu0 0.0
        %1265 = vmatpush1.xpose.msra.mxu0 0.0
        %1266 = vmatprep.subr.mxu0 0.0
        %1267 = vmatpush1.xpose.msra.mxu0 0.0
        %1268 = vmatprep.subr.mxu0 0.0
        %1269 = vmatpush1.xpose.msra.mxu0 0.0
        %1270 = vmatprep.subr.mxu0 0.0
        %1271 = vmatpush1.xpose.msra.mxu0 0.0
        %1272 = vmatprep.subr.mxu0 0.0
        %1273 = vmatpush1.xpose.msra.mxu0 0.0
        %1274 = vmatprep.subr.mxu0 0.0
        %1275 = vmatpush1.xpose.msra.mxu0 0.0
        %1276 = vmatprep.subr.mxu0 0.0
        %1277 = vmatpush1.xpose.msra.mxu0 0.0
        %1278 = vmatprep.mubr.f32.mxu0 0.0
        %1279 = vmatmul.mubr.f32.gmra.mrb[0].mxu0 %v1210
        %v1280 = vpop.f32.mrb[0].mxu0
        %v1281 = vadd.f32 0.0, %v1280
        %v1282 = vpop.f32.mrb[0].mxu0
        %1283 = vdwg.mxu0
        %v1284 = vmul.f32 %v1281, 0.35355338
        %v1285 = vsel %vm731, %v1284, -inf
        %1286 = vmax.xlane.f32.xlu0 %v1285
        %v1287 = vpop.xlane.xlu0 %1286
        %v1288 = vsub.f32 %v1284, %v1287
        %v1289 = vmul.f32 %v1288, 1.442695
        %v1290 = vpow.pop %v1289
        %v1291 = vsel %vm731, %v1290, 0.0
        %1292 = vadd.xlane.f32.xlu0 %v1291
        %v1293 = vpop.xlane.xlu0 %1292
        %v1294 = vrcp.pop %v1293
        %v1295 = vmul.f32 %v1290, %v1294
        %1296 = vrot.lane.b32.xlu0 %v728, 112
        %v1297 = vpop.permute.xlu0 %1296
        %v1300 = vsel %vm731, %v1295, 0
        %1302 = vmatprep.subr.mxu0 0.0
        %1303 = vmatpush1.msra.mxu0 %v1297
        %1304 = vmatprep.subr.mxu0 0.0
        %1305 = vmatpush1.msra.mxu0 0.0
        %1306 = vmatprep.subr.mxu0 0.0
        %1307 = vmatpush1.msra.mxu0 0.0
        %1308 = vmatprep.subr.mxu0 0.0
        %1309 = vmatpush1.msra.mxu0 0.0
        %1310 = vmatprep.subr.mxu0 0.0
        %1311 = vmatpush1.msra.mxu0 0.0
        %1312 = vmatprep.subr.mxu0 0.0
        %1313 = vmatpush1.msra.mxu0 0.0
        %1314 = vmatprep.subr.mxu0 0.0
        %1315 = vmatpush1.msra.mxu0 0.0
        %1316 = vmatprep.subr.mxu0 0.0
        %1317 = vmatpush1.msra.mxu0 0.0
        %1318 = vmatprep.subr.mxu0 0.0
        %1319 = vmatpush1.msra.mxu0 0.0
        %1320 = vmatprep.subr.mxu0 0.0
        %1321 = vmatpush1.msra.mxu0 0.0
        %1322 = vmatprep.subr.mxu0 0.0
        %1323 = vmatpush1.msra.mxu0 0.0
        %1324 = vmatprep.subr.mxu0 0.0
        %1325 = vmatpush1.msra.mxu0 0.0
        %1326 = vmatprep.subr.mxu0 0.0
        %1327 = vmatpush1.msra.mxu0 0.0
        %1328 = vmatprep.subr.mxu0 0.0
        %1329 = vmatpush1.msra.mxu0 0.0
        %1330 = vmatprep.subr.mxu0 0.0
        %1331 = vmatpush1.msra.mxu0 0.0
        %1332 = vmatprep.subr.mxu0 0.0
        %1333 = vmatpush1.msra.mxu0 0.0
        %1334 = vmatprep.subr.mxu0 0.0
        %1335 = vmatpush1.msra.mxu0 0.0
        %1336 = vmatprep.subr.mxu0 0.0
        %1337 = vmatpush1.msra.mxu0 0.0
        %1338 = vmatprep.subr.mxu0 0.0
        %1339 = vmatpush1.msra.mxu0 0.0
        %1340 = vmatprep.subr.mxu0 0.0
        %1341 = vmatpush1.msra.mxu0 0.0
        %1342 = vmatprep.subr.mxu0 0.0
        %1343 = vmatpush1.msra.mxu0 0.0
        %1344 = vmatprep.subr.mxu0 0.0
        %1345 = vmatpush1.msra.mxu0 0.0
        %1346 = vmatprep.subr.mxu0 0.0
        %1347 = vmatpush1.msra.mxu0 0.0
        %1348 = vmatprep.subr.mxu0 0.0
        %1349 = vmatpush1.msra.mxu0 0.0
        %1350 = vmatprep.subr.mxu0 0.0
        %1351 = vmatpush1.msra.mxu0 0.0
        %1352 = vmatprep.subr.mxu0 0.0
        %1353 = vmatpush1.msra.mxu0 0.0
        %1354 = vmatprep.subr.mxu0 0.0
        %1355 = vmatpush1.msra.mxu0 0.0
        %1356 = vmatprep.subr.mxu0 0.0
        %1357 = vmatpush1.msra.mxu0 0.0
        %1358 = vmatprep.subr.mxu0 0.0
        %1359 = vmatpush1.msra.mxu0 0.0
        %1360 = vmatprep.subr.mxu0 0.0
        %1361 = vmatpush1.msra.mxu0 0.0
        %1362 = vmatprep.subr.mxu0 0.0
        %1363 = vmatpush1.msra.mxu0 0.0
        %1364 = vmatprep.subr.mxu0 0.0
        %1365 = vmatpush1.msra.mxu0 0.0
        %1366 = vmatprep.mubr.f32.mxu0 0.0
        %1367 = vmatmul.mubr.f32.gmra.mrb[0].mxu0 %v1300
        %v1368 = vpop.f32.mrb[0].mxu0
        %v1369 = vadd.f32 0.0, %v1368
        %v1370 = vpop.f32.mrb[0].mxu0
        %1371 = vdwg.mxu0
        %v1373 = vsel %vm731, %v1369, 0
        %1375 = vmatprep.subr.mxu0 0.0
        %1376 = vmatpush1.msra.mxu0 %v491
        %1377 = vmatprep.subr.mxu0 0.0
        %1378 = vmatpush1.msra.mxu0 0.0
        %1379 = vmatprep.subr.mxu0 0.0
        %1380 = vmatpush1.msra.mxu0 0.0
        %1381 = vmatprep.subr.mxu0 0.0
        %1382 = vmatpush1.msra.mxu0 0.0
        %1383 = vmatprep.subr.mxu0 0.0
        %1384 = vmatpush1.msra.mxu0 0.0
        %1385 = vmatprep.subr.mxu0 0.0
        %1386 = vmatpush1.msra.mxu0 0.0
        %1387 = vmatprep.subr.mxu0 0.0
        %1388 = vmatpush1.msra.mxu0 0.0
        %1389 = vmatprep.subr.mxu0 0.0
        %1390 = vmatpush1.msra.mxu0 0.0
        %1391 = vmatprep.subr.mxu0 0.0
        %1392 = vmatpush1.msra.mxu0 0.0
        %1393 = vmatprep.subr.mxu0 0.0
        %1394 = vmatpush1.msra.mxu0 0.0
        %1395 = vmatprep.subr.mxu0 0.0
        %1396 = vmatpush1.msra.mxu0 0.0
        %1397 = vmatprep.subr.mxu0 0.0
        %1398 = vmatpush1.msra.mxu0 0.0
        %1399 = vmatprep.subr.mxu0 0.0
        %1400 = vmatpush1.msra.mxu0 0.0
        %1401 = vmatprep.subr.mxu0 0.0
        %1402 = vmatpush1.msra.mxu0 0.0
        %1403 = vmatprep.subr.mxu0 0.0
        %1404 = vmatpush1.msra.mxu0 0.0
        %1405 = vmatprep.subr.mxu0 0.0
        %1406 = vmatpush1.msra.mxu0 0.0
        %1407 = vmatprep.subr.mxu0 0.0
        %1408 = vmatpush1.msra.mxu0 0.0
        %1409 = vmatprep.subr.mxu0 0.0
        %1410 = vmatpush1.msra.mxu0 0.0
        %1411 = vmatprep.subr.mxu0 0.0
        %1412 = vmatpush1.msra.mxu0 0.0
        %1413 = vmatprep.subr.mxu0 0.0
        %1414 = vmatpush1.msra.mxu0 0.0
        %1415 = vmatprep.subr.mxu0 0.0
        %1416 = vmatpush1.msra.mxu0 0.0
        %1417 = vmatprep.subr.mxu0 0.0
        %1418 = vmatpush1.msra.mxu0 0.0
        %1419 = vmatprep.subr.mxu0 0.0
        %1420 = vmatpush1.msra.mxu0 0.0
        %1421 = vmatprep.subr.mxu0 0.0
        %1422 = vmatpush1.msra.mxu0 0.0
        %1423 = vmatprep.subr.mxu0 0.0
        %1424 = vmatpush1.msra.mxu0 0.0
        %1425 = vmatprep.subr.mxu0 0.0
        %1426 = vmatpush1.msra.mxu0 0.0
        %1427 = vmatprep.subr.mxu0 0.0
        %1428 = vmatpush1.msra.mxu0 0.0
        %1429 = vmatprep.subr.mxu0 0.0
        %1430 = vmatpush1.msra.mxu0 0.0
        %1431 = vmatprep.subr.mxu0 0.0
        %1432 = vmatpush1.msra.mxu0 0.0
        %1433 = vmatprep.subr.mxu0 0.0
        %1434 = vmatpush1.msra.mxu0 0.0
        %1435 = vmatprep.subr.mxu0 0.0
        %1436 = vmatpush1.msra.mxu0 0.0
        %1437 = vmatprep.subr.mxu0 0.0
        %1438 = vmatpush1.msra.mxu0 0.0
        %1439 = vmatprep.mubr.f32.mxu0 0.0
        %1440 = vmatmul.mubr.f32.gmra.mrb[0].mxu0 %v1373
        %v1441 = vpop.f32.mrb[0].mxu0
        %v1442 = vadd.f32 0.0, %v1441
        %v1443 = vpop.f32.mrb[0].mxu0
        %1444 = vdwg.mxu0
        %v1445 = vadd.f32 %v1203, %v1442
        %1446 = vrot.lane.b32.xlu0 %v576, 104
        %v1447 = vpop.permute.xlu0 %1446
        %1448 = vrot.lane.b32.xlu0 %v652, 104
        %v1449 = vpop.permute.xlu0 %1448
        %v1450 = vsel %vm731, %v1447, 0
        %v1452 = vsel %vm731, %v1449, 0
        %1454 = vmatprep.subr.mxu0 0.0
        %1455 = vmatpush1.xpose.msra.mxu0 %v1452
        %1456 = vmatprep.subr.mxu0 0.0
        %1457 = vmatpush1.xpose.msra.mxu0 0.0
        %1458 = vmatprep.subr.mxu0 0.0
        %1459 = vmatpush1.xpose.msra.mxu0 0.0
        %1460 = vmatprep.subr.mxu0 0.0
        %1461 = vmatpush1.xpose.msra.mxu0 0.0
        %1462 = vmatprep.subr.mxu0 0.0
        %1463 = vmatpush1.xpose.msra.mxu0 0.0
        %1464 = vmatprep.subr.mxu0 0.0
        %1465 = vmatpush1.xpose.msra.mxu0 0.0
        %1466 = vmatprep.subr.mxu0 0.0
        %1467 = vmatpush1.xpose.msra.mxu0 0.0
        %1468 = vmatprep.subr.mxu0 0.0
        %1469 = vmatpush1.xpose.msra.mxu0 0.0
        %1470 = vmatprep.subr.mxu0 0.0
        %1471 = vmatpush1.xpose.msra.mxu0 0.0
        %1472 = vmatprep.subr.mxu0 0.0
        %1473 = vmatpush1.xpose.msra.mxu0 0.0
        %1474 = vmatprep.subr.mxu0 0.0
        %1475 = vmatpush1.xpose.msra.mxu0 0.0
        %1476 = vmatprep.subr.mxu0 0.0
        %1477 = vmatpush1.xpose.msra.mxu0 0.0
        %1478 = vmatprep.subr.mxu0 0.0
        %1479 = vmatpush1.xpose.msra.mxu0 0.0
        %1480 = vmatprep.subr.mxu0 0.0
        %1481 = vmatpush1.xpose.msra.mxu0 0.0
        %1482 = vmatprep.subr.mxu0 0.0
        %1483 = vmatpush1.xpose.msra.mxu0 0.0
        %1484 = vmatprep.subr.mxu0 0.0
        %1485 = vmatpush1.xpose.msra.mxu0 0.0
        %1486 = vmatprep.subr.mxu0 0.0
        %1487 = vmatpush1.xpose.msra.mxu0 0.0
        %1488 = vmatprep.subr.mxu0 0.0
        %1489 = vmatpush1.xpose.msra.mxu0 0.0
        %1490 = vmatprep.subr.mxu0 0.0
        %1491 = vmatpush1.xpose.msra.mxu0 0.0
        %1492 = vmatprep.subr.mxu0 0.0
        %1493 = vmatpush1.xpose.msra.mxu0 0.0
        %1494 = vmatprep.subr.mxu0 0.0
        %1495 = vmatpush1.xpose.msra.mxu0 0.0
        %1496 = vmatprep.subr.mxu0 0.0
        %1497 = vmatpush1.xpose.msra.mxu0 0.0
        %1498 = vmatprep.subr.mxu0 0.0
        %1499 = vmatpush1.xpose.msra.mxu0 0.0
        %1500 = vmatprep.subr.mxu0 0.0
        %1501 = vmatpush1.xpose.msra.mxu0 0.0
        %1502 = vmatprep.subr.mxu0 0.0
        %1503 = vmatpush1.xpose.msra.mxu0 0.0
        %1504 = vmatprep.subr.mxu0 0.0
        %1505 = vmatpush1.xpose.msra.mxu0 0.0
        %1506 = vmatprep.subr.mxu0 0.0
        %1507 = vmatpush1.xpose.msra.mxu0 0.0
        %1508 = vmatprep.subr.mxu0 0.0
        %1509 = vmatpush1.xpose.msra.mxu0 0.0
        %1510 = vmatprep.subr.mxu0 0.0
        %1511 = vmatpush1.xpose.msra.mxu0 0.0
        %1512 = vmatprep.subr.mxu0 0.0
        %1513 = vmatpush1.xpose.msra.mxu0 0.0
        %1514 = vmatprep.subr.mxu0 0.0
        %1515 = vmatpush1.xpose.msra.mxu0 0.0
        %1516 = vmatprep.subr.mxu0 0.0
        %1517 = vmatpush1.xpose.msra.mxu0 0.0
        %1518 = vmatprep.mubr.f32.mxu0 0.0
        %1519 = vmatmul.mubr.f32.gmra.mrb[0].mxu0 %v1450
        %v1520 = vpop.f32.mrb[0].mxu0
        %v1521 = vadd.f32 0.0, %v1520
        %v1522 = vpop.f32.mrb[0].mxu0
        %1523 = vdwg.mxu0
        %v1524 = vmul.f32 %v1521, 0.35355338
        %v1525 = vsel %vm731, %v1524, -inf
        %1526 = vmax.xlane.f32.xlu0 %v1525
        %v1527 = vpop.xlane.xlu0 %1526
        %v1528 = vsub.f32 %v1524, %v1527
        %v1529 = vmul.f32 %v1528, 1.442695
        %v1530 = vpow.pop %v1529
        %v1531 = vsel %vm731, %v1530, 0.0
        %1532 = vadd.xlane.f32.xlu0 %v1531
        %v1533 = vpop.xlane.xlu0 %1532
        %v1534 = vrcp.pop %v1533
        %v1535 = vmul.f32 %v1530, %v1534
        %1536 = vrot.lane.b32.xlu0 %v728, 104
        %v1537 = vpop.permute.xlu0 %1536
        %v1540 = vsel %vm731, %v1535, 0
        %1542 = vmatprep.subr.mxu0 0.0
        %1543 = vmatpush1.msra.mxu0 %v1537
        %1544 = vmatprep.subr.mxu0 0.0
        %1545 = vmatpush1.msra.mxu0 0.0
        %1546 = vmatprep.subr.mxu0 0.0
        %1547 = vmatpush1.msra.mxu0 0.0
        %1548 = vmatprep.subr.mxu0 0.0
        %1549 = vmatpush1.msra.mxu0 0.0
        %1550 = vmatprep.subr.mxu0 0.0
        %1551 = vmatpush1.msra.mxu0 0.0
        %1552 = vmatprep.subr.mxu0 0.0
        %1553 = vmatpush1.msra.mxu0 0.0
        %1554 = vmatprep.subr.mxu0 0.0
        %1555 = vmatpush1.msra.mxu0 0.0
        %1556 = vmatprep.subr.mxu0 0.0
        %1557 = vmatpush1.msra.mxu0 0.0
        %1558 = vmatprep.subr.mxu0 0.0
        %1559 = vmatpush1.msra.mxu0 0.0
        %1560 = vmatprep.subr.mxu0 0.0
        %1561 = vmatpush1.msra.mxu0 0.0
        %1562 = vmatprep.subr.mxu0 0.0
        %1563 = vmatpush1.msra.mxu0 0.0
        %1564 = vmatprep.subr.mxu0 0.0
        %1565 = vmatpush1.msra.mxu0 0.0
        %1566 = vmatprep.subr.mxu0 0.0
        %1567 = vmatpush1.msra.mxu0 0.0
        %1568 = vmatprep.subr.mxu0 0.0
        %1569 = vmatpush1.msra.mxu0 0.0
        %1570 = vmatprep.subr.mxu0 0.0
        %1571 = vmatpush1.msra.mxu0 0.0
        %1572 = vmatprep.subr.mxu0 0.0
        %1573 = vmatpush1.msra.mxu0 0.0
        %1574 = vmatprep.subr.mxu0 0.0
        %1575 = vmatpush1.msra.mxu0 0.0
        %1576 = vmatprep.subr.mxu0 0.0
        %1577 = vmatpush1.msra.mxu0 0.0
        %1578 = vmatprep.subr.mxu0 0.0
        %1579 = vmatpush1.msra.mxu0 0.0
        %1580 = vmatprep.subr.mxu0 0.0
        %1581 = vmatpush1.msra.mxu0 0.0
        %1582 = vmatprep.subr.mxu0 0.0
        %1583 = vmatpush1.msra.mxu0 0.0
        %1584 = vmatprep.subr.mxu0 0.0
        %1585 = vmatpush1.msra.mxu0 0.0
        %1586 = vmatprep.subr.mxu0 0.0
        %1587 = vmatpush1.msra.mxu0 0.0
        %1588 = vmatprep.subr.mxu0 0.0
        %1589 = vmatpush1.msra.mxu0 0.0
        %1590 = vmatprep.subr.mxu0 0.0
        %1591 = vmatpush1.msra.mxu0 0.0
        %1592 = vmatprep.subr.mxu0 0.0
        %1593 = vmatpush1.msra.mxu0 0.0
        %1594 = vmatprep.subr.mxu0 0.0
        %1595 = vmatpush1.msra.mxu0 0.0
        %1596 = vmatprep.subr.mxu0 0.0
        %1597 = vmatpush1.msra.mxu0 0.0
        %1598 = vmatprep.subr.mxu0 0.0
        %1599 = vmatpush1.msra.mxu0 0.0
        %1600 = vmatprep.subr.mxu0 0.0
        %1601 = vmatpush1.msra.mxu0 0.0
        %1602 = vmatprep.subr.mxu0 0.0
        %1603 = vmatpush1.msra.mxu0 0.0
        %1604 = vmatprep.subr.mxu0 0.0
        %1605 = vmatpush1.msra.mxu0 0.0
        %1606 = vmatprep.mubr.f32.mxu0 0.0
        %1607 = vmatmul.mubr.f32.gmra.mrb[0].mxu0 %v1540
        %v1608 = vpop.f32.mrb[0].mxu0
        %v1609 = vadd.f32 0.0, %v1608
        %v1610 = vpop.f32.mrb[0].mxu0
        %1611 = vdwg.mxu0
        %v1613 = vsel %vm731, %v1609, 0
        %1615 = vmatprep.subr.mxu0 0.0
        %1616 = vmatpush1.msra.mxu0 %v492
        %1617 = vmatprep.subr.mxu0 0.0
        %1618 = vmatpush1.msra.mxu0 0.0
        %1619 = vmatprep.subr.mxu0 0.0
        %1620 = vmatpush1.msra.mxu0 0.0
        %1621 = vmatprep.subr.mxu0 0.0
        %1622 = vmatpush1.msra.mxu0 0.0
        %1623 = vmatprep.subr.mxu0 0.0
        %1624 = vmatpush1.msra.mxu0 0.0
        %1625 = vmatprep.subr.mxu0 0.0
        %1626 = vmatpush1.msra.mxu0 0.0
        %1627 = vmatprep.subr.mxu0 0.0
        %1628 = vmatpush1.msra.mxu0 0.0
        %1629 = vmatprep.subr.mxu0 0.0
        %1630 = vmatpush1.msra.mxu0 0.0
        %1631 = vmatprep.subr.mxu0 0.0
        %1632 = vmatpush1.msra.mxu0 0.0
        %1633 = vmatprep.subr.mxu0 0.0
        %1634 = vmatpush1.msra.mxu0 0.0
        %1635 = vmatprep.subr.mxu0 0.0
        %1636 = vmatpush1.msra.mxu0 0.0
        %1637 = vmatprep.subr.mxu0 0.0
        %1638 = vmatpush1.msra.mxu0 0.0
        %1639 = vmatprep.subr.mxu0 0.0
        %1640 = vmatpush1.msra.mxu0 0.0
        %1641 = vmatprep.subr.mxu0 0.0
        %1642 = vmatpush1.msra.mxu0 0.0
        %1643 = vmatprep.subr.mxu0 0.0
        %1644 = vmatpush1.msra.mxu0 0.0
        %1645 = vmatprep.subr.mxu0 0.0
        %1646 = vmatpush1.msra.mxu0 0.0
        %1647 = vmatprep.subr.mxu0 0.0
        %1648 = vmatpush1.msra.mxu0 0.0
        %1649 = vmatprep.subr.mxu0 0.0
        %1650 = vmatpush1.msra.mxu0 0.0
        %1651 = vmatprep.subr.mxu0 0.0
        %1652 = vmatpush1.msra.mxu0 0.0
        %1653 = vmatprep.subr.mxu0 0.0
        %1654 = vmatpush1.msra.mxu0 0.0
        %1655 = vmatprep.subr.mxu0 0.0
        %1656 = vmatpush1.msra.mxu0 0.0
        %1657 = vmatprep.subr.mxu0 0.0
        %1658 = vmatpush1.msra.mxu0 0.0
        %1659 = vmatprep.subr.mxu0 0.0
        %1660 = vmatpush1.msra.mxu0 0.0
        %1661 = vmatprep.subr.mxu0 0.0
        %1662 = vmatpush1.msra.mxu0 0.0
        %1663 = vmatprep.subr.mxu0 0.0
        %1664 = vmatpush1.msra.mxu0 0.0
        %1665 = vmatprep.subr.mxu0 0.0
        %1666 = vmatpush1.msra.mxu0 0.0
        %1667 = vmatprep.subr.mxu0 0.0
        %1668 = vmatpush1.msra.mxu0 0.0
        %1669 = vmatprep.subr.mxu0 0.0
        %1670 = vmatpush1.msra.mxu0 0.0
        %1671 = vmatprep.subr.mxu0 0.0
        %1672 = vmatpush1.msra.mxu0 0.0
        %1673 = vmatprep.subr.mxu0 0.0
        %1674 = vmatpush1.msra.mxu0 0.0
        %1675 = vmatprep.subr.mxu0 0.0
        %1676 = vmatpush1.msra.mxu0 0.0
        %1677 = vmatprep.subr.mxu0 0.0
        %1678 = vmatpush1.msra.mxu0 0.0
        %1679 = vmatprep.mubr.f32.mxu0 0.0
        %1680 = vmatmul.mubr.f32.gmra.mrb[0].mxu0 %v1613
        %v1681 = vpop.f32.mrb[0].mxu0
        %v1682 = vadd.f32 0.0, %v1681
        %v1683 = vpop.f32.mrb[0].mxu0
        %1684 = vdwg.mxu0
        %v1685 = vadd.f32 %v1445, %v1682
        %v1687 = vlaneseq
        %v1688 = vshrl.u32 %v1687, 7
        %v1689 = vsub.s32 0, %v1688
        %v1690 = vrot.slane %v499, %v1689
        %v1692 = vadd.f32 %v1685, %v1690
        %v1693 = vadd.f32 %v440, %v1692
        %s1694 = scalar_lea.vmem %s4, 1
        %v1695 = vld [vmem:[%s1694] sm:$0x1]
        %s1696 = scalar_lea.vmem %s5, 1
        %v1697 = vld [vmem:[%s1696] sm:$0x1]
        %v1698 = vsel %vm445, %v1693, 0.0
        %1699 = vadd.xlane.f32.xlu0 %v1698
        %v1700 = vpop.xlane.xlu0 %1699
        %v1701 = vmul.f32 %v1700, %v449
        %v1702 = vsub.f32 %v1693, %v1701
        %v1703 = vmul.f32 %v1702, %v1702
        %v1704 = vsel %vm445, %v1703, 0.0
        %1705 = vadd.xlane.f32.xlu0 %v1704
        %v1706 = vpop.xlane.xlu0 %1705
        %v1707 = vmul.f32 %v1706, %v449
        %v1708 = vadd.f32 %v1707, 1e-05
        %v1709 = vrsqrt.pop %v1708
        %v1710 = vmul.f32 %v1702, %v1709
        %v1712 = vlaneseq
        %v1713 = vshrl.u32 %v1712, 7
        %v1714 = vsub.s32 0, %v1713
        %v1715 = vrot.slane %v1695, %v1714
        %v1717 = vmul.f32 %v1710, %v1715
        %v1719 = vlaneseq
        %v1720 = vshrl.u32 %v1719, 7
        %v1721 = vsub.s32 0, %v1720
        %v1722 = vrot.slane %v1697, %v1721
        %v1724 = vadd.f32 %v1717, %v1722
        %s1725 = scalar_lea.vmem %s2, 128
        %v1726 = vld [vmem:[%s1725] sm:$0xff]
        %v1727 = vld [vmem:[%s1725 + $0x8] sm:$0xff]
        %v1728 = vld [vmem:[%s1725 + $0x10] sm:$0xff]
        %v1729 = vld [vmem:[%s1725 + $0x18] sm:$0xff]
        %s1730 = scalar_lea.vmem %s2, 160
        %v1731 = vld [vmem:[%s1730] sm:$0xff]
        %v1732 = vld [vmem:[%s1730 + $0x8] sm:$0xff]
        %v1733 = vld [vmem:[%s1730 + $0x10] sm:$0xff]
        %v1734 = vld [vmem:[%s1730 + $0x18] sm:$0xff]
        %s1735 = scalar_lea.vmem %s2, 192
        %v1736 = vld [vmem:[%s1735] sm:$0xff]
        %v1737 = vld [vmem:[%s1735 + $0x8] sm:$0xff]
        %v1738 = vld [vmem:[%s1735 + $0x10] sm:$0xff]
        %v1739 = vld [vmem:[%s1735 + $0x18] sm:$0xff]
        %s1740 = scalar_lea.vmem %s2, 224
        %v1741 = vld [vmem:[%s1740] sm:$0xff]
        %v1742 = vld [vmem:[%s1740 + $0x8] sm:$0xff]
        %v1743 = vld [vmem:[%s1740 + $0x10] sm:$0xff]
        %v1744 = vld [vmem:[%s1740 + $0x18] sm:$0xff]
        %s1745 = scalar_lea.vmem %s3, 4
        %v1746 = vld [vmem:[%s1745] sm:$0x1]
        %s1747 = scalar_lea.vmem %s3, 5
        %v1748 = vld [vmem:[%s1747] sm:$0x1]
        %s1749 = scalar_lea.vmem %s3, 6
        %v1750 = vld [vmem:[%s1749] sm:$0x1]
        %s1751 = scalar_lea.vmem %s3, 7
        %v1752 = vld [vmem:[%s1751] sm:$0x1]
        %v1754 = vlaneseq
        %v1755 = vshrl.u32 %v1754, 7
        %v1756 = vsub.s32 0, %v1755
        %v1757 = vrot.slane %v1746, %v1756
        %v1760 = vsel %vm445, %v1724, 0
        %1762 = vmatprep.subr.mxu0 0.0
        %1763 = vmatpush1.msra.mxu0 %v1726
        %1764 = vmatprep.subr.mxu0 0.0
        %1765 = vmatpush1.msra.mxu0 %v1727
        %1766 = vmatprep.subr.mxu0 0.0
        %1767 = vmatpush1.msra.mxu0 %v1728
        %1768 = vmatprep.subr.mxu0 0.0
        %1769 = vmatpush1.msra.mxu0 %v1729
        %1770 = vmatprep.subr.mxu0 0.0
        %1771 = vmatpush1.msra.mxu0 0.0
        %1772 = vmatprep.subr.mxu0 0.0
        %1773 = vmatpush1.msra.mxu0 0.0
        %1774 = vmatprep.subr.mxu0 0.0
        %1775 = vmatpush1.msra.mxu0 0.0
        %1776 = vmatprep.subr.mxu0 0.0
        %1777 = vmatpush1.msra.mxu0 0.0
        %1778 = vmatprep.subr.mxu0 0.0
        %1779 = vmatpush1.msra.mxu0 0.0
        %1780 = vmatprep.subr.mxu0 0.0
        %1781 = vmatpush1.msra.mxu0 0.0
        %1782 = vmatprep.subr.mxu0 0.0
        %1783 = vmatpush1.msra.mxu0 0.0
        %1784 = vmatprep.subr.mxu0 0.0
        %1785 = vmatpush1.msra.mxu0 0.0
        %1786 = vmatprep.subr.mxu0 0.0
        %1787 = vmatpush1.msra.mxu0 0.0
        %1788 = vmatprep.subr.mxu0 0.0
        %1789 = vmatpush1.msra.mxu0 0.0
        %1790 = vmatprep.subr.mxu0 0.0
        %1791 = vmatpush1.msra.mxu0 0.0
        %1792 = vmatprep.subr.mxu0 0.0
        %1793 = vmatpush1.msra.mxu0 0.0
        %1794 = vmatprep.subr.mxu0 0.0
        %1795 = vmatpush1.msra.mxu0 0.0
        %1796 = vmatprep.subr.mxu0 0.0
        %1797 = vmatpush1.msra.mxu0 0.0
        %1798 = vmatprep.subr.mxu0 0.0
        %1799 = vmatpush1.msra.mxu0 0.0
        %1800 = vmatprep.subr.mxu0 0.0
        %1801 = vmatpush1.msra.mxu0 0.0
        %1802 = vmatprep.subr.mxu0 0.0
        %1803 = vmatpush1.msra.mxu0 0.0
        %1804 = vmatprep.subr.mxu0 0.0
        %1805 = vmatpush1.msra.mxu0 0.0
        %1806 = vmatprep.subr.mxu0 0.0
        %1807 = vmatpush1.msra.mxu0 0.0
        %1808 = vmatprep.subr.mxu0 0.0
        %1809 = vmatpush1.msra.mxu0 0.0
        %1810 = vmatprep.subr.mxu0 0.0
        %1811 = vmatpush1.msra.mxu0 0.0
        %1812 = vmatprep.subr.mxu0 0.0
        %1813 = vmatpush1.msra.mxu0 0.0
        %1814 = vmatprep.subr.mxu0 0.0
        %1815 = vmatpush1.msra.mxu0 0.0
        %1816 = vmatprep.subr.mxu0 0.0
        %1817 = vmatpush1.msra.mxu0 0.0
        %1818 = vmatprep.subr.mxu0 0.0
        %1819 = vmatpush1.msra.mxu0 0.0
        %1820 = vmatprep.subr.mxu0 0.0
        %1821 = vmatpush1.msra.mxu0 0.0
        %1822 = vmatprep.subr.mxu0 0.0
        %1823 = vmatpush1.msra.mxu0 0.0
        %1824 = vmatprep.subr.mxu0 0.0
        %1825 = vmatpush1.msra.mxu0 0.0
        %1826 = vmatprep.mubr.f32.mxu0 0.0
        %1827 = vmatmul.mubr.f32.gmra.mrb[0].mxu0 %v1760
        %v1828 = vpop.f32.mrb[0].mxu0
        %v1829 = vadd.f32 %v1757, %v1828
        %v1830 = vpop.f32.mrb[0].mxu0
        %1831 = vdwg.mxu0
        %v1833 = vlaneseq
        %v1834 = vshrl.u32 %v1833, 7
        %v1835 = vsub.s32 0, %v1834
        %v1836 = vrot.slane %v1748, %v1835
        %v1839 = vsel %vm445, %v441, 0
        %v1842 = vsel %vm445, %v442, 0
        %1844 = vmatprep.subr.mxu0 0.0
        %1845 = vmatpush1.msra.mxu0 %v1731
        %1846 = vmatprep.subr.mxu0 0.0
        %1847 = vmatpush1.msra.mxu0 %v1732
        %1848 = vmatprep.subr.mxu0 0.0
        %1849 = vmatpush1.msra.mxu0 %v1733
        %1850 = vmatprep.subr.mxu0 0.0
        %1851 = vmatpush1.msra.mxu0 %v1734
        %1852 = vmatprep.subr.mxu0 0.0
        %1853 = vmatpush1.msra.mxu0 0.0
        %1854 = vmatprep.subr.mxu0 0.0
        %1855 = vmatpush1.msra.mxu0 0.0
        %1856 = vmatprep.subr.mxu0 0.0
        %1857 = vmatpush1.msra.mxu0 0.0
        %1858 = vmatprep.subr.mxu0 0.0
        %1859 = vmatpush1.msra.mxu0 0.0
        %1860 = vmatprep.subr.mxu0 0.0
        %1861 = vmatpush1.msra.mxu0 0.0
        %1862 = vmatprep.subr.mxu0 0.0
        %1863 = vmatpush1.msra.mxu0 0.0
        %1864 = vmatprep.subr.mxu0 0.0
        %1865 = vmatpush1.msra.mxu0 0.0
        %1866 = vmatprep.subr.mxu0 0.0
        %1867 = vmatpush1.msra.mxu0 0.0
        %1868 = vmatprep.subr.mxu0 0.0
        %1869 = vmatpush1.msra.mxu0 0.0
        %1870 = vmatprep.subr.mxu0 0.0
        %1871 = vmatpush1.msra.mxu0 0.0
        %1872 = vmatprep.subr.mxu0 0.0
        %1873 = vmatpush1.msra.mxu0 0.0
        %1874 = vmatprep.subr.mxu0 0.0
        %1875 = vmatpush1.msra.mxu0 0.0
        %1876 = vmatprep.subr.mxu0 0.0
        %1877 = vmatpush1.msra.mxu0 0.0
        %1878 = vmatprep.subr.mxu0 0.0
        %1879 = vmatpush1.msra.mxu0 0.0
        %1880 = vmatprep.subr.mxu0 0.0
        %1881 = vmatpush1.msra.mxu0 0.0
        %1882 = vmatprep.subr.mxu0 0.0
        %1883 = vmatpush1.msra.mxu0 0.0
        %1884 = vmatprep.subr.mxu0 0.0
        %1885 = vmatpush1.msra.mxu0 0.0
        %1886 = vmatprep.subr.mxu0 0.0
        %1887 = vmatpush1.msra.mxu0 0.0
        %1888 = vmatprep.subr.mxu0 0.0
        %1889 = vmatpush1.msra.mxu0 0.0
        %1890 = vmatprep.subr.mxu0 0.0
        %1891 = vmatpush1.msra.mxu0 0.0
        %1892 = vmatprep.subr.mxu0 0.0
        %1893 = vmatpush1.msra.mxu0 0.0
        %1894 = vmatprep.subr.mxu0 0.0
        %1895 = vmatpush1.msra.mxu0 0.0
        %1896 = vmatprep.subr.mxu0 0.0
        %1897 = vmatpush1.msra.mxu0 0.0
        %1898 = vmatprep.subr.mxu0 0.0
        %1899 = vmatpush1.msra.mxu0 0.0
        %1900 = vmatprep.subr.mxu0 0.0
        %1901 = vmatpush1.msra.mxu0 0.0
        %1902 = vmatprep.subr.mxu0 0.0
        %1903 = vmatpush1.msra.mxu0 0.0
        %1904 = vmatprep.subr.mxu0 0.0
        %1905 = vmatpush1.msra.mxu0 0.0
        %1906 = vmatprep.subr.mxu0 0.0
        %1907 = vmatpush1.msra.mxu0 0.0
        %1908 = vmatprep.mubr.f32.mxu0 0.0
        %1909 = vmatmul.mubr.f32.gmra.mrb[0].mxu0 %v1839
        %v1910 = vpop.f32.mrb[0].mxu0
        %v1911 = vadd.f32 %v1836, %v1910
        %v1912 = vpop.f32.mrb[0].mxu0
        %1913 = vmatprep.mubr.f32.mxu0 0.0
        %1914 = vmatmul.mubr.f32.gmra.mrb[0].mxu0 %v1842
        %v1915 = vpop.f32.mrb[0].mxu0
        %v1916 = vadd.f32 %v1836, %v1915
        %v1917 = vpop.f32.mrb[0].mxu0
        %1918 = vdwg.mxu0
        %v1920 = vlaneseq
        %v1921 = vshrl.u32 %v1920, 7
        %v1922 = vsub.s32 0, %v1921
        %v1923 = vrot.slane %v1750, %v1922
        %1925 = vmatprep.subr.mxu0 0.0
        %1926 = vmatpush1.msra.mxu0 %v1736
        %1927 = vmatprep.subr.mxu0 0.0
        %1928 = vmatpush1.msra.mxu0 %v1737
        %1929 = vmatprep.subr.mxu0 0.0
        %1930 = vmatpush1.msra.mxu0 %v1738
        %1931 = vmatprep.subr.mxu0 0.0
        %1932 = vmatpush1.msra.mxu0 %v1739
        %1933 = vmatprep.subr.mxu0 0.0
        %1934 = vmatpush1.msra.mxu0 0.0
        %1935 = vmatprep.subr.mxu0 0.0
        %1936 = vmatpush1.msra.mxu0 0.0
        %1937 = vmatprep.subr.mxu0 0.0
        %1938 = vmatpush1.msra.mxu0 0.0
        %1939 = vmatprep.subr.mxu0 0.0
        %1940 = vmatpush1.msra.mxu0 0.0
        %1941 = vmatprep.subr.mxu0 0.0
        %1942 = vmatpush1.msra.mxu0 0.0
        %1943 = vmatprep.subr.mxu0 0.0
        %1944 = vmatpush1.msra.mxu0 0.0
        %1945 = vmatprep.subr.mxu0 0.0
        %1946 = vmatpush1.msra.mxu0 0.0
        %1947 = vmatprep.subr.mxu0 0.0
        %1948 = vmatpush1.msra.mxu0 0.0
        %1949 = vmatprep.subr.mxu0 0.0
        %1950 = vmatpush1.msra.mxu0 0.0
        %1951 = vmatprep.subr.mxu0 0.0
        %1952 = vmatpush1.msra.mxu0 0.0
        %1953 = vmatprep.subr.mxu0 0.0
        %1954 = vmatpush1.msra.mxu0 0.0
        %1955 = vmatprep.subr.mxu0 0.0
        %1956 = vmatpush1.msra.mxu0 0.0
        %1957 = vmatprep.subr.mxu0 0.0
        %1958 = vmatpush1.msra.mxu0 0.0
        %1959 = vmatprep.subr.mxu0 0.0
        %1960 = vmatpush1.msra.mxu0 0.0
        %1961 = vmatprep.subr.mxu0 0.0
        %1962 = vmatpush1.msra.mxu0 0.0
        %1963 = vmatprep.subr.mxu0 0.0
        %1964 = vmatpush1.msra.mxu0 0.0
        %1965 = vmatprep.subr.mxu0 0.0
        %1966 = vmatpush1.msra.mxu0 0.0
        %1967 = vmatprep.subr.mxu0 0.0
        %1968 = vmatpush1.msra.mxu0 0.0
        %1969 = vmatprep.subr.mxu0 0.0
        %1970 = vmatpush1.msra.mxu0 0.0
        %1971 = vmatprep.subr.mxu0 0.0
        %1972 = vmatpush1.msra.mxu0 0.0
        %1973 = vmatprep.subr.mxu0 0.0
        %1974 = vmatpush1.msra.mxu0 0.0
        %1975 = vmatprep.subr.mxu0 0.0
        %1976 = vmatpush1.msra.mxu0 0.0
        %1977 = vmatprep.subr.mxu0 0.0
        %1978 = vmatpush1.msra.mxu0 0.0
        %1979 = vmatprep.subr.mxu0 0.0
        %1980 = vmatpush1.msra.mxu0 0.0
        %1981 = vmatprep.subr.mxu0 0.0
        %1982 = vmatpush1.msra.mxu0 0.0
        %1983 = vmatprep.subr.mxu0 0.0
        %1984 = vmatpush1.msra.mxu0 0.0
        %1985 = vmatprep.subr.mxu0 0.0
        %1986 = vmatpush1.msra.mxu0 0.0
        %1987 = vmatprep.subr.mxu0 0.0
        %1988 = vmatpush1.msra.mxu0 0.0
        %1989 = vmatprep.mubr.f32.mxu0 0.0
        %1990 = vmatmul.mubr.f32.gmra.mrb[0].mxu0 %v1839
        %v1991 = vpop.f32.mrb[0].mxu0
        %v1992 = vadd.f32 %v1923, %v1991
        %v1993 = vpop.f32.mrb[0].mxu0
        %1994 = vmatprep.mubr.f32.mxu0 0.0
        %1995 = vmatmul.mubr.f32.gmra.mrb[0].mxu0 %v1842
        %v1996 = vpop.f32.mrb[0].mxu0
        %v1997 = vadd.f32 %v1923, %v1996
        %v1998 = vpop.f32.mrb[0].mxu0
        %1999 = vdwg.mxu0
        %v2001 = vsel %vm731, %v1829, 0
        %v2004 = vsel %vm731, %v1911, 0
        %v2007 = vsel %vm731, %v1916, 0
        %2009 = vmatprep.subr.mxu0 0.0
        %2010 = vmatpush1.xpose.msra.mxu0 %v2004
        %2011 = vmatprep.subr.mxu0 0.0
        %2012 = vmatpush1.xpose.msra.mxu0 %v2007
        %2013 = vmatprep.subr.mxu0 0.0
        %2014 = vmatpush1.xpose.msra.mxu0 0.0
        %2015 = vmatprep.subr.mxu0 0.0
        %2016 = vmatpush1.xpose.msra.mxu0 0.0
        %2017 = vmatprep.subr.mxu0 0.0
        %2018 = vmatpush1.xpose.msra.mxu0 0.0
        %2019 = vmatprep.subr.mxu0 0.0
        %2020 = vmatpush1.xpose.msra.mxu0 0.0
        %2021 = vmatprep.subr.mxu0 0.0
        %2022 = vmatpush1.xpose.msra.mxu0 0.0
        %2023 = vmatprep.subr.mxu0 0.0
        %2024 = vmatpush1.xpose.msra.mxu0 0.0
        %2025 = vmatprep.subr.mxu0 0.0
        %2026 = vmatpush1.xpose.msra.mxu0 0.0
        %2027 = vmatprep.subr.mxu0 0.0
        %2028 = vmatpush1.xpose.msra.mxu0 0.0
        %2029 = vmatprep.subr.mxu0 0.0
        %2030 = vmatpush1.xpose.msra.mxu0 0.0
        %2031 = vmatprep.subr.mxu0 0.0
        %2032 = vmatpush1.xpose.msra.mxu0 0.0
        %2033 = vmatprep.subr.mxu0 0.0
        %2034 = vmatpush1.xpose.msra.mxu0 0.0
        %2035 = vmatprep.subr.mxu0 0.0
        %2036 = vmatpush1.xpose.msra.mxu0 0.0
        %2037 = vmatprep.subr.mxu0 0.0
        %2038 = vmatpush1.xpose.msra.mxu0 0.0
        %2039 = vmatprep.subr.mxu0 0.0
        %2040 = vmatpush1.xpose.msra.mxu0 0.0
        %2041 = vmatprep.subr.mxu0 0.0
        %2042 = vmatpush1.xpose.msra.mxu0 0.0
        %2043 = vmatprep.subr.mxu0 0.0
        %2044 = vmatpush1.xpose.msra.mxu0 0.0
        %2045 = vmatprep.subr.mxu0 0.0
        %2046 = vmatpush1.xpose.msra.mxu0 0.0
        %2047 = vmatprep.subr.mxu0 0.0
        %2048 = vmatpush1.xpose.msra.mxu0 0.0
        %2049 = vmatprep.subr.mxu0 0.0
        %2050 = vmatpush1.xpose.msra.mxu0 0.0
        %2051 = vmatprep.subr.mxu0 0.0
        %2052 = vmatpush1.xpose.msra.mxu0 0.0
        %2053 = vmatprep.subr.mxu0 0.0
        %2054 = vmatpush1.xpose.msra.mxu0 0.0
        %2055 = vmatprep.subr.mxu0 0.0
        %2056 = vmatpush1.xpose.msra.mxu0 0.0
        %2057 = vmatprep.subr.mxu0 0.0
        %2058 = vmatpush1.xpose.msra.mxu0 0.0
        %2059 = vmatprep.subr.mxu0 0.0
        %2060 = vmatpush1.xpose.msra.mxu0 0.0
        %2061 = vmatprep.subr.mxu0 0.0
        %2062 = vmatpush1.xpose.msra.mxu0 0.0
        %2063 = vmatprep.subr.mxu0 0.0
        %2064 = vmatpush1.xpose.msra.mxu0 0.0
        %2065 = vmatprep.subr.mxu0 0.0
        %2066 = vmatpush1.xpose.msra.mxu0 0.0
        %2067 = vmatprep.subr.mxu0 0.0
        %2068 = vmatpush1.xpose.msra.mxu0 0.0
        %2069 = vmatprep.subr.mxu0 0.0
        %2070 = vmatpush1.xpose.msra.mxu0 0.0
        %2071 = vmatprep.subr.mxu0 0.0
        %2072 = vmatpush1.xpose.msra.mxu0 0.0
        %2073 = vmatprep.mubr.f32.mxu0 0.0
        %2074 = vmatmul.mubr.f32.gmra.mrb[0].mxu0 %v2001
        %v2075 = vpop.f32.mrb[0].mxu0
        %v2076 = vadd.f32 0.0, %v2075
        %v2077 = vpop.f32.mrb[0].mxu0
        %2078 = vdwg.mxu0
        %v2079 = vmul.f32 %v2076, 0.35355338
        %vm2080 = vcmask 130048
        %v2081 = vsel %vm2080, %v2079, -inf
        %2082 = vmax.xlane.f32.xlu0 %v2081
        %v2083 = vpop.xlane.xlu0 %2082
        %v2084 = vsub.f32 %v2079, %v2083
        %v2085 = vmul.f32 %v2084, 1.442695
        %v2086 = vpow.pop %v2085
        %v2087 = vsel %vm2080, %v2086, 0.0
        %2088 = vadd.xlane.f32.xlu0 %v2087
        %v2089 = vpop.xlane.xlu0 %2088
        %v2090 = vrcp.pop %v2089
        %v2091 = vmul.f32 %v2086, %v2090
        %v2093 = vsel %vm2080, %v2091, 0
        %2095 = vmatprep.subr.mxu0 0.0
        %2096 = vmatpush1.msra.mxu0 %v1992
        %2097 = vmatprep.subr.mxu0 0.0
        %2098 = vmatpush1.msra.mxu0 %v1997
        %2099 = vmatprep.subr.mxu0 0.0
        %2100 = vmatpush1.msra.mxu0 0.0
        %2101 = vmatprep.subr.mxu0 0.0
        %2102 = vmatpush1.msra.mxu0 0.0
        %2103 = vmatprep.subr.mxu0 0.0
        %2104 = vmatpush1.msra.mxu0 0.0
        %2105 = vmatprep.subr.mxu0 0.0
        %2106 = vmatpush1.msra.mxu0 0.0
        %2107 = vmatprep.subr.mxu0 0.0
        %2108 = vmatpush1.msra.mxu0 0.0
        %2109 = vmatprep.subr.mxu0 0.0
        %2110 = vmatpush1.msra.mxu0 0.0
        %2111 = vmatprep.subr.mxu0 0.0
        %2112 = vmatpush1.msra.mxu0 0.0
        %2113 = vmatprep.subr.mxu0 0.0
        %2114 = vmatpush1.msra.mxu0 0.0
        %2115 = vmatprep.subr.mxu0 0.0
        %2116 = vmatpush1.msra.mxu0 0.0
        %2117 = vmatprep.subr.mxu0 0.0
        %2118 = vmatpush1.msra.mxu0 0.0
        %2119 = vmatprep.subr.mxu0 0.0
        %2120 = vmatpush1.msra.mxu0 0.0
        %2121 = vmatprep.subr.mxu0 0.0
        %2122 = vmatpush1.msra.mxu0 0.0
        %2123 = vmatprep.subr.mxu0 0.0
        %2124 = vmatpush1.msra.mxu0 0.0
        %2125 = vmatprep.subr.mxu0 0.0
        %2126 = vmatpush1.msra.mxu0 0.0
        %2127 = vmatprep.subr.mxu0 0.0
        %2128 = vmatpush1.msra.mxu0 0.0
        %2129 = vmatprep.subr.mxu0 0.0
        %2130 = vmatpush1.msra.mxu0 0.0
        %2131 = vmatprep.subr.mxu0 0.0
        %2132 = vmatpush1.msra.mxu0 0.0
        %2133 = vmatprep.subr.mxu0 0.0
        %2134 = vmatpush1.msra.mxu0 0.0
        %2135 = vmatprep.subr.mxu0 0.0
        %2136 = vmatpush1.msra.mxu0 0.0
        %2137 = vmatprep.subr.mxu0 0.0
        %2138 = vmatpush1.msra.mxu0 0.0
        %2139 = vmatprep.subr.mxu0 0.0
        %2140 = vmatpush1.msra.mxu0 0.0
        %2141 = vmatprep.subr.mxu0 0.0
        %2142 = vmatpush1.msra.mxu0 0.0
        %2143 = vmatprep.subr.mxu0 0.0
        %2144 = vmatpush1.msra.mxu0 0.0
        %2145 = vmatprep.subr.mxu0 0.0
        %2146 = vmatpush1.msra.mxu0 0.0
        %2147 = vmatprep.subr.mxu0 0.0
        %2148 = vmatpush1.msra.mxu0 0.0
        %2149 = vmatprep.subr.mxu0 0.0
        %2150 = vmatpush1.msra.mxu0 0.0
        %2151 = vmatprep.subr.mxu0 0.0
        %2152 = vmatpush1.msra.mxu0 0.0
        %2153 = vmatprep.subr.mxu0 0.0
        %2154 = vmatpush1.msra.mxu0 0.0
        %2155 = vmatprep.subr.mxu0 0.0
        %2156 = vmatpush1.msra.mxu0 0.0
        %2157 = vmatprep.subr.mxu0 0.0
        %2158 = vmatpush1.msra.mxu0 0.0
        %2159 = vmatprep.mubr.f32.mxu0 0.0
        %2160 = vmatmul.mubr.f32.gmra.mrb[0].mxu0 %v2093
        %v2161 = vpop.f32.mrb[0].mxu0
        %v2162 = vadd.f32 0.0, %v2161
        %v2163 = vpop.f32.mrb[0].mxu0
        %2164 = vdwg.mxu0
        %2165 = vrot.lane.b32.xlu0 %v1829, 120
        %v2166 = vpop.permute.xlu0 %2165
        %2167 = vrot.lane.b32.xlu0 %v1911, 120
        %v2168 = vpop.permute.xlu0 %2167
        %2169 = vrot.lane.b32.xlu0 %v1916, 120
        %v2170 = vpop.permute.xlu0 %2169
        %v2171 = vsel %vm731, %v2166, 0
        %v2173 = vsel %vm731, %v2168, 0
        %v2175 = vsel %vm731, %v2170, 0
        %2177 = vmatprep.subr.mxu0 0.0
        %2178 = vmatpush1.xpose.msra.mxu0 %v2173
        %2179 = vmatprep.subr.mxu0 0.0
        %2180 = vmatpush1.xpose.msra.mxu0 %v2175
        %2181 = vmatprep.subr.mxu0 0.0
        %2182 = vmatpush1.xpose.msra.mxu0 0.0
        %2183 = vmatprep.subr.mxu0 0.0
        %2184 = vmatpush1.xpose.msra.mxu0 0.0
        %2185 = vmatprep.subr.mxu0 0.0
        %2186 = vmatpush1.xpose.msra.mxu0 0.0
        %2187 = vmatprep.subr.mxu0 0.0
        %2188 = vmatpush1.xpose.msra.mxu0 0.0
        %2189 = vmatprep.subr.mxu0 0.0
        %2190 = vmatpush1.xpose.msra.mxu0 0.0
        %2191 = vmatprep.subr.mxu0 0.0
        %2192 = vmatpush1.xpose.msra.mxu0 0.0
        %2193 = vmatprep.subr.mxu0 0.0
        %2194 = vmatpush1.xpose.msra.mxu0 0.0
        %2195 = vmatprep.subr.mxu0 0.0
        %2196 = vmatpush1.xpose.msra.mxu0 0.0
        %2197 = vmatprep.subr.mxu0 0.0
        %2198 = vmatpush1.xpose.msra.mxu0 0.0
        %2199 = vmatprep.subr.mxu0 0.0
        %2200 = vmatpush1.xpose.msra.mxu0 0.0
        %2201 = vmatprep.subr.mxu0 0.0
        %2202 = vmatpush1.xpose.msra.mxu0 0.0
        %2203 = vmatprep.subr.mxu0 0.0
        %2204 = vmatpush1.xpose.msra.mxu0 0.0
        %2205 = vmatprep.subr.mxu0 0.0
        %2206 = vmatpush1.xpose.msra.mxu0 0.0
        %2207 = vmatprep.subr.mxu0 0.0
        %2208 = vmatpush1.xpose.msra.mxu0 0.0
        %2209 = vmatprep.subr.mxu0 0.0
        %2210 = vmatpush1.xpose.msra.mxu0 0.0
        %2211 = vmatprep.subr.mxu0 0.0
        %2212 = vmatpush1.xpose.msra.mxu0 0.0
        %2213 = vmatprep.subr.mxu0 0.0
        %2214 = vmatpush1.xpose.msra.mxu0 0.0
        %2215 = vmatprep.subr.mxu0 0.0
        %2216 = vmatpush1.xpose.msra.mxu0 0.0
        %2217 = vmatprep.subr.mxu0 0.0
        %2218 = vmatpush1.xpose.msra.mxu0 0.0
        %2219 = vmatprep.subr.mxu0 0.0
        %2220 = vmatpush1.xpose.msra.mxu0 0.0
        %2221 = vmatprep.subr.mxu0 0.0
        %2222 = vmatpush1.xpose.msra.mxu0 0.0
        %2223 = vmatprep.subr.mxu0 0.0
        %2224 = vmatpush1.xpose.msra.mxu0 0.0
        %2225 = vmatprep.subr.mxu0 0.0
        %2226 = vmatpush1.xpose.msra.mxu0 0.0
        %2227 = vmatprep.subr.mxu0 0.0
        %2228 = vmatpush1.xpose.msra.mxu0 0.0
        %2229 = vmatprep.subr.mxu0 0.0
        %2230 = vmatpush1.xpose.msra.mxu0 0.0
        %2231 = vmatprep.subr.mxu0 0.0
        %2232 = vmatpush1.xpose.msra.mxu0 0.0
        %2233 = vmatprep.subr.mxu0 0.0
        %2234 = vmatpush1.xpose.msra.mxu0 0.0
        %2235 = vmatprep.subr.mxu0 0.0
        %2236 = vmatpush1.xpose.msra.mxu0 0.0
        %2237 = vmatprep.subr.mxu0 0.0
        %2238 = vmatpush1.xpose.msra.mxu0 0.0
        %2239 = vmatprep.subr.mxu0 0.0
        %2240 = vmatpush1.xpose.msra.mxu0 0.0
        %2241 = vmatprep.mubr.f32.mxu0 0.0
        %2242 = vmatmul.mubr.f32.gmra.mrb[0].mxu0 %v2171
        %v2243 = vpop.f32.mrb[0].mxu0
        %v2244 = vadd.f32 0.0, %v2243
        %v2245 = vpop.f32.mrb[0].mxu0
        %2246 = vdwg.mxu0
        %v2247 = vmul.f32 %v2244, 0.35355338
        %v2248 = vsel %vm2080, %v2247, -inf
        %2249 = vmax.xlane.f32.xlu0 %v2248
        %v2250 = vpop.xlane.xlu0 %2249
        %v2251 = vsub.f32 %v2247, %v2250
        %v2252 = vmul.f32 %v2251, 1.442695
        %v2253 = vpow.pop %v2252
        %v2254 = vsel %vm2080, %v2253, 0.0
        %2255 = vadd.xlane.f32.xlu0 %v2254
        %v2256 = vpop.xlane.xlu0 %2255
        %v2257 = vrcp.pop %v2256
        %v2258 = vmul.f32 %v2253, %v2257
        %2261 = vrot.lane.b32.xlu0 %v1992, 120
        %v2262 = vpop.permute.xlu0 %2261
        %2263 = vrot.lane.b32.xlu0 %v1997, 120
        %v2264 = vpop.permute.xlu0 %2263
        %v2268 = vsel %vm2080, %v2258, 0
        %2270 = vmatprep.subr.mxu0 0.0
        %2271 = vmatpush1.msra.mxu0 %v2262
        %2272 = vmatprep.subr.mxu0 0.0
        %2273 = vmatpush1.msra.mxu0 %v2264
        %2274 = vmatprep.subr.mxu0 0.0
        %2275 = vmatpush1.msra.mxu0 0.0
        %2276 = vmatprep.subr.mxu0 0.0
        %2277 = vmatpush1.msra.mxu0 0.0
        %2278 = vmatprep.subr.mxu0 0.0
        %2279 = vmatpush1.msra.mxu0 0.0
        %2280 = vmatprep.subr.mxu0 0.0
        %2281 = vmatpush1.msra.mxu0 0.0
        %2282 = vmatprep.subr.mxu0 0.0
        %2283 = vmatpush1.msra.mxu0 0.0
        %2284 = vmatprep.subr.mxu0 0.0
        %2285 = vmatpush1.msra.mxu0 0.0
        %2286 = vmatprep.subr.mxu0 0.0
        %2287 = vmatpush1.msra.mxu0 0.0
        %2288 = vmatprep.subr.mxu0 0.0
        %2289 = vmatpush1.msra.mxu0 0.0
        %2290 = vmatprep.subr.mxu0 0.0
        %2291 = vmatpush1.msra.mxu0 0.0
        %2292 = vmatprep.subr.mxu0 0.0
        %2293 = vmatpush1.msra.mxu0 0.0
        %2294 = vmatprep.subr.mxu0 0.0
        %2295 = vmatpush1.msra.mxu0 0.0
        %2296 = vmatprep.subr.mxu0 0.0
        %2297 = vmatpush1.msra.mxu0 0.0
        %2298 = vmatprep.subr.mxu0 0.0
        %2299 = vmatpush1.msra.mxu0 0.0
        %2300 = vmatprep.subr.mxu0 0.0
        %2301 = vmatpush1.msra.mxu0 0.0
        %2302 = vmatprep.subr.mxu0 0.0
        %2303 = vmatpush1.msra.mxu0 0.0
        %2304 = vmatprep.subr.mxu0 0.0
        %2305 = vmatpush1.msra.mxu0 0.0
        %2306 = vmatprep.subr.mxu0 0.0
        %2307 = vmatpush1.msra.mxu0 0.0
        %2308 = vmatprep.subr.mxu0 0.0
        %2309 = vmatpush1.msra.mxu0 0.0
        %2310 = vmatprep.subr.mxu0 0.0
        %2311 = vmatpush1.msra.mxu0 0.0
        %2312 = vmatprep.subr.mxu0 0.0
        %2313 = vmatpush1.msra.mxu0 0.0
        %2314 = vmatprep.subr.mxu0 0.0
        %2315 = vmatpush1.msra.mxu0 0.0
        %2316 = vmatprep.subr.mxu0 0.0
        %2317 = vmatpush1.msra.mxu0 0.0
        %2318 = vmatprep.subr.mxu0 0.0
        %2319 = vmatpush1.msra.mxu0 0.0
        %2320 = vmatprep.subr.mxu0 0.0
        %2321 = vmatpush1.msra.mxu0 0.0
        %2322 = vmatprep.subr.mxu0 0.0
        %2323 = vmatpush1.msra.mxu0 0.0
        %2324 = vmatprep.subr.mxu0 0.0
        %2325 = vmatpush1.msra.mxu0 0.0
        %2326 = vmatprep.subr.mxu0 0.0
        %2327 = vmatpush1.msra.mxu0 0.0
        %2328 = vmatprep.subr.mxu0 0.0
        %2329 = vmatpush1.msra.mxu0 0.0
        %2330 = vmatprep.subr.mxu0 0.0
        %2331 = vmatpush1.msra.mxu0 0.0
        %2332 = vmatprep.subr.mxu0 0.0
        %2333 = vmatpush1.msra.mxu0 0.0
        %2334 = vmatprep.mubr.f32.mxu0 0.0
        %2335 = vmatmul.mubr.f32.gmra.mrb[0].mxu0 %v2268
        %v2336 = vpop.f32.mrb[0].mxu0
        %v2337 = vadd.f32 0.0, %v2336
        %v2338 = vpop.f32.mrb[0].mxu0
        %2339 = vdwg.mxu0
        %v2341 = vsel %vm731, %v2337, 0
        %2343 = vmatprep.subr.mxu0 0.0
        %2344 = vmatpush1.msra.mxu0 %v1742
        %2345 = vmatprep.subr.mxu0 0.0
        %2346 = vmatpush1.msra.mxu0 0.0
        %2347 = vmatprep.subr.mxu0 0.0
        %2348 = vmatpush1.msra.mxu0 0.0
        %2349 = vmatprep.subr.mxu0 0.0
        %2350 = vmatpush1.msra.mxu0 0.0
        %2351 = vmatprep.subr.mxu0 0.0
        %2352 = vmatpush1.msra.mxu0 0.0
        %2353 = vmatprep.subr.mxu0 0.0
        %2354 = vmatpush1.msra.mxu0 0.0
        %2355 = vmatprep.subr.mxu0 0.0
        %2356 = vmatpush1.msra.mxu0 0.0
        %2357 = vmatprep.subr.mxu0 0.0
        %2358 = vmatpush1.msra.mxu0 0.0
        %2359 = vmatprep.subr.mxu0 0.0
        %2360 = vmatpush1.msra.mxu0 0.0
        %2361 = vmatprep.subr.mxu0 0.0
        %2362 = vmatpush1.msra.mxu0 0.0
        %2363 = vmatprep.subr.mxu0 0.0
        %2364 = vmatpush1.msra.mxu0 0.0
        %2365 = vmatprep.subr.mxu0 0.0
        %2366 = vmatpush1.msra.mxu0 0.0
        %2367 = vmatprep.subr.mxu0 0.0
        %2368 = vmatpush1.msra.mxu0 0.0
        %2369 = vmatprep.subr.mxu0 0.0
        %2370 = vmatpush1.msra.mxu0 0.0
        %2371 = vmatprep.subr.mxu0 0.0
        %2372 = vmatpush1.msra.mxu0 0.0
        %2373 = vmatprep.subr.mxu0 0.0
        %2374 = vmatpush1.msra.mxu0 0.0
        %2375 = vmatprep.subr.mxu0 0.0
        %2376 = vmatpush1.msra.mxu0 0.0
        %2377 = vmatprep.subr.mxu0 0.0
        %2378 = vmatpush1.msra.mxu0 0.0
        %2379 = vmatprep.subr.mxu0 0.0
        %2380 = vmatpush1.msra.mxu0 0.0
        %2381 = vmatprep.subr.mxu0 0.0
        %2382 = vmatpush1.msra.mxu0 0.0
        %2383 = vmatprep.subr.mxu0 0.0
        %2384 = vmatpush1.msra.mxu0 0.0
        %2385 = vmatprep.subr.mxu0 0.0
        %2386 = vmatpush1.msra.mxu0 0.0
        %2387 = vmatprep.subr.mxu0 0.0
        %2388 = vmatpush1.msra.mxu0 0.0
        %2389 = vmatprep.subr.mxu0 0.0
        %2390 = vmatpush1.msra.mxu0 0.0
        %2391 = vmatprep.subr.mxu0 0.0
        %2392 = vmatpush1.msra.mxu0 0.0
        %2393 = vmatprep.subr.mxu0 0.0
        %2394 = vmatpush1.msra.mxu0 0.0
        %2395 = vmatprep.subr.mxu0 0.0
        %2396 = vmatpush1.msra.mxu0 0.0
        %2397 = vmatprep.subr.mxu0 0.0
        %2398 = vmatpush1.msra.mxu0 0.0
        %2399 = vmatprep.subr.mxu0 0.0
        %2400 = vmatpush1.msra.mxu0 0.0
        %2401 = vmatprep.subr.mxu0 0.0
        %2402 = vmatpush1.msra.mxu0 0.0
        %2403 = vmatprep.subr.mxu0 0.0
        %2404 = vmatpush1.msra.mxu0 0.0
        %2405 = vmatprep.subr.mxu0 0.0
        %2406 = vmatpush1.msra.mxu0 0.0
        %2407 = vmatprep.mubr.f32.mxu0 0.0
        %2408 = vmatmul.mubr.f32.gmra.mrb[0].mxu0 %v2341
        %v2409 = vpop.f32.mrb[0].mxu0
        %v2410 = vadd.f32 0.0, %v2409
        %v2411 = vpop.f32.mrb[0].mxu0
        %2412 = vdwg.mxu0
        %v2414 = vsel %vm731, %v2162, 0
        %2416 = vmatprep.subr.mxu0 0.0
        %2417 = vmatpush1.msra.mxu0 %v1741
        %2418 = vmatprep.subr.mxu0 0.0
        %2419 = vmatpush1.msra.mxu0 0.0
        %2420 = vmatprep.subr.mxu0 0.0
        %2421 = vmatpush1.msra.mxu0 0.0
        %2422 = vmatprep.subr.mxu0 0.0
        %2423 = vmatpush1.msra.mxu0 0.0
        %2424 = vmatprep.subr.mxu0 0.0
        %2425 = vmatpush1.msra.mxu0 0.0
        %2426 = vmatprep.subr.mxu0 0.0
        %2427 = vmatpush1.msra.mxu0 0.0
        %2428 = vmatprep.subr.mxu0 0.0
        %2429 = vmatpush1.msra.mxu0 0.0
        %2430 = vmatprep.subr.mxu0 0.0
        %2431 = vmatpush1.msra.mxu0 0.0
        %2432 = vmatprep.subr.mxu0 0.0
        %2433 = vmatpush1.msra.mxu0 0.0
        %2434 = vmatprep.subr.mxu0 0.0
        %2435 = vmatpush1.msra.mxu0 0.0
        %2436 = vmatprep.subr.mxu0 0.0
        %2437 = vmatpush1.msra.mxu0 0.0
        %2438 = vmatprep.subr.mxu0 0.0
        %2439 = vmatpush1.msra.mxu0 0.0
        %2440 = vmatprep.subr.mxu0 0.0
        %2441 = vmatpush1.msra.mxu0 0.0
        %2442 = vmatprep.subr.mxu0 0.0
        %2443 = vmatpush1.msra.mxu0 0.0
        %2444 = vmatprep.subr.mxu0 0.0
        %2445 = vmatpush1.msra.mxu0 0.0
        %2446 = vmatprep.subr.mxu0 0.0
        %2447 = vmatpush1.msra.mxu0 0.0
        %2448 = vmatprep.subr.mxu0 0.0
        %2449 = vmatpush1.msra.mxu0 0.0
        %2450 = vmatprep.subr.mxu0 0.0
        %2451 = vmatpush1.msra.mxu0 0.0
        %2452 = vmatprep.subr.mxu0 0.0
        %2453 = vmatpush1.msra.mxu0 0.0
        %2454 = vmatprep.subr.mxu0 0.0
        %2455 = vmatpush1.msra.mxu0 0.0
        %2456 = vmatprep.subr.mxu0 0.0
        %2457 = vmatpush1.msra.mxu0 0.0
        %2458 = vmatprep.subr.mxu0 0.0
        %2459 = vmatpush1.msra.mxu0 0.0
        %2460 = vmatprep.subr.mxu0 0.0
        %2461 = vmatpush1.msra.mxu0 0.0
        %2462 = vmatprep.subr.mxu0 0.0
        %2463 = vmatpush1.msra.mxu0 0.0
        %2464 = vmatprep.subr.mxu0 0.0
        %2465 = vmatpush1.msra.mxu0 0.0
        %2466 = vmatprep.subr.mxu0 0.0
        %2467 = vmatpush1.msra.mxu0 0.0
        %2468 = vmatprep.subr.mxu0 0.0
        %2469 = vmatpush1.msra.mxu0 0.0
        %2470 = vmatprep.subr.mxu0 0.0
        %2471 = vmatpush1.msra.mxu0 0.0
        %2472 = vmatprep.subr.mxu0 0.0
        %2473 = vmatpush1.msra.mxu0 0.0
        %2474 = vmatprep.subr.mxu0 0.0
        %2475 = vmatpush1.msra.mxu0 0.0
        %2476 = vmatprep.subr.mxu0 0.0
        %2477 = vmatpush1.msra.mxu0 0.0
        %2478 = vmatprep.subr.mxu0 0.0
        %2479 = vmatpush1.msra.mxu0 0.0
        %2480 = vmatprep.mubr.f32.mxu0 0.0
        %2481 = vmatmul.mubr.f32.gmra.mrb[0].mxu0 %v2414
        %v2482 = vpop.f32.mrb[0].mxu0
        %v2483 = vadd.f32 %v2410, %v2482
        %v2484 = vpop.f32.mrb[0].mxu0
        %2485 = vdwg.mxu0
        %2486 = vrot.lane.b32.xlu0 %v1829, 112
        %v2487 = vpop.permute.xlu0 %2486
        %2488 = vrot.lane.b32.xlu0 %v1911, 112
        %v2489 = vpop.permute.xlu0 %2488
        %2490 = vrot.lane.b32.xlu0 %v1916, 112
        %v2491 = vpop.permute.xlu0 %2490
        %v2492 = vsel %vm731, %v2487, 0
        %v2494 = vsel %vm731, %v2489, 0
        %v2496 = vsel %vm731, %v2491, 0
        %2498 = vmatprep.subr.mxu0 0.0
        %2499 = vmatpush1.xpose.msra.mxu0 %v2494
        %2500 = vmatprep.subr.mxu0 0.0
        %2501 = vmatpush1.xpose.msra.mxu0 %v2496
        %2502 = vmatprep.subr.mxu0 0.0
        %2503 = vmatpush1.xpose.msra.mxu0 0.0
        %2504 = vmatprep.subr.mxu0 0.0
        %2505 = vmatpush1.xpose.msra.mxu0 0.0
        %2506 = vmatprep.subr.mxu0 0.0
        %2507 = vmatpush1.xpose.msra.mxu0 0.0
        %2508 = vmatprep.subr.mxu0 0.0
        %2509 = vmatpush1.xpose.msra.mxu0 0.0
        %2510 = vmatprep.subr.mxu0 0.0
        %2511 = vmatpush1.xpose.msra.mxu0 0.0
        %2512 = vmatprep.subr.mxu0 0.0
        %2513 = vmatpush1.xpose.msra.mxu0 0.0
        %2514 = vmatprep.subr.mxu0 0.0
        %2515 = vmatpush1.xpose.msra.mxu0 0.0
        %2516 = vmatprep.subr.mxu0 0.0
        %2517 = vmatpush1.xpose.msra.mxu0 0.0
        %2518 = vmatprep.subr.mxu0 0.0
        %2519 = vmatpush1.xpose.msra.mxu0 0.0
        %2520 = vmatprep.subr.mxu0 0.0
        %2521 = vmatpush1.xpose.msra.mxu0 0.0
        %2522 = vmatprep.subr.mxu0 0.0
        %2523 = vmatpush1.xpose.msra.mxu0 0.0
        %2524 = vmatprep.subr.mxu0 0.0
        %2525 = vmatpush1.xpose.msra.mxu0 0.0
        %2526 = vmatprep.subr.mxu0 0.0
        %2527 = vmatpush1.xpose.msra.mxu0 0.0
        %2528 = vmatprep.subr.mxu0 0.0
        %2529 = vmatpush1.xpose.msra.mxu0 0.0
        %2530 = vmatprep.subr.mxu0 0.0
        %2531 = vmatpush1.xpose.msra.mxu0 0.0
        %2532 = vmatprep.subr.mxu0 0.0
        %2533 = vmatpush1.xpose.msra.mxu0 0.0
        %2534 = vmatprep.subr.mxu0 0.0
        %2535 = vmatpush1.xpose.msra.mxu0 0.0
        %2536 = vmatprep.subr.mxu0 0.0
        %2537 = vmatpush1.xpose.msra.mxu0 0.0
        %2538 = vmatprep.subr.mxu0 0.0
        %2539 = vmatpush1.xpose.msra.mxu0 0.0
        %2540 = vmatprep.subr.mxu0 0.0
        %2541 = vmatpush1.xpose.msra.mxu0 0.0
        %2542 = vmatprep.subr.mxu0 0.0
        %2543 = vmatpush1.xpose.msra.mxu0 0.0
        %2544 = vmatprep.subr.mxu0 0.0
        %2545 = vmatpush1.xpose.msra.mxu0 0.0
        %2546 = vmatprep.subr.mxu0 0.0
        %2547 = vmatpush1.xpose.msra.mxu0 0.0
        %2548 = vmatprep.subr.mxu0 0.0
        %2549 = vmatpush1.xpose.msra.mxu0 0.0
        %2550 = vmatprep.subr.mxu0 0.0
        %2551 = vmatpush1.xpose.msra.mxu0 0.0
        %2552 = vmatprep.subr.mxu0 0.0
        %2553 = vmatpush1.xpose.msra.mxu0 0.0
        %2554 = vmatprep.subr.mxu0 0.0
        %2555 = vmatpush1.xpose.msra.mxu0 0.0
        %2556 = vmatprep.subr.mxu0 0.0
        %2557 = vmatpush1.xpose.msra.mxu0 0.0
        %2558 = vmatprep.subr.mxu0 0.0
        %2559 = vmatpush1.xpose.msra.mxu0 0.0
        %2560 = vmatprep.subr.mxu0 0.0
        %2561 = vmatpush1.xpose.msra.mxu0 0.0
        %2562 = vmatprep.mubr.f32.mxu0 0.0
        %2563 = vmatmul.mubr.f32.gmra.mrb[0].mxu0 %v2492
        %v2564 = vpop.f32.mrb[0].mxu0
        %v2565 = vadd.f32 0.0, %v2564
        %v2566 = vpop.f32.mrb[0].mxu0
        %2567 = vdwg.mxu0
        %v2568 = vmul.f32 %v2565, 0.35355338
        %v2569 = vsel %vm2080, %v2568, -inf
        %2570 = vmax.xlane.f32.xlu0 %v2569
        %v2571 = vpop.xlane.xlu0 %2570
        %v2572 = vsub.f32 %v2568, %v2571
        %v2573 = vmul.f32 %v2572, 1.442695
        %v2574 = vpow.pop %v2573
        %v2575 = vsel %vm2080, %v2574, 0.0
        %2576 = vadd.xlane.f32.xlu0 %v2575
        %v2577 = vpop.xlane.xlu0 %2576
        %v2578 = vrcp.pop %v2577
        %v2579 = vmul.f32 %v2574, %v2578
        %2580 = vrot.lane.b32.xlu0 %v1992, 112
        %v2581 = vpop.permute.xlu0 %2580
        %2582 = vrot.lane.b32.xlu0 %v1997, 112
        %v2583 = vpop.permute.xlu0 %2582
        %v2587 = vsel %vm2080, %v2579, 0
        %2589 = vmatprep.subr.mxu0 0.0
        %2590 = vmatpush1.msra.mxu0 %v2581
        %2591 = vmatprep.subr.mxu0 0.0
        %2592 = vmatpush1.msra.mxu0 %v2583
        %2593 = vmatprep.subr.mxu0 0.0
        %2594 = vmatpush1.msra.mxu0 0.0
        %2595 = vmatprep.subr.mxu0 0.0
        %2596 = vmatpush1.msra.mxu0 0.0
        %2597 = vmatprep.subr.mxu0 0.0
        %2598 = vmatpush1.msra.mxu0 0.0
        %2599 = vmatprep.subr.mxu0 0.0
        %2600 = vmatpush1.msra.mxu0 0.0
        %2601 = vmatprep.subr.mxu0 0.0
        %2602 = vmatpush1.msra.mxu0 0.0
        %2603 = vmatprep.subr.mxu0 0.0
        %2604 = vmatpush1.msra.mxu0 0.0
        %2605 = vmatprep.subr.mxu0 0.0
        %2606 = vmatpush1.msra.mxu0 0.0
        %2607 = vmatprep.subr.mxu0 0.0
        %2608 = vmatpush1.msra.mxu0 0.0
        %2609 = vmatprep.subr.mxu0 0.0
        %2610 = vmatpush1.msra.mxu0 0.0
        %2611 = vmatprep.subr.mxu0 0.0
        %2612 = vmatpush1.msra.mxu0 0.0
        %2613 = vmatprep.subr.mxu0 0.0
        %2614 = vmatpush1.msra.mxu0 0.0
        %2615 = vmatprep.subr.mxu0 0.0
        %2616 = vmatpush1.msra.mxu0 0.0
        %2617 = vmatprep.subr.mxu0 0.0
        %2618 = vmatpush1.msra.mxu0 0.0
        %2619 = vmatprep.subr.mxu0 0.0
        %2620 = vmatpush1.msra.mxu0 0.0
        %2621 = vmatprep.subr.mxu0 0.0
        %2622 = vmatpush1.msra.mxu0 0.0
        %2623 = vmatprep.subr.mxu0 0.0
        %2624 = vmatpush1.msra.mxu0 0.0
        %2625 = vmatprep.subr.mxu0 0.0
        %2626 = vmatpush1.msra.mxu0 0.0
        %2627 = vmatprep.subr.mxu0 0.0
        %2628 = vmatpush1.msra.mxu0 0.0
        %2629 = vmatprep.subr.mxu0 0.0
        %2630 = vmatpush1.msra.mxu0 0.0
        %2631 = vmatprep.subr.mxu0 0.0
        %2632 = vmatpush1.msra.mxu0 0.0
        %2633 = vmatprep.subr.mxu0 0.0
        %2634 = vmatpush1.msra.mxu0 0.0
        %2635 = vmatprep.subr.mxu0 0.0
        %2636 = vmatpush1.msra.mxu0 0.0
        %2637 = vmatprep.subr.mxu0 0.0
        %2638 = vmatpush1.msra.mxu0 0.0
        %2639 = vmatprep.subr.mxu0 0.0
        %2640 = vmatpush1.msra.mxu0 0.0
        %2641 = vmatprep.subr.mxu0 0.0
        %2642 = vmatpush1.msra.mxu0 0.0
        %2643 = vmatprep.subr.mxu0 0.0
        %2644 = vmatpush1.msra.mxu0 0.0
        %2645 = vmatprep.subr.mxu0 0.0
        %2646 = vmatpush1.msra.mxu0 0.0
        %2647 = vmatprep.subr.mxu0 0.0
        %2648 = vmatpush1.msra.mxu0 0.0
        %2649 = vmatprep.subr.mxu0 0.0
        %2650 = vmatpush1.msra.mxu0 0.0
        %2651 = vmatprep.subr.mxu0 0.0
        %2652 = vmatpush1.msra.mxu0 0.0
        %2653 = vmatprep.mubr.f32.mxu0 0.0
        %2654 = vmatmul.mubr.f32.gmra.mrb[0].mxu0 %v2587
        %v2655 = vpop.f32.mrb[0].mxu0
        %v2656 = vadd.f32 0.0, %v2655
        %v2657 = vpop.f32.mrb[0].mxu0
        %2658 = vdwg.mxu0
        %v2660 = vsel %vm731, %v2656, 0
        %2662 = vmatprep.subr.mxu0 0.0
        %2663 = vmatpush1.msra.mxu0 %v1743
        %2664 = vmatprep.subr.mxu0 0.0
        %2665 = vmatpush1.msra.mxu0 0.0
        %2666 = vmatprep.subr.mxu0 0.0
        %2667 = vmatpush1.msra.mxu0 0.0
        %2668 = vmatprep.subr.mxu0 0.0
        %2669 = vmatpush1.msra.mxu0 0.0
        %2670 = vmatprep.subr.mxu0 0.0
        %2671 = vmatpush1.msra.mxu0 0.0
        %2672 = vmatprep.subr.mxu0 0.0
        %2673 = vmatpush1.msra.mxu0 0.0
        %2674 = vmatprep.subr.mxu0 0.0
        %2675 = vmatpush1.msra.mxu0 0.0
        %2676 = vmatprep.subr.mxu0 0.0
        %2677 = vmatpush1.msra.mxu0 0.0
        %2678 = vmatprep.subr.mxu0 0.0
        %2679 = vmatpush1.msra.mxu0 0.0
        %2680 = vmatprep.subr.mxu0 0.0
        %2681 = vmatpush1.msra.mxu0 0.0
        %2682 = vmatprep.subr.mxu0 0.0
        %2683 = vmatpush1.msra.mxu0 0.0
        %2684 = vmatprep.subr.mxu0 0.0
        %2685 = vmatpush1.msra.mxu0 0.0
        %2686 = vmatprep.subr.mxu0 0.0
        %2687 = vmatpush1.msra.mxu0 0.0
        %2688 = vmatprep.subr.mxu0 0.0
        %2689 = vmatpush1.msra.mxu0 0.0
        %2690 = vmatprep.subr.mxu0 0.0
        %2691 = vmatpush1.msra.mxu0 0.0
        %2692 = vmatprep.subr.mxu0 0.0
        %2693 = vmatpush1.msra.mxu0 0.0
        %2694 = vmatprep.subr.mxu0 0.0
        %2695 = vmatpush1.msra.mxu0 0.0
        %2696 = vmatprep.subr.mxu0 0.0
        %2697 = vmatpush1.msra.mxu0 0.0
        %2698 = vmatprep.subr.mxu0 0.0
        %2699 = vmatpush1.msra.mxu0 0.0
        %2700 = vmatprep.subr.mxu0 0.0
        %2701 = vmatpush1.msra.mxu0 0.0
        %2702 = vmatprep.subr.mxu0 0.0
        %2703 = vmatpush1.msra.mxu0 0.0
        %2704 = vmatprep.subr.mxu0 0.0
        %2705 = vmatpush1.msra.mxu0 0.0
        %2706 = vmatprep.subr.mxu0 0.0
        %2707 = vmatpush1.msra.mxu0 0.0
        %2708 = vmatprep.subr.mxu0 0.0
        %2709 = vmatpush1.msra.mxu0 0.0
        %2710 = vmatprep.subr.mxu0 0.0
        %2711 = vmatpush1.msra.mxu0 0.0
        %2712 = vmatprep.subr.mxu0 0.0
        %2713 = vmatpush1.msra.mxu0 0.0
        %2714 = vmatprep.subr.mxu0 0.0
        %2715 = vmatpush1.msra.mxu0 0.0
        %2716 = vmatprep.subr.mxu0 0.0
        %2717 = vmatpush1.msra.mxu0 0.0
        %2718 = vmatprep.subr.mxu0 0.0
        %2719 = vmatpush1.msra.mxu0 0.0
        %2720 = vmatprep.subr.mxu0 0.0
        %2721 = vmatpush1.msra.mxu0 0.0
        %2722 = vmatprep.subr.mxu0 0.0
        %2723 = vmatpush1.msra.mxu0 0.0
        %2724 = vmatprep.subr.mxu0 0.0
        %2725 = vmatpush1.msra.mxu0 0.0
        %2726 = vmatprep.mubr.f32.mxu0 0.0
        %2727 = vmatmul.mubr.f32.gmra.mrb[0].mxu0 %v2660
        %v2728 = vpop.f32.mrb[0].mxu0
        %v2729 = vadd.f32 0.0, %v2728
        %v2730 = vpop.f32.mrb[0].mxu0
        %2731 = vdwg.mxu0
        %v2732 = vadd.f32 %v2483, %v2729
        %2733 = vrot.lane.b32.xlu0 %v1829, 104
        %v2734 = vpop.permute.xlu0 %2733
        %2735 = vrot.lane.b32.xlu0 %v1911, 104
        %v2736 = vpop.permute.xlu0 %2735
        %2737 = vrot.lane.b32.xlu0 %v1916, 104
        %v2738 = vpop.permute.xlu0 %2737
        %v2739 = vsel %vm731, %v2734, 0
        %v2741 = vsel %vm731, %v2736, 0
        %v2743 = vsel %vm731, %v2738, 0
        %2745 = vmatprep.subr.mxu0 0.0
        %2746 = vmatpush1.xpose.msra.mxu0 %v2741
        %2747 = vmatprep.subr.mxu0 0.0
        %2748 = vmatpush1.xpose.msra.mxu0 %v2743
        %2749 = vmatprep.subr.mxu0 0.0
        %2750 = vmatpush1.xpose.msra.mxu0 0.0
        %2751 = vmatprep.subr.mxu0 0.0
        %2752 = vmatpush1.xpose.msra.mxu0 0.0
        %2753 = vmatprep.subr.mxu0 0.0
        %2754 = vmatpush1.xpose.msra.mxu0 0.0
        %2755 = vmatprep.subr.mxu0 0.0
        %2756 = vmatpush1.xpose.msra.mxu0 0.0
        %2757 = vmatprep.subr.mxu0 0.0
        %2758 = vmatpush1.xpose.msra.mxu0 0.0
        %2759 = vmatprep.subr.mxu0 0.0
        %2760 = vmatpush1.xpose.msra.mxu0 0.0
        %2761 = vmatprep.subr.mxu0 0.0
        %2762 = vmatpush1.xpose.msra.mxu0 0.0
        %2763 = vmatprep.subr.mxu0 0.0
        %2764 = vmatpush1.xpose.msra.mxu0 0.0
        %2765 = vmatprep.subr.mxu0 0.0
        %2766 = vmatpush1.xpose.msra.mxu0 0.0
        %2767 = vmatprep.subr.mxu0 0.0
        %2768 = vmatpush1.xpose.msra.mxu0 0.0
        %2769 = vmatprep.subr.mxu0 0.0
        %2770 = vmatpush1.xpose.msra.mxu0 0.0
        %2771 = vmatprep.subr.mxu0 0.0
        %2772 = vmatpush1.xpose.msra.mxu0 0.0
        %2773 = vmatprep.subr.mxu0 0.0
        %2774 = vmatpush1.xpose.msra.mxu0 0.0
        %2775 = vmatprep.subr.mxu0 0.0
        %2776 = vmatpush1.xpose.msra.mxu0 0.0
        %2777 = vmatprep.subr.mxu0 0.0
        %2778 = vmatpush1.xpose.msra.mxu0 0.0
        %2779 = vmatprep.subr.mxu0 0.0
        %2780 = vmatpush1.xpose.msra.mxu0 0.0
        %2781 = vmatprep.subr.mxu0 0.0
        %2782 = vmatpush1.xpose.msra.mxu0 0.0
        %2783 = vmatprep.subr.mxu0 0.0
        %2784 = vmatpush1.xpose.msra.mxu0 0.0
        %2785 = vmatprep.subr.mxu0 0.0
        %2786 = vmatpush1.xpose.msra.mxu0 0.0
        %2787 = vmatprep.subr.mxu0 0.0
        %2788 = vmatpush1.xpose.msra.mxu0 0.0
        %2789 = vmatprep.subr.mxu0 0.0
        %2790 = vmatpush1.xpose.msra.mxu0 0.0
        %2791 = vmatprep.subr.mxu0 0.0
        %2792 = vmatpush1.xpose.msra.mxu0 0.0
        %2793 = vmatprep.subr.mxu0 0.0
        %2794 = vmatpush1.xpose.msra.mxu0 0.0
        %2795 = vmatprep.subr.mxu0 0.0
        %2796 = vmatpush1.xpose.msra.mxu0 0.0
        %2797 = vmatprep.subr.mxu0 0.0
        %2798 = vmatpush1.xpose.msra.mxu0 0.0
        %2799 = vmatprep.subr.mxu0 0.0
        %2800 = vmatpush1.xpose.msra.mxu0 0.0
        %2801 = vmatprep.subr.mxu0 0.0
        %2802 = vmatpush1.xpose.msra.mxu0 0.0
        %2803 = vmatprep.subr.mxu0 0.0
        %2804 = vmatpush1.xpose.msra.mxu0 0.0
        %2805 = vmatprep.subr.mxu0 0.0
        %2806 = vmatpush1.xpose.msra.mxu0 0.0
        %2807 = vmatprep.subr.mxu0 0.0
        %2808 = vmatpush1.xpose.msra.mxu0 0.0
        %2809 = vmatprep.mubr.f32.mxu0 0.0
        %2810 = vmatmul.mubr.f32.gmra.mrb[0].mxu0 %v2739
        %v2811 = vpop.f32.mrb[0].mxu0
        %v2812 = vadd.f32 0.0, %v2811
        %v2813 = vpop.f32.mrb[0].mxu0
        %2814 = vdwg.mxu0
        %v2815 = vmul.f32 %v2812, 0.35355338
        %v2816 = vsel %vm2080, %v2815, -inf
        %2817 = vmax.xlane.f32.xlu0 %v2816
        %v2818 = vpop.xlane.xlu0 %2817
        %v2819 = vsub.f32 %v2815, %v2818
        %v2820 = vmul.f32 %v2819, 1.442695
        %v2821 = vpow.pop %v2820
        %v2822 = vsel %vm2080, %v2821, 0.0
        %2823 = vadd.xlane.f32.xlu0 %v2822
        %v2824 = vpop.xlane.xlu0 %2823
        %v2825 = vrcp.pop %v2824
        %v2826 = vmul.f32 %v2821, %v2825
        %2827 = vrot.lane.b32.xlu0 %v1992, 104
        %v2828 = vpop.permute.xlu0 %2827
        %2829 = vrot.lane.b32.xlu0 %v1997, 104
        %v2830 = vpop.permute.xlu0 %2829
        %v2834 = vsel %vm2080, %v2826, 0
        %2836 = vmatprep.subr.mxu0 0.0
        %2837 = vmatpush1.msra.mxu0 %v2828
        %2838 = vmatprep.subr.mxu0 0.0
        %2839 = vmatpush1.msra.mxu0 %v2830
        %2840 = vmatprep.subr.mxu0 0.0
        %2841 = vmatpush1.msra.mxu0 0.0
        %2842 = vmatprep.subr.mxu0 0.0
        %2843 = vmatpush1.msra.mxu0 0.0
        %2844 = vmatprep.subr.mxu0 0.0
        %2845 = vmatpush1.msra.mxu0 0.0
        %2846 = vmatprep.subr.mxu0 0.0
        %2847 = vmatpush1.msra.mxu0 0.0
        %2848 = vmatprep.subr.mxu0 0.0
        %2849 = vmatpush1.msra.mxu0 0.0
        %2850 = vmatprep.subr.mxu0 0.0
        %2851 = vmatpush1.msra.mxu0 0.0
        %2852 = vmatprep.subr.mxu0 0.0
        %2853 = vmatpush1.msra.mxu0 0.0
        %2854 = vmatprep.subr.mxu0 0.0
        %2855 = vmatpush1.msra.mxu0 0.0
        %2856 = vmatprep.subr.mxu0 0.0
        %2857 = vmatpush1.msra.mxu0 0.0
        %2858 = vmatprep.subr.mxu0 0.0
        %2859 = vmatpush1.msra.mxu0 0.0
        %2860 = vmatprep.subr.mxu0 0.0
        %2861 = vmatpush1.msra.mxu0 0.0
        %2862 = vmatprep.subr.mxu0 0.0
        %2863 = vmatpush1.msra.mxu0 0.0
        %2864 = vmatprep.subr.mxu0 0.0
        %2865 = vmatpush1.msra.mxu0 0.0
        %2866 = vmatprep.subr.mxu0 0.0
        %2867 = vmatpush1.msra.mxu0 0.0
        %2868 = vmatprep.subr.mxu0 0.0
        %2869 = vmatpush1.msra.mxu0 0.0
        %2870 = vmatprep.subr.mxu0 0.0
        %2871 = vmatpush1.msra.mxu0 0.0
        %2872 = vmatprep.subr.mxu0 0.0
        %2873 = vmatpush1.msra.mxu0 0.0
        %2874 = vmatprep.subr.mxu0 0.0
        %2875 = vmatpush1.msra.mxu0 0.0
        %2876 = vmatprep.subr.mxu0 0.0
        %2877 = vmatpush1.msra.mxu0 0.0
        %2878 = vmatprep.subr.mxu0 0.0
        %2879 = vmatpush1.msra.mxu0 0.0
        %2880 = vmatprep.subr.mxu0 0.0
        %2881 = vmatpush1.msra.mxu0 0.0
        %2882 = vmatprep.subr.mxu0 0.0
        %2883 = vmatpush1.msra.mxu0 0.0
        %2884 = vmatprep.subr.mxu0 0.0
        %2885 = vmatpush1.msra.mxu0 0.0
        %2886 = vmatprep.subr.mxu0 0.0
        %2887 = vmatpush1.msra.mxu0 0.0
        %2888 = vmatprep.subr.mxu0 0.0
        %2889 = vmatpush1.msra.mxu0 0.0
        %2890 = vmatprep.subr.mxu0 0.0
        %2891 = vmatpush1.msra.mxu0 0.0
        %2892 = vmatprep.subr.mxu0 0.0
        %2893 = vmatpush1.msra.mxu0 0.0
        %2894 = vmatprep.subr.mxu0 0.0
        %2895 = vmatpush1.msra.mxu0 0.0
        %2896 = vmatprep.subr.mxu0 0.0
        %2897 = vmatpush1.msra.mxu0 0.0
        %2898 = vmatprep.subr.mxu0 0.0
        %2899 = vmatpush1.msra.mxu0 0.0
        %2900 = vmatprep.mubr.f32.mxu0 0.0
        %2901 = vmatmul.mubr.f32.gmra.mrb[0].mxu0 %v2834
        %v2902 = vpop.f32.mrb[0].mxu0
        %v2903 = vadd.f32 0.0, %v2902
        %v2904 = vpop.f32.mrb[0].mxu0
        %2905 = vdwg.mxu0
        %v2907 = vsel %vm731, %v2903, 0
        %2909 = vmatprep.subr.mxu0 0.0
        %2910 = vmatpush1.msra.mxu0 %v1744
        %2911 = vmatprep.subr.mxu0 0.0
        %2912 = vmatpush1.msra.mxu0 0.0
        %2913 = vmatprep.subr.mxu0 0.0
        %2914 = vmatpush1.msra.mxu0 0.0
        %2915 = vmatprep.subr.mxu0 0.0
        %2916 = vmatpush1.msra.mxu0 0.0
        %2917 = vmatprep.subr.mxu0 0.0
        %2918 = vmatpush1.msra.mxu0 0.0
        %2919 = vmatprep.subr.mxu0 0.0
        %2920 = vmatpush1.msra.mxu0 0.0
        %2921 = vmatprep.subr.mxu0 0.0
        %2922 = vmatpush1.msra.mxu0 0.0
        %2923 = vmatprep.subr.mxu0 0.0
        %2924 = vmatpush1.msra.mxu0 0.0
        %2925 = vmatprep.subr.mxu0 0.0
        %2926 = vmatpush1.msra.mxu0 0.0
        %2927 = vmatprep.subr.mxu0 0.0
        %2928 = vmatpush1.msra.mxu0 0.0
        %2929 = vmatprep.subr.mxu0 0.0
        %2930 = vmatpush1.msra.mxu0 0.0
        %2931 = vmatprep.subr.mxu0 0.0
        %2932 = vmatpush1.msra.mxu0 0.0
        %2933 = vmatprep.subr.mxu0 0.0
        %2934 = vmatpush1.msra.mxu0 0.0
        %2935 = vmatprep.subr.mxu0 0.0
        %2936 = vmatpush1.msra.mxu0 0.0
        %2937 = vmatprep.subr.mxu0 0.0
        %2938 = vmatpush1.msra.mxu0 0.0
        %2939 = vmatprep.subr.mxu0 0.0
        %2940 = vmatpush1.msra.mxu0 0.0
        %2941 = vmatprep.subr.mxu0 0.0
        %2942 = vmatpush1.msra.mxu0 0.0
        %2943 = vmatprep.subr.mxu0 0.0
        %2944 = vmatpush1.msra.mxu0 0.0
        %2945 = vmatprep.subr.mxu0 0.0
        %2946 = vmatpush1.msra.mxu0 0.0
        %2947 = vmatprep.subr.mxu0 0.0
        %2948 = vmatpush1.msra.mxu0 0.0
        %2949 = vmatprep.subr.mxu0 0.0
        %2950 = vmatpush1.msra.mxu0 0.0
        %2951 = vmatprep.subr.mxu0 0.0
        %2952 = vmatpush1.msra.mxu0 0.0
        %2953 = vmatprep.subr.mxu0 0.0
        %2954 = vmatpush1.msra.mxu0 0.0
        %2955 = vmatprep.subr.mxu0 0.0
        %2956 = vmatpush1.msra.mxu0 0.0
        %2957 = vmatprep.subr.mxu0 0.0
        %2958 = vmatpush1.msra.mxu0 0.0
        %2959 = vmatprep.subr.mxu0 0.0
        %2960 = vmatpush1.msra.mxu0 0.0
        %2961 = vmatprep.subr.mxu0 0.0
        %2962 = vmatpush1.msra.mxu0 0.0
        %2963 = vmatprep.subr.mxu0 0.0
        %2964 = vmatpush1.msra.mxu0 0.0
        %2965 = vmatprep.subr.mxu0 0.0
        %2966 = vmatpush1.msra.mxu0 0.0
        %2967 = vmatprep.subr.mxu0 0.0
        %2968 = vmatpush1.msra.mxu0 0.0
        %2969 = vmatprep.subr.mxu0 0.0
        %2970 = vmatpush1.msra.mxu0 0.0
        %2971 = vmatprep.subr.mxu0 0.0
        %2972 = vmatpush1.msra.mxu0 0.0
        %2973 = vmatprep.mubr.f32.mxu0 0.0
        %2974 = vmatmul.mubr.f32.gmra.mrb[0].mxu0 %v2907
        %v2975 = vpop.f32.mrb[0].mxu0
        %v2976 = vadd.f32 0.0, %v2975
        %v2977 = vpop.f32.mrb[0].mxu0
        %2978 = vdwg.mxu0
        %v2979 = vadd.f32 %v2732, %v2976
        %v2981 = vlaneseq
        %v2982 = vshrl.u32 %v2981, 7
        %v2983 = vsub.s32 0, %v2982
        %v2984 = vrot.slane %v1752, %v2983
        %v2986 = vadd.f32 %v2979, %v2984
        %v2987 = vadd.f32 %v1693, %v2986
        %s2988 = scalar_lea.vmem %s4, 2
        %v2989 = vld [vmem:[%s2988] sm:$0x1]
        %s2990 = scalar_lea.vmem %s5, 2
        %v2991 = vld [vmem:[%s2990] sm:$0x1]
        %v2992 = vsel %vm445, %v2987, 0.0
        %2993 = vadd.xlane.f32.xlu0 %v2992
        %v2994 = vpop.xlane.xlu0 %2993
        %v2995 = vmul.f32 %v2994, %v449
        %v2996 = vsub.f32 %v2987, %v2995
        %v2997 = vmul.f32 %v2996, %v2996
        %v2998 = vsel %vm445, %v2997, 0.0
        %2999 = vadd.xlane.f32.xlu0 %v2998
        %v3000 = vpop.xlane.xlu0 %2999
        %v3001 = vmul.f32 %v3000, %v449
        %v3002 = vadd.f32 %v3001, 1e-05
        %v3003 = vrsqrt.pop %v3002
        %v3004 = vmul.f32 %v2996, %v3003
        %v3006 = vlaneseq
        %v3007 = vshrl.u32 %v3006, 7
        %v3008 = vsub.s32 0, %v3007
        %v3009 = vrot.slane %v2989, %v3008
        %v3011 = vmul.f32 %v3004, %v3009
        %v3013 = vlaneseq
        %v3014 = vshrl.u32 %v3013, 7
        %v3015 = vsub.s32 0, %v3014
        %v3016 = vrot.slane %v2991, %v3015
        %v3018 = vadd.f32 %v3011, %v3016
        %v3019 = vld [vmem:[%s6] sm:$0xff]
        %v3020 = vld [vmem:[%s6 + $0x8] sm:$0xff]
        %v3021 = vld [vmem:[%s6 + $0x10] sm:$0xff]
        %v3022 = vld [vmem:[%s6 + $0x18] sm:$0xff]
        %v3023 = vld [vmem:[%s7] sm:$0x1]
        %v3025 = vlaneseq
        %v3026 = vshrl.u32 %v3025, 7
        %v3027 = vsub.s32 0, %v3026
        %v3028 = vrot.slane %v3023, %v3027
        %v3031 = vsel %vm445, %v3018, 0
        %3033 = vmatprep.subr.mxu0 0.0
        %3034 = vmatpush1.msra.mxu0 %v3019
        %3035 = vmatprep.subr.mxu0 0.0
        %3036 = vmatpush1.msra.mxu0 %v3020
        %3037 = vmatprep.subr.mxu0 0.0
        %3038 = vmatpush1.msra.mxu0 %v3021
        %3039 = vmatprep.subr.mxu0 0.0
        %3040 = vmatpush1.msra.mxu0 %v3022
        %3041 = vmatprep.subr.mxu0 0.0
        %3042 = vmatpush1.msra.mxu0 0.0
        %3043 = vmatprep.subr.mxu0 0.0
        %3044 = vmatpush1.msra.mxu0 0.0
        %3045 = vmatprep.subr.mxu0 0.0
        %3046 = vmatpush1.msra.mxu0 0.0
        %3047 = vmatprep.subr.mxu0 0.0
        %3048 = vmatpush1.msra.mxu0 0.0
        %3049 = vmatprep.subr.mxu0 0.0
        %3050 = vmatpush1.msra.mxu0 0.0
        %3051 = vmatprep.subr.mxu0 0.0
        %3052 = vmatpush1.msra.mxu0 0.0
        %3053 = vmatprep.subr.mxu0 0.0
        %3054 = vmatpush1.msra.mxu0 0.0
        %3055 = vmatprep.subr.mxu0 0.0
        %3056 = vmatpush1.msra.mxu0 0.0
        %3057 = vmatprep.subr.mxu0 0.0
        %3058 = vmatpush1.msra.mxu0 0.0
        %3059 = vmatprep.subr.mxu0 0.0
        %3060 = vmatpush1.msra.mxu0 0.0
        %3061 = vmatprep.subr.mxu0 0.0
        %3062 = vmatpush1.msra.mxu0 0.0
        %3063 = vmatprep.subr.mxu0 0.0
        %3064 = vmatpush1.msra.mxu0 0.0
        %3065 = vmatprep.subr.mxu0 0.0
        %3066 = vmatpush1.msra.mxu0 0.0
        %3067 = vmatprep.subr.mxu0 0.0
        %3068 = vmatpush1.msra.mxu0 0.0
        %3069 = vmatprep.subr.mxu0 0.0
        %3070 = vmatpush1.msra.mxu0 0.0
        %3071 = vmatprep.subr.mxu0 0.0
        %3072 = vmatpush1.msra.mxu0 0.0
        %3073 = vmatprep.subr.mxu0 0.0
        %3074 = vmatpush1.msra.mxu0 0.0
        %3075 = vmatprep.subr.mxu0 0.0
        %3076 = vmatpush1.msra.mxu0 0.0
        %3077 = vmatprep.subr.mxu0 0.0
        %3078 = vmatpush1.msra.mxu0 0.0
        %3079 = vmatprep.subr.mxu0 0.0
        %3080 = vmatpush1.msra.mxu0 0.0
        %3081 = vmatprep.subr.mxu0 0.0
        %3082 = vmatpush1.msra.mxu0 0.0
        %3083 = vmatprep.subr.mxu0 0.0
        %3084 = vmatpush1.msra.mxu0 0.0
        %3085 = vmatprep.subr.mxu0 0.0
        %3086 = vmatpush1.msra.mxu0 0.0
        %3087 = vmatprep.subr.mxu0 0.0
        %3088 = vmatpush1.msra.mxu0 0.0
        %3089 = vmatprep.subr.mxu0 0.0
        %3090 = vmatpush1.msra.mxu0 0.0
        %3091 = vmatprep.subr.mxu0 0.0
        %3092 = vmatpush1.msra.mxu0 0.0
        %3093 = vmatprep.subr.mxu0 0.0
        %3094 = vmatpush1.msra.mxu0 0.0
        %3095 = vmatprep.subr.mxu0 0.0
        %3096 = vmatpush1.msra.mxu0 0.0
        %3097 = vmatprep.mubr.f32.mxu0 0.0
        %3098 = vmatmul.mubr.f32.gmra.mrb[0].mxu0 %v3031
        %v3099 = vpop.f32.mrb[0].mxu0
        %v3100 = vadd.f32 %v3028, %v3099
        %v3101 = vpop.f32.mrb[0].mxu0
        %3102 = vdwg.mxu0
        %v3103 = vmul.f32 %v3100, 0.5
        %v3104 = vmul.f32 %v3100, 0.044715
        %v3105 = vmul.f32 %v3104, %v3100
        %v3106 = vmul.f32 %v3105, %v3100
        %v3107 = vadd.f32 %v3100, %v3106
        %v3108 = vmul.f32 %v3107, 0.7978846
        %v3109 = vtanh.pop %v3108
        %v3110 = vadd.f32 %v3109, 1.0
        %v3111 = vmul.f32 %v3103, %v3110
        %v3112 = vld [vmem:[%s8] sm:$0xff]
        %v3113 = vld [vmem:[%s8 + $0x8] sm:$0xff]
        %v3114 = vld [vmem:[%s8 + $0x10] sm:$0xff]
        %v3115 = vld [vmem:[%s8 + $0x18] sm:$0xff]
        %v3116 = vld [vmem:[%s8 + $0x20] sm:$0xff]
        %v3117 = vld [vmem:[%s8 + $0x28] sm:$0xff]
        %v3118 = vld [vmem:[%s8 + $0x30] sm:$0xff]
        %v3119 = vld [vmem:[%s8 + $0x38] sm:$0xff]
        %vm3120 = vcmask 523264
        %v3122 = vsel %vm3120, %v3111, 0
        %3124 = vmatprep.subr.mxu0 0.0
        %3125 = vmatpush1.msra.mxu0 %v3112
        %3126 = vmatprep.subr.mxu0 0.0
        %3127 = vmatpush1.msra.mxu0 %v3113
        %3128 = vmatprep.subr.mxu0 0.0
        %3129 = vmatpush1.msra.mxu0 %v3114
        %3130 = vmatprep.subr.mxu0 0.0
        %3131 = vmatpush1.msra.mxu0 %v3115
        %3132 = vmatprep.subr.mxu0 0.0
        %3133 = vmatpush1.msra.mxu0 %v3116
        %3134 = vmatprep.subr.mxu0 0.0
        %3135 = vmatpush1.msra.mxu0 %v3117
        %3136 = vmatprep.subr.mxu0 0.0
        %3137 = vmatpush1.msra.mxu0 %v3118
        %3138 = vmatprep.subr.mxu0 0.0
        %3139 = vmatpush1.msra.mxu0 %v3119
        %3140 = vmatprep.subr.mxu0 0.0
        %3141 = vmatpush1.msra.mxu0 0.0
        %3142 = vmatprep.subr.mxu0 0.0
        %3143 = vmatpush1.msra.mxu0 0.0
        %3144 = vmatprep.subr.mxu0 0.0
        %3145 = vmatpush1.msra.mxu0 0.0
        %3146 = vmatprep.subr.mxu0 0.0
        %3147 = vmatpush1.msra.mxu0 0.0
        %3148 = vmatprep.subr.mxu0 0.0
        %3149 = vmatpush1.msra.mxu0 0.0
        %3150 = vmatprep.subr.mxu0 0.0
        %3151 = vmatpush1.msra.mxu0 0.0
        %3152 = vmatprep.subr.mxu0 0.0
        %3153 = vmatpush1.msra.mxu0 0.0
        %3154 = vmatprep.subr.mxu0 0.0
        %3155 = vmatpush1.msra.mxu0 0.0
        %3156 = vmatprep.subr.mxu0 0.0
        %3157 = vmatpush1.msra.mxu0 0.0
        %3158 = vmatprep.subr.mxu0 0.0
        %3159 = vmatpush1.msra.mxu0 0.0
        %3160 = vmatprep.subr.mxu0 0.0
        %3161 = vmatpush1.msra.mxu0 0.0
        %3162 = vmatprep.subr.mxu0 0.0
        %3163 = vmatpush1.msra.mxu0 0.0
        %3164 = vmatprep.subr.mxu0 0.0
        %3165 = vmatpush1.msra.mxu0 0.0
        %3166 = vmatprep.subr.mxu0 0.0
        %3167 = vmatpush1.msra.mxu0 0.0
        %3168 = vmatprep.subr.mxu0 0.0
        %3169 = vmatpush1.msra.mxu0 0.0
        %3170 = vmatprep.subr.mxu0 0.0
        %3171 = vmatpush1.msra.mxu0 0.0
        %3172 = vmatprep.subr.mxu0 0.0
        %3173 = vmatpush1.msra.mxu0 0.0
        %3174 = vmatprep.subr.mxu0 0.0
        %3175 = vmatpush1.msra.mxu0 0.0
        %3176 = vmatprep.subr.mxu0 0.0
        %3177 = vmatpush1.msra.mxu0 0.0
        %3178 = vmatprep.subr.mxu0 0.0
        %3179 = vmatpush1.msra.mxu0 0.0
        %3180 = vmatprep.subr.mxu0 0.0
        %3181 = vmatpush1.msra.mxu0 0.0
        %3182 = vmatprep.subr.mxu0 0.0
        %3183 = vmatpush1.msra.mxu0 0.0
        %3184 = vmatprep.subr.mxu0 0.0
        %3185 = vmatpush1.msra.mxu0 0.0
        %3186 = vmatprep.subr.mxu0 0.0
        %3187 = vmatpush1.msra.mxu0 0.0
        %3188 = vmatprep.mubr.f32.mxu0 0.0
        %3189 = vmatmul.mubr.f32.gmra.mrb[0].mxu0 %v3122
        %v3190 = vpop.f32.mrb[0].mxu0
        %v3191 = vadd.f32 0.0, %v3190
        %v3192 = vpop.f32.mrb[0].mxu0
        %3193 = vdwg.mxu0
        %v3194 = vadd.f32 %v2987, %v3191
        %v3195 = vld [vmem:[%s9] sm:$0x1]
        %v3197 = vlaneseq
        %v3198 = vshrl.u32 %v3197, 7
        %v3199 = vsub.s32 0, %v3198
        %v3200 = vrot.slane %v3195, %v3199
        %v3202 = vadd.f32 %v3194, %v3200
        %s3203 = scalar_lea.vmem %s4, 3
        %v3204 = vld [vmem:[%s3203] sm:$0x1]
        %s3205 = scalar_lea.vmem %s5, 3
        %v3206 = vld [vmem:[%s3205] sm:$0x1]
        %v3207 = vsel %vm445, %v3202, 0.0
        %3208 = vadd.xlane.f32.xlu0 %v3207
        %v3209 = vpop.xlane.xlu0 %3208
        %v3210 = vmul.f32 %v3209, %v449
        %v3211 = vsub.f32 %v3202, %v3210
        %v3212 = vmul.f32 %v3211, %v3211
        %v3213 = vsel %vm445, %v3212, 0.0
        %3214 = vadd.xlane.f32.xlu0 %v3213
        %v3215 = vpop.xlane.xlu0 %3214
        %v3216 = vmul.f32 %v3215, %v449
        %v3217 = vadd.f32 %v3216, 1e-05
        %v3218 = vrsqrt.pop %v3217
        %v3219 = vmul.f32 %v3211, %v3218
        %v3221 = vlaneseq
        %v3222 = vshrl.u32 %v3221, 7
        %v3223 = vsub.s32 0, %v3222
        %v3224 = vrot.slane %v3204, %v3223
        %v3226 = vmul.f32 %v3219, %v3224
        %v3228 = vlaneseq
        %v3229 = vshrl.u32 %v3228, 7
        %v3230 = vsub.s32 0, %v3229
        %v3231 = vrot.slane %v3206, %v3230
        %v3233 = vadd.f32 %v3226, %v3231
        %s3234 = scalar_lea.vmem %s2, 256
        %v3235 = vld [vmem:[%s3234] sm:$0xff]
        %v3236 = vld [vmem:[%s3234 + $0x8] sm:$0xff]
        %v3237 = vld [vmem:[%s3234 + $0x10] sm:$0xff]
        %v3238 = vld [vmem:[%s3234 + $0x18] sm:$0xff]
        %s3239 = scalar_lea.vmem %s2, 288
        %v3240 = vld [vmem:[%s3239] sm:$0xff]
        %v3241 = vld [vmem:[%s3239 + $0x8] sm:$0xff]
        %v3242 = vld [vmem:[%s3239 + $0x10] sm:$0xff]
        %v3243 = vld [vmem:[%s3239 + $0x18] sm:$0xff]
        %s3244 = scalar_lea.vmem %s2, 320
        %v3245 = vld [vmem:[%s3244] sm:$0xff]
        %v3246 = vld [vmem:[%s3244 + $0x8] sm:$0xff]
        %v3247 = vld [vmem:[%s3244 + $0x10] sm:$0xff]
        %v3248 = vld [vmem:[%s3244 + $0x18] sm:$0xff]
        %s3249 = scalar_lea.vmem %s2, 352
        %v3250 = vld [vmem:[%s3249] sm:$0xff]
        %v3251 = vld [vmem:[%s3249 + $0x8] sm:$0xff]
        %v3252 = vld [vmem:[%s3249 + $0x10] sm:$0xff]
        %v3253 = vld [vmem:[%s3249 + $0x18] sm:$0xff]
        %s3254 = scalar_lea.vmem %s3, 8
        %v3255 = vld [vmem:[%s3254] sm:$0x1]
        %s3256 = scalar_lea.vmem %s3, 9
        %v3257 = vld [vmem:[%s3256] sm:$0x1]
        %s3258 = scalar_lea.vmem %s3, 10
        %v3259 = vld [vmem:[%s3258] sm:$0x1]
        %s3260 = scalar_lea.vmem %s3, 11
        %v3261 = vld [vmem:[%s3260] sm:$0x1]
        %v3263 = vlaneseq
        %v3264 = vshrl.u32 %v3263, 7
        %v3265 = vsub.s32 0, %v3264
        %v3266 = vrot.slane %v3255, %v3265
        %v3269 = vsel %vm445, %v3233, 0
        %3271 = vmatprep.subr.mxu0 0.0
        %3272 = vmatpush1.msra.mxu0 %v3235
        %3273 = vmatprep.subr.mxu0 0.0
        %3274 = vmatpush1.msra.mxu0 %v3236
        %3275 = vmatprep.subr.mxu0 0.0
        %3276 = vmatpush1.msra.mxu0 %v3237
        %3277 = vmatprep.subr.mxu0 0.0
        %3278 = vmatpush1.msra.mxu0 %v3238
        %3279 = vmatprep.subr.mxu0 0.0
        %3280 = vmatpush1.msra.mxu0 0.0
        %3281 = vmatprep.subr.mxu0 0.0
        %3282 = vmatpush1.msra.mxu0 0.0
        %3283 = vmatprep.subr.mxu0 0.0
        %3284 = vmatpush1.msra.mxu0 0.0
        %3285 = vmatprep.subr.mxu0 0.0
        %3286 = vmatpush1.msra.mxu0 0.0
        %3287 = vmatprep.subr.mxu0 0.0
        %3288 = vmatpush1.msra.mxu0 0.0
        %3289 = vmatprep.subr.mxu0 0.0
        %3290 = vmatpush1.msra.mxu0 0.0
        %3291 = vmatprep.subr.mxu0 0.0
        %3292 = vmatpush1.msra.mxu0 0.0
        %3293 = vmatprep.subr.mxu0 0.0
        %3294 = vmatpush1.msra.mxu0 0.0
        %3295 = vmatprep.subr.mxu0 0.0
        %3296 = vmatpush1.msra.mxu0 0.0
        %3297 = vmatprep.subr.mxu0 0.0
        %3298 = vmatpush1.msra.mxu0 0.0
        %3299 = vmatprep.subr.mxu0 0.0
        %3300 = vmatpush1.msra.mxu0 0.0
        %3301 = vmatprep.subr.mxu0 0.0
        %3302 = vmatpush1.msra.mxu0 0.0
        %3303 = vmatprep.subr.mxu0 0.0
        %3304 = vmatpush1.msra.mxu0 0.0
        %3305 = vmatprep.subr.mxu0 0.0
        %3306 = vmatpush1.msra.mxu0 0.0
        %3307 = vmatprep.subr.mxu0 0.0
        %3308 = vmatpush1.msra.mxu0 0.0
        %3309 = vmatprep.subr.mxu0 0.0
        %3310 = vmatpush1.msra.mxu0 0.0
        %3311 = vmatprep.subr.mxu0 0.0
        %3312 = vmatpush1.msra.mxu0 0.0
        %3313 = vmatprep.subr.mxu0 0.0
        %3314 = vmatpush1.msra.mxu0 0.0
        %3315 = vmatprep.subr.mxu0 0.0
        %3316 = vmatpush1.msra.mxu0 0.0
        %3317 = vmatprep.subr.mxu0 0.0
        %3318 = vmatpush1.msra.mxu0 0.0
        %3319 = vmatprep.subr.mxu0 0.0
        %3320 = vmatpush1.msra.mxu0 0.0
        %3321 = vmatprep.subr.mxu0 0.0
        %3322 = vmatpush1.msra.mxu0 0.0
        %3323 = vmatprep.subr.mxu0 0.0
        %3324 = vmatpush1.msra.mxu0 0.0
        %3325 = vmatprep.subr.mxu0 0.0
        %3326 = vmatpush1.msra.mxu0 0.0
        %3327 = vmatprep.subr.mxu0 0.0
        %3328 = vmatpush1.msra.mxu0 0.0
        %3329 = vmatprep.subr.mxu0 0.0
        %3330 = vmatpush1.msra.mxu0 0.0
        %3331 = vmatprep.subr.mxu0 0.0
        %3332 = vmatpush1.msra.mxu0 0.0
        %3333 = vmatprep.subr.mxu0 0.0
        %3334 = vmatpush1.msra.mxu0 0.0
        %3335 = vmatprep.mubr.f32.mxu0 0.0
        %3336 = vmatmul.mubr.f32.gmra.mrb[0].mxu0 %v3269
        %v3337 = vpop.f32.mrb[0].mxu0
        %v3338 = vadd.f32 %v3266, %v3337
        %v3339 = vpop.f32.mrb[0].mxu0
        %3340 = vdwg.mxu0
        %v3342 = vlaneseq
        %v3343 = vshrl.u32 %v3342, 7
        %v3344 = vsub.s32 0, %v3343
        %v3345 = vrot.slane %v3257, %v3344
        %3347 = vmatprep.subr.mxu0 0.0
        %3348 = vmatpush1.msra.mxu0 %v3240
        %3349 = vmatprep.subr.mxu0 0.0
        %3350 = vmatpush1.msra.mxu0 %v3241
        %3351 = vmatprep.subr.mxu0 0.0
        %3352 = vmatpush1.msra.mxu0 %v3242
        %3353 = vmatprep.subr.mxu0 0.0
        %3354 = vmatpush1.msra.mxu0 %v3243
        %3355 = vmatprep.subr.mxu0 0.0
        %3356 = vmatpush1.msra.mxu0 0.0
        %3357 = vmatprep.subr.mxu0 0.0
        %3358 = vmatpush1.msra.mxu0 0.0
        %3359 = vmatprep.subr.mxu0 0.0
        %3360 = vmatpush1.msra.mxu0 0.0
        %3361 = vmatprep.subr.mxu0 0.0
        %3362 = vmatpush1.msra.mxu0 0.0
        %3363 = vmatprep.subr.mxu0 0.0
        %3364 = vmatpush1.msra.mxu0 0.0
        %3365 = vmatprep.subr.mxu0 0.0
        %3366 = vmatpush1.msra.mxu0 0.0
        %3367 = vmatprep.subr.mxu0 0.0
        %3368 = vmatpush1.msra.mxu0 0.0
        %3369 = vmatprep.subr.mxu0 0.0
        %3370 = vmatpush1.msra.mxu0 0.0
        %3371 = vmatprep.subr.mxu0 0.0
        %3372 = vmatpush1.msra.mxu0 0.0
        %3373 = vmatprep.subr.mxu0 0.0
        %3374 = vmatpush1.msra.mxu0 0.0
        %3375 = vmatprep.subr.mxu0 0.0
        %3376 = vmatpush1.msra.mxu0 0.0
        %3377 = vmatprep.subr.mxu0 0.0
        %3378 = vmatpush1.msra.mxu0 0.0
        %3379 = vmatprep.subr.mxu0 0.0
        %3380 = vmatpush1.msra.mxu0 0.0
        %3381 = vmatprep.subr.mxu0 0.0
        %3382 = vmatpush1.msra.mxu0 0.0
        %3383 = vmatprep.subr.mxu0 0.0
        %3384 = vmatpush1.msra.mxu0 0.0
        %3385 = vmatprep.subr.mxu0 0.0
        %3386 = vmatpush1.msra.mxu0 0.0
        %3387 = vmatprep.subr.mxu0 0.0
        %3388 = vmatpush1.msra.mxu0 0.0
        %3389 = vmatprep.subr.mxu0 0.0
        %3390 = vmatpush1.msra.mxu0 0.0
        %3391 = vmatprep.subr.mxu0 0.0
        %3392 = vmatpush1.msra.mxu0 0.0
        %3393 = vmatprep.subr.mxu0 0.0
        %3394 = vmatpush1.msra.mxu0 0.0
        %3395 = vmatprep.subr.mxu0 0.0
        %3396 = vmatpush1.msra.mxu0 0.0
        %3397 = vmatprep.subr.mxu0 0.0
        %3398 = vmatpush1.msra.mxu0 0.0
        %3399 = vmatprep.subr.mxu0 0.0
        %3400 = vmatpush1.msra.mxu0 0.0
        %3401 = vmatprep.subr.mxu0 0.0
        %3402 = vmatpush1.msra.mxu0 0.0
        %3403 = vmatprep.subr.mxu0 0.0
        %3404 = vmatpush1.msra.mxu0 0.0
        %3405 = vmatprep.subr.mxu0 0.0
        %3406 = vmatpush1.msra.mxu0 0.0
        %3407 = vmatprep.subr.mxu0 0.0
        %3408 = vmatpush1.msra.mxu0 0.0
        %3409 = vmatprep.subr.mxu0 0.0
        %3410 = vmatpush1.msra.mxu0 0.0
        %3411 = vmatprep.mubr.f32.mxu0 0.0
        %3412 = vmatmul.mubr.f32.gmra.mrb[0].mxu0 %v3269
        %v3413 = vpop.f32.mrb[0].mxu0
        %v3414 = vadd.f32 %v3345, %v3413
        %v3415 = vpop.f32.mrb[0].mxu0
        %3416 = vdwg.mxu0
        %v3418 = vlaneseq
        %v3419 = vshrl.u32 %v3418, 7
        %v3420 = vsub.s32 0, %v3419
        %v3421 = vrot.slane %v3259, %v3420
        %3423 = vmatprep.subr.mxu0 0.0
        %3424 = vmatpush1.msra.mxu0 %v3245
        %3425 = vmatprep.subr.mxu0 0.0
        %3426 = vmatpush1.msra.mxu0 %v3246
        %3427 = vmatprep.subr.mxu0 0.0
        %3428 = vmatpush1.msra.mxu0 %v3247
        %3429 = vmatprep.subr.mxu0 0.0
        %3430 = vmatpush1.msra.mxu0 %v3248
        %3431 = vmatprep.subr.mxu0 0.0
        %3432 = vmatpush1.msra.mxu0 0.0
        %3433 = vmatprep.subr.mxu0 0.0
        %3434 = vmatpush1.msra.mxu0 0.0
        %3435 = vmatprep.subr.mxu0 0.0
        %3436 = vmatpush1.msra.mxu0 0.0
        %3437 = vmatprep.subr.mxu0 0.0
        %3438 = vmatpush1.msra.mxu0 0.0
        %3439 = vmatprep.subr.mxu0 0.0
        %3440 = vmatpush1.msra.mxu0 0.0
        %3441 = vmatprep.subr.mxu0 0.0
        %3442 = vmatpush1.msra.mxu0 0.0
        %3443 = vmatprep.subr.mxu0 0.0
        %3444 = vmatpush1.msra.mxu0 0.0
        %3445 = vmatprep.subr.mxu0 0.0
        %3446 = vmatpush1.msra.mxu0 0.0
        %3447 = vmatprep.subr.mxu0 0.0
        %3448 = vmatpush1.msra.mxu0 0.0
        %3449 = vmatprep.subr.mxu0 0.0
        %3450 = vmatpush1.msra.mxu0 0.0
        %3451 = vmatprep.subr.mxu0 0.0
        %3452 = vmatpush1.msra.mxu0 0.0
        %3453 = vmatprep.subr.mxu0 0.0
        %3454 = vmatpush1.msra.mxu0 0.0
        %3455 = vmatprep.subr.mxu0 0.0
        %3456 = vmatpush1.msra.mxu0 0.0
        %3457 = vmatprep.subr.mxu0 0.0
        %3458 = vmatpush1.msra.mxu0 0.0
        %3459 = vmatprep.subr.mxu0 0.0
        %3460 = vmatpush1.msra.mxu0 0.0
        %3461 = vmatprep.subr.mxu0 0.0
        %3462 = vmatpush1.msra.mxu0 0.0
        %3463 = vmatprep.subr.mxu0 0.0
        %3464 = vmatpush1.msra.mxu0 0.0
        %3465 = vmatprep.subr.mxu0 0.0
        %3466 = vmatpush1.msra.mxu0 0.0
        %3467 = vmatprep.subr.mxu0 0.0
        %3468 = vmatpush1.msra.mxu0 0.0
        %3469 = vmatprep.subr.mxu0 0.0
        %3470 = vmatpush1.msra.mxu0 0.0
        %3471 = vmatprep.subr.mxu0 0.0
        %3472 = vmatpush1.msra.mxu0 0.0
        %3473 = vmatprep.subr.mxu0 0.0
        %3474 = vmatpush1.msra.mxu0 0.0
        %3475 = vmatprep.subr.mxu0 0.0
        %3476 = vmatpush1.msra.mxu0 0.0
        %3477 = vmatprep.subr.mxu0 0.0
        %3478 = vmatpush1.msra.mxu0 0.0
        %3479 = vmatprep.subr.mxu0 0.0
        %3480 = vmatpush1.msra.mxu0 0.0
        %3481 = vmatprep.subr.mxu0 0.0
        %3482 = vmatpush1.msra.mxu0 0.0
        %3483 = vmatprep.subr.mxu0 0.0
        %3484 = vmatpush1.msra.mxu0 0.0
        %3485 = vmatprep.subr.mxu0 0.0
        %3486 = vmatpush1.msra.mxu0 0.0
        %3487 = vmatprep.mubr.f32.mxu0 0.0
        %3488 = vmatmul.mubr.f32.gmra.mrb[0].mxu0 %v3269
        %v3489 = vpop.f32.mrb[0].mxu0
        %v3490 = vadd.f32 %v3421, %v3489
        %v3491 = vpop.f32.mrb[0].mxu0
        %3492 = vdwg.mxu0
        %v3494 = vsel %vm731, %v3338, 0
        %v3497 = vsel %vm731, %v3414, 0
        %3499 = vmatprep.subr.mxu0 0.0
        %3500 = vmatpush1.xpose.msra.mxu0 %v3497
        %3501 = vmatprep.subr.mxu0 0.0
        %3502 = vmatpush1.xpose.msra.mxu0 0.0
        %3503 = vmatprep.subr.mxu0 0.0
        %3504 = vmatpush1.xpose.msra.mxu0 0.0
        %3505 = vmatprep.subr.mxu0 0.0
        %3506 = vmatpush1.xpose.msra.mxu0 0.0
        %3507 = vmatprep.subr.mxu0 0.0
        %3508 = vmatpush1.xpose.msra.mxu0 0.0
        %3509 = vmatprep.subr.mxu0 0.0
        %3510 = vmatpush1.xpose.msra.mxu0 0.0
        %3511 = vmatprep.subr.mxu0 0.0
        %3512 = vmatpush1.xpose.msra.mxu0 0.0
        %3513 = vmatprep.subr.mxu0 0.0
        %3514 = vmatpush1.xpose.msra.mxu0 0.0
        %3515 = vmatprep.subr.mxu0 0.0
        %3516 = vmatpush1.xpose.msra.mxu0 0.0
        %3517 = vmatprep.subr.mxu0 0.0
        %3518 = vmatpush1.xpose.msra.mxu0 0.0
        %3519 = vmatprep.subr.mxu0 0.0
        %3520 = vmatpush1.xpose.msra.mxu0 0.0
        %3521 = vmatprep.subr.mxu0 0.0
        %3522 = vmatpush1.xpose.msra.mxu0 0.0
        %3523 = vmatprep.subr.mxu0 0.0
        %3524 = vmatpush1.xpose.msra.mxu0 0.0
        %3525 = vmatprep.subr.mxu0 0.0
        %3526 = vmatpush1.xpose.msra.mxu0 0.0
        %3527 = vmatprep.subr.mxu0 0.0
        %3528 = vmatpush1.xpose.msra.mxu0 0.0
        %3529 = vmatprep.subr.mxu0 0.0
        %3530 = vmatpush1.xpose.msra.mxu0 0.0
        %3531 = vmatprep.subr.mxu0 0.0
        %3532 = vmatpush1.xpose.msra.mxu0 0.0
        %3533 = vmatprep.subr.mxu0 0.0
        %3534 = vmatpush1.xpose.msra.mxu0 0.0
        %3535 = vmatprep.subr.mxu0 0.0
        %3536 = vmatpush1.xpose.msra.mxu0 0.0
        %3537 = vmatprep.subr.mxu0 0.0
        %3538 = vmatpush1.xpose.msra.mxu0 0.0
        %3539 = vmatprep.subr.mxu0 0.0
        %3540 = vmatpush1.xpose.msra.mxu0 0.0
        %3541 = vmatprep.subr.mxu0 0.0
        %3542 = vmatpush1.xpose.msra.mxu0 0.0
        %3543 = vmatprep.subr.mxu0 0.0
        %3544 = vmatpush1.xpose.msra.mxu0 0.0
        %3545 = vmatprep.subr.mxu0 0.0
        %3546 = vmatpush1.xpose.msra.mxu0 0.0
        %3547 = vmatprep.subr.mxu0 0.0
        %3548 = vmatpush1.xpose.msra.mxu0 0.0
        %3549 = vmatprep.subr.mxu0 0.0
        %3550 = vmatpush1.xpose.msra.mxu0 0.0
        %3551 = vmatprep.subr.mxu0 0.0
        %3552 = vmatpush1.xpose.msra.mxu0 0.0
        %3553 = vmatprep.subr.mxu0 0.0
        %3554 = vmatpush1.xpose.msra.mxu0 0.0
        %3555 = vmatprep.subr.mxu0 0.0
        %3556 = vmatpush1.xpose.msra.mxu0 0.0
        %3557 = vmatprep.subr.mxu0 0.0
        %3558 = vmatpush1.xpose.msra.mxu0 0.0
        %3559 = vmatprep.subr.mxu0 0.0
        %3560 = vmatpush1.xpose.msra.mxu0 0.0
        %3561 = vmatprep.subr.mxu0 0.0
        %3562 = vmatpush1.xpose.msra.mxu0 0.0
        %3563 = vmatprep.mubr.f32.mxu0 0.0
        %3564 = vmatmul.mubr.f32.gmra.mrb[0].mxu0 %v3494
        %v3565 = vpop.f32.mrb[0].mxu0
        %v3566 = vadd.f32 0.0, %v3565
        %v3567 = vpop.f32.mrb[0].mxu0
        %3568 = vdwg.mxu0
        %v3569 = vmul.f32 %v3566, 0.35355338
        %v3570 = vsel %vm731, %v3569, -inf
        %3571 = vmax.xlane.f32.xlu0 %v3570
        %v3572 = vpop.xlane.xlu0 %3571
        %v3573 = vsub.f32 %v3569, %v3572
        %v3574 = vmul.f32 %v3573, 1.442695
        %v3575 = vpow.pop %v3574
        %v3576 = vsel %vm731, %v3575, 0.0
        %3577 = vadd.xlane.f32.xlu0 %v3576
        %v3578 = vpop.xlane.xlu0 %3577
        %v3579 = vrcp.pop %v3578
        %v3580 = vmul.f32 %v3575, %v3579
        %v3582 = vsel %vm731, %v3580, 0
        %3584 = vmatprep.subr.mxu0 0.0
        %3585 = vmatpush1.msra.mxu0 %v3490
        %3586 = vmatprep.subr.mxu0 0.0
        %3587 = vmatpush1.msra.mxu0 0.0
        %3588 = vmatprep.subr.mxu0 0.0
        %3589 = vmatpush1.msra.mxu0 0.0
        %3590 = vmatprep.subr.mxu0 0.0
        %3591 = vmatpush1.msra.mxu0 0.0
        %3592 = vmatprep.subr.mxu0 0.0
        %3593 = vmatpush1.msra.mxu0 0.0
        %3594 = vmatprep.subr.mxu0 0.0
        %3595 = vmatpush1.msra.mxu0 0.0
        %3596 = vmatprep.subr.mxu0 0.0
        %3597 = vmatpush1.msra.mxu0 0.0
        %3598 = vmatprep.subr.mxu0 0.0
        %3599 = vmatpush1.msra.mxu0 0.0
        %3600 = vmatprep.subr.mxu0 0.0
        %3601 = vmatpush1.msra.mxu0 0.0
        %3602 = vmatprep.subr.mxu0 0.0
        %3603 = vmatpush1.msra.mxu0 0.0
        %3604 = vmatprep.subr.mxu0 0.0
        %3605 = vmatpush1.msra.mxu0 0.0
        %3606 = vmatprep.subr.mxu0 0.0
        %3607 = vmatpush1.msra.mxu0 0.0
        %3608 = vmatprep.subr.mxu0 0.0
        %3609 = vmatpush1.msra.mxu0 0.0
        %3610 = vmatprep.subr.mxu0 0.0
        %3611 = vmatpush1.msra.mxu0 0.0
        %3612 = vmatprep.subr.mxu0 0.0
        %3613 = vmatpush1.msra.mxu0 0.0
        %3614 = vmatprep.subr.mxu0 0.0
        %3615 = vmatpush1.msra.mxu0 0.0
        %3616 = vmatprep.subr.mxu0 0.0
        %3617 = vmatpush1.msra.mxu0 0.0
        %3618 = vmatprep.subr.mxu0 0.0
        %3619 = vmatpush1.msra.mxu0 0.0
        %3620 = vmatprep.subr.mxu0 0.0
        %3621 = vmatpush1.msra.mxu0 0.0
        %3622 = vmatprep.subr.mxu0 0.0
        %3623 = vmatpush1.msra.mxu0 0.0
        %3624 = vmatprep.subr.mxu0 0.0
        %3625 = vmatpush1.msra.mxu0 0.0
        %3626 = vmatprep.subr.mxu0 0.0
        %3627 = vmatpush1.msra.mxu0 0.0
        %3628 = vmatprep.subr.mxu0 0.0
        %3629 = vmatpush1.msra.mxu0 0.0
        %3630 = vmatprep.subr.mxu0 0.0
        %3631 = vmatpush1.msra.mxu0 0.0
        %3632 = vmatprep.subr.mxu0 0.0
        %3633 = vmatpush1.msra.mxu0 0.0
        %3634 = vmatprep.subr.mxu0 0.0
        %3635 = vmatpush1.msra.mxu0 0.0
        %3636 = vmatprep.subr.mxu0 0.0
        %3637 = vmatpush1.msra.mxu0 0.0
        %3638 = vmatprep.subr.mxu0 0.0
        %3639 = vmatpush1.msra.mxu0 0.0
        %3640 = vmatprep.subr.mxu0 0.0
        %3641 = vmatpush1.msra.mxu0 0.0
        %3642 = vmatprep.subr.mxu0 0.0
        %3643 = vmatpush1.msra.mxu0 0.0
        %3644 = vmatprep.subr.mxu0 0.0
        %3645 = vmatpush1.msra.mxu0 0.0
        %3646 = vmatprep.subr.mxu0 0.0
        %3647 = vmatpush1.msra.mxu0 0.0
        %3648 = vmatprep.mubr.f32.mxu0 0.0
        %3649 = vmatmul.mubr.f32.gmra.mrb[0].mxu0 %v3582
        %v3650 = vpop.f32.mrb[0].mxu0
        %v3651 = vadd.f32 0.0, %v3650
        %v3652 = vpop.f32.mrb[0].mxu0
        %3653 = vdwg.mxu0
        %3654 = vrot.lane.b32.xlu0 %v3338, 120
        %v3655 = vpop.permute.xlu0 %3654
        %3656 = vrot.lane.b32.xlu0 %v3414, 120
        %v3657 = vpop.permute.xlu0 %3656
        %v3658 = vsel %vm731, %v3655, 0
        %v3660 = vsel %vm731, %v3657, 0
        %3662 = vmatprep.subr.mxu0 0.0
        %3663 = vmatpush1.xpose.msra.mxu0 %v3660
        %3664 = vmatprep.subr.mxu0 0.0
        %3665 = vmatpush1.xpose.msra.mxu0 0.0
        %3666 = vmatprep.subr.mxu0 0.0
        %3667 = vmatpush1.xpose.msra.mxu0 0.0
        %3668 = vmatprep.subr.mxu0 0.0
        %3669 = vmatpush1.xpose.msra.mxu0 0.0
        %3670 = vmatprep.subr.mxu0 0.0
        %3671 = vmatpush1.xpose.msra.mxu0 0.0
        %3672 = vmatprep.subr.mxu0 0.0
        %3673 = vmatpush1.xpose.msra.mxu0 0.0
        %3674 = vmatprep.subr.mxu0 0.0
        %3675 = vmatpush1.xpose.msra.mxu0 0.0
        %3676 = vmatprep.subr.mxu0 0.0
        %3677 = vmatpush1.xpose.msra.mxu0 0.0
        %3678 = vmatprep.subr.mxu0 0.0
        %3679 = vmatpush1.xpose.msra.mxu0 0.0
        %3680 = vmatprep.subr.mxu0 0.0
        %3681 = vmatpush1.xpose.msra.mxu0 0.0
        %3682 = vmatprep.subr.mxu0 0.0
        %3683 = vmatpush1.xpose.msra.mxu0 0.0
        %3684 = vmatprep.subr.mxu0 0.0
        %3685 = vmatpush1.xpose.msra.mxu0 0.0
        %3686 = vmatprep.subr.mxu0 0.0
        %3687 = vmatpush1.xpose.msra.mxu0 0.0
        %3688 = vmatprep.subr.mxu0 0.0
        %3689 = vmatpush1.xpose.msra.mxu0 0.0
        %3690 = vmatprep.subr.mxu0 0.0
        %3691 = vmatpush1.xpose.msra.mxu0 0.0
        %3692 = vmatprep.subr.mxu0 0.0
        %3693 = vmatpush1.xpose.msra.mxu0 0.0
        %3694 = vmatprep.subr.mxu0 0.0
        %3695 = vmatpush1.xpose.msra.mxu0 0.0
        %3696 = vmatprep.subr.mxu0 0.0
        %3697 = vmatpush1.xpose.msra.mxu0 0.0
        %3698 = vmatprep.subr.mxu0 0.0
        %3699 = vmatpush1.xpose.msra.mxu0 0.0
        %3700 = vmatprep.subr.mxu0 0.0
        %3701 = vmatpush1.xpose.msra.mxu0 0.0
        %3702 = vmatprep.subr.mxu0 0.0
        %3703 = vmatpush1.xpose.msra.mxu0 0.0
        %3704 = vmatprep.subr.mxu0 0.0
        %3705 = vmatpush1.xpose.msra.mxu0 0.0
        %3706 = vmatprep.subr.mxu0 0.0
        %3707 = vmatpush1.xpose.msra.mxu0 0.0
        %3708 = vmatprep.subr.mxu0 0.0
        %3709 = vmatpush1.xpose.msra.mxu0 0.0
        %3710 = vmatprep.subr.mxu0 0.0
        %3711 = vmatpush1.xpose.msra.mxu0 0.0
        %3712 = vmatprep.subr.mxu0 0.0
        %3713 = vmatpush1.xpose.msra.mxu0 0.0
        %3714 = vmatprep.subr.mxu0 0.0
        %3715 = vmatpush1.xpose.msra.mxu0 0.0
        %3716 = vmatprep.subr.mxu0 0.0
        %3717 = vmatpush1.xpose.msra.mxu0 0.0
        %3718 = vmatprep.subr.mxu0 0.0
        %3719 = vmatpush1.xpose.msra.mxu0 0.0
        %3720 = vmatprep.subr.mxu0 0.0
        %3721 = vmatpush1.xpose.msra.mxu0 0.0
        %3722 = vmatprep.subr.mxu0 0.0
        %3723 = vmatpush1.xpose.msra.mxu0 0.0
        %3724 = vmatprep.subr.mxu0 0.0
        %3725 = vmatpush1.xpose.msra.mxu0 0.0
        %3726 = vmatprep.mubr.f32.mxu0 0.0
        %3727 = vmatmul.mubr.f32.gmra.mrb[0].mxu0 %v3658
        %v3728 = vpop.f32.mrb[0].mxu0
        %v3729 = vadd.f32 0.0, %v3728
        %v3730 = vpop.f32.mrb[0].mxu0
        %3731 = vdwg.mxu0
        %v3732 = vmul.f32 %v3729, 0.35355338
        %v3733 = vsel %vm731, %v3732, -inf
        %3734 = vmax.xlane.f32.xlu0 %v3733
        %v3735 = vpop.xlane.xlu0 %3734
        %v3736 = vsub.f32 %v3732, %v3735
        %v3737 = vmul.f32 %v3736, 1.442695
        %v3738 = vpow.pop %v3737
        %v3739 = vsel %vm731, %v3738, 0.0
        %3740 = vadd.xlane.f32.xlu0 %v3739
        %v3741 = vpop.xlane.xlu0 %3740
        %v3742 = vrcp.pop %v3741
        %v3743 = vmul.f32 %v3738, %v3742
        %3745 = vrot.lane.b32.xlu0 %v3490, 120
        %v3746 = vpop.permute.xlu0 %3745
        %v3749 = vsel %vm731, %v3743, 0
        %3751 = vmatprep.subr.mxu0 0.0
        %3752 = vmatpush1.msra.mxu0 %v3746
        %3753 = vmatprep.subr.mxu0 0.0
        %3754 = vmatpush1.msra.mxu0 0.0
        %3755 = vmatprep.subr.mxu0 0.0
        %3756 = vmatpush1.msra.mxu0 0.0
        %3757 = vmatprep.subr.mxu0 0.0
        %3758 = vmatpush1.msra.mxu0 0.0
        %3759 = vmatprep.subr.mxu0 0.0
        %3760 = vmatpush1.msra.mxu0 0.0
        %3761 = vmatprep.subr.mxu0 0.0
        %3762 = vmatpush1.msra.mxu0 0.0
        %3763 = vmatprep.subr.mxu0 0.0
        %3764 = vmatpush1.msra.mxu0 0.0
        %3765 = vmatprep.subr.mxu0 0.0
        %3766 = vmatpush1.msra.mxu0 0.0
        %3767 = vmatprep.subr.mxu0 0.0
        %3768 = vmatpush1.msra.mxu0 0.0
        %3769 = vmatprep.subr.mxu0 0.0
        %3770 = vmatpush1.msra.mxu0 0.0
        %3771 = vmatprep.subr.mxu0 0.0
        %3772 = vmatpush1.msra.mxu0 0.0
        %3773 = vmatprep.subr.mxu0 0.0
        %3774 = vmatpush1.msra.mxu0 0.0
        %3775 = vmatprep.subr.mxu0 0.0
        %3776 = vmatpush1.msra.mxu0 0.0
        %3777 = vmatprep.subr.mxu0 0.0
        %3778 = vmatpush1.msra.mxu0 0.0
        %3779 = vmatprep.subr.mxu0 0.0
        %3780 = vmatpush1.msra.mxu0 0.0
        %3781 = vmatprep.subr.mxu0 0.0
        %3782 = vmatpush1.msra.mxu0 0.0
        %3783 = vmatprep.subr.mxu0 0.0
        %3784 = vmatpush1.msra.mxu0 0.0
        %3785 = vmatprep.subr.mxu0 0.0
        %3786 = vmatpush1.msra.mxu0 0.0
        %3787 = vmatprep.subr.mxu0 0.0
        %3788 = vmatpush1.msra.mxu0 0.0
        %3789 = vmatprep.subr.mxu0 0.0
        %3790 = vmatpush1.msra.mxu0 0.0
        %3791 = vmatprep.subr.mxu0 0.0
        %3792 = vmatpush1.msra.mxu0 0.0
        %3793 = vmatprep.subr.mxu0 0.0
        %3794 = vmatpush1.msra.mxu0 0.0
        %3795 = vmatprep.subr.mxu0 0.0
        %3796 = vmatpush1.msra.mxu0 0.0
        %3797 = vmatprep.subr.mxu0 0.0
        %3798 = vmatpush1.msra.mxu0 0.0
        %3799 = vmatprep.subr.mxu0 0.0
        %3800 = vmatpush1.msra.mxu0 0.0
        %3801 = vmatprep.subr.mxu0 0.0
        %3802 = vmatpush1.msra.mxu0 0.0
        %3803 = vmatprep.subr.mxu0 0.0
        %3804 = vmatpush1.msra.mxu0 0.0
        %3805 = vmatprep.subr.mxu0 0.0
        %3806 = vmatpush1.msra.mxu0 0.0
        %3807 = vmatprep.subr.mxu0 0.0
        %3808 = vmatpush1.msra.mxu0 0.0
        %3809 = vmatprep.subr.mxu0 0.0
        %3810 = vmatpush1.msra.mxu0 0.0
        %3811 = vmatprep.subr.mxu0 0.0
        %3812 = vmatpush1.msra.mxu0 0.0
        %3813 = vmatprep.subr.mxu0 0.0
        %3814 = vmatpush1.msra.mxu0 0.0
        %3815 = vmatprep.mubr.f32.mxu0 0.0
        %3816 = vmatmul.mubr.f32.gmra.mrb[0].mxu0 %v3749
        %v3817 = vpop.f32.mrb[0].mxu0
        %v3818 = vadd.f32 0.0, %v3817
        %v3819 = vpop.f32.mrb[0].mxu0
        %3820 = vdwg.mxu0
        %v3822 = vsel %vm731, %v3818, 0
        %3824 = vmatprep.subr.mxu0 0.0
        %3825 = vmatpush1.msra.mxu0 %v3251
        %3826 = vmatprep.subr.mxu0 0.0
        %3827 = vmatpush1.msra.mxu0 0.0
        %3828 = vmatprep.subr.mxu0 0.0
        %3829 = vmatpush1.msra.mxu0 0.0
        %3830 = vmatprep.subr.mxu0 0.0
        %3831 = vmatpush1.msra.mxu0 0.0
        %3832 = vmatprep.subr.mxu0 0.0
        %3833 = vmatpush1.msra.mxu0 0.0
        %3834 = vmatprep.subr.mxu0 0.0
        %3835 = vmatpush1.msra.mxu0 0.0
        %3836 = vmatprep.subr.mxu0 0.0
        %3837 = vmatpush1.msra.mxu0 0.0
        %3838 = vmatprep.subr.mxu0 0.0
        %3839 = vmatpush1.msra.mxu0 0.0
        %3840 = vmatprep.subr.mxu0 0.0
        %3841 = vmatpush1.msra.mxu0 0.0
        %3842 = vmatprep.subr.mxu0 0.0
        %3843 = vmatpush1.msra.mxu0 0.0
        %3844 = vmatprep.subr.mxu0 0.0
        %3845 = vmatpush1.msra.mxu0 0.0
        %3846 = vmatprep.subr.mxu0 0.0
        %3847 = vmatpush1.msra.mxu0 0.0
        %3848 = vmatprep.subr.mxu0 0.0
        %3849 = vmatpush1.msra.mxu0 0.0
        %3850 = vmatprep.subr.mxu0 0.0
        %3851 = vmatpush1.msra.mxu0 0.0
        %3852 = vmatprep.subr.mxu0 0.0
        %3853 = vmatpush1.msra.mxu0 0.0
        %3854 = vmatprep.subr.mxu0 0.0
        %3855 = vmatpush1.msra.mxu0 0.0
        %3856 = vmatprep.subr.mxu0 0.0
        %3857 = vmatpush1.msra.mxu0 0.0
        %3858 = vmatprep.subr.mxu0 0.0
        %3859 = vmatpush1.msra.mxu0 0.0
        %3860 = vmatprep.subr.mxu0 0.0
        %3861 = vmatpush1.msra.mxu0 0.0
        %3862 = vmatprep.subr.mxu0 0.0
        %3863 = vmatpush1.msra.mxu0 0.0
        %3864 = vmatprep.subr.mxu0 0.0
        %3865 = vmatpush1.msra.mxu0 0.0
        %3866 = vmatprep.subr.mxu0 0.0
        %3867 = vmatpush1.msra.mxu0 0.0
        %3868 = vmatprep.subr.mxu0 0.0
        %3869 = vmatpush1.msra.mxu0 0.0
        %3870 = vmatprep.subr.mxu0 0.0
        %3871 = vmatpush1.msra.mxu0 0.0
        %3872 = vmatprep.subr.mxu0 0.0
        %3873 = vmatpush1.msra.mxu0 0.0
        %3874 = vmatprep.subr.mxu0 0.0
        %3875 = vmatpush1.msra.mxu0 0.0
        %3876 = vmatprep.subr.mxu0 0.0
        %3877 = vmatpush1.msra.mxu0 0.0
        %3878 = vmatprep.subr.mxu0 0.0
        %3879 = vmatpush1.msra.mxu0 0.0
        %3880 = vmatprep.subr.mxu0 0.0
        %3881 = vmatpush1.msra.mxu0 0.0
        %3882 = vmatprep.subr.mxu0 0.0
        %3883 = vmatpush1.msra.mxu0 0.0
        %3884 = vmatprep.subr.mxu0 0.0
        %3885 = vmatpush1.msra.mxu0 0.0
        %3886 = vmatprep.subr.mxu0 0.0
        %3887 = vmatpush1.msra.mxu0 0.0
        %3888 = vmatprep.mubr.f32.mxu0 0.0
        %3889 = vmatmul.mubr.f32.gmra.mrb[0].mxu0 %v3822
        %v3890 = vpop.f32.mrb[0].mxu0
        %v3891 = vadd.f32 0.0, %v3890
        %v3892 = vpop.f32.mrb[0].mxu0
        %3893 = vdwg.mxu0
        %v3895 = vsel %vm731, %v3651, 0
        %3897 = vmatprep.subr.mxu0 0.0
        %3898 = vmatpush1.msra.mxu0 %v3250
        %3899 = vmatprep.subr.mxu0 0.0
        %3900 = vmatpush1.msra.mxu0 0.0
        %3901 = vmatprep.subr.mxu0 0.0
        %3902 = vmatpush1.msra.mxu0 0.0
        %3903 = vmatprep.subr.mxu0 0.0
        %3904 = vmatpush1.msra.mxu0 0.0
        %3905 = vmatprep.subr.mxu0 0.0
        %3906 = vmatpush1.msra.mxu0 0.0
        %3907 = vmatprep.subr.mxu0 0.0
        %3908 = vmatpush1.msra.mxu0 0.0
        %3909 = vmatprep.subr.mxu0 0.0
        %3910 = vmatpush1.msra.mxu0 0.0
        %3911 = vmatprep.subr.mxu0 0.0
        %3912 = vmatpush1.msra.mxu0 0.0
        %3913 = vmatprep.subr.mxu0 0.0
        %3914 = vmatpush1.msra.mxu0 0.0
        %3915 = vmatprep.subr.mxu0 0.0
        %3916 = vmatpush1.msra.mxu0 0.0
        %3917 = vmatprep.subr.mxu0 0.0
        %3918 = vmatpush1.msra.mxu0 0.0
        %3919 = vmatprep.subr.mxu0 0.0
        %3920 = vmatpush1.msra.mxu0 0.0
        %3921 = vmatprep.subr.mxu0 0.0
        %3922 = vmatpush1.msra.mxu0 0.0
        %3923 = vmatprep.subr.mxu0 0.0
        %3924 = vmatpush1.msra.mxu0 0.0
        %3925 = vmatprep.subr.mxu0 0.0
        %3926 = vmatpush1.msra.mxu0 0.0
        %3927 = vmatprep.subr.mxu0 0.0
        %3928 = vmatpush1.msra.mxu0 0.0
        %3929 = vmatprep.subr.mxu0 0.0
        %3930 = vmatpush1.msra.mxu0 0.0
        %3931 = vmatprep.subr.mxu0 0.0
        %3932 = vmatpush1.msra.mxu0 0.0
        %3933 = vmatprep.subr.mxu0 0.0
        %3934 = vmatpush1.msra.mxu0 0.0
        %3935 = vmatprep.subr.mxu0 0.0
        %3936 = vmatpush1.msra.mxu0 0.0
        %3937 = vmatprep.subr.mxu0 0.0
        %3938 = vmatpush1.msra.mxu0 0.0
        %3939 = vmatprep.subr.mxu0 0.0
        %3940 = vmatpush1.msra.mxu0 0.0
        %3941 = vmatprep.subr.mxu0 0.0
        %3942 = vmatpush1.msra.mxu0 0.0
        %3943 = vmatprep.subr.mxu0 0.0
        %3944 = vmatpush1.msra.mxu0 0.0
        %3945 = vmatprep.subr.mxu0 0.0
        %3946 = vmatpush1.msra.mxu0 0.0
        %3947 = vmatprep.subr.mxu0 0.0
        %3948 = vmatpush1.msra.mxu0 0.0
        %3949 = vmatprep.subr.mxu0 0.0
        %3950 = vmatpush1.msra.mxu0 0.0
        %3951 = vmatprep.subr.mxu0 0.0
        %3952 = vmatpush1.msra.mxu0 0.0
        %3953 = vmatprep.subr.mxu0 0.0
        %3954 = vmatpush1.msra.mxu0 0.0
        %3955 = vmatprep.subr.mxu0 0.0
        %3956 = vmatpush1.msra.mxu0 0.0
        %3957 = vmatprep.subr.mxu0 0.0
        %3958 = vmatpush1.msra.mxu0 0.0
        %3959 = vmatprep.subr.mxu0 0.0
        %3960 = vmatpush1.msra.mxu0 0.0
        %3961 = vmatprep.mubr.f32.mxu0 0.0
        %3962 = vmatmul.mubr.f32.gmra.mrb[0].mxu0 %v3895
        %v3963 = vpop.f32.mrb[0].mxu0
        %v3964 = vadd.f32 %v3891, %v3963
        %v3965 = vpop.f32.mrb[0].mxu0
        %3966 = vdwg.mxu0
        %3967 = vrot.lane.b32.xlu0 %v3338, 112
        %v3968 = vpop.permute.xlu0 %3967
        %3969 = vrot.lane.b32.xlu0 %v3414, 112
        %v3970 = vpop.permute.xlu0 %3969
        %v3971 = vsel %vm731, %v3968, 0
        %v3973 = vsel %vm731, %v3970, 0
        %3975 = vmatprep.subr.mxu0 0.0
        %3976 = vmatpush1.xpose.msra.mxu0 %v3973
        %3977 = vmatprep.subr.mxu0 0.0
        %3978 = vmatpush1.xpose.msra.mxu0 0.0
        %3979 = vmatprep.subr.mxu0 0.0
        %3980 = vmatpush1.xpose.msra.mxu0 0.0
        %3981 = vmatprep.subr.mxu0 0.0
        %3982 = vmatpush1.xpose.msra.mxu0 0.0
        %3983 = vmatprep.subr.mxu0 0.0
        %3984 = vmatpush1.xpose.msra.mxu0 0.0
        %3985 = vmatprep.subr.mxu0 0.0
        %3986 = vmatpush1.xpose.msra.mxu0 0.0
        %3987 = vmatprep.subr.mxu0 0.0
        %3988 = vmatpush1.xpose.msra.mxu0 0.0
        %3989 = vmatprep.subr.mxu0 0.0
        %3990 = vmatpush1.xpose.msra.mxu0 0.0
        %3991 = vmatprep.subr.mxu0 0.0
        %3992 = vmatpush1.xpose.msra.mxu0 0.0
        %3993 = vmatprep.subr.mxu0 0.0
        %3994 = vmatpush1.xpose.msra.mxu0 0.0
        %3995 = vmatprep.subr.mxu0 0.0
        %3996 = vmatpush1.xpose.msra.mxu0 0.0
        %3997 = vmatprep.subr.mxu0 0.0
        %3998 = vmatpush1.xpose.msra.mxu0 0.0
        %3999 = vmatprep.subr.mxu0 0.0
        %4000 = vmatpush1.xpose.msra.mxu0 0.0
        %4001 = vmatprep.subr.mxu0 0.0
        %4002 = vmatpush1.xpose.msra.mxu0 0.0
        %4003 = vmatprep.subr.mxu0 0.0
        %4004 = vmatpush1.xpose.msra.mxu0 0.0
        %4005 = vmatprep.subr.mxu0 0.0
        %4006 = vmatpush1.xpose.msra.mxu0 0.0
        %4007 = vmatprep.subr.mxu0 0.0
        %4008 = vmatpush1.xpose.msra.mxu0 0.0
        %4009 = vmatprep.subr.mxu0 0.0
        %4010 = vmatpush1.xpose.msra.mxu0 0.0
        %4011 = vmatprep.subr.mxu0 0.0
        %4012 = vmatpush1.xpose.msra.mxu0 0.0
        %4013 = vmatprep.subr.mxu0 0.0
        %4014 = vmatpush1.xpose.msra.mxu0 0.0
        %4015 = vmatprep.subr.mxu0 0.0
        %4016 = vmatpush1.xpose.msra.mxu0 0.0
        %4017 = vmatprep.subr.mxu0 0.0
        %4018 = vmatpush1.xpose.msra.mxu0 0.0
        %4019 = vmatprep.subr.mxu0 0.0
        %4020 = vmatpush1.xpose.msra.mxu0 0.0
        %4021 = vmatprep.subr.mxu0 0.0
        %4022 = vmatpush1.xpose.msra.mxu0 0.0
        %4023 = vmatprep.subr.mxu0 0.0
        %4024 = vmatpush1.xpose.msra.mxu0 0.0
        %4025 = vmatprep.subr.mxu0 0.0
        %4026 = vmatpush1.xpose.msra.mxu0 0.0
        %4027 = vmatprep.subr.mxu0 0.0
        %4028 = vmatpush1.xpose.msra.mxu0 0.0
        %4029 = vmatprep.subr.mxu0 0.0
        %4030 = vmatpush1.xpose.msra.mxu0 0.0
        %4031 = vmatprep.subr.mxu0 0.0
        %4032 = vmatpush1.xpose.msra.mxu0 0.0
        %4033 = vmatprep.subr.mxu0 0.0
        %4034 = vmatpush1.xpose.msra.mxu0 0.0
        %4035 = vmatprep.subr.mxu0 0.0
        %4036 = vmatpush1.xpose.msra.mxu0 0.0
        %4037 = vmatprep.subr.mxu0 0.0
        %4038 = vmatpush1.xpose.msra.mxu0 0.0
        %4039 = vmatprep.mubr.f32.mxu0 0.0
        %4040 = vmatmul.mubr.f32.gmra.mrb[0].mxu0 %v3971
        %v4041 = vpop.f32.mrb[0].mxu0
        %v4042 = vadd.f32 0.0, %v4041
        %v4043 = vpop.f32.mrb[0].mxu0
        %4044 = vdwg.mxu0
        %v4045 = vmul.f32 %v4042, 0.35355338
        %v4046 = vsel %vm731, %v4045, -inf
        %4047 = vmax.xlane.f32.xlu0 %v4046
        %v4048 = vpop.xlane.xlu0 %4047
        %v4049 = vsub.f32 %v4045, %v4048
        %v4050 = vmul.f32 %v4049, 1.442695
        %v4051 = vpow.pop %v4050
        %v4052 = vsel %vm731, %v4051, 0.0
        %4053 = vadd.xlane.f32.xlu0 %v4052
        %v4054 = vpop.xlane.xlu0 %4053
        %v4055 = vrcp.pop %v4054
        %v4056 = vmul.f32 %v4051, %v4055
        %4057 = vrot.lane.b32.xlu0 %v3490, 112
        %v4058 = vpop.permute.xlu0 %4057
        %v4061 = vsel %vm731, %v4056, 0
        %4063 = vmatprep.subr.mxu0 0.0
        %4064 = vmatpush1.msra.mxu0 %v4058
        %4065 = vmatprep.subr.mxu0 0.0
        %4066 = vmatpush1.msra.mxu0 0.0
        %4067 = vmatprep.subr.mxu0 0.0
        %4068 = vmatpush1.msra.mxu0 0.0
        %4069 = vmatprep.subr.mxu0 0.0
        %4070 = vmatpush1.msra.mxu0 0.0
        %4071 = vmatprep.subr.mxu0 0.0
        %4072 = vmatpush1.msra.mxu0 0.0
        %4073 = vmatprep.subr.mxu0 0.0
        %4074 = vmatpush1.msra.mxu0 0.0
        %4075 = vmatprep.subr.mxu0 0.0
        %4076 = vmatpush1.msra.mxu0 0.0
        %4077 = vmatprep.subr.mxu0 0.0
        %4078 = vmatpush1.msra.mxu0 0.0
        %4079 = vmatprep.subr.mxu0 0.0
        %4080 = vmatpush1.msra.mxu0 0.0
        %4081 = vmatprep.subr.mxu0 0.0
        %4082 = vmatpush1.msra.mxu0 0.0
        %4083 = vmatprep.subr.mxu0 0.0
        %4084 = vmatpush1.msra.mxu0 0.0
        %4085 = vmatprep.subr.mxu0 0.0
        %4086 = vmatpush1.msra.mxu0 0.0
        %4087 = vmatprep.subr.mxu0 0.0
        %4088 = vmatpush1.msra.mxu0 0.0
        %4089 = vmatprep.subr.mxu0 0.0
        %4090 = vmatpush1.msra.mxu0 0.0
        %4091 = vmatprep.subr.mxu0 0.0
        %4092 = vmatpush1.msra.mxu0 0.0
        %4093 = vmatprep.subr.mxu0 0.0
        %4094 = vmatpush1.msra.mxu0 0.0
        %4095 = vmatprep.subr.mxu0 0.0
        %4096 = vmatpush1.msra.mxu0 0.0
        %4097 = vmatprep.subr.mxu0 0.0
        %4098 = vmatpush1.msra.mxu0 0.0
        %4099 = vmatprep.subr.mxu0 0.0
        %4100 = vmatpush1.msra.mxu0 0.0
        %4101 = vmatprep.subr.mxu0 0.0
        %4102 = vmatpush1.msra.mxu0 0.0
        %4103 = vmatprep.subr.mxu0 0.0
        %4104 = vmatpush1.msra.mxu0 0.0
        %4105 = vmatprep.subr.mxu0 0.0
        %4106 = vmatpush1.msra.mxu0 0.0
        %4107 = vmatprep.subr.mxu0 0.0
        %4108 = vmatpush1.msra.mxu0 0.0
        %4109 = vmatprep.subr.mxu0 0.0
        %4110 = vmatpush1.msra.mxu0 0.0
        %4111 = vmatprep.subr.mxu0 0.0
        %4112 = vmatpush1.msra.mxu0 0.0
        %4113 = vmatprep.subr.mxu0 0.0
        %4114 = vmatpush1.msra.mxu0 0.0
        %4115 = vmatprep.subr.mxu0 0.0
        %4116 = vmatpush1.msra.mxu0 0.0
        %4117 = vmatprep.subr.mxu0 0.0
        %4118 = vmatpush1.msra.mxu0 0.0
        %4119 = vmatprep.subr.mxu0 0.0
        %4120 = vmatpush1.msra.mxu0 0.0
        %4121 = vmatprep.subr.mxu0 0.0
        %4122 = vmatpush1.msra.mxu0 0.0
        %4123 = vmatprep.subr.mxu0 0.0
        %4124 = vmatpush1.msra.mxu0 0.0
        %4125 = vmatprep.subr.mxu0 0.0
        %4126 = vmatpush1.msra.mxu0 0.0
        %4127 = vmatprep.mubr.f32.mxu0 0.0
        %4128 = vmatmul.mubr.f32.gmra.mrb[0].mxu0 %v4061
        %v4129 = vpop.f32.mrb[0].mxu0
        %v4130 = vadd.f32 0.0, %v4129
        %v4131 = vpop.f32.mrb[0].mxu0
        %4132 = vdwg.mxu0
        %v4134 = vsel %vm731, %v4130, 0
        %4136 = vmatprep.subr.mxu0 0.0
        %4137 = vmatpush1.msra.mxu0 %v3252
        %4138 = vmatprep.subr.mxu0 0.0
        %4139 = vmatpush1.msra.mxu0 0.0
        %4140 = vmatprep.subr.mxu0 0.0
        %4141 = vmatpush1.msra.mxu0 0.0
        %4142 = vmatprep.subr.mxu0 0.0
        %4143 = vmatpush1.msra.mxu0 0.0
        %4144 = vmatprep.subr.mxu0 0.0
        %4145 = vmatpush1.msra.mxu0 0.0
        %4146 = vmatprep.subr.mxu0 0.0
        %4147 = vmatpush1.msra.mxu0 0.0
        %4148 = vmatprep.subr.mxu0 0.0
        %4149 = vmatpush1.msra.mxu0 0.0
        %4150 = vmatprep.subr.mxu0 0.0
        %4151 = vmatpush1.msra.mxu0 0.0
        %4152 = vmatprep.subr.mxu0 0.0
        %4153 = vmatpush1.msra.mxu0 0.0
        %4154 = vmatprep.subr.mxu0 0.0
        %4155 = vmatpush1.msra.mxu0 0.0
        %4156 = vmatprep.subr.mxu0 0.0
        %4157 = vmatpush1.msra.mxu0 0.0
        %4158 = vmatprep.subr.mxu0 0.0
        %4159 = vmatpush1.msra.mxu0 0.0
        %4160 = vmatprep.subr.mxu0 0.0
        %4161 = vmatpush1.msra.mxu0 0.0
        %4162 = vmatprep.subr.mxu0 0.0
        %4163 = vmatpush1.msra.mxu0 0.0
        %4164 = vmatprep.subr.mxu0 0.0
        %4165 = vmatpush1.msra.mxu0 0.0
        %4166 = vmatprep.subr.mxu0 0.0
        %4167 = vmatpush1.msra.mxu0 0.0
        %4168 = vmatprep.subr.mxu0 0.0
        %4169 = vmatpush1.msra.mxu0 0.0
        %4170 = vmatprep.subr.mxu0 0.0
        %4171 = vmatpush1.msra.mxu0 0.0
        %4172 = vmatprep.subr.mxu0 0.0
        %4173 = vmatpush1.msra.mxu0 0.0
        %4174 = vmatprep.subr.mxu0 0.0
        %4175 = vmatpush1.msra.mxu0 0.0
        %4176 = vmatprep.subr.mxu0 0.0
        %4177 = vmatpush1.msra.mxu0 0.0
        %4178 = vmatprep.subr.mxu0 0.0
        %4179 = vmatpush1.msra.mxu0 0.0
        %4180 = vmatprep.subr.mxu0 0.0
        %4181 = vmatpush1.msra.mxu0 0.0
        %4182 = vmatprep.subr.mxu0 0.0
        %4183 = vmatpush1.msra.mxu0 0.0
        %4184 = vmatprep.subr.mxu0 0.0
        %4185 = vmatpush1.msra.mxu0 0.0
        %4186 = vmatprep.subr.mxu0 0.0
        %4187 = vmatpush1.msra.mxu0 0.0
        %4188 = vmatprep.subr.mxu0 0.0
        %4189 = vmatpush1.msra.mxu0 0.0
        %4190 = vmatprep.subr.mxu0 0.0
        %4191 = vmatpush1.msra.mxu0 0.0
        %4192 = vmatprep.subr.mxu0 0.0
        %4193 = vmatpush1.msra.mxu0 0.0
        %4194 = vmatprep.subr.mxu0 0.0
        %4195 = vmatpush1.msra.mxu0 0.0
        %4196 = vmatprep.subr.mxu0 0.0
        %4197 = vmatpush1.msra.mxu0 0.0
        %4198 = vmatprep.subr.mxu0 0.0
        %4199 = vmatpush1.msra.mxu0 0.0
        %4200 = vmatprep.mubr.f32.mxu0 0.0
        %4201 = vmatmul.mubr.f32.gmra.mrb[0].mxu0 %v4134
        %v4202 = vpop.f32.mrb[0].mxu0
        %v4203 = vadd.f32 0.0, %v4202
        %v4204 = vpop.f32.mrb[0].mxu0
        %4205 = vdwg.mxu0
        %v4206 = vadd.f32 %v3964, %v4203
        %4207 = vrot.lane.b32.xlu0 %v3338, 104
        %v4208 = vpop.permute.xlu0 %4207
        %4209 = vrot.lane.b32.xlu0 %v3414, 104
        %v4210 = vpop.permute.xlu0 %4209
        %v4211 = vsel %vm731, %v4208, 0
        %v4213 = vsel %vm731, %v4210, 0
        %4215 = vmatprep.subr.mxu0 0.0
        %4216 = vmatpush1.xpose.msra.mxu0 %v4213
        %4217 = vmatprep.subr.mxu0 0.0
        %4218 = vmatpush1.xpose.msra.mxu0 0.0
        %4219 = vmatprep.subr.mxu0 0.0
        %4220 = vmatpush1.xpose.msra.mxu0 0.0
        %4221 = vmatprep.subr.mxu0 0.0
        %4222 = vmatpush1.xpose.msra.mxu0 0.0
        %4223 = vmatprep.subr.mxu0 0.0
        %4224 = vmatpush1.xpose.msra.mxu0 0.0
        %4225 = vmatprep.subr.mxu0 0.0
        %4226 = vmatpush1.xpose.msra.mxu0 0.0
        %4227 = vmatprep.subr.mxu0 0.0
        %4228 = vmatpush1.xpose.msra.mxu0 0.0
        %4229 = vmatprep.subr.mxu0 0.0
        %4230 = vmatpush1.xpose.msra.mxu0 0.0
        %4231 = vmatprep.subr.mxu0 0.0
        %4232 = vmatpush1.xpose.msra.mxu0 0.0
        %4233 = vmatprep.subr.mxu0 0.0
        %4234 = vmatpush1.xpose.msra.mxu0 0.0
        %4235 = vmatprep.subr.mxu0 0.0
        %4236 = vmatpush1.xpose.msra.mxu0 0.0
        %4237 = vmatprep.subr.mxu0 0.0
        %4238 = vmatpush1.xpose.msra.mxu0 0.0
        %4239 = vmatprep.subr.mxu0 0.0
        %4240 = vmatpush1.xpose.msra.mxu0 0.0
        %4241 = vmatprep.subr.mxu0 0.0
        %4242 = vmatpush1.xpose.msra.mxu0 0.0
        %4243 = vmatprep.subr.mxu0 0.0
        %4244 = vmatpush1.xpose.msra.mxu0 0.0
        %4245 = vmatprep.subr.mxu0 0.0
        %4246 = vmatpush1.xpose.msra.mxu0 0.0
        %4247 = vmatprep.subr.mxu0 0.0
        %4248 = vmatpush1.xpose.msra.mxu0 0.0
        %4249 = vmatprep.subr.mxu0 0.0
        %4250 = vmatpush1.xpose.msra.mxu0 0.0
        %4251 = vmatprep.subr.mxu0 0.0
        %4252 = vmatpush1.xpose.msra.mxu0 0.0
        %4253 = vmatprep.subr.mxu0 0.0
        %4254 = vmatpush1.xpose.msra.mxu0 0.0
        %4255 = vmatprep.subr.mxu0 0.0
        %4256 = vmatpush1.xpose.msra.mxu0 0.0
        %4257 = vmatprep.subr.mxu0 0.0
        %4258 = vmatpush1.xpose.msra.mxu0 0.0
        %4259 = vmatprep.subr.mxu0 0.0
        %4260 = vmatpush1.xpose.msra.mxu0 0.0
        %4261 = vmatprep.subr.mxu0 0.0
        %4262 = vmatpush1.xpose.msra.mxu0 0.0
        %4263 = vmatprep.subr.mxu0 0.0
        %4264 = vmatpush1.xpose.msra.mxu0 0.0
        %4265 = vmatprep.subr.mxu0 0.0
        %4266 = vmatpush1.xpose.msra.mxu0 0.0
        %4267 = vmatprep.subr.mxu0 0.0
        %4268 = vmatpush1.xpose.msra.mxu0 0.0
        %4269 = vmatprep.subr.mxu0 0.0
        %4270 = vmatpush1.xpose.msra.mxu0 0.0
        %4271 = vmatprep.subr.mxu0 0.0
        %4272 = vmatpush1.xpose.msra.mxu0 0.0
        %4273 = vmatprep.subr.mxu0 0.0
        %4274 = vmatpush1.xpose.msra.mxu0 0.0
        %4275 = vmatprep.subr.mxu0 0.0
        %4276 = vmatpush1.xpose.msra.mxu0 0.0
        %4277 = vmatprep.subr.mxu0 0.0
        %4278 = vmatpush1.xpose.msra.mxu0 0.0
        %4279 = vmatprep.mubr.f32.mxu0 0.0
        %4280 = vmatmul.mubr.f32.gmra.mrb[0].mxu0 %v4211
        %v4281 = vpop.f32.mrb[0].mxu0
        %v4282 = vadd.f32 0.0, %v4281
        %v4283 = vpop.f32.mrb[0].mxu0
        %4284 = vdwg.mxu0
        %v4285 = vmul.f32 %v4282, 0.35355338
        %v4286 = vsel %vm731, %v4285, -inf
        %4287 = vmax.xlane.f32.xlu0 %v4286
        %v4288 = vpop.xlane.xlu0 %4287
        %v4289 = vsub.f32 %v4285, %v4288
        %v4290 = vmul.f32 %v4289, 1.442695
        %v4291 = vpow.pop %v4290
        %v4292 = vsel %vm731, %v4291, 0.0
        %4293 = vadd.xlane.f32.xlu0 %v4292
        %v4294 = vpop.xlane.xlu0 %4293
        %v4295 = vrcp.pop %v4294
        %v4296 = vmul.f32 %v4291, %v4295
        %4297 = vrot.lane.b32.xlu0 %v3490, 104
        %v4298 = vpop.permute.xlu0 %4297
        %v4301 = vsel %vm731, %v4296, 0
        %4303 = vmatprep.subr.mxu0 0.0
        %4304 = vmatpush1.msra.mxu0 %v4298
        %4305 = vmatprep.subr.mxu0 0.0
        %4306 = vmatpush1.msra.mxu0 0.0
        %4307 = vmatprep.subr.mxu0 0.0
        %4308 = vmatpush1.msra.mxu0 0.0
        %4309 = vmatprep.subr.mxu0 0.0
        %4310 = vmatpush1.msra.mxu0 0.0
        %4311 = vmatprep.subr.mxu0 0.0
        %4312 = vmatpush1.msra.mxu0 0.0
        %4313 = vmatprep.subr.mxu0 0.0
        %4314 = vmatpush1.msra.mxu0 0.0
        %4315 = vmatprep.subr.mxu0 0.0
        %4316 = vmatpush1.msra.mxu0 0.0
        %4317 = vmatprep.subr.mxu0 0.0
        %4318 = vmatpush1.msra.mxu0 0.0
        %4319 = vmatprep.subr.mxu0 0.0
        %4320 = vmatpush1.msra.mxu0 0.0
        %4321 = vmatprep.subr.mxu0 0.0
        %4322 = vmatpush1.msra.mxu0 0.0
        %4323 = vmatprep.subr.mxu0 0.0
        %4324 = vmatpush1.msra.mxu0 0.0
        %4325 = vmatprep.subr.mxu0 0.0
        %4326 = vmatpush1.msra.mxu0 0.0
        %4327 = vmatprep.subr.mxu0 0.0
        %4328 = vmatpush1.msra.mxu0 0.0
        %4329 = vmatprep.subr.mxu0 0.0
        %4330 = vmatpush1.msra.mxu0 0.0
        %4331 = vmatprep.subr.mxu0 0.0
        %4332 = vmatpush1.msra.mxu0 0.0
        %4333 = vmatprep.subr.mxu0 0.0
        %4334 = vmatpush1.msra.mxu0 0.0
        %4335 = vmatprep.subr.mxu0 0.0
        %4336 = vmatpush1.msra.mxu0 0.0
        %4337 = vmatprep.subr.mxu0 0.0
        %4338 = vmatpush1.msra.mxu0 0.0
        %4339 = vmatprep.subr.mxu0 0.0
        %4340 = vmatpush1.msra.mxu0 0.0
        %4341 = vmatprep.subr.mxu0 0.0
        %4342 = vmatpush1.msra.mxu0 0.0
        %4343 = vmatprep.subr.mxu0 0.0
        %4344 = vmatpush1.msra.mxu0 0.0
        %4345 = vmatprep.subr.mxu0 0.0
        %4346 = vmatpush1.msra.mxu0 0.0
        %4347 = vmatprep.subr.mxu0 0.0
        %4348 = vmatpush1.msra.mxu0 0.0
        %4349 = vmatprep.subr.mxu0 0.0
        %4350 = vmatpush1.msra.mxu0 0.0
        %4351 = vmatprep.subr.mxu0 0.0
        %4352 = vmatpush1.msra.mxu0 0.0
        %4353 = vmatprep.subr.mxu0 0.0
        %4354 = vmatpush1.msra.mxu0 0.0
        %4355 = vmatprep.subr.mxu0 0.0
        %4356 = vmatpush1.msra.mxu0 0.0
        %4357 = vmatprep.subr.mxu0 0.0
        %4358 = vmatpush1.msra.mxu0 0.0
        %4359 = vmatprep.subr.mxu0 0.0
        %4360 = vmatpush1.msra.mxu0 0.0
        %4361 = vmatprep.subr.mxu0 0.0
        %4362 = vmatpush1.msra.mxu0 0.0
        %4363 = vmatprep.subr.mxu0 0.0
        %4364 = vmatpush1.msra.mxu0 0.0
        %4365 = vmatprep.subr.mxu0 0.0
        %4366 = vmatpush1.msra.mxu0 0.0
        %4367 = vmatprep.mubr.f32.mxu0 0.0
        %4368 = vmatmul.mubr.f32.gmra.mrb[0].mxu0 %v4301
        %v4369 = vpop.f32.mrb[0].mxu0
        %v4370 = vadd.f32 0.0, %v4369
        %v4371 = vpop.f32.mrb[0].mxu0
        %4372 = vdwg.mxu0
        %v4374 = vsel %vm731, %v4370, 0
        %4376 = vmatprep.subr.mxu0 0.0
        %4377 = vmatpush1.msra.mxu0 %v3253
        %4378 = vmatprep.subr.mxu0 0.0
        %4379 = vmatpush1.msra.mxu0 0.0
        %4380 = vmatprep.subr.mxu0 0.0
        %4381 = vmatpush1.msra.mxu0 0.0
        %4382 = vmatprep.subr.mxu0 0.0
        %4383 = vmatpush1.msra.mxu0 0.0
        %4384 = vmatprep.subr.mxu0 0.0
        %4385 = vmatpush1.msra.mxu0 0.0
        %4386 = vmatprep.subr.mxu0 0.0
        %4387 = vmatpush1.msra.mxu0 0.0
        %4388 = vmatprep.subr.mxu0 0.0
        %4389 = vmatpush1.msra.mxu0 0.0
        %4390 = vmatprep.subr.mxu0 0.0
        %4391 = vmatpush1.msra.mxu0 0.0
        %4392 = vmatprep.subr.mxu0 0.0
        %4393 = vmatpush1.msra.mxu0 0.0
        %4394 = vmatprep.subr.mxu0 0.0
        %4395 = vmatpush1.msra.mxu0 0.0
        %4396 = vmatprep.subr.mxu0 0.0
        %4397 = vmatpush1.msra.mxu0 0.0
        %4398 = vmatprep.subr.mxu0 0.0
        %4399 = vmatpush1.msra.mxu0 0.0
        %4400 = vmatprep.subr.mxu0 0.0
        %4401 = vmatpush1.msra.mxu0 0.0
        %4402 = vmatprep.subr.mxu0 0.0
        %4403 = vmatpush1.msra.mxu0 0.0
        %4404 = vmatprep.subr.mxu0 0.0
        %4405 = vmatpush1.msra.mxu0 0.0
        %4406 = vmatprep.subr.mxu0 0.0
        %4407 = vmatpush1.msra.mxu0 0.0
        %4408 = vmatprep.subr.mxu0 0.0
        %4409 = vmatpush1.msra.mxu0 0.0
        %4410 = vmatprep.subr.mxu0 0.0
        %4411 = vmatpush1.msra.mxu0 0.0
        %4412 = vmatprep.subr.mxu0 0.0
        %4413 = vmatpush1.msra.mxu0 0.0
        %4414 = vmatprep.subr.mxu0 0.0
        %4415 = vmatpush1.msra.mxu0 0.0
        %4416 = vmatprep.subr.mxu0 0.0
        %4417 = vmatpush1.msra.mxu0 0.0
        %4418 = vmatprep.subr.mxu0 0.0
        %4419 = vmatpush1.msra.mxu0 0.0
        %4420 = vmatprep.subr.mxu0 0.0
        %4421 = vmatpush1.msra.mxu0 0.0
        %4422 = vmatprep.subr.mxu0 0.0
        %4423 = vmatpush1.msra.mxu0 0.0
        %4424 = vmatprep.subr.mxu0 0.0
        %4425 = vmatpush1.msra.mxu0 0.0
        %4426 = vmatprep.subr.mxu0 0.0
        %4427 = vmatpush1.msra.mxu0 0.0
        %4428 = vmatprep.subr.mxu0 0.0
        %4429 = vmatpush1.msra.mxu0 0.0
        %4430 = vmatprep.subr.mxu0 0.0
        %4431 = vmatpush1.msra.mxu0 0.0
        %4432 = vmatprep.subr.mxu0 0.0
        %4433 = vmatpush1.msra.mxu0 0.0
        %4434 = vmatprep.subr.mxu0 0.0
        %4435 = vmatpush1.msra.mxu0 0.0
        %4436 = vmatprep.subr.mxu0 0.0
        %4437 = vmatpush1.msra.mxu0 0.0
        %4438 = vmatprep.subr.mxu0 0.0
        %4439 = vmatpush1.msra.mxu0 0.0
        %4440 = vmatprep.mubr.f32.mxu0 0.0
        %4441 = vmatmul.mubr.f32.gmra.mrb[0].mxu0 %v4374
        %v4442 = vpop.f32.mrb[0].mxu0
        %v4443 = vadd.f32 0.0, %v4442
        %v4444 = vpop.f32.mrb[0].mxu0
        %4445 = vdwg.mxu0
        %v4446 = vadd.f32 %v4206, %v4443
        %v4448 = vlaneseq
        %v4449 = vshrl.u32 %v4448, 7
        %v4450 = vsub.s32 0, %v4449
        %v4451 = vrot.slane %v3261, %v4450
        %v4453 = vadd.f32 %v4446, %v4451
        %v4454 = vadd.f32 %v3202, %v4453
        %s4455 = scalar_lea.vmem %s4, 4
        %v4456 = vld [vmem:[%s4455] sm:$0x1]
        %s4457 = scalar_lea.vmem %s5, 4
        %v4458 = vld [vmem:[%s4457] sm:$0x1]
        %v4459 = vsel %vm445, %v4454, 0.0
        %4460 = vadd.xlane.f32.xlu0 %v4459
        %v4461 = vpop.xlane.xlu0 %4460
        %v4462 = vmul.f32 %v4461, %v449
        %v4463 = vsub.f32 %v4454, %v4462
        %v4464 = vmul.f32 %v4463, %v4463
        %v4465 = vsel %vm445, %v4464, 0.0
        %4466 = vadd.xlane.f32.xlu0 %v4465
        %v4467 = vpop.xlane.xlu0 %4466
        %v4468 = vmul.f32 %v4467, %v449
        %v4469 = vadd.f32 %v4468, 1e-05
        %v4470 = vrsqrt.pop %v4469
        %v4471 = vmul.f32 %v4463, %v4470
        %v4473 = vlaneseq
        %v4474 = vshrl.u32 %v4473, 7
        %v4475 = vsub.s32 0, %v4474
        %v4476 = vrot.slane %v4456, %v4475
        %v4478 = vmul.f32 %v4471, %v4476
        %v4480 = vlaneseq
        %v4481 = vshrl.u32 %v4480, 7
        %v4482 = vsub.s32 0, %v4481
        %v4483 = vrot.slane %v4458, %v4482
        %v4485 = vadd.f32 %v4478, %v4483
        %s4486 = scalar_lea.vmem %s2, 384
        %v4487 = vld [vmem:[%s4486] sm:$0xff]
        %v4488 = vld [vmem:[%s4486 + $0x8] sm:$0xff]
        %v4489 = vld [vmem:[%s4486 + $0x10] sm:$0xff]
        %v4490 = vld [vmem:[%s4486 + $0x18] sm:$0xff]
        %s4491 = scalar_lea.vmem %s2, 416
        %v4492 = vld [vmem:[%s4491] sm:$0xff]
        %v4493 = vld [vmem:[%s4491 + $0x8] sm:$0xff]
        %v4494 = vld [vmem:[%s4491 + $0x10] sm:$0xff]
        %v4495 = vld [vmem:[%s4491 + $0x18] sm:$0xff]
        %s4496 = scalar_lea.vmem %s2, 448
        %v4497 = vld [vmem:[%s4496] sm:$0xff]
        %v4498 = vld [vmem:[%s4496 + $0x8] sm:$0xff]
        %v4499 = vld [vmem:[%s4496 + $0x10] sm:$0xff]
        %v4500 = vld [vmem:[%s4496 + $0x18] sm:$0xff]
        %s4501 = scalar_lea.vmem %s2, 480
        %v4502 = vld [vmem:[%s4501] sm:$0xff]
        %v4503 = vld [vmem:[%s4501 + $0x8] sm:$0xff]
        %v4504 = vld [vmem:[%s4501 + $0x10] sm:$0xff]
        %v4505 = vld [vmem:[%s4501 + $0x18] sm:$0xff]
        %s4506 = scalar_lea.vmem %s3, 12
        %v4507 = vld [vmem:[%s4506] sm:$0x1]
        %s4508 = scalar_lea.vmem %s3, 13
        %v4509 = vld [vmem:[%s4508] sm:$0x1]
        %s4510 = scalar_lea.vmem %s3, 14
        %v4511 = vld [vmem:[%s4510] sm:$0x1]
        %s4512 = scalar_lea.vmem %s3, 15
        %v4513 = vld [vmem:[%s4512] sm:$0x1]
        %v4515 = vlaneseq
        %v4516 = vshrl.u32 %v4515, 7
        %v4517 = vsub.s32 0, %v4516
        %v4518 = vrot.slane %v4507, %v4517
        %v4521 = vsel %vm445, %v4485, 0
        %4523 = vmatprep.subr.mxu0 0.0
        %4524 = vmatpush1.msra.mxu0 %v4487
        %4525 = vmatprep.subr.mxu0 0.0
        %4526 = vmatpush1.msra.mxu0 %v4488
        %4527 = vmatprep.subr.mxu0 0.0
        %4528 = vmatpush1.msra.mxu0 %v4489
        %4529 = vmatprep.subr.mxu0 0.0
        %4530 = vmatpush1.msra.mxu0 %v4490
        %4531 = vmatprep.subr.mxu0 0.0
        %4532 = vmatpush1.msra.mxu0 0.0
        %4533 = vmatprep.subr.mxu0 0.0
        %4534 = vmatpush1.msra.mxu0 0.0
        %4535 = vmatprep.subr.mxu0 0.0
        %4536 = vmatpush1.msra.mxu0 0.0
        %4537 = vmatprep.subr.mxu0 0.0
        %4538 = vmatpush1.msra.mxu0 0.0
        %4539 = vmatprep.subr.mxu0 0.0
        %4540 = vmatpush1.msra.mxu0 0.0
        %4541 = vmatprep.subr.mxu0 0.0
        %4542 = vmatpush1.msra.mxu0 0.0
        %4543 = vmatprep.subr.mxu0 0.0
        %4544 = vmatpush1.msra.mxu0 0.0
        %4545 = vmatprep.subr.mxu0 0.0
        %4546 = vmatpush1.msra.mxu0 0.0
        %4547 = vmatprep.subr.mxu0 0.0
        %4548 = vmatpush1.msra.mxu0 0.0
        %4549 = vmatprep.subr.mxu0 0.0
        %4550 = vmatpush1.msra.mxu0 0.0
        %4551 = vmatprep.subr.mxu0 0.0
        %4552 = vmatpush1.msra.mxu0 0.0
        %4553 = vmatprep.subr.mxu0 0.0
        %4554 = vmatpush1.msra.mxu0 0.0
        %4555 = vmatprep.subr.mxu0 0.0
        %4556 = vmatpush1.msra.mxu0 0.0
        %4557 = vmatprep.subr.mxu0 0.0
        %4558 = vmatpush1.msra.mxu0 0.0
        %4559 = vmatprep.subr.mxu0 0.0
        %4560 = vmatpush1.msra.mxu0 0.0
        %4561 = vmatprep.subr.mxu0 0.0
        %4562 = vmatpush1.msra.mxu0 0.0
        %4563 = vmatprep.subr.mxu0 0.0
        %4564 = vmatpush1.msra.mxu0 0.0
        %4565 = vmatprep.subr.mxu0 0.0
        %4566 = vmatpush1.msra.mxu0 0.0
        %4567 = vmatprep.subr.mxu0 0.0
        %4568 = vmatpush1.msra.mxu0 0.0
        %4569 = vmatprep.subr.mxu0 0.0
        %4570 = vmatpush1.msra.mxu0 0.0
        %4571 = vmatprep.subr.mxu0 0.0
        %4572 = vmatpush1.msra.mxu0 0.0
        %4573 = vmatprep.subr.mxu0 0.0
        %4574 = vmatpush1.msra.mxu0 0.0
        %4575 = vmatprep.subr.mxu0 0.0
        %4576 = vmatpush1.msra.mxu0 0.0
        %4577 = vmatprep.subr.mxu0 0.0
        %4578 = vmatpush1.msra.mxu0 0.0
        %4579 = vmatprep.subr.mxu0 0.0
        %4580 = vmatpush1.msra.mxu0 0.0
        %4581 = vmatprep.subr.mxu0 0.0
        %4582 = vmatpush1.msra.mxu0 0.0
        %4583 = vmatprep.subr.mxu0 0.0
        %4584 = vmatpush1.msra.mxu0 0.0
        %4585 = vmatprep.subr.mxu0 0.0
        %4586 = vmatpush1.msra.mxu0 0.0
        %4587 = vmatprep.mubr.f32.mxu0 0.0
        %4588 = vmatmul.mubr.f32.gmra.mrb[0].mxu0 %v4521
        %v4589 = vpop.f32.mrb[0].mxu0
        %v4590 = vadd.f32 %v4518, %v4589
        %v4591 = vpop.f32.mrb[0].mxu0
        %4592 = vdwg.mxu0
        %v4594 = vlaneseq
        %v4595 = vshrl.u32 %v4594, 7
        %v4596 = vsub.s32 0, %v4595
        %v4597 = vrot.slane %v4509, %v4596
        %4599 = vmatprep.subr.mxu0 0.0
        %4600 = vmatpush1.msra.mxu0 %v4492
        %4601 = vmatprep.subr.mxu0 0.0
        %4602 = vmatpush1.msra.mxu0 %v4493
        %4603 = vmatprep.subr.mxu0 0.0
        %4604 = vmatpush1.msra.mxu0 %v4494
        %4605 = vmatprep.subr.mxu0 0.0
        %4606 = vmatpush1.msra.mxu0 %v4495
        %4607 = vmatprep.subr.mxu0 0.0
        %4608 = vmatpush1.msra.mxu0 0.0
        %4609 = vmatprep.subr.mxu0 0.0
        %4610 = vmatpush1.msra.mxu0 0.0
        %4611 = vmatprep.subr.mxu0 0.0
        %4612 = vmatpush1.msra.mxu0 0.0
        %4613 = vmatprep.subr.mxu0 0.0
        %4614 = vmatpush1.msra.mxu0 0.0
        %4615 = vmatprep.subr.mxu0 0.0
        %4616 = vmatpush1.msra.mxu0 0.0
        %4617 = vmatprep.subr.mxu0 0.0
        %4618 = vmatpush1.msra.mxu0 0.0
        %4619 = vmatprep.subr.mxu0 0.0
        %4620 = vmatpush1.msra.mxu0 0.0
        %4621 = vmatprep.subr.mxu0 0.0
        %4622 = vmatpush1.msra.mxu0 0.0
        %4623 = vmatprep.subr.mxu0 0.0
        %4624 = vmatpush1.msra.mxu0 0.0
        %4625 = vmatprep.subr.mxu0 0.0
        %4626 = vmatpush1.msra.mxu0 0.0
        %4627 = vmatprep.subr.mxu0 0.0
        %4628 = vmatpush1.msra.mxu0 0.0
        %4629 = vmatprep.subr.mxu0 0.0
        %4630 = vmatpush1.msra.mxu0 0.0
        %4631 = vmatprep.subr.mxu0 0.0
        %4632 = vmatpush1.msra.mxu0 0.0
        %4633 = vmatprep.subr.mxu0 0.0
        %4634 = vmatpush1.msra.mxu0 0.0
        %4635 = vmatprep.subr.mxu0 0.0
        %4636 = vmatpush1.msra.mxu0 0.0
        %4637 = vmatprep.subr.mxu0 0.0
        %4638 = vmatpush1.msra.mxu0 0.0
        %4639 = vmatprep.subr.mxu0 0.0
        %4640 = vmatpush1.msra.mxu0 0.0
        %4641 = vmatprep.subr.mxu0 0.0
        %4642 = vmatpush1.msra.mxu0 0.0
        %4643 = vmatprep.subr.mxu0 0.0
        %4644 = vmatpush1.msra.mxu0 0.0
        %4645 = vmatprep.subr.mxu0 0.0
        %4646 = vmatpush1.msra.mxu0 0.0
        %4647 = vmatprep.subr.mxu0 0.0
        %4648 = vmatpush1.msra.mxu0 0.0
        %4649 = vmatprep.subr.mxu0 0.0
        %4650 = vmatpush1.msra.mxu0 0.0
        %4651 = vmatprep.subr.mxu0 0.0
        %4652 = vmatpush1.msra.mxu0 0.0
        %4653 = vmatprep.subr.mxu0 0.0
        %4654 = vmatpush1.msra.mxu0 0.0
        %4655 = vmatprep.subr.mxu0 0.0
        %4656 = vmatpush1.msra.mxu0 0.0
        %4657 = vmatprep.subr.mxu0 0.0
        %4658 = vmatpush1.msra.mxu0 0.0
        %4659 = vmatprep.subr.mxu0 0.0
        %4660 = vmatpush1.msra.mxu0 0.0
        %4661 = vmatprep.subr.mxu0 0.0
        %4662 = vmatpush1.msra.mxu0 0.0
        %4663 = vmatprep.mubr.f32.mxu0 0.0
        %4664 = vmatmul.mubr.f32.gmra.mrb[0].mxu0 %v1839
        %v4665 = vpop.f32.mrb[0].mxu0
        %v4666 = vadd.f32 %v4597, %v4665
        %v4667 = vpop.f32.mrb[0].mxu0
        %4668 = vmatprep.mubr.f32.mxu0 0.0
        %4669 = vmatmul.mubr.f32.gmra.mrb[0].mxu0 %v1842
        %v4670 = vpop.f32.mrb[0].mxu0
        %v4671 = vadd.f32 %v4597, %v4670
        %v4672 = vpop.f32.mrb[0].mxu0
        %4673 = vdwg.mxu0
        %v4675 = vlaneseq
        %v4676 = vshrl.u32 %v4675, 7
        %v4677 = vsub.s32 0, %v4676
        %v4678 = vrot.slane %v4511, %v4677
        %4680 = vmatprep.subr.mxu0 0.0
        %4681 = vmatpush1.msra.mxu0 %v4497
        %4682 = vmatprep.subr.mxu0 0.0
        %4683 = vmatpush1.msra.mxu0 %v4498
        %4684 = vmatprep.subr.mxu0 0.0
        %4685 = vmatpush1.msra.mxu0 %v4499
        %4686 = vmatprep.subr.mxu0 0.0
        %4687 = vmatpush1.msra.mxu0 %v4500
        %4688 = vmatprep.subr.mxu0 0.0
        %4689 = vmatpush1.msra.mxu0 0.0
        %4690 = vmatprep.subr.mxu0 0.0
        %4691 = vmatpush1.msra.mxu0 0.0
        %4692 = vmatprep.subr.mxu0 0.0
        %4693 = vmatpush1.msra.mxu0 0.0
        %4694 = vmatprep.subr.mxu0 0.0
        %4695 = vmatpush1.msra.mxu0 0.0
        %4696 = vmatprep.subr.mxu0 0.0
        %4697 = vmatpush1.msra.mxu0 0.0
        %4698 = vmatprep.subr.mxu0 0.0
        %4699 = vmatpush1.msra.mxu0 0.0
        %4700 = vmatprep.subr.mxu0 0.0
        %4701 = vmatpush1.msra.mxu0 0.0
        %4702 = vmatprep.subr.mxu0 0.0
        %4703 = vmatpush1.msra.mxu0 0.0
        %4704 = vmatprep.subr.mxu0 0.0
        %4705 = vmatpush1.msra.mxu0 0.0
        %4706 = vmatprep.subr.mxu0 0.0
        %4707 = vmatpush1.msra.mxu0 0.0
        %4708 = vmatprep.subr.mxu0 0.0
        %4709 = vmatpush1.msra.mxu0 0.0
        %4710 = vmatprep.subr.mxu0 0.0
        %4711 = vmatpush1.msra.mxu0 0.0
        %4712 = vmatprep.subr.mxu0 0.0
        %4713 = vmatpush1.msra.mxu0 0.0
        %4714 = vmatprep.subr.mxu0 0.0
        %4715 = vmatpush1.msra.mxu0 0.0
        %4716 = vmatprep.subr.mxu0 0.0
        %4717 = vmatpush1.msra.mxu0 0.0
        %4718 = vmatprep.subr.mxu0 0.0
        %4719 = vmatpush1.msra.mxu0 0.0
        %4720 = vmatprep.subr.mxu0 0.0
        %4721 = vmatpush1.msra.mxu0 0.0
        %4722 = vmatprep.subr.mxu0 0.0
        %4723 = vmatpush1.msra.mxu0 0.0
        %4724 = vmatprep.subr.mxu0 0.0
        %4725 = vmatpush1.msra.mxu0 0.0
        %4726 = vmatprep.subr.mxu0 0.0
        %4727 = vmatpush1.msra.mxu0 0.0
        %4728 = vmatprep.subr.mxu0 0.0
        %4729 = vmatpush1.msra.mxu0 0.0
        %4730 = vmatprep.subr.mxu0 0.0
        %4731 = vmatpush1.msra.mxu0 0.0
        %4732 = vmatprep.subr.mxu0 0.0
        %4733 = vmatpush1.msra.mxu0 0.0
        %4734 = vmatprep.subr.mxu0 0.0
        %4735 = vmatpush1.msra.mxu0 0.0
        %4736 = vmatprep.subr.mxu0 0.0
        %4737 = vmatpush1.msra.mxu0 0.0
        %4738 = vmatprep.subr.mxu0 0.0
        %4739 = vmatpush1.msra.mxu0 0.0
        %4740 = vmatprep.subr.mxu0 0.0
        %4741 = vmatpush1.msra.mxu0 0.0
        %4742 = vmatprep.subr.mxu0 0.0
        %4743 = vmatpush1.msra.mxu0 0.0
        %4744 = vmatprep.mubr.f32.mxu0 0.0
        %4745 = vmatmul.mubr.f32.gmra.mrb[0].mxu0 %v1839
        %v4746 = vpop.f32.mrb[0].mxu0
        %v4747 = vadd.f32 %v4678, %v4746
        %v4748 = vpop.f32.mrb[0].mxu0
        %4749 = vmatprep.mubr.f32.mxu0 0.0
        %4750 = vmatmul.mubr.f32.gmra.mrb[0].mxu0 %v1842
        %v4751 = vpop.f32.mrb[0].mxu0
        %v4752 = vadd.f32 %v4678, %v4751
        %v4753 = vpop.f32.mrb[0].mxu0
        %4754 = vdwg.mxu0
        %v4756 = vsel %vm731, %v4590, 0
        %v4759 = vsel %vm731, %v4666, 0
        %v4762 = vsel %vm731, %v4671, 0
        %4764 = vmatprep.subr.mxu0 0.0
        %4765 = vmatpush1.xpose.msra.mxu0 %v4759
        %4766 = vmatprep.subr.mxu0 0.0
        %4767 = vmatpush1.xpose.msra.mxu0 %v4762
        %4768 = vmatprep.subr.mxu0 0.0
        %4769 = vmatpush1.xpose.msra.mxu0 0.0
        %4770 = vmatprep.subr.mxu0 0.0
        %4771 = vmatpush1.xpose.msra.mxu0 0.0
        %4772 = vmatprep.subr.mxu0 0.0
        %4773 = vmatpush1.xpose.msra.mxu0 0.0
        %4774 = vmatprep.subr.mxu0 0.0
        %4775 = vmatpush1.xpose.msra.mxu0 0.0
        %4776 = vmatprep.subr.mxu0 0.0
        %4777 = vmatpush1.xpose.msra.mxu0 0.0
        %4778 = vmatprep.subr.mxu0 0.0
        %4779 = vmatpush1.xpose.msra.mxu0 0.0
        %4780 = vmatprep.subr.mxu0 0.0
        %4781 = vmatpush1.xpose.msra.mxu0 0.0
        %4782 = vmatprep.subr.mxu0 0.0
        %4783 = vmatpush1.xpose.msra.mxu0 0.0
        %4784 = vmatprep.subr.mxu0 0.0
        %4785 = vmatpush1.xpose.msra.mxu0 0.0
        %4786 = vmatprep.subr.mxu0 0.0
        %4787 = vmatpush1.xpose.msra.mxu0 0.0
        %4788 = vmatprep.subr.mxu0 0.0
        %4789 = vmatpush1.xpose.msra.mxu0 0.0
        %4790 = vmatprep.subr.mxu0 0.0
        %4791 = vmatpush1.xpose.msra.mxu0 0.0
        %4792 = vmatprep.subr.mxu0 0.0
        %4793 = vmatpush1.xpose.msra.mxu0 0.0
        %4794 = vmatprep.subr.mxu0 0.0
        %4795 = vmatpush1.xpose.msra.mxu0 0.0
        %4796 = vmatprep.subr.mxu0 0.0
        %4797 = vmatpush1.xpose.msra.mxu0 0.0
        %4798 = vmatprep.subr.mxu0 0.0
        %4799 = vmatpush1.xpose.msra.mxu0 0.0
        %4800 = vmatprep.subr.mxu0 0.0
        %4801 = vmatpush1.xpose.msra.mxu0 0.0
        %4802 = vmatprep.subr.mxu0 0.0
        %4803 = vmatpush1.xpose.msra.mxu0 0.0
        %4804 = vmatprep.subr.mxu0 0.0
        %4805 = vmatpush1.xpose.msra.mxu0 0.0
        %4806 = vmatprep.subr.mxu0 0.0
        %4807 = vmatpush1.xpose.msra.mxu0 0.0
        %4808 = vmatprep.subr.mxu0 0.0
        %4809 = vmatpush1.xpose.msra.mxu0 0.0
        %4810 = vmatprep.subr.mxu0 0.0
        %4811 = vmatpush1.xpose.msra.mxu0 0.0
        %4812 = vmatprep.subr.mxu0 0.0
        %4813 = vmatpush1.xpose.msra.mxu0 0.0
        %4814 = vmatprep.subr.mxu0 0.0
        %4815 = vmatpush1.xpose.msra.mxu0 0.0
        %4816 = vmatprep.subr.mxu0 0.0
        %4817 = vmatpush1.xpose.msra.mxu0 0.0
        %4818 = vmatprep.subr.mxu0 0.0
        %4819 = vmatpush1.xpose.msra.mxu0 0.0
        %4820 = vmatprep.subr.mxu0 0.0
        %4821 = vmatpush1.xpose.msra.mxu0 0.0
        %4822 = vmatprep.subr.mxu0 0.0
        %4823 = vmatpush1.xpose.msra.mxu0 0.0
        %4824 = vmatprep.subr.mxu0 0.0
        %4825 = vmatpush1.xpose.msra.mxu0 0.0
        %4826 = vmatprep.subr.mxu0 0.0
        %4827 = vmatpush1.xpose.msra.mxu0 0.0
        %4828 = vmatprep.mubr.f32.mxu0 0.0
        %4829 = vmatmul.mubr.f32.gmra.mrb[0].mxu0 %v4756
        %v4830 = vpop.f32.mrb[0].mxu0
        %v4831 = vadd.f32 0.0, %v4830
        %v4832 = vpop.f32.mrb[0].mxu0
        %4833 = vdwg.mxu0
        %v4834 = vmul.f32 %v4831, 0.35355338
        %v4835 = vsel %vm2080, %v4834, -inf
        %4836 = vmax.xlane.f32.xlu0 %v4835
        %v4837 = vpop.xlane.xlu0 %4836
        %v4838 = vsub.f32 %v4834, %v4837
        %v4839 = vmul.f32 %v4838, 1.442695
        %v4840 = vpow.pop %v4839
        %v4841 = vsel %vm2080, %v4840, 0.0
        %4842 = vadd.xlane.f32.xlu0 %v4841
        %v4843 = vpop.xlane.xlu0 %4842
        %v4844 = vrcp.pop %v4843
        %v4845 = vmul.f32 %v4840, %v4844
        %v4847 = vsel %vm2080, %v4845, 0
        %4849 = vmatprep.subr.mxu0 0.0
        %4850 = vmatpush1.msra.mxu0 %v4747
        %4851 = vmatprep.subr.mxu0 0.0
        %4852 = vmatpush1.msra.mxu0 %v4752
        %4853 = vmatprep.subr.mxu0 0.0
        %4854 = vmatpush1.msra.mxu0 0.0
        %4855 = vmatprep.subr.mxu0 0.0
        %4856 = vmatpush1.msra.mxu0 0.0
        %4857 = vmatprep.subr.mxu0 0.0
        %4858 = vmatpush1.msra.mxu0 0.0
        %4859 = vmatprep.subr.mxu0 0.0
        %4860 = vmatpush1.msra.mxu0 0.0
        %4861 = vmatprep.subr.mxu0 0.0
        %4862 = vmatpush1.msra.mxu0 0.0
        %4863 = vmatprep.subr.mxu0 0.0
        %4864 = vmatpush1.msra.mxu0 0.0
        %4865 = vmatprep.subr.mxu0 0.0
        %4866 = vmatpush1.msra.mxu0 0.0
        %4867 = vmatprep.subr.mxu0 0.0
        %4868 = vmatpush1.msra.mxu0 0.0
        %4869 = vmatprep.subr.mxu0 0.0
        %4870 = vmatpush1.msra.mxu0 0.0
        %4871 = vmatprep.subr.mxu0 0.0
        %4872 = vmatpush1.msra.mxu0 0.0
        %4873 = vmatprep.subr.mxu0 0.0
        %4874 = vmatpush1.msra.mxu0 0.0
        %4875 = vmatprep.subr.mxu0 0.0
        %4876 = vmatpush1.msra.mxu0 0.0
        %4877 = vmatprep.subr.mxu0 0.0
        %4878 = vmatpush1.msra.mxu0 0.0
        %4879 = vmatprep.subr.mxu0 0.0
        %4880 = vmatpush1.msra.mxu0 0.0
        %4881 = vmatprep.subr.mxu0 0.0
        %4882 = vmatpush1.msra.mxu0 0.0
        %4883 = vmatprep.subr.mxu0 0.0
        %4884 = vmatpush1.msra.mxu0 0.0
        %4885 = vmatprep.subr.mxu0 0.0
        %4886 = vmatpush1.msra.mxu0 0.0
        %4887 = vmatprep.subr.mxu0 0.0
        %4888 = vmatpush1.msra.mxu0 0.0
        %4889 = vmatprep.subr.mxu0 0.0
        %4890 = vmatpush1.msra.mxu0 0.0
        %4891 = vmatprep.subr.mxu0 0.0
        %4892 = vmatpush1.msra.mxu0 0.0
        %4893 = vmatprep.subr.mxu0 0.0
        %4894 = vmatpush1.msra.mxu0 0.0
        %4895 = vmatprep.subr.mxu0 0.0
        %4896 = vmatpush1.msra.mxu0 0.0
        %4897 = vmatprep.subr.mxu0 0.0
        %4898 = vmatpush1.msra.mxu0 0.0
        %4899 = vmatprep.subr.mxu0 0.0
        %4900 = vmatpush1.msra.mxu0 0.0
        %4901 = vmatprep.subr.mxu0 0.0
        %4902 = vmatpush1.msra.mxu0 0.0
        %4903 = vmatprep.subr.mxu0 0.0
        %4904 = vmatpush1.msra.mxu0 0.0
        %4905 = vmatprep.subr.mxu0 0.0
        %4906 = vmatpush1.msra.mxu0 0.0
        %4907 = vmatprep.subr.mxu0 0.0
        %4908 = vmatpush1.msra.mxu0 0.0
        %4909 = vmatprep.subr.mxu0 0.0
        %4910 = vmatpush1.msra.mxu0 0.0
        %4911 = vmatprep.subr.mxu0 0.0
        %4912 = vmatpush1.msra.mxu0 0.0
        %4913 = vmatprep.mubr.f32.mxu0 0.0
        %4914 = vmatmul.mubr.f32.gmra.mrb[0].mxu0 %v4847
        %v4915 = vpop.f32.mrb[0].mxu0
        %v4916 = vadd.f32 0.0, %v4915
        %v4917 = vpop.f32.mrb[0].mxu0
        %4918 = vdwg.mxu0
        %v4919 = vadd.f32 %v4845, 0.0
        %4920 = vrot.lane.b32.xlu0 %v4590, 120
        %v4921 = vpop.permute.xlu0 %4920
        %4922 = vrot.lane.b32.xlu0 %v4666, 120
        %v4923 = vpop.permute.xlu0 %4922
        %4924 = vrot.lane.b32.xlu0 %v4671, 120
        %v4925 = vpop.permute.xlu0 %4924
        %v4926 = vsel %vm731, %v4921, 0
        %v4928 = vsel %vm731, %v4923, 0
        %v4930 = vsel %vm731, %v4925, 0
        %4932 = vmatprep.subr.mxu0 0.0
        %4933 = vmatpush1.xpose.msra.mxu0 %v4928
        %4934 = vmatprep.subr.mxu0 0.0
        %4935 = vmatpush1.xpose.msra.mxu0 %v4930
        %4936 = vmatprep.subr.mxu0 0.0
        %4937 = vmatpush1.xpose.msra.mxu0 0.0
        %4938 = vmatprep.subr.mxu0 0.0
        %4939 = vmatpush1.xpose.msra.mxu0 0.0
        %4940 = vmatprep.subr.mxu0 0.0
        %4941 = vmatpush1.xpose.msra.mxu0 0.0
        %4942 = vmatprep.subr.mxu0 0.0
        %4943 = vmatpush1.xpose.msra.mxu0 0.0
        %4944 = vmatprep.subr.mxu0 0.0
        %4945 = vmatpush1.xpose.msra.mxu0 0.0
        %4946 = vmatprep.subr.mxu0 0.0
        %4947 = vmatpush1.xpose.msra.mxu0 0.0
        %4948 = vmatprep.subr.mxu0 0.0
        %4949 = vmatpush1.xpose.msra.mxu0 0.0
        %4950 = vmatprep.subr.mxu0 0.0
        %4951 = vmatpush1.xpose.msra.mxu0 0.0
        %4952 = vmatprep.subr.mxu0 0.0
        %4953 = vmatpush1.xpose.msra.mxu0 0.0
        %4954 = vmatprep.subr.mxu0 0.0
        %4955 = vmatpush1.xpose.msra.mxu0 0.0
        %4956 = vmatprep.subr.mxu0 0.0
        %4957 = vmatpush1.xpose.msra.mxu0 0.0
        %4958 = vmatprep.subr.mxu0 0.0
        %4959 = vmatpush1.xpose.msra.mxu0 0.0
        %4960 = vmatprep.subr.mxu0 0.0
        %4961 = vmatpush1.xpose.msra.mxu0 0.0
        %4962 = vmatprep.subr.mxu0 0.0
        %4963 = vmatpush1.xpose.msra.mxu0 0.0
        %4964 = vmatprep.subr.mxu0 0.0
        %4965 = vmatpush1.xpose.msra.mxu0 0.0
        %4966 = vmatprep.subr.mxu0 0.0
        %4967 = vmatpush1.xpose.msra.mxu0 0.0
        %4968 = vmatprep.subr.mxu0 0.0
        %4969 = vmatpush1.xpose.msra.mxu0 0.0
        %4970 = vmatprep.subr.mxu0 0.0
        %4971 = vmatpush1.xpose.msra.mxu0 0.0
        %4972 = vmatprep.subr.mxu0 0.0
        %4973 = vmatpush1.xpose.msra.mxu0 0.0
        %4974 = vmatprep.subr.mxu0 0.0
        %4975 = vmatpush1.xpose.msra.mxu0 0.0
        %4976 = vmatprep.subr.mxu0 0.0
        %4977 = vmatpush1.xpose.msra.mxu0 0.0
        %4978 = vmatprep.subr.mxu0 0.0
        %4979 = vmatpush1.xpose.msra.mxu0 0.0
        %4980 = vmatprep.subr.mxu0 0.0
        %4981 = vmatpush1.xpose.msra.mxu0 0.0
        %4982 = vmatprep.subr.mxu0 0.0
        %4983 = vmatpush1.xpose.msra.mxu0 0.0
        %4984 = vmatprep.subr.mxu0 0.0
        %4985 = vmatpush1.xpose.msra.mxu0 0.0
        %4986 = vmatprep.subr.mxu0 0.0
        %4987 = vmatpush1.xpose.msra.mxu0 0.0
        %4988 = vmatprep.subr.mxu0 0.0
        %4989 = vmatpush1.xpose.msra.mxu0 0.0
        %4990 = vmatprep.subr.mxu0 0.0
        %4991 = vmatpush1.xpose.msra.mxu0 0.0
        %4992 = vmatprep.subr.mxu0 0.0
        %4993 = vmatpush1.xpose.msra.mxu0 0.0
        %4994 = vmatprep.subr.mxu0 0.0
        %4995 = vmatpush1.xpose.msra.mxu0 0.0
        %4996 = vmatprep.mubr.f32.mxu0 0.0
        %4997 = vmatmul.mubr.f32.gmra.mrb[0].mxu0 %v4926
        %v4998 = vpop.f32.mrb[0].mxu0
        %v4999 = vadd.f32 0.0, %v4998
        %v5000 = vpop.f32.mrb[0].mxu0
        %5001 = vdwg.mxu0
        %v5002 = vmul.f32 %v4999, 0.35355338
        %v5003 = vsel %vm2080, %v5002, -inf
        %5004 = vmax.xlane.f32.xlu0 %v5003
        %v5005 = vpop.xlane.xlu0 %5004
        %v5006 = vsub.f32 %v5002, %v5005
        %v5007 = vmul.f32 %v5006, 1.442695
        %v5008 = vpow.pop %v5007
        %v5009 = vsel %vm2080, %v5008, 0.0
        %5010 = vadd.xlane.f32.xlu0 %v5009
        %v5011 = vpop.xlane.xlu0 %5010
        %v5012 = vrcp.pop %v5011
        %v5013 = vmul.f32 %v5008, %v5012
        %5016 = vrot.lane.b32.xlu0 %v4747, 120
        %v5017 = vpop.permute.xlu0 %5016
        %5018 = vrot.lane.b32.xlu0 %v4752, 120
        %v5019 = vpop.permute.xlu0 %5018
        %v5023 = vsel %vm2080, %v5013, 0
        %5025 = vmatprep.subr.mxu0 0.0
        %5026 = vmatpush1.msra.mxu0 %v5017
        %5027 = vmatprep.subr.mxu0 0.0
        %5028 = vmatpush1.msra.mxu0 %v5019
        %5029 = vmatprep.subr.mxu0 0.0
        %5030 = vmatpush1.msra.mxu0 0.0
        %5031 = vmatprep.subr.mxu0 0.0
        %5032 = vmatpush1.msra.mxu0 0.0
        %5033 = vmatprep.subr.mxu0 0.0
        %5034 = vmatpush1.msra.mxu0 0.0
        %5035 = vmatprep.subr.mxu0 0.0
        %5036 = vmatpush1.msra.mxu0 0.0
        %5037 = vmatprep.subr.mxu0 0.0
        %5038 = vmatpush1.msra.mxu0 0.0
        %5039 = vmatprep.subr.mxu0 0.0
        %5040 = vmatpush1.msra.mxu0 0.0
        %5041 = vmatprep.subr.mxu0 0.0
        %5042 = vmatpush1.msra.mxu0 0.0
        %5043 = vmatprep.subr.mxu0 0.0
        %5044 = vmatpush1.msra.mxu0 0.0
        %5045 = vmatprep.subr.mxu0 0.0
        %5046 = vmatpush1.msra.mxu0 0.0
        %5047 = vmatprep.subr.mxu0 0.0
        %5048 = vmatpush1.msra.mxu0 0.0
        %5049 = vmatprep.subr.mxu0 0.0
        %5050 = vmatpush1.msra.mxu0 0.0
        %5051 = vmatprep.subr.mxu0 0.0
        %5052 = vmatpush1.msra.mxu0 0.0
        %5053 = vmatprep.subr.mxu0 0.0
        %5054 = vmatpush1.msra.mxu0 0.0
        %5055 = vmatprep.subr.mxu0 0.0
        %5056 = vmatpush1.msra.mxu0 0.0
        %5057 = vmatprep.subr.mxu0 0.0
        %5058 = vmatpush1.msra.mxu0 0.0
        %5059 = vmatprep.subr.mxu0 0.0
        %5060 = vmatpush1.msra.mxu0 0.0
        %5061 = vmatprep.subr.mxu0 0.0
        %5062 = vmatpush1.msra.mxu0 0.0
        %5063 = vmatprep.subr.mxu0 0.0
        %5064 = vmatpush1.msra.mxu0 0.0
        %5065 = vmatprep.subr.mxu0 0.0
        %5066 = vmatpush1.msra.mxu0 0.0
        %5067 = vmatprep.subr.mxu0 0.0
        %5068 = vmatpush1.msra.mxu0 0.0
        %5069 = vmatprep.subr.mxu0 0.0
        %5070 = vmatpush1.msra.mxu0 0.0
        %5071 = vmatprep.subr.mxu0 0.0
        %5072 = vmatpush1.msra.mxu0 0.0
        %5073 = vmatprep.subr.mxu0 0.0
        %5074 = vmatpush1.msra.mxu0 0.0
        %5075 = vmatprep.subr.mxu0 0.0
        %5076 = vmatpush1.msra.mxu0 0.0
        %5077 = vmatprep.subr.mxu0 0.0
        %5078 = vmatpush1.msra.mxu0 0.0
        %5079 = vmatprep.subr.mxu0 0.0
        %5080 = vmatpush1.msra.mxu0 0.0
        %5081 = vmatprep.subr.mxu0 0.0
        %5082 = vmatpush1.msra.mxu0 0.0
        %5083 = vmatprep.subr.mxu0 0.0
        %5084 = vmatpush1.msra.mxu0 0.0
        %5085 = vmatprep.subr.mxu0 0.0
        %5086 = vmatpush1.msra.mxu0 0.0
        %5087 = vmatprep.subr.mxu0 0.0
        %5088 = vmatpush1.msra.mxu0 0.0
        %5089 = vmatprep.mubr.f32.mxu0 0.0
        %5090 = vmatmul.mubr.f32.gmra.mrb[0].mxu0 %v5023
        %v5091 = vpop.f32.mrb[0].mxu0
        %v5092 = vadd.f32 0.0, %v5091
        %v5093 = vpop.f32.mrb[0].mxu0
        %5094 = vdwg.mxu0
        %v5096 = vsel %vm731, %v5092, 0
        %5098 = vmatprep.subr.mxu0 0.0
        %5099 = vmatpush1.msra.mxu0 %v4503
        %5100 = vmatprep.subr.mxu0 0.0
        %5101 = vmatpush1.msra.mxu0 0.0
        %5102 = vmatprep.subr.mxu0 0.0
        %5103 = vmatpush1.msra.mxu0 0.0
        %5104 = vmatprep.subr.mxu0 0.0
        %5105 = vmatpush1.msra.mxu0 0.0
        %5106 = vmatprep.subr.mxu0 0.0
        %5107 = vmatpush1.msra.mxu0 0.0
        %5108 = vmatprep.subr.mxu0 0.0
        %5109 = vmatpush1.msra.mxu0 0.0
        %5110 = vmatprep.subr.mxu0 0.0
        %5111 = vmatpush1.msra.mxu0 0.0
        %5112 = vmatprep.subr.mxu0 0.0
        %5113 = vmatpush1.msra.mxu0 0.0
        %5114 = vmatprep.subr.mxu0 0.0
        %5115 = vmatpush1.msra.mxu0 0.0
        %5116 = vmatprep.subr.mxu0 0.0
        %5117 = vmatpush1.msra.mxu0 0.0
        %5118 = vmatprep.subr.mxu0 0.0
        %5119 = vmatpush1.msra.mxu0 0.0
        %5120 = vmatprep.subr.mxu0 0.0
        %5121 = vmatpush1.msra.mxu0 0.0
        %5122 = vmatprep.subr.mxu0 0.0
        %5123 = vmatpush1.msra.mxu0 0.0
        %5124 = vmatprep.subr.mxu0 0.0
        %5125 = vmatpush1.msra.mxu0 0.0
        %5126 = vmatprep.subr.mxu0 0.0
        %5127 = vmatpush1.msra.mxu0 0.0
        %5128 = vmatprep.subr.mxu0 0.0
        %5129 = vmatpush1.msra.mxu0 0.0
        %5130 = vmatprep.subr.mxu0 0.0
        %5131 = vmatpush1.msra.mxu0 0.0
        %5132 = vmatprep.subr.mxu0 0.0
        %5133 = vmatpush1.msra.mxu0 0.0
        %5134 = vmatprep.subr.mxu0 0.0
        %5135 = vmatpush1.msra.mxu0 0.0
        %5136 = vmatprep.subr.mxu0 0.0
        %5137 = vmatpush1.msra.mxu0 0.0
        %5138 = vmatprep.subr.mxu0 0.0
        %5139 = vmatpush1.msra.mxu0 0.0
        %5140 = vmatprep.subr.mxu0 0.0
        %5141 = vmatpush1.msra.mxu0 0.0
        %5142 = vmatprep.subr.mxu0 0.0
        %5143 = vmatpush1.msra.mxu0 0.0
        %5144 = vmatprep.subr.mxu0 0.0
        %5145 = vmatpush1.msra.mxu0 0.0
        %5146 = vmatprep.subr.mxu0 0.0
        %5147 = vmatpush1.msra.mxu0 0.0
        %5148 = vmatprep.subr.mxu0 0.0
        %5149 = vmatpush1.msra.mxu0 0.0
        %5150 = vmatprep.subr.mxu0 0.0
        %5151 = vmatpush1.msra.mxu0 0.0
        %5152 = vmatprep.subr.mxu0 0.0
        %5153 = vmatpush1.msra.mxu0 0.0
        %5154 = vmatprep.subr.mxu0 0.0
        %5155 = vmatpush1.msra.mxu0 0.0
        %5156 = vmatprep.subr.mxu0 0.0
        %5157 = vmatpush1.msra.mxu0 0.0
        %5158 = vmatprep.subr.mxu0 0.0
        %5159 = vmatpush1.msra.mxu0 0.0
        %5160 = vmatprep.subr.mxu0 0.0
        %5161 = vmatpush1.msra.mxu0 0.0
        %5162 = vmatprep.mubr.f32.mxu0 0.0
        %5163 = vmatmul.mubr.f32.gmra.mrb[0].mxu0 %v5096
        %v5164 = vpop.f32.mrb[0].mxu0
        %v5165 = vadd.f32 0.0, %v5164
        %v5166 = vpop.f32.mrb[0].mxu0
        %5167 = vdwg.mxu0
        %v5169 = vsel %vm731, %v4916, 0
        %5171 = vmatprep.subr.mxu0 0.0
        %5172 = vmatpush1.msra.mxu0 %v4502
        %5173 = vmatprep.subr.mxu0 0.0
        %5174 = vmatpush1.msra.mxu0 0.0
        %5175 = vmatprep.subr.mxu0 0.0
        %5176 = vmatpush1.msra.mxu0 0.0
        %5177 = vmatprep.subr.mxu0 0.0
        %5178 = vmatpush1.msra.mxu0 0.0
        %5179 = vmatprep.subr.mxu0 0.0
        %5180 = vmatpush1.msra.mxu0 0.0
        %5181 = vmatprep.subr.mxu0 0.0
        %5182 = vmatpush1.msra.mxu0 0.0
        %5183 = vmatprep.subr.mxu0 0.0
        %5184 = vmatpush1.msra.mxu0 0.0
        %5185 = vmatprep.subr.mxu0 0.0
        %5186 = vmatpush1.msra.mxu0 0.0
        %5187 = vmatprep.subr.mxu0 0.0
        %5188 = vmatpush1.msra.mxu0 0.0
        %5189 = vmatprep.subr.mxu0 0.0
        %5190 = vmatpush1.msra.mxu0 0.0
        %5191 = vmatprep.subr.mxu0 0.0
        %5192 = vmatpush1.msra.mxu0 0.0
        %5193 = vmatprep.subr.mxu0 0.0
        %5194 = vmatpush1.msra.mxu0 0.0
        %5195 = vmatprep.subr.mxu0 0.0
        %5196 = vmatpush1.msra.mxu0 0.0
        %5197 = vmatprep.subr.mxu0 0.0
        %5198 = vmatpush1.msra.mxu0 0.0
        %5199 = vmatprep.subr.mxu0 0.0
        %5200 = vmatpush1.msra.mxu0 0.0
        %5201 = vmatprep.subr.mxu0 0.0
        %5202 = vmatpush1.msra.mxu0 0.0
        %5203 = vmatprep.subr.mxu0 0.0
        %5204 = vmatpush1.msra.mxu0 0.0
        %5205 = vmatprep.subr.mxu0 0.0
        %5206 = vmatpush1.msra.mxu0 0.0
        %5207 = vmatprep.subr.mxu0 0.0
        %5208 = vmatpush1.msra.mxu0 0.0
        %5209 = vmatprep.subr.mxu0 0.0
        %5210 = vmatpush1.msra.mxu0 0.0
        %5211 = vmatprep.subr.mxu0 0.0
        %5212 = vmatpush1.msra.mxu0 0.0
        %5213 = vmatprep.subr.mxu0 0.0
        %5214 = vmatpush1.msra.mxu0 0.0
        %5215 = vmatprep.subr.mxu0 0.0
        %5216 = vmatpush1.msra.mxu0 0.0
        %5217 = vmatprep.subr.mxu0 0.0
        %5218 = vmatpush1.msra.mxu0 0.0
        %5219 = vmatprep.subr.mxu0 0.0
        %5220 = vmatpush1.msra.mxu0 0.0
        %5221 = vmatprep.subr.mxu0 0.0
        %5222 = vmatpush1.msra.mxu0 0.0
        %5223 = vmatprep.subr.mxu0 0.0
        %5224 = vmatpush1.msra.mxu0 0.0
        %5225 = vmatprep.subr.mxu0 0.0
        %5226 = vmatpush1.msra.mxu0 0.0
        %5227 = vmatprep.subr.mxu0 0.0
        %5228 = vmatpush1.msra.mxu0 0.0
        %5229 = vmatprep.subr.mxu0 0.0
        %5230 = vmatpush1.msra.mxu0 0.0
        %5231 = vmatprep.subr.mxu0 0.0
        %5232 = vmatpush1.msra.mxu0 0.0
        %5233 = vmatprep.subr.mxu0 0.0
        %5234 = vmatpush1.msra.mxu0 0.0
        %5235 = vmatprep.mubr.f32.mxu0 0.0
        %5236 = vmatmul.mubr.f32.gmra.mrb[0].mxu0 %v5169
        %v5237 = vpop.f32.mrb[0].mxu0
        %v5238 = vadd.f32 %v5165, %v5237
        %v5239 = vpop.f32.mrb[0].mxu0
        %5240 = vdwg.mxu0
        %v5241 = vadd.f32 %v4919, %v5013
        %5242 = vrot.lane.b32.xlu0 %v4590, 112
        %v5243 = vpop.permute.xlu0 %5242
        %5244 = vrot.lane.b32.xlu0 %v4666, 112
        %v5245 = vpop.permute.xlu0 %5244
        %5246 = vrot.lane.b32.xlu0 %v4671, 112
        %v5247 = vpop.permute.xlu0 %5246
        %v5248 = vsel %vm731, %v5243, 0
        %v5250 = vsel %vm731, %v5245, 0
        %v5252 = vsel %vm731, %v5247, 0
        %5254 = vmatprep.subr.mxu0 0.0
        %5255 = vmatpush1.xpose.msra.mxu0 %v5250
        %5256 = vmatprep.subr.mxu0 0.0
        %5257 = vmatpush1.xpose.msra.mxu0 %v5252
        %5258 = vmatprep.subr.mxu0 0.0
        %5259 = vmatpush1.xpose.msra.mxu0 0.0
        %5260 = vmatprep.subr.mxu0 0.0
        %5261 = vmatpush1.xpose.msra.mxu0 0.0
        %5262 = vmatprep.subr.mxu0 0.0
        %5263 = vmatpush1.xpose.msra.mxu0 0.0
        %5264 = vmatprep.subr.mxu0 0.0
        %5265 = vmatpush1.xpose.msra.mxu0 0.0
        %5266 = vmatprep.subr.mxu0 0.0
        %5267 = vmatpush1.xpose.msra.mxu0 0.0
        %5268 = vmatprep.subr.mxu0 0.0
        %5269 = vmatpush1.xpose.msra.mxu0 0.0
        %5270 = vmatprep.subr.mxu0 0.0
        %5271 = vmatpush1.xpose.msra.mxu0 0.0
        %5272 = vmatprep.subr.mxu0 0.0
        %5273 = vmatpush1.xpose.msra.mxu0 0.0
        %5274 = vmatprep.subr.mxu0 0.0
        %5275 = vmatpush1.xpose.msra.mxu0 0.0
        %5276 = vmatprep.subr.mxu0 0.0
        %5277 = vmatpush1.xpose.msra.mxu0 0.0
        %5278 = vmatprep.subr.mxu0 0.0
        %5279 = vmatpush1.xpose.msra.mxu0 0.0
        %5280 = vmatprep.subr.mxu0 0.0
        %5281 = vmatpush1.xpose.msra.mxu0 0.0
        %5282 = vmatprep.subr.mxu0 0.0
        %5283 = vmatpush1.xpose.msra.mxu0 0.0
        %5284 = vmatprep.subr.mxu0 0.0
        %5285 = vmatpush1.xpose.msra.mxu0 0.0
        %5286 = vmatprep.subr.mxu0 0.0
        %5287 = vmatpush1.xpose.msra.mxu0 0.0
        %5288 = vmatprep.subr.mxu0 0.0
        %5289 = vmatpush1.xpose.msra.mxu0 0.0
        %5290 = vmatprep.subr.mxu0 0.0
        %5291 = vmatpush1.xpose.msra.mxu0 0.0
        %5292 = vmatprep.subr.mxu0 0.0
        %5293 = vmatpush1.xpose.msra.mxu0 0.0
        %5294 = vmatprep.subr.mxu0 0.0
        %5295 = vmatpush1.xpose.msra.mxu0 0.0
        %5296 = vmatprep.subr.mxu0 0.0
        %5297 = vmatpush1.xpose.msra.mxu0 0.0
        %5298 = vmatprep.subr.mxu0 0.0
        %5299 = vmatpush1.xpose.msra.mxu0 0.0
        %5300 = vmatprep.subr.mxu0 0.0
        %5301 = vmatpush1.xpose.msra.mxu0 0.0
        %5302 = vmatprep.subr.mxu0 0.0
        %5303 = vmatpush1.xpose.msra.mxu0 0.0
        %5304 = vmatprep.subr.mxu0 0.0
        %5305 = vmatpush1.xpose.msra.mxu0 0.0
        %5306 = vmatprep.subr.mxu0 0.0
        %5307 = vmatpush1.xpose.msra.mxu0 0.0
        %5308 = vmatprep.subr.mxu0 0.0
        %5309 = vmatpush1.xpose.msra.mxu0 0.0
        %5310 = vmatprep.subr.mxu0 0.0
        %5311 = vmatpush1.xpose.msra.mxu0 0.0
        %5312 = vmatprep.subr.mxu0 0.0
        %5313 = vmatpush1.xpose.msra.mxu0 0.0
        %5314 = vmatprep.subr.mxu0 0.0
        %5315 = vmatpush1.xpose.msra.mxu0 0.0
        %5316 = vmatprep.subr.mxu0 0.0
        %5317 = vmatpush1.xpose.msra.mxu0 0.0
        %5318 = vmatprep.mubr.f32.mxu0 0.0
        %5319 = vmatmul.mubr.f32.gmra.mrb[0].mxu0 %v5248
        %v5320 = vpop.f32.mrb[0].mxu0
        %v5321 = vadd.f32 0.0, %v5320
        %v5322 = vpop.f32.mrb[0].mxu0
        %5323 = vdwg.mxu0
        %v5324 = vmul.f32 %v5321, 0.35355338
        %v5325 = vsel %vm2080, %v5324, -inf
        %5326 = vmax.xlane.f32.xlu0 %v5325
        %v5327 = vpop.xlane.xlu0 %5326
        %v5328 = vsub.f32 %v5324, %v5327
        %v5329 = vmul.f32 %v5328, 1.442695
        %v5330 = vpow.pop %v5329
        %v5331 = vsel %vm2080, %v5330, 0.0
        %5332 = vadd.xlane.f32.xlu0 %v5331
        %v5333 = vpop.xlane.xlu0 %5332
        %v5334 = vrcp.pop %v5333
        %v5335 = vmul.f32 %v5330, %v5334
        %5336 = vrot.lane.b32.xlu0 %v4747, 112
        %v5337 = vpop.permute.xlu0 %5336
        %5338 = vrot.lane.b32.xlu0 %v4752, 112
        %v5339 = vpop.permute.xlu0 %5338
        %v5343 = vsel %vm2080, %v5335, 0
        %5345 = vmatprep.subr.mxu0 0.0
        %5346 = vmatpush1.msra.mxu0 %v5337
        %5347 = vmatprep.subr.mxu0 0.0
        %5348 = vmatpush1.msra.mxu0 %v5339
        %5349 = vmatprep.subr.mxu0 0.0
        %5350 = vmatpush1.msra.mxu0 0.0
        %5351 = vmatprep.subr.mxu0 0.0
        %5352 = vmatpush1.msra.mxu0 0.0
        %5353 = vmatprep.subr.mxu0 0.0
        %5354 = vmatpush1.msra.mxu0 0.0
        %5355 = vmatprep.subr.mxu0 0.0
        %5356 = vmatpush1.msra.mxu0 0.0
        %5357 = vmatprep.subr.mxu0 0.0
        %5358 = vmatpush1.msra.mxu0 0.0
        %5359 = vmatprep.subr.mxu0 0.0
        %5360 = vmatpush1.msra.mxu0 0.0
        %5361 = vmatprep.subr.mxu0 0.0
        %5362 = vmatpush1.msra.mxu0 0.0
        %5363 = vmatprep.subr.mxu0 0.0
        %5364 = vmatpush1.msra.mxu0 0.0
        %5365 = vmatprep.subr.mxu0 0.0
        %5366 = vmatpush1.msra.mxu0 0.0
        %5367 = vmatprep.subr.mxu0 0.0
        %5368 = vmatpush1.msra.mxu0 0.0
        %5369 = vmatprep.subr.mxu0 0.0
        %5370 = vmatpush1.msra.mxu0 0.0
        %5371 = vmatprep.subr.mxu0 0.0
        %5372 = vmatpush1.msra.mxu0 0.0
        %5373 = vmatprep.subr.mxu0 0.0
        %5374 = vmatpush1.msra.mxu0 0.0
        %5375 = vmatprep.subr.mxu0 0.0
        %5376 = vmatpush1.msra.mxu0 0.0
        %5377 = vmatprep.subr.mxu0 0.0
        %5378 = vmatpush1.msra.mxu0 0.0
        %5379 = vmatprep.subr.mxu0 0.0
        %5380 = vmatpush1.msra.mxu0 0.0
        %5381 = vmatprep.subr.mxu0 0.0
        %5382 = vmatpush1.msra.mxu0 0.0
        %5383 = vmatprep.subr.mxu0 0.0
        %5384 = vmatpush1.msra.mxu0 0.0
        %5385 = vmatprep.subr.mxu0 0.0
        %5386 = vmatpush1.msra.mxu0 0.0
        %5387 = vmatprep.subr.mxu0 0.0
        %5388 = vmatpush1.msra.mxu0 0.0
        %5389 = vmatprep.subr.mxu0 0.0
        %5390 = vmatpush1.msra.mxu0 0.0
        %5391 = vmatprep.subr.mxu0 0.0
        %5392 = vmatpush1.msra.mxu0 0.0
        %5393 = vmatprep.subr.mxu0 0.0
        %5394 = vmatpush1.msra.mxu0 0.0
        %5395 = vmatprep.subr.mxu0 0.0
        %5396 = vmatpush1.msra.mxu0 0.0
        %5397 = vmatprep.subr.mxu0 0.0
        %5398 = vmatpush1.msra.mxu0 0.0
        %5399 = vmatprep.subr.mxu0 0.0
        %5400 = vmatpush1.msra.mxu0 0.0
        %5401 = vmatprep.subr.mxu0 0.0
        %5402 = vmatpush1.msra.mxu0 0.0
        %5403 = vmatprep.subr.mxu0 0.0
        %5404 = vmatpush1.msra.mxu0 0.0
        %5405 = vmatprep.subr.mxu0 0.0
        %5406 = vmatpush1.msra.mxu0 0.0
        %5407 = vmatprep.subr.mxu0 0.0
        %5408 = vmatpush1.msra.mxu0 0.0
        %5409 = vmatprep.mubr.f32.mxu0 0.0
        %5410 = vmatmul.mubr.f32.gmra.mrb[0].mxu0 %v5343
        %v5411 = vpop.f32.mrb[0].mxu0
        %v5412 = vadd.f32 0.0, %v5411
        %v5413 = vpop.f32.mrb[0].mxu0
        %5414 = vdwg.mxu0
        %v5416 = vsel %vm731, %v5412, 0
        %5418 = vmatprep.subr.mxu0 0.0
        %5419 = vmatpush1.msra.mxu0 %v4504
        %5420 = vmatprep.subr.mxu0 0.0
        %5421 = vmatpush1.msra.mxu0 0.0
        %5422 = vmatprep.subr.mxu0 0.0
        %5423 = vmatpush1.msra.mxu0 0.0
        %5424 = vmatprep.subr.mxu0 0.0
        %5425 = vmatpush1.msra.mxu0 0.0
        %5426 = vmatprep.subr.mxu0 0.0
        %5427 = vmatpush1.msra.mxu0 0.0
        %5428 = vmatprep.subr.mxu0 0.0
        %5429 = vmatpush1.msra.mxu0 0.0
        %5430 = vmatprep.subr.mxu0 0.0
        %5431 = vmatpush1.msra.mxu0 0.0
        %5432 = vmatprep.subr.mxu0 0.0
        %5433 = vmatpush1.msra.mxu0 0.0
        %5434 = vmatprep.subr.mxu0 0.0
        %5435 = vmatpush1.msra.mxu0 0.0
        %5436 = vmatprep.subr.mxu0 0.0
        %5437 = vmatpush1.msra.mxu0 0.0
        %5438 = vmatprep.subr.mxu0 0.0
        %5439 = vmatpush1.msra.mxu0 0.0
        %5440 = vmatprep.subr.mxu0 0.0
        %5441 = vmatpush1.msra.mxu0 0.0
        %5442 = vmatprep.subr.mxu0 0.0
        %5443 = vmatpush1.msra.mxu0 0.0
        %5444 = vmatprep.subr.mxu0 0.0
        %5445 = vmatpush1.msra.mxu0 0.0
        %5446 = vmatprep.subr.mxu0 0.0
        %5447 = vmatpush1.msra.mxu0 0.0
        %5448 = vmatprep.subr.mxu0 0.0
        %5449 = vmatpush1.msra.mxu0 0.0
        %5450 = vmatprep.subr.mxu0 0.0
        %5451 = vmatpush1.msra.mxu0 0.0
        %5452 = vmatprep.subr.mxu0 0.0
        %5453 = vmatpush1.msra.mxu0 0.0
        %5454 = vmatprep.subr.mxu0 0.0
        %5455 = vmatpush1.msra.mxu0 0.0
        %5456 = vmatprep.subr.mxu0 0.0
        %5457 = vmatpush1.msra.mxu0 0.0
        %5458 = vmatprep.subr.mxu0 0.0
        %5459 = vmatpush1.msra.mxu0 0.0
        %5460 = vmatprep.subr.mxu0 0.0
        %5461 = vmatpush1.msra.mxu0 0.0
        %5462 = vmatprep.subr.mxu0 0.0
        %5463 = vmatpush1.msra.mxu0 0.0
        %5464 = vmatprep.subr.mxu0 0.0
        %5465 = vmatpush1.msra.mxu0 0.0
        %5466 = vmatprep.subr.mxu0 0.0
        %5467 = vmatpush1.msra.mxu0 0.0
        %5468 = vmatprep.subr.mxu0 0.0
        %5469 = vmatpush1.msra.mxu0 0.0
        %5470 = vmatprep.subr.mxu0 0.0
        %5471 = vmatpush1.msra.mxu0 0.0
        %5472 = vmatprep.subr.mxu0 0.0
        %5473 = vmatpush1.msra.mxu0 0.0
        %5474 = vmatprep.subr.mxu0 0.0
        %5475 = vmatpush1.msra.mxu0 0.0
        %5476 = vmatprep.subr.mxu0 0.0
        %5477 = vmatpush1.msra.mxu0 0.0
        %5478 = vmatprep.subr.mxu0 0.0
        %5479 = vmatpush1.msra.mxu0 0.0
        %5480 = vmatprep.subr.mxu0 0.0
        %5481 = vmatpush1.msra.mxu0 0.0
        %5482 = vmatprep.mubr.f32.mxu0 0.0
        %5483 = vmatmul.mubr.f32.gmra.mrb[0].mxu0 %v5416
        %v5484 = vpop.f32.mrb[0].mxu0
        %v5485 = vadd.f32 0.0, %v5484
        %v5486 = vpop.f32.mrb[0].mxu0
        %5487 = vdwg.mxu0
        %v5488 = vadd.f32 %v5238, %v5485
        %v5489 = vadd.f32 %v5241, %v5335
        %5490 = vrot.lane.b32.xlu0 %v4590, 104
        %v5491 = vpop.permute.xlu0 %5490
        %5492 = vrot.lane.b32.xlu0 %v4666, 104
        %v5493 = vpop.permute.xlu0 %5492
        %5494 = vrot.lane.b32.xlu0 %v4671, 104
        %v5495 = vpop.permute.xlu0 %5494
        %v5496 = vsel %vm731, %v5491, 0
        %v5498 = vsel %vm731, %v5493, 0
        %v5500 = vsel %vm731, %v5495, 0
        %5502 = vmatprep.subr.mxu0 0.0
        %5503 = vmatpush1.xpose.msra.mxu0 %v5498
        %5504 = vmatprep.subr.mxu0 0.0
        %5505 = vmatpush1.xpose.msra.mxu0 %v5500
        %5506 = vmatprep.subr.mxu0 0.0
        %5507 = vmatpush1.xpose.msra.mxu0 0.0
        %5508 = vmatprep.subr.mxu0 0.0
        %5509 = vmatpush1.xpose.msra.mxu0 0.0
        %5510 = vmatprep.subr.mxu0 0.0
        %5511 = vmatpush1.xpose.msra.mxu0 0.0
        %5512 = vmatprep.subr.mxu0 0.0
        %5513 = vmatpush1.xpose.msra.mxu0 0.0
        %5514 = vmatprep.subr.mxu0 0.0
        %5515 = vmatpush1.xpose.msra.mxu0 0.0
        %5516 = vmatprep.subr.mxu0 0.0
        %5517 = vmatpush1.xpose.msra.mxu0 0.0
        %5518 = vmatprep.subr.mxu0 0.0
        %5519 = vmatpush1.xpose.msra.mxu0 0.0
        %5520 = vmatprep.subr.mxu0 0.0
        %5521 = vmatpush1.xpose.msra.mxu0 0.0
        %5522 = vmatprep.subr.mxu0 0.0
        %5523 = vmatpush1.xpose.msra.mxu0 0.0
        %5524 = vmatprep.subr.mxu0 0.0
        %5525 = vmatpush1.xpose.msra.mxu0 0.0
        %5526 = vmatprep.subr.mxu0 0.0
        %5527 = vmatpush1.xpose.msra.mxu0 0.0
        %5528 = vmatprep.subr.mxu0 0.0
        %5529 = vmatpush1.xpose.msra.mxu0 0.0
        %5530 = vmatprep.subr.mxu0 0.0
        %5531 = vmatpush1.xpose.msra.mxu0 0.0
        %5532 = vmatprep.subr.mxu0 0.0
        %5533 = vmatpush1.xpose.msra.mxu0 0.0
        %5534 = vmatprep.subr.mxu0 0.0
        %5535 = vmatpush1.xpose.msra.mxu0 0.0
        %5536 = vmatprep.subr.mxu0 0.0
        %5537 = vmatpush1.xpose.msra.mxu0 0.0
        %5538 = vmatprep.subr.mxu0 0.0
        %5539 = vmatpush1.xpose.msra.mxu0 0.0
        %5540 = vmatprep.subr.mxu0 0.0
        %5541 = vmatpush1.xpose.msra.mxu0 0.0
        %5542 = vmatprep.subr.mxu0 0.0
        %5543 = vmatpush1.xpose.msra.mxu0 0.0
        %5544 = vmatprep.subr.mxu0 0.0
        %5545 = vmatpush1.xpose.msra.mxu0 0.0
        %5546 = vmatprep.subr.mxu0 0.0
        %5547 = vmatpush1.xpose.msra.mxu0 0.0
        %5548 = vmatprep.subr.mxu0 0.0
        %5549 = vmatpush1.xpose.msra.mxu0 0.0
        %5550 = vmatprep.subr.mxu0 0.0
        %5551 = vmatpush1.xpose.msra.mxu0 0.0
        %5552 = vmatprep.subr.mxu0 0.0
        %5553 = vmatpush1.xpose.msra.mxu0 0.0
        %5554 = vmatprep.subr.mxu0 0.0
        %5555 = vmatpush1.xpose.msra.mxu0 0.0
        %5556 = vmatprep.subr.mxu0 0.0
        %5557 = vmatpush1.xpose.msra.mxu0 0.0
        %5558 = vmatprep.subr.mxu0 0.0
        %5559 = vmatpush1.xpose.msra.mxu0 0.0
        %5560 = vmatprep.subr.mxu0 0.0
        %5561 = vmatpush1.xpose.msra.mxu0 0.0
        %5562 = vmatprep.subr.mxu0 0.0
        %5563 = vmatpush1.xpose.msra.mxu0 0.0
        %5564 = vmatprep.subr.mxu0 0.0
        %5565 = vmatpush1.xpose.msra.mxu0 0.0
        %5566 = vmatprep.mubr.f32.mxu0 0.0
        %5567 = vmatmul.mubr.f32.gmra.mrb[0].mxu0 %v5496
        %v5568 = vpop.f32.mrb[0].mxu0
        %v5569 = vadd.f32 0.0, %v5568
        %v5570 = vpop.f32.mrb[0].mxu0
        %5571 = vdwg.mxu0
        %v5572 = vmul.f32 %v5569, 0.35355338
        %v5573 = vsel %vm2080, %v5572, -inf
        %5574 = vmax.xlane.f32.xlu0 %v5573
        %v5575 = vpop.xlane.xlu0 %5574
        %v5576 = vsub.f32 %v5572, %v5575
        %v5577 = vmul.f32 %v5576, 1.442695
        %v5578 = vpow.pop %v5577
        %v5579 = vsel %vm2080, %v5578, 0.0
        %5580 = vadd.xlane.f32.xlu0 %v5579
        %v5581 = vpop.xlane.xlu0 %5580
        %v5582 = vrcp.pop %v5581
        %v5583 = vmul.f32 %v5578, %v5582
        %5584 = vrot.lane.b32.xlu0 %v4747, 104
        %v5585 = vpop.permute.xlu0 %5584
        %5586 = vrot.lane.b32.xlu0 %v4752, 104
        %v5587 = vpop.permute.xlu0 %5586
        %v5591 = vsel %vm2080, %v5583, 0
        %5593 = vmatprep.subr.mxu0 0.0
        %5594 = vmatpush1.msra.mxu0 %v5585
        %5595 = vmatprep.subr.mxu0 0.0
        %5596 = vmatpush1.msra.mxu0 %v5587
        %5597 = vmatprep.subr.mxu0 0.0
        %5598 = vmatpush1.msra.mxu0 0.0
        %5599 = vmatprep.subr.mxu0 0.0
        %5600 = vmatpush1.msra.mxu0 0.0
        %5601 = vmatprep.subr.mxu0 0.0
        %5602 = vmatpush1.msra.mxu0 0.0
        %5603 = vmatprep.subr.mxu0 0.0
        %5604 = vmatpush1.msra.mxu0 0.0
        %5605 = vmatprep.subr.mxu0 0.0
        %5606 = vmatpush1.msra.mxu0 0.0
        %5607 = vmatprep.subr.mxu0 0.0
        %5608 = vmatpush1.msra.mxu0 0.0
        %5609 = vmatprep.subr.mxu0 0.0
        %5610 = vmatpush1.msra.mxu0 0.0
        %5611 = vmatprep.subr.mxu0 0.0
        %5612 = vmatpush1.msra.mxu0 0.0
        %5613 = vmatprep.subr.mxu0 0.0
        %5614 = vmatpush1.msra.mxu0 0.0
        %5615 = vmatprep.subr.mxu0 0.0
        %5616 = vmatpush1.msra.mxu0 0.0
        %5617 = vmatprep.subr.mxu0 0.0
        %5618 = vmatpush1.msra.mxu0 0.0
        %5619 = vmatprep.subr.mxu0 0.0
        %5620 = vmatpush1.msra.mxu0 0.0
        %5621 = vmatprep.subr.mxu0 0.0
        %5622 = vmatpush1.msra.mxu0 0.0
        %5623 = vmatprep.subr.mxu0 0.0
        %5624 = vmatpush1.msra.mxu0 0.0
        %5625 = vmatprep.subr.mxu0 0.0
        %5626 = vmatpush1.msra.mxu0 0.0
        %5627 = vmatprep.subr.mxu0 0.0
        %5628 = vmatpush1.msra.mxu0 0.0
        %5629 = vmatprep.subr.mxu0 0.0
        %5630 = vmatpush1.msra.mxu0 0.0
        %5631 = vmatprep.subr.mxu0 0.0
        %5632 = vmatpush1.msra.mxu0 0.0
        %5633 = vmatprep.subr.mxu0 0.0
        %5634 = vmatpush1.msra.mxu0 0.0
        %5635 = vmatprep.subr.mxu0 0.0
        %5636 = vmatpush1.msra.mxu0 0.0
        %5637 = vmatprep.subr.mxu0 0.0
        %5638 = vmatpush1.msra.mxu0 0.0
        %5639 = vmatprep.subr.mxu0 0.0
        %5640 = vmatpush1.msra.mxu0 0.0
        %5641 = vmatprep.subr.mxu0 0.0
        %5642 = vmatpush1.msra.mxu0 0.0
        %5643 = vmatprep.subr.mxu0 0.0
        %5644 = vmatpush1.msra.mxu0 0.0
        %5645 = vmatprep.subr.mxu0 0.0
        %5646 = vmatpush1.msra.mxu0 0.0
        %5647 = vmatprep.subr.mxu0 0.0
        %5648 = vmatpush1.msra.mxu0 0.0
        %5649 = vmatprep.subr.mxu0 0.0
        %5650 = vmatpush1.msra.mxu0 0.0
        %5651 = vmatprep.subr.mxu0 0.0
        %5652 = vmatpush1.msra.mxu0 0.0
        %5653 = vmatprep.subr.mxu0 0.0
        %5654 = vmatpush1.msra.mxu0 0.0
        %5655 = vmatprep.subr.mxu0 0.0
        %5656 = vmatpush1.msra.mxu0 0.0
        %5657 = vmatprep.mubr.f32.mxu0 0.0
        %5658 = vmatmul.mubr.f32.gmra.mrb[0].mxu0 %v5591
        %v5659 = vpop.f32.mrb[0].mxu0
        %v5660 = vadd.f32 0.0, %v5659
        %v5661 = vpop.f32.mrb[0].mxu0
        %5662 = vdwg.mxu0
        %v5664 = vsel %vm731, %v5660, 0
        %5666 = vmatprep.subr.mxu0 0.0
        %5667 = vmatpush1.msra.mxu0 %v4505
        %5668 = vmatprep.subr.mxu0 0.0
        %5669 = vmatpush1.msra.mxu0 0.0
        %5670 = vmatprep.subr.mxu0 0.0
        %5671 = vmatpush1.msra.mxu0 0.0
        %5672 = vmatprep.subr.mxu0 0.0
        %5673 = vmatpush1.msra.mxu0 0.0
        %5674 = vmatprep.subr.mxu0 0.0
        %5675 = vmatpush1.msra.mxu0 0.0
        %5676 = vmatprep.subr.mxu0 0.0
        %5677 = vmatpush1.msra.mxu0 0.0
        %5678 = vmatprep.subr.mxu0 0.0
        %5679 = vmatpush1.msra.mxu0 0.0
        %5680 = vmatprep.subr.mxu0 0.0
        %5681 = vmatpush1.msra.mxu0 0.0
        %5682 = vmatprep.subr.mxu0 0.0
        %5683 = vmatpush1.msra.mxu0 0.0
        %5684 = vmatprep.subr.mxu0 0.0
        %5685 = vmatpush1.msra.mxu0 0.0
        %5686 = vmatprep.subr.mxu0 0.0
        %5687 = vmatpush1.msra.mxu0 0.0
        %5688 = vmatprep.subr.mxu0 0.0
        %5689 = vmatpush1.msra.mxu0 0.0
        %5690 = vmatprep.subr.mxu0 0.0
        %5691 = vmatpush1.msra.mxu0 0.0
        %5692 = vmatprep.subr.mxu0 0.0
        %5693 = vmatpush1.msra.mxu0 0.0
        %5694 = vmatprep.subr.mxu0 0.0
        %5695 = vmatpush1.msra.mxu0 0.0
        %5696 = vmatprep.subr.mxu0 0.0
        %5697 = vmatpush1.msra.mxu0 0.0
        %5698 = vmatprep.subr.mxu0 0.0
        %5699 = vmatpush1.msra.mxu0 0.0
        %5700 = vmatprep.subr.mxu0 0.0
        %5701 = vmatpush1.msra.mxu0 0.0
        %5702 = vmatprep.subr.mxu0 0.0
        %5703 = vmatpush1.msra.mxu0 0.0
        %5704 = vmatprep.subr.mxu0 0.0
        %5705 = vmatpush1.msra.mxu0 0.0
        %5706 = vmatprep.subr.mxu0 0.0
        %5707 = vmatpush1.msra.mxu0 0.0
        %5708 = vmatprep.subr.mxu0 0.0
        %5709 = vmatpush1.msra.mxu0 0.0
        %5710 = vmatprep.subr.mxu0 0.0
        %5711 = vmatpush1.msra.mxu0 0.0
        %5712 = vmatprep.subr.mxu0 0.0
        %5713 = vmatpush1.msra.mxu0 0.0
        %5714 = vmatprep.subr.mxu0 0.0
        %5715 = vmatpush1.msra.mxu0 0.0
        %5716 = vmatprep.subr.mxu0 0.0
        %5717 = vmatpush1.msra.mxu0 0.0
        %5718 = vmatprep.subr.mxu0 0.0
        %5719 = vmatpush1.msra.mxu0 0.0
        %5720 = vmatprep.subr.mxu0 0.0
        %5721 = vmatpush1.msra.mxu0 0.0
        %5722 = vmatprep.subr.mxu0 0.0
        %5723 = vmatpush1.msra.mxu0 0.0
        %5724 = vmatprep.subr.mxu0 0.0
        %5725 = vmatpush1.msra.mxu0 0.0
        %5726 = vmatprep.subr.mxu0 0.0
        %5727 = vmatpush1.msra.mxu0 0.0
        %5728 = vmatprep.subr.mxu0 0.0
        %5729 = vmatpush1.msra.mxu0 0.0
        %5730 = vmatprep.mubr.f32.mxu0 0.0
        %5731 = vmatmul.mubr.f32.gmra.mrb[0].mxu0 %v5664
        %v5732 = vpop.f32.mrb[0].mxu0
        %v5733 = vadd.f32 0.0, %v5732
        %v5734 = vpop.f32.mrb[0].mxu0
        %5735 = vdwg.mxu0
        %v5736 = vadd.f32 %v5488, %v5733
        %v5737 = vadd.f32 %v5489, %v5583
        %v5739 = vlaneseq
        %v5740 = vshrl.u32 %v5739, 7
        %v5741 = vsub.s32 0, %v5740
        %v5742 = vrot.slane %v4513, %v5741
        %v5744 = vadd.f32 %v5736, %v5742
        %v5745 = vmul.f32 %v5737, 0.25
        %v5746 = vadd.f32 %v4454, %v5744
        %s5747 = scalar_lea.vmem %s4, 5
        %v5748 = vld [vmem:[%s5747] sm:$0x1]
        %s5749 = scalar_lea.vmem %s5, 5
        %v5750 = vld [vmem:[%s5749] sm:$0x1]
        %v5751 = vsel %vm445, %v5746, 0.0
        %5752 = vadd.xlane.f32.xlu0 %v5751
        %v5753 = vpop.xlane.xlu0 %5752
        %v5754 = vmul.f32 %v5753, %v449
        %v5755 = vsub.f32 %v5746, %v5754
        %v5756 = vmul.f32 %v5755, %v5755
        %v5757 = vsel %vm445, %v5756, 0.0
        %5758 = vadd.xlane.f32.xlu0 %v5757
        %v5759 = vpop.xlane.xlu0 %5758
        %v5760 = vmul.f32 %v5759, %v449
        %v5761 = vadd.f32 %v5760, 1e-05
        %v5762 = vrsqrt.pop %v5761
        %v5763 = vmul.f32 %v5755, %v5762
        %v5765 = vlaneseq
        %v5766 = vshrl.u32 %v5765, 7
        %v5767 = vsub.s32 0, %v5766
        %v5768 = vrot.slane %v5748, %v5767
        %v5770 = vmul.f32 %v5763, %v5768
        %v5772 = vlaneseq
        %v5773 = vshrl.u32 %v5772, 7
        %v5774 = vsub.s32 0, %v5773
        %v5775 = vrot.slane %v5750, %v5774
        %v5777 = vadd.f32 %v5770, %v5775
        %s5778 = scalar_lea.vmem %s6, 32
        %v5779 = vld [vmem:[%s5778] sm:$0xff]
        %v5780 = vld [vmem:[%s5778 + $0x8] sm:$0xff]
        %v5781 = vld [vmem:[%s5778 + $0x10] sm:$0xff]
        %v5782 = vld [vmem:[%s5778 + $0x18] sm:$0xff]
        %s5783 = scalar_lea.vmem %s7, 1
        %v5784 = vld [vmem:[%s5783] sm:$0x1]
        %v5786 = vlaneseq
        %v5787 = vshrl.u32 %v5786, 7
        %v5788 = vsub.s32 0, %v5787
        %v5789 = vrot.slane %v5784, %v5788
        %v5792 = vsel %vm445, %v5777, 0
        %5794 = vmatprep.subr.mxu0 0.0
        %5795 = vmatpush1.msra.mxu0 %v5779
        %5796 = vmatprep.subr.mxu0 0.0
        %5797 = vmatpush1.msra.mxu0 %v5780
        %5798 = vmatprep.subr.mxu0 0.0
        %5799 = vmatpush1.msra.mxu0 %v5781
        %5800 = vmatprep.subr.mxu0 0.0
        %5801 = vmatpush1.msra.mxu0 %v5782
        %5802 = vmatprep.subr.mxu0 0.0
        %5803 = vmatpush1.msra.mxu0 0.0
        %5804 = vmatprep.subr.mxu0 0.0
        %5805 = vmatpush1.msra.mxu0 0.0
        %5806 = vmatprep.subr.mxu0 0.0
        %5807 = vmatpush1.msra.mxu0 0.0
        %5808 = vmatprep.subr.mxu0 0.0
        %5809 = vmatpush1.msra.mxu0 0.0
        %5810 = vmatprep.subr.mxu0 0.0
        %5811 = vmatpush1.msra.mxu0 0.0
        %5812 = vmatprep.subr.mxu0 0.0
        %5813 = vmatpush1.msra.mxu0 0.0
        %5814 = vmatprep.subr.mxu0 0.0
        %5815 = vmatpush1.msra.mxu0 0.0
        %5816 = vmatprep.subr.mxu0 0.0
        %5817 = vmatpush1.msra.mxu0 0.0
        %5818 = vmatprep.subr.mxu0 0.0
        %5819 = vmatpush1.msra.mxu0 0.0
        %5820 = vmatprep.subr.mxu0 0.0
        %5821 = vmatpush1.msra.mxu0 0.0
        %5822 = vmatprep.subr.mxu0 0.0
        %5823 = vmatpush1.msra.mxu0 0.0
        %5824 = vmatprep.subr.mxu0 0.0
        %5825 = vmatpush1.msra.mxu0 0.0
        %5826 = vmatprep.subr.mxu0 0.0
        %5827 = vmatpush1.msra.mxu0 0.0
        %5828 = vmatprep.subr.mxu0 0.0
        %5829 = vmatpush1.msra.mxu0 0.0
        %5830 = vmatprep.subr.mxu0 0.0
        %5831 = vmatpush1.msra.mxu0 0.0
        %5832 = vmatprep.subr.mxu0 0.0
        %5833 = vmatpush1.msra.mxu0 0.0
        %5834 = vmatprep.subr.mxu0 0.0
        %5835 = vmatpush1.msra.mxu0 0.0
        %5836 = vmatprep.subr.mxu0 0.0
        %5837 = vmatpush1.msra.mxu0 0.0
        %5838 = vmatprep.subr.mxu0 0.0
        %5839 = vmatpush1.msra.mxu0 0.0
        %5840 = vmatprep.subr.mxu0 0.0
        %5841 = vmatpush1.msra.mxu0 0.0
        %5842 = vmatprep.subr.mxu0 0.0
        %5843 = vmatpush1.msra.mxu0 0.0
        %5844 = vmatprep.subr.mxu0 0.0
        %5845 = vmatpush1.msra.mxu0 0.0
        %5846 = vmatprep.subr.mxu0 0.0
        %5847 = vmatpush1.msra.mxu0 0.0
        %5848 = vmatprep.subr.mxu0 0.0
        %5849 = vmatpush1.msra.mxu0 0.0
        %5850 = vmatprep.subr.mxu0 0.0
        %5851 = vmatpush1.msra.mxu0 0.0
        %5852 = vmatprep.subr.mxu0 0.0
        %5853 = vmatpush1.msra.mxu0 0.0
        %5854 = vmatprep.subr.mxu0 0.0
        %5855 = vmatpush1.msra.mxu0 0.0
        %5856 = vmatprep.subr.mxu0 0.0
        %5857 = vmatpush1.msra.mxu0 0.0
        %5858 = vmatprep.mubr.f32.mxu0 0.0
        %5859 = vmatmul.mubr.f32.gmra.mrb[0].mxu0 %v5792
        %v5860 = vpop.f32.mrb[0].mxu0
        %v5861 = vadd.f32 %v5789, %v5860
        %v5862 = vpop.f32.mrb[0].mxu0
        %5863 = vdwg.mxu0
        %v5864 = vmul.f32 %v5861, 0.5
        %v5865 = vmul.f32 %v5861, 0.044715
        %v5866 = vmul.f32 %v5865, %v5861
        %v5867 = vmul.f32 %v5866, %v5861
        %v5868 = vadd.f32 %v5861, %v5867
        %v5869 = vmul.f32 %v5868, 0.7978846
        %v5870 = vtanh.pop %v5869
        %v5871 = vadd.f32 %v5870, 1.0
        %v5872 = vmul.f32 %v5864, %v5871
        %s5873 = scalar_lea.vmem %s8, 64
        %v5874 = vld [vmem:[%s5873] sm:$0xff]
        %v5875 = vld [vmem:[%s5873 + $0x8] sm:$0xff]
        %v5876 = vld [vmem:[%s5873 + $0x10] sm:$0xff]
        %v5877 = vld [vmem:[%s5873 + $0x18] sm:$0xff]
        %v5878 = vld [vmem:[%s5873 + $0x20] sm:$0xff]
        %v5879 = vld [vmem:[%s5873 + $0x28] sm:$0xff]
        %v5880 = vld [vmem:[%s5873 + $0x30] sm:$0xff]
        %v5881 = vld [vmem:[%s5873 + $0x38] sm:$0xff]
        %v5883 = vsel %vm3120, %v5872, 0
        %5885 = vmatprep.subr.mxu0 0.0
        %5886 = vmatpush1.msra.mxu0 %v5874
        %5887 = vmatprep.subr.mxu0 0.0
        %5888 = vmatpush1.msra.mxu0 %v5875
        %5889 = vmatprep.subr.mxu0 0.0
        %5890 = vmatpush1.msra.mxu0 %v5876
        %5891 = vmatprep.subr.mxu0 0.0
        %5892 = vmatpush1.msra.mxu0 %v5877
        %5893 = vmatprep.subr.mxu0 0.0
        %5894 = vmatpush1.msra.mxu0 %v5878
        %5895 = vmatprep.subr.mxu0 0.0
        %5896 = vmatpush1.msra.mxu0 %v5879
        %5897 = vmatprep.subr.mxu0 0.0
        %5898 = vmatpush1.msra.mxu0 %v5880
        %5899 = vmatprep.subr.mxu0 0.0
        %5900 = vmatpush1.msra.mxu0 %v5881
        %5901 = vmatprep.subr.mxu0 0.0
        %5902 = vmatpush1.msra.mxu0 0.0
        %5903 = vmatprep.subr.mxu0 0.0
        %5904 = vmatpush1.msra.mxu0 0.0
        %5905 = vmatprep.subr.mxu0 0.0
        %5906 = vmatpush1.msra.mxu0 0.0
        %5907 = vmatprep.subr.mxu0 0.0
        %5908 = vmatpush1.msra.mxu0 0.0
        %5909 = vmatprep.subr.mxu0 0.0
        %5910 = vmatpush1.msra.mxu0 0.0
        %5911 = vmatprep.subr.mxu0 0.0
        %5912 = vmatpush1.msra.mxu0 0.0
        %5913 = vmatprep.subr.mxu0 0.0
        %5914 = vmatpush1.msra.mxu0 0.0
        %5915 = vmatprep.subr.mxu0 0.0
        %5916 = vmatpush1.msra.mxu0 0.0
        %5917 = vmatprep.subr.mxu0 0.0
        %5918 = vmatpush1.msra.mxu0 0.0
        %5919 = vmatprep.subr.mxu0 0.0
        %5920 = vmatpush1.msra.mxu0 0.0
        %5921 = vmatprep.subr.mxu0 0.0
        %5922 = vmatpush1.msra.mxu0 0.0
        %5923 = vmatprep.subr.mxu0 0.0
        %5924 = vmatpush1.msra.mxu0 0.0
        %5925 = vmatprep.subr.mxu0 0.0
        %5926 = vmatpush1.msra.mxu0 0.0
        %5927 = vmatprep.subr.mxu0 0.0
        %5928 = vmatpush1.msra.mxu0 0.0
        %5929 = vmatprep.subr.mxu0 0.0
        %5930 = vmatpush1.msra.mxu0 0.0
        %5931 = vmatprep.subr.mxu0 0.0
        %5932 = vmatpush1.msra.mxu0 0.0
        %5933 = vmatprep.subr.mxu0 0.0
        %5934 = vmatpush1.msra.mxu0 0.0
        %5935 = vmatprep.subr.mxu0 0.0
        %5936 = vmatpush1.msra.mxu0 0.0
        %5937 = vmatprep.subr.mxu0 0.0
        %5938 = vmatpush1.msra.mxu0 0.0
        %5939 = vmatprep.subr.mxu0 0.0
        %5940 = vmatpush1.msra.mxu0 0.0
        %5941 = vmatprep.subr.mxu0 0.0
        %5942 = vmatpush1.msra.mxu0 0.0
        %5943 = vmatprep.subr.mxu0 0.0
        %5944 = vmatpush1.msra.mxu0 0.0
        %5945 = vmatprep.subr.mxu0 0.0
        %5946 = vmatpush1.msra.mxu0 0.0
        %5947 = vmatprep.subr.mxu0 0.0
        %5948 = vmatpush1.msra.mxu0 0.0
        %5949 = vmatprep.mubr.f32.mxu0 0.0
        %5950 = vmatmul.mubr.f32.gmra.mrb[0].mxu0 %v5883
        %v5951 = vpop.f32.mrb[0].mxu0
        %v5952 = vadd.f32 0.0, %v5951
        %v5953 = vpop.f32.mrb[0].mxu0
        %5954 = vdwg.mxu0
        %v5955 = vadd.f32 %v5746, %v5952
        %s5956 = scalar_lea.vmem %s9, 1
        %v5957 = vld [vmem:[%s5956] sm:$0x1]
        %v5959 = vlaneseq
        %v5960 = vshrl.u32 %v5959, 7
        %v5961 = vsub.s32 0, %v5960
        %v5962 = vrot.slane %v5957, %v5961
        %v5964 = vadd.f32 %v5955, %v5962
        %v5965 = vld [vmem:[%s10] sm:$0x1]
        %s5966 = scalar_lea.vmem %s10, 1
        %v5967 = vld [vmem:[%s5966] sm:$0x1]
        %v5968 = vsel %vm445, %v5964, 0.0
        %5969 = vadd.xlane.f32.xlu0 %v5968
        %v5970 = vpop.xlane.xlu0 %5969
        %v5971 = vmul.f32 %v5970, %v449
        %v5972 = vsub.f32 %v5964, %v5971
        %v5973 = vmul.f32 %v5972, %v5972
        %v5974 = vsel %vm445, %v5973, 0.0
        %5975 = vadd.xlane.f32.xlu0 %v5974
        %v5976 = vpop.xlane.xlu0 %5975
        %v5977 = vmul.f32 %v5976, %v449
        %v5978 = vadd.f32 %v5977, 1e-12
        %v5979 = vrsqrt.pop %v5978
        %v5980 = vmul.f32 %v5972, %v5979
        %v5982 = vlaneseq
        %v5983 = vshrl.u32 %v5982, 7
        %v5984 = vsub.s32 0, %v5983
        %v5985 = vrot.slane %v5965, %v5984
        %v5987 = vmul.f32 %v5980, %v5985
        %v5989 = vlaneseq
        %v5990 = vshrl.u32 %v5989, 7
        %v5991 = vsub.s32 0, %v5990
        %v5992 = vrot.slane %v5967, %v5991
        %v5994 = vadd.f32 %v5987, %v5992
        %5995 = vst.msk [vmem:[%s423] sm:$0xff] %vm445, %v5994
        %5996 = vst.msk [vmem:[%s430] sm:$0xff] %vm2080, %v5745
        %s5997 = sand.u32 %s279, 1
        %s5998 = scalar_lea.sflag [#allocation3], %s5997
        %s5999 = sand.u32 %s279, 1
        %s6000 = smul.addr %s5999, 8
        %s6001 = scalar_lea.vmem [#allocation2], %s6000
        %s6002 = sand.u32 %s305, 1
        %s6003 = scalar_lea.sflag [#allocation5], %s6002
        %s6004 = sand.u32 %s305, 1
        %s6005 = smul.addr %s6004, 8
        %s6006 = scalar_lea.vmem [#allocation4], %s6005
        // Predicated region
        $region65: #{denoise_decoder_forward.1} parent=63 // pred_check
          %p6007 = pneg %p289
        $region66: #{denoise_decoder_forward.1} parent=63 // pred_check_branch
          %6009 = sbr.rel (%p6007) target = $region68
        $region67: #{denoise_decoder_forward.1} parent=63 // pred_region
          %s6011 = ssub.s32 128, 128
          %6012 = vsyncadd %s5998, %s6011
          %s6013 = smul.addr %s30, 128
          %s6014 = scalar_lea.hbm %s11, %s6013
          %s6016 = sshll.u32 %s6001, 4
          %s6017 = int_to_ptr.vmem [resolvable:$true] %s6016
          %6019 = dma.vmem_to_hbm [thread:$0]  %s6017, 128, %s6014, %s5998
        $region68: #{denoise_decoder_forward.1} parent=63 // pred_fallthru
          _
        // Predicated region
        $region69: #{denoise_decoder_forward.1} parent=63 // pred_check
          %p6020 = pneg %p315
        $region70: #{denoise_decoder_forward.1} parent=63 // pred_check_branch
          %6022 = sbr.rel (%p6020) target = $region72
        $region71: #{denoise_decoder_forward.1} parent=63 // pred_region
          %s6024 = ssub.s32 128, 128
          %6025 = vsyncadd %s6003, %s6024
          %s6026 = smul.addr %s30, 128
          %s6027 = scalar_lea.hbm %s12, %s6026
          %s6029 = sshll.u32 %s6006, 4
          %s6030 = int_to_ptr.vmem [resolvable:$true] %s6029
          %6032 = dma.vmem_to_hbm [thread:$0]  %s6030, 128, %s6027, %s6003
        $region72: #{denoise_decoder_forward.1} parent=63 // pred_fallthru
          _
      $region64: #{denoise_decoder_forward.1} parent=5 // pred_fallthru
        _
      %p6033 = scmp.le.s32.totalorder 2, %s25
      // Predicated region
      $region73: #{denoise_decoder_forward.1} parent=5 // pred_check
        %p6034 = pneg %p6033
      $region74: #{denoise_decoder_forward.1} parent=5 // pred_check_branch
        %6036 = sbr.rel (%p6034) target = $region76
      $region75: #{denoise_decoder_forward.1} parent=5 // pred_region
        %s6037 = ssub.s32 %s25, 2
        // Predicated region
        $region77: #{denoise_decoder_forward.1} parent=75 // pred_check
          %p6038 = pneg %p295
        $region78: #{denoise_decoder_forward.1} parent=75 // pred_check_branch
          %6040 = sbr.rel (%p6038) target = $region80
        $region79: #{denoise_decoder_forward.1} parent=75 // pred_region
          %s6041 = sand.u32 %s280, 1
          %s6042 = scalar_lea.sflag [#allocation3], %s6041
          %s6043 = sand.u32 %s280, 1
          %s6044 = smul.addr %s6043, 8
          %s6045 = scalar_lea.vmem [#allocation2], %s6044
          %6046 = dma.done %s6042, 128
        $region80: #{denoise_decoder_forward.1} parent=75 // pred_fallthru
          _
        // Predicated region
        $region81: #{denoise_decoder_forward.1} parent=75 // pred_check
          %p6047 = pneg %p321
        $region82: #{denoise_decoder_forward.1} parent=75 // pred_check_branch
          %6049 = sbr.rel (%p6047) target = $region84
        $region83: #{denoise_decoder_forward.1} parent=75 // pred_region
          %s6050 = sand.u32 %s306, 1
          %s6051 = scalar_lea.sflag [#allocation5], %s6050
          %s6052 = sand.u32 %s306, 1
          %s6053 = smul.addr %s6052, 8
          %s6054 = scalar_lea.vmem [#allocation4], %s6053
          %6055 = dma.done %s6051, 128
        $region84: #{denoise_decoder_forward.1} parent=75 // pred_fallthru
          _
      $region76: #{denoise_decoder_forward.1} parent=5 // pred_fallthru
        _
    $region6: #{denoise_decoder_forward.1} parent=1 // loop_footer
      %s29 = sadd.s32 1, %s25
    $region7: #{denoise_decoder_forward.1} parent=1 // loop_footer_branch
      %24 = sbr.rel target = $region3
    $region8: #{denoise_decoder_forward.1} parent=1 // loop_exit
      _
    %6056 = vsyncpa [#allocation3], 1
    %s6057 = scalar_lea.sflag [#allocation3], 1
    %6058 = vsyncpa %s6057, 1
    %6059 = vsyncpa [#allocation5], 1
    %s6060 = scalar_lea.sflag [#allocation5], 1
    %6061 = vsyncpa %s6060, 1

</llo_original>
